<compile_context>
chip_gen: v7x
topology: tpu7x:2x2x1
jax: 0.10.0
libtpu: 0.0.40
codegen_flags: <defaults>
</compile_context>

<pallas_src>
import jax
import jax.numpy as jnp
from jax.experimental import pallas as pl
from jax.experimental.pallas import tpu as pltpu

_BN_EPS = 1e-5
_LANE = 128
COMPUTE_DTYPE = jnp.bfloat16     # MXU operand dtype (bf16 feeds v6e/v7x MXU at full rate)


# ---------------------------------------------------------------------------
# helpers
# ---------------------------------------------------------------------------
def _round_up(x, m):
    return ((x + m - 1) // m) * m


def _largest_divisor_leq(n, cap):
    for d in range(min(n, max(1, cap)), 0, -1):
        if n % d == 0:
            return d
    return 1


def _pad_last(x, target):
    return jnp.pad(x, [(0, 0)] * (x.ndim - 1) + [(0, target - x.shape[-1])])


# ---------------------------------------------------------------------------
# Pallas kernels
# ---------------------------------------------------------------------------
def _up_matmul_kernel(x_ref, w_ref, b_ref, o_ref):
    """ConvTranspose2d(k=2,s=2) hot path: (TILE_M, Cin) @ (Cin, 4*Cp) + bias."""
    acc = jnp.dot(x_ref[...], w_ref[...], preferred_element_type=jnp.float32)
    o_ref[...] = (acc + b_ref[...]).astype(o_ref.dtype)


def _conv3x3_stats_kernel(xpad_ref, w_ref, b_ref, o_ref, stat_ref):
    """3x3 same-conv with in-kernel im2col (9 shifted MXU matmuls) + bias.

    xpad_ref : (1, Ho+2, Wo+2, Cin)  zero-padded input, resident per sample
    w_ref    : (9, Cin, Cp)          resident weights, tap-major (dy*3+dx)
    b_ref    : (1, Cp)               resident bias
    o_ref    : (1, TILE_H, Wo, Cp)   raw (pre-BN) conv output, f32
    stat_ref : (1, 1, 2, Cp)         per-tile BN partials: row0=sum, row1=sum_sq
    """
    tile_h, wo, cp = o_ref.shape[1], o_ref.shape[2], o_ref.shape[3]
    cin = xpad_ref.shape[3]
    rows = tile_h * wo
    row0 = pl.program_id(1) * tile_h

    acc = jnp.zeros((rows, cp), jnp.float32)
    for dy in range(3):
        for dx in range(3):
            slab = xpad_ref[0, pl.ds(row0 + dy, tile_h), pl.ds(dx, wo), :]
            acc = acc + jnp.dot(slab.reshape(rows, cin), w_ref[dy * 3 + dx],
                                preferred_element_type=jnp.float32)
    acc = acc + b_ref[...]
    o_ref[0] = acc.reshape(tile_h, wo, cp).astype(o_ref.dtype)

    s1 = jnp.sum(acc, axis=0, keepdims=True)
    s2 = jnp.sum(acc * acc, axis=0, keepdims=True)
    stat_ref[0, 0] = jnp.concatenate([s1, s2], axis=0)


def _bn_relu_kernel(x_ref, scale_ref, shift_ref, o_ref):
    """Apply folded BatchNorm (scale/shift) + ReLU on a row tile."""
    h = x_ref[...] * scale_ref[...] + shift_ref[...]
    o_ref[...] = jnp.maximum(h, 0.0).astype(o_ref.dtype)


def _bn_relu_emb_kernel(x_ref, scale_ref, shift_ref, temb_ref, o_ref):
    """Folded BatchNorm + ReLU + per-sample time-embedding add (broadcast in-kernel)."""
    h = x_ref[...] * scale_ref[...] + shift_ref[...]
    h = jnp.maximum(h, 0.0) + temb_ref[...]
    o_ref[...] = h.astype(o_ref.dtype)


# ---------------------------------------------------------------------------
# pallas_call wrappers
# ---------------------------------------------------------------------------
def _up_matmul(x2d, w2d, b2d, tile_m):
    m, k = x2d.shape
    ncols = w2d.shape[1]
    return pl.pallas_call(
        _up_matmul_kernel,
        out_shape=jax.ShapeDtypeStruct((m, ncols), jnp.float32),
        grid=(m // tile_m,),
        in_specs=[
            pl.BlockSpec((tile_m, k), lambda i: (i, 0)),
            pl.BlockSpec((k, ncols), lambda i: (0, 0)),   # weights resident
            pl.BlockSpec((1, ncols), lambda i: (0, 0)),   # bias resident
        ],
        out_specs=pl.BlockSpec((tile_m, ncols), lambda i: (i, 0)),
        compiler_params=pltpu.CompilerParams(dimension_semantics=("parallel",)),
    )(x2d, w2d, b2d)


def _conv3x3_with_stats(xpad, w9, bias, tile_h):
    n, hp, wp, cin = xpad.shape
    ho, wo = hp - 2, wp - 2
    cp = w9.shape[-1]
    hb = ho // tile_h
    return pl.pallas_call(
        _conv3x3_stats_kernel,
        out_shape=(
            jax.ShapeDtypeStruct((n, ho, wo, cp), jnp.float32),
            jax.ShapeDtypeStruct((n, hb, 2, cp), jnp.float32),
        ),
        grid=(n, hb),
        in_specs=[
            pl.BlockSpec((1, hp, wp, cin), lambda i, j: (i, 0, 0, 0)),  # per-sample resident
            pl.BlockSpec((9, cin, cp), lambda i, j: (0, 0, 0)),         # weights resident
            pl.BlockSpec((1, cp), lambda i, j: (0, 0)),                 # bias resident
        ],
        out_specs=(
            pl.BlockSpec((1, tile_h, wo, cp), lambda i, j: (i, j, 0, 0)),
            pl.BlockSpec((1, 1, 2, cp), lambda i, j: (i, j, 0, 0)),
        ),
        compiler_params=pltpu.CompilerParams(
            dimension_semantics=("parallel", "parallel")),
    )(xpad, w9, bias)


def _bn_relu(x, scale, shift, tile_h, out_dtype):
    n, ho, wo, cp = x.shape
    hb = ho // tile_h
    blk = pl.BlockSpec((1, tile_h, wo, cp), lambda i, j: (i, j, 0, 0))
    vec = pl.BlockSpec((1, cp), lambda i, j: (0, 0))
    return pl.pallas_call(
        _bn_relu_kernel,
        out_shape=jax.ShapeDtypeStruct((n, ho, wo, cp), out_dtype),
        grid=(n, hb),
        in_specs=[blk, vec, vec],
        out_specs=blk,
        compiler_params=pltpu.CompilerParams(
            dimension_semantics=("parallel", "parallel")),
    )(x, scale, shift)


def _bn_relu_emb(x, scale, shift, temb3, tile_h, out_dtype):
    n, ho, wo, cp = x.shape
    hb = ho // tile_h
    blk = pl.BlockSpec((1, tile_h, wo, cp), lambda i, j: (i, j, 0, 0))
    vec = pl.BlockSpec((1, cp), lambda i, j: (0, 0))
    emb = pl.BlockSpec((1, 1, cp), lambda i, j: (i, 0, 0))   # per-sample row, broadcast in-kernel
    return pl.pallas_call(
        _bn_relu_emb_kernel,
        out_shape=jax.ShapeDtypeStruct((n, ho, wo, cp), out_dtype),
        grid=(n, hb),
        in_specs=[blk, vec, vec, emb],
        out_specs=blk,
        compiler_params=pltpu.CompilerParams(
            dimension_semantics=("parallel", "parallel")),
    )(x, scale, shift, temb3)


def _fold_bn(stats, gamma_p, beta_p, count):
    """(N, HB, 2, Cp) partial sums -> folded per-channel scale/shift (training-mode BN)."""
    s1 = jnp.sum(stats[:, :, 0, :], axis=(0, 1))
    s2 = jnp.sum(stats[:, :, 1, :], axis=(0, 1))
    mean = s1 / count
    var = jnp.maximum(s2 / count - mean * mean, 0.0)     # biased batch variance
    scale = gamma_p * jax.lax.rsqrt(var + _BN_EPS)
    shift = beta_p - mean * scale
    return scale.reshape(1, -1).astype(jnp.float32), shift.reshape(1, -1).astype(jnp.float32)


# ---------------------------------------------------------------------------
# Forward pass
# ---------------------------------------------------------------------------
@jax.jit
def decoder_block_forward(params, inputs_nchw, skip_nchw, time_idx):
    """Mirrors decoder_block.forward(inputs, skip, time) of the PyTorch module."""
    x = jnp.transpose(inputs_nchw, (0, 2, 3, 1)).astype(jnp.float32)   # (N,H,W,Cin)
    s = jnp.transpose(skip_nchw, (0, 2, 3, 1)).astype(jnp.float32)     # (N,2H,2W,Cout)
    n, h, w, c_in = x.shape
    c_out = params["up_b"].shape[0]
    cp = _round_up(c_out, _LANE)                                       # lane-dense channels
    ho, wo = 2 * h, 2 * w

    # --- self.up : ConvTranspose2d(in_c, out_c, k=2, s=2) as a tiled matmul ---
    # torch weight (Cin, Cout, 2, 2); columns ordered (di, dj, co_pad), co fastest.
    wup = jnp.transpose(params["up_w"], (0, 2, 3, 1))                  # (Cin,2,2,Cout)
    wup = _pad_last(wup, cp).reshape(c_in, 4 * cp).astype(COMPUTE_DTYPE)
    bup = jnp.tile(_pad_last(params["up_b"], cp), 4).reshape(1, 4 * cp)
    m1 = n * h * w
    tile_m = _largest_divisor_leq(m1, 256)
    up = _up_matmul(x.reshape(m1, c_in).astype(COMPUTE_DTYPE), wup, bup, tile_m)
    # TODO(synk): the 2x2 pixel-interleave of the up output is still XLA glue (one HBM copy).
    up = up.reshape(n, h, w, 2, 2, cp)[..., :c_out]
    up = up.transpose(0, 1, 3, 2, 4, 5).reshape(n, ho, wo, c_out)

    # --- torch.cat([up, skip], dim=1) -> NHWC channel concat + spatial zero pad ---
    xc = jnp.concatenate([up, s], axis=-1)                             # (N,Ho,Wo,2*Cout)
    xc_pad = jnp.pad(xc, ((0, 0), (1, 1), (1, 1), (0, 0))).astype(COMPUTE_DTYPE)

    tile_h = _largest_divisor_leq(ho, max(1, 256 // wo))               # ~256 rows per tile
    count = jnp.float32(n * ho * wo)

    # --- conv1 (+bias) with in-kernel im2col; emits partial BN statistics ---
    w1 = jnp.transpose(params["c1_w"], (2, 3, 1, 0)).reshape(9, 2 * c_out, c_out)
    w1 = _pad_last(w1, cp).astype(COMPUTE_DTYPE)
    b1 = _pad_last(params["c1_b"], cp).reshape(1, cp)
    raw1, st1 = _conv3x3_with_stats(xc_pad, w1, b1, tile_h)
    sc1, sh1 = _fold_bn(st1, _pad_last(params["bn1_g"], cp),
                        _pad_last(params["bn1_b"], cp), count)
    h1 = _bn_relu(raw1, sc1, sh1, tile_h, COMPUTE_DTYPE)               # (N,Ho,Wo,Cp) bf16

    # --- conv2 (+bias) + BN2 + ReLU + per-sample time-embedding add ---
    h1_pad = jnp.pad(h1, ((0, 0), (1, 1), (1, 1), (0, 0)))
    w2 = jnp.transpose(params["c2_w"], (2, 3, 1, 0)).reshape(9, c_out, c_out)
    w2 = jnp.pad(w2, ((0, 0), (0, cp - c_out), (0, cp - c_out))).astype(COMPUTE_DTYPE)
    b2 = _pad_last(params["c2_b"], cp).reshape(1, cp)
    raw2, st2 = _conv3x3_with_stats(h1_pad, w2, b2, tile_h)
    sc2, sh2 = _fold_bn(st2, _pad_last(params["bn2_g"], cp),
                        _pad_last(params["bn2_b"], cp), count)
    temb3 = _pad_last(params["emb"][time_idx], cp).astype(jnp.float32).reshape(n, 1, cp)
    out = _bn_relu_emb(raw2, sc2, sh2, temb3, tile_h, jnp.float32)     # (N,Ho,Wo,Cp)

    return jnp.transpose(out[..., :c_out], (0, 3, 1, 2))               # back to NCHW


# ---------------------------------------------------------------------------
# Pure-JAX reference (f32) for a sanity check
# ---------------------------------------------------------------------------
def _conv3x3_ref(x, w, b):
    y = jax.lax.conv_general_dilated(x, w, window_strides=(1, 1),
                                     padding=((1, 1), (1, 1)),
                                     dimension_numbers=("NCHW", "OIHW", "NCHW"))
    return y + b[None, :, None, None]


def _bn_ref(x, g, b):
    mean = x.mean(axis=(0, 2, 3), keepdims=True)
    var = x.var(axis=(0, 2, 3), keepdims=True)
    return (x - mean) * jax.lax.rsqrt(var + _BN_EPS) * g[None, :, None, None] \
        + b[None, :, None, None]


def _reference_forward(params, inputs, skip, time_idx):
    n, _, h, w = inputs.shape
    co = params["up_b"].shape[0]
    up = jnp.einsum("nchw,cdij->ndhiwj", inputs, params["up_w"]).reshape(n, co, 2 * h, 2 * w)
    up = up + params["up_b"][None, :, None, None]
    x = jnp.concatenate([up, skip], axis=1)
    x = jnp.maximum(_bn_ref(_conv3x3_ref(x, params["c1_w"], params["c1_b"]),
                            params["bn1_g"], params["bn1_b"]), 0.0)
    x = jnp.maximum(_bn_ref(_conv3x3_ref(x, params["c2_w"], params["c2_b"]),
                            params["bn2_g"], params["bn2_b"]), 0.0)
    return x + params["emb"][time_idx][:, :, None, None]


# ---------------------------------------------------------------------------
# Params / demo
# ---------------------------------------------------------------------------
def init_params(key, in_c, out_c, time_steps):
    ks = jax.random.split(key, 9)
    f32 = jnp.float32
    return {
        "up_w": 0.1 * jax.random.normal(ks[0], (in_c, out_c, 2, 2), f32),
        "up_b": 0.1 * jax.random.normal(ks[1], (out_c,), f32),
        "c1_w": 0.1 * jax.random.normal(ks[2], (out_c, 2 * out_c, 3, 3), f32),
        "c1_b": 0.1 * jax.random.normal(ks[3], (out_c,), f32),
        "bn1_g": 1.0 + 0.1 * jax.random.normal(ks[4], (out_c,), f32),
        "bn1_b": 0.1 * jax.random.normal(ks[5], (out_c,), f32),
        "c2_w": 0.1 * jax.random.normal(ks[6], (out_c, out_c, 3, 3), f32),
        "c2_b": 0.1 * jax.random.normal(ks[7], (out_c,), f32),
        "bn2_g": jnp.ones((out_c,), f32),
        "bn2_b": jnp.zeros((out_c,), f32),
        "emb": jax.random.normal(ks[8], (time_steps, out_c), f32),
    }


if __name__ == "__main__":
    in_c, out_c, time_steps = 8, 4, 1000
    n, h, w = 2, 16, 16

    key = jax.random.PRNGKey(0)
    kp, kx, ks, kt = jax.random.split(key, 4)
    params = init_params(kp, in_c, out_c, time_steps)

    inputs = jax.random.normal(kx, (n, in_c, h, w), jnp.float32)            # NCHW
    skip = jax.random.normal(ks, (n, out_c, 2 * h, 2 * w), jnp.float32)     # NCHW
    time_idx = jax.random.randint(kt, (n,), 0, time_steps, jnp.int32)

    out = decoder_block_forward(params, inputs, skip, time_idx)
    out = jax.block_until_ready(out)

    assert out.shape == (n, out_c, 2 * h, 2 * w), out.shape
    assert bool(jnp.all(jnp.isfinite(out)))

    # Sanity-check against a pure-JAX f32 reference (loose tolerance: bf16 MXU operands).
    ref = _reference_forward(params, inputs, skip, time_idx)
    max_err = float(jnp.max(jnp.abs(out - ref)))
    mean_err = float(jnp.mean(jnp.abs(out - ref)))
    assert max_err < 0.25 and mean_err < 0.05, (max_err, mean_err)

    print("KERNEL_OK")
</pallas_src>

<mosaic_0001>
module attributes {stable_mosaic.version = 11 : i64} {
  func.func @_up_matmul_kernel(%arg0: i32, %arg1: memref<256x8xbf16, #tpu.memory_space<vmem>>, %arg2: memref<8x512xbf16, #tpu.memory_space<vmem>>, %arg3: memref<1x512xf32, #tpu.memory_space<vmem>>, %arg4: memref<256x512xf32, #tpu.memory_space<vmem>>) attributes {dimension_semantics = [#tpu.dimension_semantics<parallel>], iteration_bounds = array<i64: 2>, scalar_prefetch = 0 : i64, scratch_operands = 0 : i64, tpu.core_type = #tpu.core_type<tc>, window_params = [{transform_indices = @transform_0, window_bounds = array<i64: 256, 8>}, {pipeline_mode = #tpu.pipeline_mode<synchronous>, transform_indices = @transform_1, window_bounds = array<i64: 8, 512>}, {pipeline_mode = #tpu.pipeline_mode<synchronous>, transform_indices = @transform_2, window_bounds = array<i64: 1, 512>}, {transform_indices = @transform_3, window_bounds = array<i64: 256, 512>}]} {
    %c0 = arith.constant 0 : index
    %c0_0 = arith.constant 0 : index
    %0 = vector.load %arg1[%c0, %c0_0] : memref<256x8xbf16, #tpu.memory_space<vmem>>, vector<256x8xbf16>
    %c0_1 = arith.constant 0 : index
    %c0_2 = arith.constant 0 : index
    %1 = vector.load %arg2[%c0_1, %c0_2] : memref<8x512xbf16, #tpu.memory_space<vmem>>, vector<8x512xbf16>
    %cst = arith.constant dense<0.000000e+00> : vector<256x512xf32>
    %2 = tpu.matmul %0, %1, %cst {dimension_numbers = #tpu.dot_dimension_numbers<[1], [0], [0], [1], [0, 0, 1, 1], [], []>} : vector<256x8xbf16>, vector<8x512xbf16>, vector<256x512xf32> -> vector<256x512xf32>
    %c0_3 = arith.constant 0 : index
    %c0_4 = arith.constant 0 : index
    %3 = vector.load %arg3[%c0_3, %c0_4] : memref<1x512xf32, #tpu.memory_space<vmem>>, vector<1x512xf32>
    %4 = vector.broadcast %3 : vector<1x512xf32> to vector<256x512xf32>
    %5 = arith.addf %2, %4 : vector<256x512xf32>
    %c0_5 = arith.constant 0 : index
    %c0_6 = arith.constant 0 : index
    %6 = vector.load %arg4[%c0_5, %c0_6] : memref<256x512xf32, #tpu.memory_space<vmem>>, vector<256x512xf32>
    tpu.vector_store %arg4[%c0_5, %c0_6], %5 {strides = array<i32>} : memref<256x512xf32, #tpu.memory_space<vmem>>, vector<256x512xf32>,
    return
  }
  func.func @transform_0(%arg0: i32) -> (i32, i32) {
    %c0_i32 = arith.constant 0 : i32
    %c0_i32_0 = arith.constant 0 : i32
    return %arg0, %c0_i32 : i32, i32
  }
  func.func @transform_1(%arg0: i32) -> (i32, i32) {
    %c0_i32 = arith.constant 0 : i32
    %c0_i32_0 = arith.constant 0 : i32
    %c0_i32_1 = arith.constant 0 : i32
    return %c0_i32, %c0_i32_0 : i32, i32
  }
  func.func @transform_2(%arg0: i32) -> (i32, i32) {
    %c0_i32 = arith.constant 0 : i32
    %c0_i32_0 = arith.constant 0 : i32
    %c0_i32_1 = arith.constant 0 : i32
    return %c0_i32, %c0_i32_0 : i32, i32
  }
  func.func @transform_3(%arg0: i32) -> (i32, i32) {
    %c0_i32 = arith.constant 0 : i32
    %c0_i32_0 = arith.constant 0 : i32
    return %arg0, %c0_i32 : i32, i32
  }
}

module attributes {stable_mosaic.version = 11 : i64} {
  func.func @_conv3x3_stats_kernel(%arg0: i32, %arg1: i32, %arg2: memref<1x34x34x8xbf16, #tpu.memory_space<vmem>>, %arg3: memref<9x8x128xbf16, #tpu.memory_space<vmem>>, %arg4: memref<1x128xf32, #tpu.memory_space<vmem>>, %arg5: memref<1x8x32x128xf32, #tpu.memory_space<vmem>>, %arg6: memref<1x1x2x128xf32, #tpu.memory_space<vmem>>) attributes {dimension_semantics = [#tpu.dimension_semantics<parallel>, #tpu.dimension_semantics<parallel>], iteration_bounds = array<i64: 2, 4>, scalar_prefetch = 0 : i64, scratch_operands = 0 : i64, tpu.core_type = #tpu.core_type<tc>, window_params = [{transform_indices = @transform_0, window_bounds = array<i64: 1, 34, 34, 8>}, {pipeline_mode = #tpu.pipeline_mode<synchronous>, transform_indices = @transform_1, window_bounds = array<i64: 9, 8, 128>}, {pipeline_mode = #tpu.pipeline_mode<synchronous>, transform_indices = @transform_2, window_bounds = array<i64: 1, 128>}, {transform_indices = @transform_3, window_bounds = array<i64: 1, 8, 32, 128>}, {transform_indices = @transform_4, window_bounds = array<i64: 1, 1, 2, 128>}]} {
    %c8_i32 = arith.constant 8 : i32
    %0 = arith.muli %arg1, %c8_i32 : i32
    %cst = arith.constant 0.000000e+00 : f32
    %1 = vector.broadcast %cst : f32 to vector<256x128xf32>
    %c0_i32 = arith.constant 0 : i32
    %2 = arith.addi %0, %c0_i32 : i32
    %c0 = arith.constant 0 : index
    %3 = arith.index_cast %2 : i32 to index
    %c0_0 = arith.constant 0 : index
    %c0_1 = arith.constant 0 : index
    %4 = vector.load %arg2[%c0, %3, %c0_0, %c0_1] : memref<1x34x34x8xbf16, #tpu.memory_space<vmem>>, vector<1x8x32x8xbf16>
    %5 = vector.shape_cast %4 : vector<1x8x32x8xbf16> to vector<8x32x8xbf16>
    %6 = vector.shape_cast %5 : vector<8x32x8xbf16> to vector<256x8xbf16>
    %c0_2 = arith.constant 0 : index
    %c0_3 = arith.constant 0 : index
    %c0_4 = arith.constant 0 : index
    %7 = vector.load %arg3[%c0_2, %c0_3, %c0_4] : memref<9x8x128xbf16, #tpu.memory_space<vmem>>, vector<1x8x128xbf16>
    %8 = vector.shape_cast %7 : vector<1x8x128xbf16> to vector<8x128xbf16>
    %cst_5 = arith.constant dense<0.000000e+00> : vector<256x128xf32>
    %9 = tpu.matmul %6, %8, %cst_5 {dimension_numbers = #tpu.dot_dimension_numbers<[1], [0], [0], [1], [0, 0, 1, 1], [], []>} : vector<256x8xbf16>, vector<8x128xbf16>, vector<256x128xf32> -> vector<256x128xf32>
    %10 = arith.addf %1, %9 : vector<256x128xf32>
    %c0_i32_6 = arith.constant 0 : i32
    %11 = arith.addi %0, %c0_i32_6 : i32
    %c0_7 = arith.constant 0 : index
    %12 = arith.index_cast %11 : i32 to index
    %c1 = arith.constant 1 : index
    %c0_8 = arith.constant 0 : index
    %13 = vector.load %arg2[%c0_7, %12, %c1, %c0_8] : memref<1x34x34x8xbf16, #tpu.memory_space<vmem>>, vector<1x8x32x8xbf16>
    %14 = vector.shape_cast %13 : vector<1x8x32x8xbf16> to vector<8x32x8xbf16>
    %15 = vector.shape_cast %14 : vector<8x32x8xbf16> to vector<256x8xbf16>
    %c1_9 = arith.constant 1 : index
    %c0_10 = arith.constant 0 : index
    %c0_11 = arith.constant 0 : index
    %16 = vector.load %arg3[%c1_9, %c0_10, %c0_11] : memref<9x8x128xbf16, #tpu.memory_space<vmem>>, vector<1x8x128xbf16>
    %17 = vector.shape_cast %16 : vector<1x8x128xbf16> to vector<8x128xbf16>
    %cst_12 = arith.constant dense<0.000000e+00> : vector<256x128xf32>
    %18 = tpu.matmul %15, %17, %cst_12 {dimension_numbers = #tpu.dot_dimension_numbers<[1], [0], [0], [1], [0, 0, 1, 1], [], []>} : vector<256x8xbf16>, vector<8x128xbf16>, vector<256x128xf32> -> vector<256x128xf32>
    %19 = arith.addf %10, %18 : vector<256x128xf32>
    %c0_i32_13 = arith.constant 0 : i32
    %20 = arith.addi %0, %c0_i32_13 : i32
    %c0_14 = arith.constant 0 : index
    %21 = arith.index_cast %20 : i32 to index
    %c2 = arith.constant 2 : index
    %c0_15 = arith.constant 0 : index
    %22 = vector.load %arg2[%c0_14, %21, %c2, %c0_15] : memref<1x34x34x8xbf16, #tpu.memory_space<vmem>>, vector<1x8x32x8xbf16>
    %23 = vector.shape_cast %22 : vector<1x8x32x8xbf16> to vector<8x32x8xbf16>
    %24 = vector.shape_cast %23 : vector<8x32x8xbf16> to vector<256x8xbf16>
    %c2_16 = arith.constant 2 : index
    %c0_17 = arith.constant 0 : index
    %c0_18 = arith.constant 0 : index
    %25 = vector.load %arg3[%c2_16, %c0_17, %c0_18] : memref<9x8x128xbf16, #tpu.memory_space<vmem>>, vector<1x8x128xbf16>
    %26 = vector.shape_cast %25 : vector<1x8x128xbf16> to vector<8x128xbf16>
    %cst_19 = arith.constant dense<0.000000e+00> : vector<256x128xf32>
    %27 = tpu.matmul %24, %26, %cst_19 {dimension_numbers = #tpu.dot_dimension_numbers<[1], [0], [0], [1], [0, 0, 1, 1], [], []>} : vector<256x8xbf16>, vector<8x128xbf16>, vector<256x128xf32> -> vector<256x128xf32>
    %28 = arith.addf %19, %27 : vector<256x128xf32>
    %c1_i32 = arith.constant 1 : i32
    %29 = arith.addi %0, %c1_i32 : i32
    %c0_20 = arith.constant 0 : index
    %30 = arith.index_cast %29 : i32 to index
    %c0_21 = arith.constant 0 : index
    %c0_22 = arith.constant 0 : index
    %31 = vector.load %arg2[%c0_20, %30, %c0_21, %c0_22] : memref<1x34x34x8xbf16, #tpu.memory_space<vmem>>, vector<1x8x32x8xbf16>
    %32 = vector.shape_cast %31 : vector<1x8x32x8xbf16> to vector<8x32x8xbf16>
    %33 = vector.shape_cast %32 : vector<8x32x8xbf16> to vector<256x8xbf16>
    %c3 = arith.constant 3 : index
    %c0_23 = arith.constant 0 : index
    %c0_24 = arith.constant 0 : index
    %34 = vector.load %arg3[%c3, %c0_23, %c0_24] : memref<9x8x128xbf16, #tpu.memory_space<vmem>>, vector<1x8x128xbf16>
    %35 = vector.shape_cast %34 : vector<1x8x128xbf16> to vector<8x128xbf16>
    %cst_25 = arith.constant dense<0.000000e+00> : vector<256x128xf32>
    %36 = tpu.matmul %33, %35, %cst_25 {dimension_numbers = #tpu.dot_dimension_numbers<[1], [0], [0], [1], [0, 0, 1, 1], [], []>} : vector<256x8xbf16>, vector<8x128xbf16>, vector<256x128xf32> -> vector<256x128xf32>
    %37 = arith.addf %28, %36 : vector<256x128xf32>
    %c1_i32_26 = arith.constant 1 : i32
    %38 = arith.addi %0, %c1_i32_26 : i32
    %c0_27 = arith.constant 0 : index
    %39 = arith.index_cast %38 : i32 to index
    %c1_28 = arith.constant 1 : index
    %c0_29 = arith.constant 0 : index
    %40 = vector.load %arg2[%c0_27, %39, %c1_28, %c0_29] : memref<1x34x34x8xbf16, #tpu.memory_space<vmem>>, vector<1x8x32x8xbf16>
    %41 = vector.shape_cast %40 : vector<1x8x32x8xbf16> to vector<8x32x8xbf16>
    %42 = vector.shape_cast %41 : vector<8x32x8xbf16> to vector<256x8xbf16>
    %c4 = arith.constant 4 : index
    %c0_30 = arith.constant 0 : index
    %c0_31 = arith.constant 0 : index
    %43 = vector.load %arg3[%c4, %c0_30, %c0_31] : memref<9x8x128xbf16, #tpu.memory_space<vmem>>, vector<1x8x128xbf16>
    %44 = vector.shape_cast %43 : vector<1x8x128xbf16> to vector<8x128xbf16>
    %cst_32 = arith.constant dense<0.000000e+00> : vector<256x128xf32>
    %45 = tpu.matmul %42, %44, %cst_32 {dimension_numbers = #tpu.dot_dimension_numbers<[1], [0], [0], [1], [0, 0, 1, 1], [], []>} : vector<256x8xbf16>, vector<8x128xbf16>, vector<256x128xf32> -> vector<256x128xf32>
    %46 = arith.addf %37, %45 : vector<256x128xf32>
    %c1_i32_33 = arith.constant 1 : i32
    %47 = arith.addi %0, %c1_i32_33 : i32
    %c0_34 = arith.constant 0 : index
    %48 = arith.index_cast %47 : i32 to index
    %c2_35 = arith.constant 2 : index
    %c0_36 = arith.constant 0 : index
    %49 = vector.load %arg2[%c0_34, %48, %c2_35, %c0_36] : memref<1x34x34x8xbf16, #tpu.memory_space<vmem>>, vector<1x8x32x8xbf16>
    %50 = vector.shape_cast %49 : vector<1x8x32x8xbf16> to vector<8x32x8xbf16>
    %51 = vector.shape_cast %50 : vector<8x32x8xbf16> to vector<256x8xbf16>
    %c5 = arith.constant 5 : index
    %c0_37 = arith.constant 0 : index
    %c0_38 = arith.constant 0 : index
    %52 = vector.load %arg3[%c5, %c0_37, %c0_38] : memref<9x8x128xbf16, #tpu.memory_space<vmem>>, vector<1x8x128xbf16>
    %53 = vector.shape_cast %52 : vector<1x8x128xbf16> to vector<8x128xbf16>
    %cst_39 = arith.constant dense<0.000000e+00> : vector<256x128xf32>
    %54 = tpu.matmul %51, %53, %cst_39 {dimension_numbers = #tpu.dot_dimension_numbers<[1], [0], [0], [1], [0, 0, 1, 1], [], []>} : vector<256x8xbf16>, vector<8x128xbf16>, vector<256x128xf32> -> vector<256x128xf32>
    %55 = arith.addf %46, %54 : vector<256x128xf32>
    %c2_i32 = arith.constant 2 : i32
    %56 = arith.addi %0, %c2_i32 : i32
    %c0_40 = arith.constant 0 : index
    %57 = arith.index_cast %56 : i32 to index
    %c0_41 = arith.constant 0 : index
    %c0_42 = arith.constant 0 : index
    %58 = vector.load %arg2[%c0_40, %57, %c0_41, %c0_42] : memref<1x34x34x8xbf16, #tpu.memory_space<vmem>>, vector<1x8x32x8xbf16>
    %59 = vector.shape_cast %58 : vector<1x8x32x8xbf16> to vector<8x32x8xbf16>
    %60 = vector.shape_cast %59 : vector<8x32x8xbf16> to vector<256x8xbf16>
    %c6 = arith.constant 6 : index
    %c0_43 = arith.constant 0 : index
    %c0_44 = arith.constant 0 : index
    %61 = vector.load %arg3[%c6, %c0_43, %c0_44] : memref<9x8x128xbf16, #tpu.memory_space<vmem>>, vector<1x8x128xbf16>
    %62 = vector.shape_cast %61 : vector<1x8x128xbf16> to vector<8x128xbf16>
    %cst_45 = arith.constant dense<0.000000e+00> : vector<256x128xf32>
    %63 = tpu.matmul %60, %62, %cst_45 {dimension_numbers = #tpu.dot_dimension_numbers<[1], [0], [0], [1], [0, 0, 1, 1], [], []>} : vector<256x8xbf16>, vector<8x128xbf16>, vector<256x128xf32> -> vector<256x128xf32>
    %64 = arith.addf %55, %63 : vector<256x128xf32>
    %c2_i32_46 = arith.constant 2 : i32
    %65 = arith.addi %0, %c2_i32_46 : i32
    %c0_47 = arith.constant 0 : index
    %66 = arith.index_cast %65 : i32 to index
    %c1_48 = arith.constant 1 : index
    %c0_49 = arith.constant 0 : index
    %67 = vector.load %arg2[%c0_47, %66, %c1_48, %c0_49] : memref<1x34x34x8xbf16, #tpu.memory_space<vmem>>, vector<1x8x32x8xbf16>
    %68 = vector.shape_cast %67 : vector<1x8x32x8xbf16> to vector<8x32x8xbf16>
    %69 = vector.shape_cast %68 : vector<8x32x8xbf16> to vector<256x8xbf16>
    %c7 = arith.constant 7 : index
    %c0_50 = arith.constant 0 : index
    %c0_51 = arith.constant 0 : index
    %70 = vector.load %arg3[%c7, %c0_50, %c0_51] : memref<9x8x128xbf16, #tpu.memory_space<vmem>>, vector<1x8x128xbf16>
    %71 = vector.shape_cast %70 : vector<1x8x128xbf16> to vector<8x128xbf16>
    %cst_52 = arith.constant dense<0.000000e+00> : vector<256x128xf32>
    %72 = tpu.matmul %69, %71, %cst_52 {dimension_numbers = #tpu.dot_dimension_numbers<[1], [0], [0], [1], [0, 0, 1, 1], [], []>} : vector<256x8xbf16>, vector<8x128xbf16>, vector<256x128xf32> -> vector<256x128xf32>
    %73 = arith.addf %64, %72 : vector<256x128xf32>
    %c2_i32_53 = arith.constant 2 : i32
    %74 = arith.addi %0, %c2_i32_53 : i32
    %c0_54 = arith.constant 0 : index
    %75 = arith.index_cast %74 : i32 to index
    %c2_55 = arith.constant 2 : index
    %c0_56 = arith.constant 0 : index
    %76 = vector.load %arg2[%c0_54, %75, %c2_55, %c0_56] : memref<1x34x34x8xbf16, #tpu.memory_space<vmem>>, vector<1x8x32x8xbf16>
    %77 = vector.shape_cast %76 : vector<1x8x32x8xbf16> to vector<8x32x8xbf16>
    %78 = vector.shape_cast %77 : vector<8x32x8xbf16> to vector<256x8xbf16>
    %c8 = arith.constant 8 : index
    %c0_57 = arith.constant 0 : index
    %c0_58 = arith.constant 0 : index
    %79 = vector.load %arg3[%c8, %c0_57, %c0_58] : memref<9x8x128xbf16, #tpu.memory_space<vmem>>, vector<1x8x128xbf16>
    %80 = vector.shape_cast %79 : vector<1x8x128xbf16> to vector<8x128xbf16>
    %cst_59 = arith.constant dense<0.000000e+00> : vector<256x128xf32>
    %81 = tpu.matmul %78, %80, %cst_59 {dimension_numbers = #tpu.dot_dimension_numbers<[1], [0], [0], [1], [0, 0, 1, 1], [], []>} : vector<256x8xbf16>, vector<8x128xbf16>, vector<256x128xf32> -> vector<256x128xf32>
    %82 = arith.addf %73, %81 : vector<256x128xf32>
    %c0_60 = arith.constant 0 : index
    %c0_61 = arith.constant 0 : index
    %83 = vector.load %arg4[%c0_60, %c0_61] : memref<1x128xf32, #tpu.memory_space<vmem>>, vector<1x128xf32>
    %84 = vector.broadcast %83 : vector<1x128xf32> to vector<256x128xf32>
    %85 = arith.addf %82, %84 : vector<256x128xf32>
    %86 = vector.shape_cast %85 : vector<256x128xf32> to vector<8x32x128xf32>
    %c0_62 = arith.constant 0 : index
    %c0_63 = arith.constant 0 : index
    %c0_64 = arith.constant 0 : index
    %c0_65 = arith.constant 0 : index
    %87 = vector.load %arg5[%c0_62, %c0_63, %c0_64, %c0_65] : memref<1x8x32x128xf32, #tpu.memory_space<vmem>>, vector<1x8x32x128xf32>
    %88 = vector.shape_cast %87 : vector<1x8x32x128xf32> to vector<8x32x128xf32>
    %89 = vector.shape_cast %86 : vector<8x32x128xf32> to vector<1x8x32x128xf32>
    tpu.vector_store %arg5[%c0_62, %c0_63, %c0_64, %c0_65], %89 {strides = array<i32>} : memref<1x8x32x128xf32, #tpu.memory_space<vmem>>, vector<1x8x32x128xf32>,
    %cst_66 = arith.constant dense<0.000000e+00> : vector<128xf32>
    %90 = vector.multi_reduction <add>, %85, %cst_66 [0] : vector<256x128xf32> to vector<128xf32>
    %91 = vector.shape_cast %90 : vector<128xf32> to vector<1x128xf32>
    %92 = arith.mulf %85, %85 : vector<256x128xf32>
    %cst_67 = arith.constant dense<0.000000e+00> : vector<128xf32>
    %93 = vector.multi_reduction <add>, %92, %cst_67 [0] : vector<256x128xf32> to vector<128xf32>
    %94 = vector.shape_cast %93 : vector<128xf32> to vector<1x128xf32>
    %95 = tpu.concatenate %91, %94 in 0 : vector<1x128xf32>, vector<1x128xf32> -> vector<2x128xf32>
    %c0_68 = arith.constant 0 : index
    %c0_69 = arith.constant 0 : index
    %c0_70 = arith.constant 0 : index
    %c0_71 = arith.constant 0 : index
    %96 = vector.load %arg6[%c0_68, %c0_69, %c0_70, %c0_71] : memref<1x1x2x128xf32, #tpu.memory_space<vmem>>, vector<1x1x2x128xf32>
    %97 = vector.shape_cast %96 : vector<1x1x2x128xf32> to vector<2x128xf32>
    %98 = vector.shape_cast %95 : vector<2x128xf32> to vector<1x1x2x128xf32>
    tpu.vector_store %arg6[%c0_68, %c0_69, %c0_70, %c0_71], %98 {strides = array<i32>} : memref<1x1x2x128xf32, #tpu.memory_space<vmem>>, vector<1x1x2x128xf32>,
    return
  }
  func.func @transform_0(%arg0: i32, %arg1: i32) -> (i32, i32, i32, i32) {
    %c0_i32 = arith.constant 0 : i32
    %c0_i32_0 = arith.constant 0 : i32
    %c0_i32_1 = arith.constant 0 : i32
    %c0_i32_2 = arith.constant 0 : i32
    return %arg0, %c0_i32, %c0_i32_0, %c0_i32_1 : i32, i32, i32, i32
  }
  func.func @transform_1(%arg0: i32, %arg1: i32) -> (i32, i32, i32) {
    %c0_i32 = arith.constant 0 : i32
    %c0_i32_0 = arith.constant 0 : i32
    %c0_i32_1 = arith.constant 0 : i32
    %c0_i32_2 = arith.constant 0 : i32
    return %c0_i32, %c0_i32_0, %c0_i32_1 : i32, i32, i32
  }
  func.func @transform_2(%arg0: i32, %arg1: i32) -> (i32, i32) {
    %c0_i32 = arith.constant 0 : i32
    %c0_i32_0 = arith.constant 0 : i32
    %c0_i32_1 = arith.constant 0 : i32
    return %c0_i32, %c0_i32_0 : i32, i32
  }
  func.func @transform_3(%arg0: i32, %arg1: i32) -> (i32, i32, i32, i32) {
    %c0_i32 = arith.constant 0 : i32
    %c0_i32_0 = arith.constant 0 : i32
    %c0_i32_1 = arith.constant 0 : i32
    return %arg0, %arg1, %c0_i32, %c0_i32_0 : i32, i32, i32, i32
  }
  func.func @transform_4(%arg0: i32, %arg1: i32) -> (i32, i32, i32, i32) {
    %c0_i32 = arith.constant 0 : i32
    %c0_i32_0 = arith.constant 0 : i32
    %c0_i32_1 = arith.constant 0 : i32
    return %arg0, %arg1, %c0_i32, %c0_i32_0 : i32, i32, i32, i32
  }
}

module attributes {stable_mosaic.version = 11 : i64} {
  func.func @_bn_relu_kernel(%arg0: i32, %arg1: i32, %arg2: memref<1x8x32x128xf32, #tpu.memory_space<vmem>>, %arg3: memref<1x128xf32, #tpu.memory_space<vmem>>, %arg4: memref<1x128xf32, #tpu.memory_space<vmem>>, %arg5: memref<1x8x32x128xbf16, #tpu.memory_space<vmem>>) attributes {dimension_semantics = [#tpu.dimension_semantics<parallel>, #tpu.dimension_semantics<parallel>], iteration_bounds = array<i64: 2, 4>, scalar_prefetch = 0 : i64, scratch_operands = 0 : i64, tpu.core_type = #tpu.core_type<tc>, window_params = [{transform_indices = @transform_0, window_bounds = array<i64: 1, 8, 32, 128>}, {pipeline_mode = #tpu.pipeline_mode<synchronous>, transform_indices = @transform_1, window_bounds = array<i64: 1, 128>}, {pipeline_mode = #tpu.pipeline_mode<synchronous>, transform_indices = @transform_2, window_bounds = array<i64: 1, 128>}, {transform_indices = @transform_3, window_bounds = array<i64: 1, 8, 32, 128>}]} {
    %c0 = arith.constant 0 : index
    %c0_0 = arith.constant 0 : index
    %c0_1 = arith.constant 0 : index
    %c0_2 = arith.constant 0 : index
    %0 = vector.load %arg2[%c0, %c0_0, %c0_1, %c0_2] : memref<1x8x32x128xf32, #tpu.memory_space<vmem>>, vector<1x8x32x128xf32>
    %c0_3 = arith.constant 0 : index
    %c0_4 = arith.constant 0 : index
    %1 = vector.load %arg3[%c0_3, %c0_4] : memref<1x128xf32, #tpu.memory_space<vmem>>, vector<1x128xf32>
    %2 = vector.shape_cast %1 : vector<1x128xf32> to vector<1x1x1x128xf32>
    %3 = vector.broadcast %2 : vector<1x1x1x128xf32> to vector<1x8x32x128xf32>
    %4 = arith.mulf %0, %3 : vector<1x8x32x128xf32>
    %c0_5 = arith.constant 0 : index
    %c0_6 = arith.constant 0 : index
    %5 = vector.load %arg4[%c0_5, %c0_6] : memref<1x128xf32, #tpu.memory_space<vmem>>, vector<1x128xf32>
    %6 = vector.shape_cast %5 : vector<1x128xf32> to vector<1x1x1x128xf32>
    %7 = vector.broadcast %6 : vector<1x1x1x128xf32> to vector<1x8x32x128xf32>
    %8 = arith.addf %4, %7 : vector<1x8x32x128xf32>
    %cst = arith.constant 0.000000e+00 : f32
    %9 = vector.broadcast %cst : f32 to vector<1x8x32x128xf32>
    %10 = arith.maximumf %8, %9 : vector<1x8x32x128xf32>
    %11 = arith.truncf %10 : vector<1x8x32x128xf32> to vector<1x8x32x128xbf16>
    %c0_7 = arith.constant 0 : index
    %c0_8 = arith.constant 0 : index
    %c0_9 = arith.constant 0 : index
    %c0_10 = arith.constant 0 : index
    %12 = vector.load %arg5[%c0_7, %c0_8, %c0_9, %c0_10] : memref<1x8x32x128xbf16, #tpu.memory_space<vmem>>, vector<1x8x32x128xbf16>
    tpu.vector_store %arg5[%c0_7, %c0_8, %c0_9, %c0_10], %11 {strides = array<i32>} : memref<1x8x32x128xbf16, #tpu.memory_space<vmem>>, vector<1x8x32x128xbf16>,
    return
  }
  func.func @transform_0(%arg0: i32, %arg1: i32) -> (i32, i32, i32, i32) {
    %c0_i32 = arith.constant 0 : i32
    %c0_i32_0 = arith.constant 0 : i32
    %c0_i32_1 = arith.constant 0 : i32
    return %arg0, %arg1, %c0_i32, %c0_i32_0 : i32, i32, i32, i32
  }
  func.func @transform_1(%arg0: i32, %arg1: i32) -> (i32, i32) {
    %c0_i32 = arith.constant 0 : i32
    %c0_i32_0 = arith.constant 0 : i32
    %c0_i32_1 = arith.constant 0 : i32
    return %c0_i32, %c0_i32_0 : i32, i32
  }
  func.func @transform_2(%arg0: i32, %arg1: i32) -> (i32, i32) {
    %c0_i32 = arith.constant 0 : i32
    %c0_i32_0 = arith.constant 0 : i32
    %c0_i32_1 = arith.constant 0 : i32
    return %c0_i32, %c0_i32_0 : i32, i32
  }
  func.func @transform_3(%arg0: i32, %arg1: i32) -> (i32, i32, i32, i32) {
    %c0_i32 = arith.constant 0 : i32
    %c0_i32_0 = arith.constant 0 : i32
    %c0_i32_1 = arith.constant 0 : i32
    return %arg0, %arg1, %c0_i32, %c0_i32_0 : i32, i32, i32, i32
  }
}

module attributes {stable_mosaic.version = 11 : i64} {
  func.func @_conv3x3_stats_kernel(%arg0: i32, %arg1: i32, %arg2: memref<1x34x34x128xbf16, #tpu.memory_space<vmem>>, %arg3: memref<9x128x128xbf16, #tpu.memory_space<vmem>>, %arg4: memref<1x128xf32, #tpu.memory_space<vmem>>, %arg5: memref<1x8x32x128xf32, #tpu.memory_space<vmem>>, %arg6: memref<1x1x2x128xf32, #tpu.memory_space<vmem>>) attributes {dimension_semantics = [#tpu.dimension_semantics<parallel>, #tpu.dimension_semantics<parallel>], iteration_bounds = array<i64: 2, 4>, scalar_prefetch = 0 : i64, scratch_operands = 0 : i64, tpu.core_type = #tpu.core_type<tc>, window_params = [{transform_indices = @transform_0, window_bounds = array<i64: 1, 34, 34, 128>}, {pipeline_mode = #tpu.pipeline_mode<synchronous>, transform_indices = @transform_1, window_bounds = array<i64: 9, 128, 128>}, {pipeline_mode = #tpu.pipeline_mode<synchronous>, transform_indices = @transform_2, window_bounds = array<i64: 1, 128>}, {transform_indices = @transform_3, window_bounds = array<i64: 1, 8, 32, 128>}, {transform_indices = @transform_4, window_bounds = array<i64: 1, 1, 2, 128>}]} {
    %c8_i32 = arith.constant 8 : i32
    %0 = arith.muli %arg1, %c8_i32 : i32
    %cst = arith.constant 0.000000e+00 : f32
    %1 = vector.broadcast %cst : f32 to vector<256x128xf32>
    %c0_i32 = arith.constant 0 : i32
    %2 = arith.addi %0, %c0_i32 : i32
    %c0 = arith.constant 0 : index
    %3 = arith.index_cast %2 : i32 to index
    %c0_0 = arith.constant 0 : index
    %c0_1 = arith.constant 0 : index
    %4 = vector.load %arg2[%c0, %3, %c0_0, %c0_1] : memref<1x34x34x128xbf16, #tpu.memory_space<vmem>>, vector<1x8x32x128xbf16>
    %5 = vector.shape_cast %4 : vector<1x8x32x128xbf16> to vector<8x32x128xbf16>
    %6 = vector.shape_cast %5 : vector<8x32x128xbf16> to vector<256x128xbf16>
    %c0_2 = arith.constant 0 : index
    %c0_3 = arith.constant 0 : index
    %c0_4 = arith.constant 0 : index
    %7 = vector.load %arg3[%c0_2, %c0_3, %c0_4] : memref<9x128x128xbf16, #tpu.memory_space<vmem>>, vector<1x128x128xbf16>
    %8 = vector.shape_cast %7 : vector<1x128x128xbf16> to vector<128x128xbf16>
    %cst_5 = arith.constant dense<0.000000e+00> : vector<256x128xf32>
    %9 = tpu.matmul %6, %8, %cst_5 {dimension_numbers = #tpu.dot_dimension_numbers<[1], [0], [0], [1], [0, 0, 1, 1], [], []>} : vector<256x128xbf16>, vector<128x128xbf16>, vector<256x128xf32> -> vector<256x128xf32>
    %10 = arith.addf %1, %9 : vector<256x128xf32>
    %c0_i32_6 = arith.constant 0 : i32
    %11 = arith.addi %0, %c0_i32_6 : i32
    %c0_7 = arith.constant 0 : index
    %12 = arith.index_cast %11 : i32 to index
    %c1 = arith.constant 1 : index
    %c0_8 = arith.constant 0 : index
    %13 = vector.load %arg2[%c0_7, %12, %c1, %c0_8] : memref<1x34x34x128xbf16, #tpu.memory_space<vmem>>, vector<1x8x32x128xbf16>
    %14 = vector.shape_cast %13 : vector<1x8x32x128xbf16> to vector<8x32x128xbf16>
    %15 = vector.shape_cast %14 : vector<8x32x128xbf16> to vector<256x128xbf16>
    %c1_9 = arith.constant 1 : index
    %c0_10 = arith.constant 0 : index
    %c0_11 = arith.constant 0 : index
    %16 = vector.load %arg3[%c1_9, %c0_10, %c0_11] : memref<9x128x128xbf16, #tpu.memory_space<vmem>>, vector<1x128x128xbf16>
    %17 = vector.shape_cast %16 : vector<1x128x128xbf16> to vector<128x128xbf16>
    %cst_12 = arith.constant dense<0.000000e+00> : vector<256x128xf32>
    %18 = tpu.matmul %15, %17, %cst_12 {dimension_numbers = #tpu.dot_dimension_numbers<[1], [0], [0], [1], [0, 0, 1, 1], [], []>} : vector<256x128xbf16>, vector<128x128xbf16>, vector<256x128xf32> -> vector<256x128xf32>
    %19 = arith.addf %10, %18 : vector<256x128xf32>
    %c0_i32_13 = arith.constant 0 : i32
    %20 = arith.addi %0, %c0_i32_13 : i32
    %c0_14 = arith.constant 0 : index
    %21 = arith.index_cast %20 : i32 to index
    %c2 = arith.constant 2 : index
    %c0_15 = arith.constant 0 : index
    %22 = vector.load %arg2[%c0_14, %21, %c2, %c0_15] : memref<1x34x34x128xbf16, #tpu.memory_space<vmem>>, vector<1x8x32x128xbf16>
    %23 = vector.shape_cast %22 : vector<1x8x32x128xbf16> to vector<8x32x128xbf16>
    %24 = vector.shape_cast %23 : vector<8x32x128xbf16> to vector<256x128xbf16>
    %c2_16 = arith.constant 2 : index
    %c0_17 = arith.constant 0 : index
    %c0_18 = arith.constant 0 : index
    %25 = vector.load %arg3[%c2_16, %c0_17, %c0_18] : memref<9x128x128xbf16, #tpu.memory_space<vmem>>, vector<1x128x128xbf16>
    %26 = vector.shape_cast %25 : vector<1x128x128xbf16> to vector<128x128xbf16>
    %cst_19 = arith.constant dense<0.000000e+00> : vector<256x128xf32>
    %27 = tpu.matmul %24, %26, %cst_19 {dimension_numbers = #tpu.dot_dimension_numbers<[1], [0], [0], [1], [0, 0, 1, 1], [], []>} : vector<256x128xbf16>, vector<128x128xbf16>, vector<256x128xf32> -> vector<256x128xf32>
    %28 = arith.addf %19, %27 : vector<256x128xf32>
    %c1_i32 = arith.constant 1 : i32
    %29 = arith.addi %0, %c1_i32 : i32
    %c0_20 = arith.constant 0 : index
    %30 = arith.index_cast %29 : i32 to index
    %c0_21 = arith.constant 0 : index
    %c0_22 = arith.constant 0 : index
    %31 = vector.load %arg2[%c0_20, %30, %c0_21, %c0_22] : memref<1x34x34x128xbf16, #tpu.memory_space<vmem>>, vector<1x8x32x128xbf16>
    %32 = vector.shape_cast %31 : vector<1x8x32x128xbf16> to vector<8x32x128xbf16>
    %33 = vector.shape_cast %32 : vector<8x32x128xbf16> to vector<256x128xbf16>
    %c3 = arith.constant 3 : index
    %c0_23 = arith.constant 0 : index
    %c0_24 = arith.constant 0 : index
    %34 = vector.load %arg3[%c3, %c0_23, %c0_24] : memref<9x128x128xbf16, #tpu.memory_space<vmem>>, vector<1x128x128xbf16>
    %35 = vector.shape_cast %34 : vector<1x128x128xbf16> to vector<128x128xbf16>
    %cst_25 = arith.constant dense<0.000000e+00> : vector<256x128xf32>
    %36 = tpu.matmul %33, %35, %cst_25 {dimension_numbers = #tpu.dot_dimension_numbers<[1], [0], [0], [1], [0, 0, 1, 1], [], []>} : vector<256x128xbf16>, vector<128x128xbf16>, vector<256x128xf32> -> vector<256x128xf32>
    %37 = arith.addf %28, %36 : vector<256x128xf32>
    %c1_i32_26 = arith.constant 1 : i32
    %38 = arith.addi %0, %c1_i32_26 : i32
    %c0_27 = arith.constant 0 : index
    %39 = arith.index_cast %38 : i32 to index
    %c1_28 = arith.constant 1 : index
    %c0_29 = arith.constant 0 : index
    %40 = vector.load %arg2[%c0_27, %39, %c1_28, %c0_29] : memref<1x34x34x128xbf16, #tpu.memory_space<vmem>>, vector<1x8x32x128xbf16>
    %41 = vector.shape_cast %40 : vector<1x8x32x128xbf16> to vector<8x32x128xbf16>
    %42 = vector.shape_cast %41 : vector<8x32x128xbf16> to vector<256x128xbf16>
    %c4 = arith.constant 4 : index
    %c0_30 = arith.constant 0 : index
    %c0_31 = arith.constant 0 : index
    %43 = vector.load %arg3[%c4, %c0_30, %c0_31] : memref<9x128x128xbf16, #tpu.memory_space<vmem>>, vector<1x128x128xbf16>
    %44 = vector.shape_cast %43 : vector<1x128x128xbf16> to vector<128x128xbf16>
    %cst_32 = arith.constant dense<0.000000e+00> : vector<256x128xf32>
    %45 = tpu.matmul %42, %44, %cst_32 {dimension_numbers = #tpu.dot_dimension_numbers<[1], [0], [0], [1], [0, 0, 1, 1], [], []>} : vector<256x128xbf16>, vector<128x128xbf16>, vector<256x128xf32> -> vector<256x128xf32>
    %46 = arith.addf %37, %45 : vector<256x128xf32>
    %c1_i32_33 = arith.constant 1 : i32
    %47 = arith.addi %0, %c1_i32_33 : i32
    %c0_34 = arith.constant 0 : index
    %48 = arith.index_cast %47 : i32 to index
    %c2_35 = arith.constant 2 : index
    %c0_36 = arith.constant 0 : index
    %49 = vector.load %arg2[%c0_34, %48, %c2_35, %c0_36] : memref<1x34x34x128xbf16, #tpu.memory_space<vmem>>, vector<1x8x32x128xbf16>
    %50 = vector.shape_cast %49 : vector<1x8x32x128xbf16> to vector<8x32x128xbf16>
    %51 = vector.shape_cast %50 : vector<8x32x128xbf16> to vector<256x128xbf16>
    %c5 = arith.constant 5 : index
    %c0_37 = arith.constant 0 : index
    %c0_38 = arith.constant 0 : index
    %52 = vector.load %arg3[%c5, %c0_37, %c0_38] : memref<9x128x128xbf16, #tpu.memory_space<vmem>>, vector<1x128x128xbf16>
    %53 = vector.shape_cast %52 : vector<1x128x128xbf16> to vector<128x128xbf16>
    %cst_39 = arith.constant dense<0.000000e+00> : vector<256x128xf32>
    %54 = tpu.matmul %51, %53, %cst_39 {dimension_numbers = #tpu.dot_dimension_numbers<[1], [0], [0], [1], [0, 0, 1, 1], [], []>} : vector<256x128xbf16>, vector<128x128xbf16>, vector<256x128xf32> -> vector<256x128xf32>
    %55 = arith.addf %46, %54 : vector<256x128xf32>
    %c2_i32 = arith.constant 2 : i32
    %56 = arith.addi %0, %c2_i32 : i32
    %c0_40 = arith.constant 0 : index
    %57 = arith.index_cast %56 : i32 to index
    %c0_41 = arith.constant 0 : index
    %c0_42 = arith.constant 0 : index
    %58 = vector.load %arg2[%c0_40, %57, %c0_41, %c0_42] : memref<1x34x34x128xbf16, #tpu.memory_space<vmem>>, vector<1x8x32x128xbf16>
    %59 = vector.shape_cast %58 : vector<1x8x32x128xbf16> to vector<8x32x128xbf16>
    %60 = vector.shape_cast %59 : vector<8x32x128xbf16> to vector<256x128xbf16>
    %c6 = arith.constant 6 : index
    %c0_43 = arith.constant 0 : index
    %c0_44 = arith.constant 0 : index
    %61 = vector.load %arg3[%c6, %c0_43, %c0_44] : memref<9x128x128xbf16, #tpu.memory_space<vmem>>, vector<1x128x128xbf16>
    %62 = vector.shape_cast %61 : vector<1x128x128xbf16> to vector<128x128xbf16>
    %cst_45 = arith.constant dense<0.000000e+00> : vector<256x128xf32>
    %63 = tpu.matmul %60, %62, %cst_45 {dimension_numbers = #tpu.dot_dimension_numbers<[1], [0], [0], [1], [0, 0, 1, 1], [], []>} : vector<256x128xbf16>, vector<128x128xbf16>, vector<256x128xf32> -> vector<256x128xf32>
    %64 = arith.addf %55, %63 : vector<256x128xf32>
    %c2_i32_46 = arith.constant 2 : i32
    %65 = arith.addi %0, %c2_i32_46 : i32
    %c0_47 = arith.constant 0 : index
    %66 = arith.index_cast %65 : i32 to index
    %c1_48 = arith.constant 1 : index
    %c0_49 = arith.constant 0 : index
    %67 = vector.load %arg2[%c0_47, %66, %c1_48, %c0_49] : memref<1x34x34x128xbf16, #tpu.memory_space<vmem>>, vector<1x8x32x128xbf16>
    %68 = vector.shape_cast %67 : vector<1x8x32x128xbf16> to vector<8x32x128xbf16>
    %69 = vector.shape_cast %68 : vector<8x32x128xbf16> to vector<256x128xbf16>
    %c7 = arith.constant 7 : index
    %c0_50 = arith.constant 0 : index
    %c0_51 = arith.constant 0 : index
    %70 = vector.load %arg3[%c7, %c0_50, %c0_51] : memref<9x128x128xbf16, #tpu.memory_space<vmem>>, vector<1x128x128xbf16>
    %71 = vector.shape_cast %70 : vector<1x128x128xbf16> to vector<128x128xbf16>
    %cst_52 = arith.constant dense<0.000000e+00> : vector<256x128xf32>
    %72 = tpu.matmul %69, %71, %cst_52 {dimension_numbers = #tpu.dot_dimension_numbers<[1], [0], [0], [1], [0, 0, 1, 1], [], []>} : vector<256x128xbf16>, vector<128x128xbf16>, vector<256x128xf32> -> vector<256x128xf32>
    %73 = arith.addf %64, %72 : vector<256x128xf32>
    %c2_i32_53 = arith.constant 2 : i32
    %74 = arith.addi %0, %c2_i32_53 : i32
    %c0_54 = arith.constant 0 : index
    %75 = arith.index_cast %74 : i32 to index
    %c2_55 = arith.constant 2 : index
    %c0_56 = arith.constant 0 : index
    %76 = vector.load %arg2[%c0_54, %75, %c2_55, %c0_56] : memref<1x34x34x128xbf16, #tpu.memory_space<vmem>>, vector<1x8x32x128xbf16>
    %77 = vector.shape_cast %76 : vector<1x8x32x128xbf16> to vector<8x32x128xbf16>
    %78 = vector.shape_cast %77 : vector<8x32x128xbf16> to vector<256x128xbf16>
    %c8 = arith.constant 8 : index
    %c0_57 = arith.constant 0 : index
    %c0_58 = arith.constant 0 : index
    %79 = vector.load %arg3[%c8, %c0_57, %c0_58] : memref<9x128x128xbf16, #tpu.memory_space<vmem>>, vector<1x128x128xbf16>
    %80 = vector.shape_cast %79 : vector<1x128x128xbf16> to vector<128x128xbf16>
    %cst_59 = arith.constant dense<0.000000e+00> : vector<256x128xf32>
    %81 = tpu.matmul %78, %80, %cst_59 {dimension_numbers = #tpu.dot_dimension_numbers<[1], [0], [0], [1], [0, 0, 1, 1], [], []>} : vector<256x128xbf16>, vector<128x128xbf16>, vector<256x128xf32> -> vector<256x128xf32>
    %82 = arith.addf %73, %81 : vector<256x128xf32>
    %c0_60 = arith.constant 0 : index
    %c0_61 = arith.constant 0 : index
    %83 = vector.load %arg4[%c0_60, %c0_61] : memref<1x128xf32, #tpu.memory_space<vmem>>, vector<1x128xf32>
    %84 = vector.broadcast %83 : vector<1x128xf32> to vector<256x128xf32>
    %85 = arith.addf %82, %84 : vector<256x128xf32>
    %86 = vector.shape_cast %85 : vector<256x128xf32> to vector<8x32x128xf32>
    %c0_62 = arith.constant 0 : index
    %c0_63 = arith.constant 0 : index
    %c0_64 = arith.constant 0 : index
    %c0_65 = arith.constant 0 : index
    %87 = vector.load %arg5[%c0_62, %c0_63, %c0_64, %c0_65] : memref<1x8x32x128xf32, #tpu.memory_space<vmem>>, vector<1x8x32x128xf32>
    %88 = vector.shape_cast %87 : vector<1x8x32x128xf32> to vector<8x32x128xf32>
    %89 = vector.shape_cast %86 : vector<8x32x128xf32> to vector<1x8x32x128xf32>
    tpu.vector_store %arg5[%c0_62, %c0_63, %c0_64, %c0_65], %89 {strides = array<i32>} : memref<1x8x32x128xf32, #tpu.memory_space<vmem>>, vector<1x8x32x128xf32>,
    %cst_66 = arith.constant dense<0.000000e+00> : vector<128xf32>
    %90 = vector.multi_reduction <add>, %85, %cst_66 [0] : vector<256x128xf32> to vector<128xf32>
    %91 = vector.shape_cast %90 : vector<128xf32> to vector<1x128xf32>
    %92 = arith.mulf %85, %85 : vector<256x128xf32>
    %cst_67 = arith.constant dense<0.000000e+00> : vector<128xf32>
    %93 = vector.multi_reduction <add>, %92, %cst_67 [0] : vector<256x128xf32> to vector<128xf32>
    %94 = vector.shape_cast %93 : vector<128xf32> to vector<1x128xf32>
    %95 = tpu.concatenate %91, %94 in 0 : vector<1x128xf32>, vector<1x128xf32> -> vector<2x128xf32>
    %c0_68 = arith.constant 0 : index
    %c0_69 = arith.constant 0 : index
    %c0_70 = arith.constant 0 : index
    %c0_71 = arith.constant 0 : index
    %96 = vector.load %arg6[%c0_68, %c0_69, %c0_70, %c0_71] : memref<1x1x2x128xf32, #tpu.memory_space<vmem>>, vector<1x1x2x128xf32>
    %97 = vector.shape_cast %96 : vector<1x1x2x128xf32> to vector<2x128xf32>
    %98 = vector.shape_cast %95 : vector<2x128xf32> to vector<1x1x2x128xf32>
    tpu.vector_store %arg6[%c0_68, %c0_69, %c0_70, %c0_71], %98 {strides = array<i32>} : memref<1x1x2x128xf32, #tpu.memory_space<vmem>>, vector<1x1x2x128xf32>,
    return
  }
  func.func @transform_0(%arg0: i32, %arg1: i32) -> (i32, i32, i32, i32) {
    %c0_i32 = arith.constant 0 : i32
    %c0_i32_0 = arith.constant 0 : i32
    %c0_i32_1 = arith.constant 0 : i32
    %c0_i32_2 = arith.constant 0 : i32
    return %arg0, %c0_i32, %c0_i32_0, %c0_i32_1 : i32, i32, i32, i32
  }
  func.func @transform_1(%arg0: i32, %arg1: i32) -> (i32, i32, i32) {
    %c0_i32 = arith.constant 0 : i32
    %c0_i32_0 = arith.constant 0 : i32
    %c0_i32_1 = arith.constant 0 : i32
    %c0_i32_2 = arith.constant 0 : i32
    return %c0_i32, %c0_i32_0, %c0_i32_1 : i32, i32, i32
  }
  func.func @transform_2(%arg0: i32, %arg1: i32) -> (i32, i32) {
    %c0_i32 = arith.constant 0 : i32
    %c0_i32_0 = arith.constant 0 : i32
    %c0_i32_1 = arith.constant 0 : i32
    return %c0_i32, %c0_i32_0 : i32, i32
  }
  func.func @transform_3(%arg0: i32, %arg1: i32) -> (i32, i32, i32, i32) {
    %c0_i32 = arith.constant 0 : i32
    %c0_i32_0 = arith.constant 0 : i32
    %c0_i32_1 = arith.constant 0 : i32
    return %arg0, %arg1, %c0_i32, %c0_i32_0 : i32, i32, i32, i32
  }
  func.func @transform_4(%arg0: i32, %arg1: i32) -> (i32, i32, i32, i32) {
    %c0_i32 = arith.constant 0 : i32
    %c0_i32_0 = arith.constant 0 : i32
    %c0_i32_1 = arith.constant 0 : i32
    return %arg0, %arg1, %c0_i32, %c0_i32_0 : i32, i32, i32, i32
  }
}

module attributes {stable_mosaic.version = 11 : i64} {
  func.func @_bn_relu_emb_kernel(%arg0: i32, %arg1: i32, %arg2: memref<1x8x32x128xf32, #tpu.memory_space<vmem>>, %arg3: memref<1x128xf32, #tpu.memory_space<vmem>>, %arg4: memref<1x128xf32, #tpu.memory_space<vmem>>, %arg5: memref<1x1x128xf32, #tpu.memory_space<vmem>>, %arg6: memref<1x8x32x128xf32, #tpu.memory_space<vmem>>) attributes {dimension_semantics = [#tpu.dimension_semantics<parallel>, #tpu.dimension_semantics<parallel>], iteration_bounds = array<i64: 2, 4>, scalar_prefetch = 0 : i64, scratch_operands = 0 : i64, tpu.core_type = #tpu.core_type<tc>, window_params = [{transform_indices = @transform_0, window_bounds = array<i64: 1, 8, 32, 128>}, {pipeline_mode = #tpu.pipeline_mode<synchronous>, transform_indices = @transform_1, window_bounds = array<i64: 1, 128>}, {pipeline_mode = #tpu.pipeline_mode<synchronous>, transform_indices = @transform_2, window_bounds = array<i64: 1, 128>}, {transform_indices = @transform_3, window_bounds = array<i64: 1, 1, 128>}, {transform_indices = @transform_4, window_bounds = array<i64: 1, 8, 32, 128>}]} {
    %c0 = arith.constant 0 : index
    %c0_0 = arith.constant 0 : index
    %c0_1 = arith.constant 0 : index
    %c0_2 = arith.constant 0 : index
    %0 = vector.load %arg2[%c0, %c0_0, %c0_1, %c0_2] : memref<1x8x32x128xf32, #tpu.memory_space<vmem>>, vector<1x8x32x128xf32>
    %c0_3 = arith.constant 0 : index
    %c0_4 = arith.constant 0 : index
    %1 = vector.load %arg3[%c0_3, %c0_4] : memref<1x128xf32, #tpu.memory_space<vmem>>, vector<1x128xf32>
    %2 = vector.shape_cast %1 : vector<1x128xf32> to vector<1x1x1x128xf32>
    %3 = vector.broadcast %2 : vector<1x1x1x128xf32> to vector<1x8x32x128xf32>
    %4 = arith.mulf %0, %3 : vector<1x8x32x128xf32>
    %c0_5 = arith.constant 0 : index
    %c0_6 = arith.constant 0 : index
    %5 = vector.load %arg4[%c0_5, %c0_6] : memref<1x128xf32, #tpu.memory_space<vmem>>, vector<1x128xf32>
    %6 = vector.shape_cast %5 : vector<1x128xf32> to vector<1x1x1x128xf32>
    %7 = vector.broadcast %6 : vector<1x1x1x128xf32> to vector<1x8x32x128xf32>
    %8 = arith.addf %4, %7 : vector<1x8x32x128xf32>
    %cst = arith.constant 0.000000e+00 : f32
    %9 = vector.broadcast %cst : f32 to vector<1x8x32x128xf32>
    %10 = arith.maximumf %8, %9 : vector<1x8x32x128xf32>
    %c0_7 = arith.constant 0 : index
    %c0_8 = arith.constant 0 : index
    %c0_9 = arith.constant 0 : index
    %11 = vector.load %arg5[%c0_7, %c0_8, %c0_9] : memref<1x1x128xf32, #tpu.memory_space<vmem>>, vector<1x1x128xf32>
    %12 = vector.shape_cast %11 : vector<1x1x128xf32> to vector<1x1x1x128xf32>
    %13 = vector.broadcast %12 : vector<1x1x1x128xf32> to vector<1x8x32x128xf32>
    %14 = arith.addf %10, %13 : vector<1x8x32x128xf32>
    %c0_10 = arith.constant 0 : index
    %c0_11 = arith.constant 0 : index
    %c0_12 = arith.constant 0 : index
    %c0_13 = arith.constant 0 : index
    %15 = vector.load %arg6[%c0_10, %c0_11, %c0_12, %c0_13] : memref<1x8x32x128xf32, #tpu.memory_space<vmem>>, vector<1x8x32x128xf32>
    tpu.vector_store %arg6[%c0_10, %c0_11, %c0_12, %c0_13], %14 {strides = array<i32>} : memref<1x8x32x128xf32, #tpu.memory_space<vmem>>, vector<1x8x32x128xf32>,
    return
  }
  func.func @transform_0(%arg0: i32, %arg1: i32) -> (i32, i32, i32, i32) {
    %c0_i32 = arith.constant 0 : i32
    %c0_i32_0 = arith.constant 0 : i32
    %c0_i32_1 = arith.constant 0 : i32
    return %arg0, %arg1, %c0_i32, %c0_i32_0 : i32, i32, i32, i32
  }
  func.func @transform_1(%arg0: i32, %arg1: i32) -> (i32, i32) {
    %c0_i32 = arith.constant 0 : i32
    %c0_i32_0 = arith.constant 0 : i32
    %c0_i32_1 = arith.constant 0 : i32
    return %c0_i32, %c0_i32_0 : i32, i32
  }
  func.func @transform_2(%arg0: i32, %arg1: i32) -> (i32, i32) {
    %c0_i32 = arith.constant 0 : i32
    %c0_i32_0 = arith.constant 0 : i32
    %c0_i32_1 = arith.constant 0 : i32
    return %c0_i32, %c0_i32_0 : i32, i32
  }
  func.func @transform_3(%arg0: i32, %arg1: i32) -> (i32, i32, i32) {
    %c0_i32 = arith.constant 0 : i32
    %c0_i32_0 = arith.constant 0 : i32
    %c0_i32_1 = arith.constant 0 : i32
    return %arg0, %c0_i32, %c0_i32_0 : i32, i32, i32
  }
  func.func @transform_4(%arg0: i32, %arg1: i32) -> (i32, i32, i32, i32) {
    %c0_i32 = arith.constant 0 : i32
    %c0_i32_0 = arith.constant 0 : i32
    %c0_i32_1 = arith.constant 0 : i32
    return %arg0, %arg1, %c0_i32, %c0_i32_0 : i32, i32, i32, i32
  }
}

</mosaic_0001>

<llo_original>
// kernel: tile.8
$region0: #{tile.8}
  #allocation0 [shape = 's32[1]{0}', space=sflag, size = 0x4, scoped, tag = 'scoped memory for tile.8']
  %s0 = inlined_call_operand.vmem [shape: f32[128], index: 0, kind: input, shape index: {}]
  %s1 = inlined_call_operand.vmem [shape: f32[4,128], index: 1, kind: output, shape index: {}]
  // Predicated region
  $region2: #{tile.8} parent=0 // pred_check
    _
  $region3: #{tile.8} parent=0 // pred_check_branch
    %3 = sbr.rel (0) target = $region5
  $region4: #{tile.8} parent=0 // pred_region
    _
  $region5: #{tile.8} parent=0 // pred_fallthru
    _
  %v4 = vld [vmem:[%s0] ss:$0 sm:$0xff]
  %5 = vst [vmem:[%s1] sm:$0xf] %v4

// kernel: decoder_block_forward.5
$region0: #{decoder_block_forward.5}
  #allocation0 [shape = 'u32[]', space=smem, size = 0x4, offset = 0x4, fixed_abs, tag = 'smem constant byte address 0x4 - core index']
  #allocation1 [shape = 'u32[144,128]{1,0:T(1,128)}', space=vmem, size = 0x12000, scoped, tag = 'internal scratch']
  %s0 = inlined_call_operand.vmem [shape: bf16[512,8], index: 0, kind: input, shape index: {}]
  %s1 = inlined_call_operand.vmem [shape: bf16[8,512], index: 1, kind: input, shape index: {}]
  %s2 = inlined_call_operand.vmem [shape: f32[1,512], index: 2, kind: input, shape index: {}]
  %s3 = inlined_call_operand.vmem [shape: f32[512,512], index: 3, kind: output, shape index: {}]
  %s4 = sld [smem:[#allocation0]]
  $region45: #{decoder_block_forward.5} parent=0
    _
  %s6 = ssub.s32 1, %s4
  %s7 = scalar_select 0, %s6, %s4
  loop: start=0, step=1, limit=4
  $region2: #{decoder_block_forward.5} parent=0 // loop_pre_header
    _
  $region3: #{decoder_block_forward.5} parent=0 // loop_header
    %s9 = sphi 0, %s13
    %p10 = scmp.ge.s32.totalorder %s9, 4
    %s19 = sphi 0, %s21
    %s22 = sphi 0, %s19
    %s23 = sphi 0, %s22
    %s39 = sphi 0, %s23
    %s43 = sphi 0, %s43
    %s45 = sphi 0, %s43
    %s46 = sphi 0, %s45
    %s60 = sphi 0, %s46
    %s64 = sphi 0, %s64
    %s66 = sphi 0, %s64
    %s67 = sphi 0, %s66
    %s81 = sphi 0, %s67
    %s87 = sphi 0, %s89
    %s90 = sphi 0, %s87
    %s91 = sphi 0, %s90
    %s107 = sphi 0, %s91
  $region4: #{decoder_block_forward.5} parent=0 // loop_header_branch
    %12 = sbr.rel (%p10) target = $region8
  $region5: #{decoder_block_forward.5} parent=0 // loop_body
    %s14 = ssub.s32 %s9, 1
    %s15 = ssub.s32 %s9, 2
    %s16 = sadd.s32 %s9, 1
    %s17 = ssub.s32 %s9, %s16
    %p18 = scmp.eq.s32.totalorder %s17, 0
    %s20 = sadd.s32 %s19, 1
    %s21 = scalar_select %p18, %s19, %s20
    %p24 = pneg %p18
    %p25 = scmp.eq.s32.totalorder %s9, 1
    %p26 = por %p24, %p25
    %p27 = scmp.ne.s32.totalorder %s19, %s22
    %p28 = scmp.eq.s32.totalorder %s9, 0
    %p29 = por %p27, %p28
    %p30 = scmp.ne.s32.totalorder %s19, %s22
    %p31 = scmp.eq.s32.totalorder %s14, 1
    %p32 = por %p30, %p31
    %p33 = scmp.ne.s32.totalorder %s22, %s23
    %p34 = scmp.eq.s32.totalorder %s14, 0
    %p35 = por %p33, %p34
    %p36 = scmp.ne.s32.totalorder %s22, %s23
    %p37 = scmp.eq.s32.totalorder %s15, 1
    %p38 = por %p36, %p37
    %p40 = scmp.ne.s32.totalorder %s23, %s39
    %p41 = scmp.eq.s32.totalorder %s15, 0
    %p42 = por %p40, %p41
    %s44 = sadd.s32 %s43, 1
    %p47 = scmp.eq.s32.totalorder %s9, 1
    %p48 = scmp.ne.s32.totalorder %s43, %s45
    %p49 = scmp.eq.s32.totalorder %s9, 0
    %p50 = por %p48, %p49
    %p51 = scmp.ne.s32.totalorder %s43, %s45
    %p52 = scmp.eq.s32.totalorder %s14, 1
    %p53 = por %p51, %p52
    %p54 = scmp.ne.s32.totalorder %s45, %s46
    %p55 = scmp.eq.s32.totalorder %s14, 0
    %p56 = por %p54, %p55
    %p57 = scmp.ne.s32.totalorder %s45, %s46
    %p58 = scmp.eq.s32.totalorder %s15, 1
    %p59 = por %p57, %p58
    %p61 = scmp.ne.s32.totalorder %s46, %s60
    %p62 = scmp.eq.s32.totalorder %s15, 0
    %p63 = por %p61, %p62
    %s65 = sadd.s32 %s64, 1
    %p68 = scmp.eq.s32.totalorder %s9, 1
    %p69 = scmp.ne.s32.totalorder %s64, %s66
    %p70 = scmp.eq.s32.totalorder %s9, 0
    %p71 = por %p69, %p70
    %p72 = scmp.ne.s32.totalorder %s64, %s66
    %p73 = scmp.eq.s32.totalorder %s14, 1
    %p74 = por %p72, %p73
    %p75 = scmp.ne.s32.totalorder %s66, %s67
    %p76 = scmp.eq.s32.totalorder %s14, 0
    %p77 = por %p75, %p76
    %p78 = scmp.ne.s32.totalorder %s66, %s67
    %p79 = scmp.eq.s32.totalorder %s15, 1
    %p80 = por %p78, %p79
    %p82 = scmp.ne.s32.totalorder %s67, %s81
    %p83 = scmp.eq.s32.totalorder %s15, 0
    %p84 = por %p82, %p83
    %s85 = ssub.s32 %s9, %s16
    %p86 = scmp.eq.s32.totalorder %s85, 0
    %s88 = sadd.s32 %s87, 1
    %s89 = scalar_select %p86, %s87, %s88
    %p92 = pneg %p86
    %p93 = scmp.eq.s32.totalorder %s9, 1
    %p94 = por %p92, %p93
    %p95 = scmp.ne.s32.totalorder %s87, %s90
    %p96 = scmp.eq.s32.totalorder %s9, 0
    %p97 = por %p95, %p96
    %p98 = scmp.ne.s32.totalorder %s87, %s90
    %p99 = scmp.eq.s32.totalorder %s14, 1
    %p100 = por %p98, %p99
    %p101 = scmp.ne.s32.totalorder %s90, %s91
    %p102 = scmp.eq.s32.totalorder %s14, 0
    %p103 = por %p101, %p102
    %p104 = scmp.ne.s32.totalorder %s90, %s91
    %p105 = scmp.eq.s32.totalorder %s15, 1
    %p106 = por %p104, %p105
    %p108 = scmp.ne.s32.totalorder %s91, %s107
    %p109 = scmp.eq.s32.totalorder %s15, 0
    %p110 = por %p108, %p109
    %p111 = scmp.le.s32.totalorder 1, %s9
    %p112 = scmp.lt.s32.totalorder %s9, 3
    %p113 = pnand %p111, %p112
    %p114 = pneg %p113
    // Predicated region
    $region9: #{decoder_block_forward.5} parent=5 // pred_check
      _
    $region10: #{decoder_block_forward.5} parent=5 // pred_check_branch
      %116 = sbr.rel (%p113) target = $region12
    $region11: #{decoder_block_forward.5} parent=5 // pred_region
      %s117 = ssub.s32 %s9, 1
      // Predicated region
      $region13: #{decoder_block_forward.5} parent=11 // pred_check
        %p118 = pneg %p56
      $region14: #{decoder_block_forward.5} parent=11 // pred_check_branch
        %120 = sbr.rel (%p118) target = $region16
      $region15: #{decoder_block_forward.5} parent=11 // pred_region
        _
      $region16: #{decoder_block_forward.5} parent=11 // pred_fallthru
        _
      // Predicated region
      $region17: #{decoder_block_forward.5} parent=11 // pred_check
        %p121 = pneg %p77
      $region18: #{decoder_block_forward.5} parent=11 // pred_check_branch
        %123 = sbr.rel (%p121) target = $region20
      $region19: #{decoder_block_forward.5} parent=11 // pred_region
        _
      $region20: #{decoder_block_forward.5} parent=11 // pred_fallthru
        _
    $region12: #{decoder_block_forward.5} parent=5 // pred_fallthru
      _
    %p124 = scmp.lt.s32.totalorder %s9, 2
    // Predicated region
    $region21: #{decoder_block_forward.5} parent=5 // pred_check
      %p125 = pneg %p124
    $region22: #{decoder_block_forward.5} parent=5 // pred_check_branch
      %127 = sbr.rel (%p125) target = $region24
    $region23: #{decoder_block_forward.5} parent=5 // pred_region
      // Predicated region
      $region25: #{decoder_block_forward.5} parent=23 // pred_check
        %p128 = pneg %p29
      $region26: #{decoder_block_forward.5} parent=23 // pred_check_branch
        %130 = sbr.rel (%p128) target = $region28
      $region27: #{decoder_block_forward.5} parent=23 // pred_region
        %s131 = smul.u32 32, %s9
        %p132 = scmp.lt.s32.totalorder %s131, 63
        %s133 = scalar_select %p132, %s131, 63
        %s134 = smul.addr %s133, 4
        %s135 = scalar_lea.vmem %s0, %s134
        %s136 = smul.u32 32, %s9
      $region28: #{decoder_block_forward.5} parent=23 // pred_fallthru
        _
    $region24: #{decoder_block_forward.5} parent=5 // pred_fallthru
      _
    %p137 = scmp.le.s32.totalorder 1, %s9
    %p138 = scmp.lt.s32.totalorder %s9, 3
    %p139 = pnand %p137, %p138
    %p140 = pneg %p139
    // Predicated region
    $region29: #{decoder_block_forward.5} parent=5 // pred_check
      _
    $region30: #{decoder_block_forward.5} parent=5 // pred_check_branch
      %142 = sbr.rel (%p139) target = $region32
    $region31: #{decoder_block_forward.5} parent=5 // pred_region
      %s143 = ssub.s32 %s9, 1
      %s144 = smul.u32 32, %s14
      %p145 = scmp.lt.s32.totalorder %s144, 63
      %s146 = scalar_select %p145, %s144, 63
      %s147 = smul.addr %s146, 4
      %s148 = scalar_lea.vmem %s0, %s147
      %p149 = pneg %p35
      %p150 = pneg %p32
      %p151 = pneg %p56
      %p152 = pneg %p53
      %p153 = pneg %p77
      %p154 = pneg %p74
      %p155 = pneg %p103
      %p156 = pneg %p100
      %s157 = smul.u32 32, %s14
      %p158 = scmp.lt.s32.totalorder %s157, 63
      %s159 = scalar_select %p158, %s157, 63
      %s160 = smul.addr %s159, 4
      %s161 = smul.addr %s160, 8
      %s162 = scalar_lea.vmem %s3, %s161
      %s163 = smul.u32 32, %s14
      %p164 = scmp.lt.s32.totalorder %s163, 63
      %s165 = scalar_select %p164, %s163, 63
      %s166 = smul.addr %s165, 4
      %s167 = scalar_lea.vmem %s0, %s166
      %s168 = smul.u32 32, %s14
      %s169 = smul.u32 32, %s14
      %p170 = scmp.lt.s32.totalorder %s169, 63
      %s171 = scalar_select %p170, %s169, 63
      %s172 = smul.addr %s171, 4
      %s173 = smul.addr %s172, 8
      %s174 = scalar_lea.vmem %s3, %s173
      %s175 = smul.u32 32, %s14
      %v177 = vld [vmem:[%s167] sm:$0xf]
      %v178 = vld [vmem:[%s167 + $0x4] sm:$0xf]
      %v179 = vld [vmem:[%s167 + $0x8] sm:$0xf]
      %v180 = vld [vmem:[%s167 + $0xc] sm:$0xf]
      %v181 = vld [vmem:[%s167 + $0x10] sm:$0xf]
      %v182 = vld [vmem:[%s167 + $0x14] sm:$0xf]
      %v183 = vld [vmem:[%s167 + $0x18] sm:$0xf]
      %v184 = vld [vmem:[%s167 + $0x1c] sm:$0xf]
      %v185 = vld [vmem:[%s167 + $0x20] sm:$0xf]
      %v186 = vld [vmem:[%s167 + $0x24] sm:$0xf]
      %v187 = vld [vmem:[%s167 + $0x28] sm:$0xf]
      %v188 = vld [vmem:[%s167 + $0x2c] sm:$0xf]
      %v189 = vld [vmem:[%s167 + $0x30] sm:$0xf]
      %v190 = vld [vmem:[%s167 + $0x34] sm:$0xf]
      %v191 = vld [vmem:[%s167 + $0x38] sm:$0xf]
      %v192 = vld [vmem:[%s167 + $0x3c] sm:$0xf]
      %v193 = vld [vmem:[%s167 + $0x40] sm:$0xf]
      %v194 = vld [vmem:[%s167 + $0x44] sm:$0xf]
      %v195 = vld [vmem:[%s167 + $0x48] sm:$0xf]
      %v196 = vld [vmem:[%s167 + $0x4c] sm:$0xf]
      %v197 = vld [vmem:[%s167 + $0x50] sm:$0xf]
      %v198 = vld [vmem:[%s167 + $0x54] sm:$0xf]
      %v199 = vld [vmem:[%s167 + $0x58] sm:$0xf]
      %v200 = vld [vmem:[%s167 + $0x5c] sm:$0xf]
      %v201 = vld [vmem:[%s167 + $0x60] sm:$0xf]
      %v202 = vld [vmem:[%s167 + $0x64] sm:$0xf]
      %v203 = vld [vmem:[%s167 + $0x68] sm:$0xf]
      %v204 = vld [vmem:[%s167 + $0x6c] sm:$0xf]
      %v205 = vld [vmem:[%s167 + $0x70] sm:$0xf]
      %v206 = vld [vmem:[%s167 + $0x74] sm:$0xf]
      %v207 = vld [vmem:[%s167 + $0x78] sm:$0xf]
      %v208 = vld [vmem:[%s167 + $0x7c] sm:$0xf]
      %v209 = vld [vmem:[%s1] sm:$0xff]
      %v210 = vld [vmem:[%s1 + $0x8] sm:$0xff]
      %v211 = vld [vmem:[%s2] sm:$0xf]
      %v213 = vlaneseq
      %v214 = vshrl.u32 %v213, 7
      %v215 = vsub.s32 0, %v214
      %v216 = vrot.slane %v211, %v215
      %v217 = vlaneseq
      %v218 = vshrl.u32 %v217, 7
      %v219 = vsub.s32 1, %v218
      %v220 = vrot.slane %v211, %v219
      %v221 = vlaneseq
      %v222 = vshrl.u32 %v221, 7
      %v223 = vsub.s32 2, %v222
      %v224 = vrot.slane %v211, %v223
      %v225 = vlaneseq
      %v226 = vshrl.u32 %v225, 7
      %v227 = vsub.s32 3, %v226
      %v228 = vrot.slane %v211, %v227
      %v265 = vunpack.c.l.b16 %v177
      %v266 = vunpack.c.l.b16 %v178
      %v267 = vunpack.c.l.b16 %v179
      %v268 = vunpack.c.l.b16 %v180
      %v269 = vunpack.c.l.b16 %v181
      %v270 = vunpack.c.l.b16 %v182
      %v271 = vunpack.c.l.b16 %v183
      %v272 = vunpack.c.l.b16 %v184
      %v273 = vunpack.c.l.b16 %v185
      %v274 = vunpack.c.l.b16 %v186
      %v275 = vunpack.c.l.b16 %v187
      %v276 = vunpack.c.l.b16 %v188
      %v277 = vunpack.c.l.b16 %v189
      %v278 = vunpack.c.l.b16 %v190
      %v279 = vunpack.c.l.b16 %v191
      %v280 = vunpack.c.l.b16 %v192
      %v281 = vunpack.c.l.b16 %v193
      %v282 = vunpack.c.l.b16 %v194
      %v283 = vunpack.c.l.b16 %v195
      %v284 = vunpack.c.l.b16 %v196
      %v285 = vunpack.c.l.b16 %v197
      %v286 = vunpack.c.l.b16 %v198
      %v287 = vunpack.c.l.b16 %v199
      %v288 = vunpack.c.l.b16 %v200
      %v289 = vunpack.c.l.b16 %v201
      %v290 = vunpack.c.l.b16 %v202
      %v291 = vunpack.c.l.b16 %v203
      %v292 = vunpack.c.l.b16 %v204
      %v293 = vunpack.c.l.b16 %v205
      %v294 = vunpack.c.l.b16 %v206
      %v295 = vunpack.c.l.b16 %v207
      %v296 = vunpack.c.l.b16 %v208
      %v297 = vpack.c.b16 %v266, %v265
      %v298 = vpack.c.b16 %v268, %v267
      %v299 = vpack.c.b16 %v270, %v269
      %v300 = vpack.c.b16 %v272, %v271
      %v301 = vpack.c.b16 %v274, %v273
      %v302 = vpack.c.b16 %v276, %v275
      %v303 = vpack.c.b16 %v278, %v277
      %v304 = vpack.c.b16 %v280, %v279
      %v305 = vpack.c.b16 %v282, %v281
      %v306 = vpack.c.b16 %v284, %v283
      %v307 = vpack.c.b16 %v286, %v285
      %v308 = vpack.c.b16 %v288, %v287
      %v309 = vpack.c.b16 %v290, %v289
      %v310 = vpack.c.b16 %v292, %v291
      %v311 = vpack.c.b16 %v294, %v293
      %v312 = vpack.c.b16 %v296, %v295
      %v315 = vunpack.c.l.b16 %v209
      %v316 = vunpack.c.h.b16 %v209
      %v317 = vunpack.c.l.b16 %v210
      %v318 = vunpack.c.h.b16 %v210
      %v319 = vpack.c.b16 %v315, %v315
      %v320 = vpack.c.b16 %v316, %v316
      %v321 = vpack.c.b16 %v317, %v317
      %v322 = vpack.c.b16 %v318, %v318
      %vm323 = vcmask 64512
      %v325 = vsel %vm323, %v297, 0
      %v328 = vsel %vm323, %v298, 0
      %v331 = vsel %vm323, %v299, 0
      %v334 = vsel %vm323, %v300, 0
      %v337 = vsel %vm323, %v301, 0
      %v340 = vsel %vm323, %v302, 0
      %v343 = vsel %vm323, %v303, 0
      %v346 = vsel %vm323, %v304, 0
      %v349 = vsel %vm323, %v305, 0
      %v352 = vsel %vm323, %v306, 0
      %v355 = vsel %vm323, %v307, 0
      %v358 = vsel %vm323, %v308, 0
      %v361 = vsel %vm323, %v309, 0
      %v364 = vsel %vm323, %v310, 0
      %v367 = vsel %vm323, %v311, 0
      %v370 = vsel %vm323, %v312, 0
      %vm372 = vcmask 1043456
      %v374 = vsel %vm372, %v319, 0
      %v377 = vsel %vm372, %v320, 0
      %v380 = vsel %vm372, %v321, 0
      %v383 = vsel %vm372, %v322, 0
      %385 = vmatprep.subr.bf16.mxu0 %v377
      %386 = vmatpush1.bf16.msra.mxu0 %v374
      %387 = vmatprep.subr.bf16.mxu0 0
      %388 = vmatpush1.bf16.msra.mxu0 0
      %389 = vmatprep.subr.bf16.mxu0 0
      %390 = vmatpush1.bf16.msra.mxu0 0
      %391 = vmatprep.subr.bf16.mxu0 0
      %392 = vmatpush1.bf16.msra.mxu0 0
      %393 = vmatprep.subr.bf16.mxu0 0
      %394 = vmatpush1.bf16.msra.mxu0 0
      %395 = vmatprep.subr.bf16.mxu0 0
      %396 = vmatpush1.bf16.msra.mxu0 0
      %397 = vmatprep.subr.bf16.mxu0 0
      %398 = vmatpush1.bf16.msra.mxu0 0
      %399 = vmatprep.subr.bf16.mxu0 0
      %400 = vmatpush1.bf16.msra.mxu0 0
      %401 = vmatprep.subr.bf16.mxu0 0
      %402 = vmatpush1.bf16.msra.mxu0 0
      %403 = vmatprep.subr.bf16.mxu0 0
      %404 = vmatpush1.bf16.msra.mxu0 0
      %405 = vmatprep.subr.bf16.mxu0 0
      %406 = vmatpush1.bf16.msra.mxu0 0
      %407 = vmatprep.subr.bf16.mxu0 0
      %408 = vmatpush1.bf16.msra.mxu0 0
      %409 = vmatprep.subr.bf16.mxu0 0
      %410 = vmatpush1.bf16.msra.mxu0 0
      %411 = vmatprep.subr.bf16.mxu0 0
      %412 = vmatpush1.bf16.msra.mxu0 0
      %413 = vmatprep.subr.bf16.mxu0 0
      %414 = vmatpush1.bf16.msra.mxu0 0
      %415 = vmatprep.subr.bf16.mxu0 0
      %416 = vmatpush1.bf16.msra.mxu0 0
      %417 = vmatprep.mubr.bf16.mxu0 0
      %418 = vmatmul.mubr.bf16.gmra.mrb[0].mxu0 %v325
      %v419 = vpop.f32.mrb[0].mxu0
      %v420 = vadd.f32 %v216, %v419
      %v421 = vpop.f32.mrb[0].mxu0
      %v422 = vadd.f32 %v220, %v421
      %v423 = vpop.f32.mrb[0].mxu0
      %v424 = vadd.f32 %v216, %v423
      %v425 = vpop.f32.mrb[0].mxu0
      %v426 = vadd.f32 %v220, %v425
      %427 = vmatprep.mubr.bf16.mxu0 0
      %428 = vmatmul.mubr.bf16.gmra.mrb[0].mxu0 %v328
      %v429 = vpop.f32.mrb[0].mxu0
      %v430 = vadd.f32 %v216, %v429
      %v431 = vpop.f32.mrb[0].mxu0
      %v432 = vadd.f32 %v220, %v431
      %v433 = vpop.f32.mrb[0].mxu0
      %v434 = vadd.f32 %v216, %v433
      %v435 = vpop.f32.mrb[0].mxu0
      %v436 = vadd.f32 %v220, %v435
      %437 = vmatprep.mubr.bf16.mxu0 0
      %438 = vmatmul.mubr.bf16.gmra.mrb[0].mxu0 %v331
      %v439 = vpop.f32.mrb[0].mxu0
      %v440 = vadd.f32 %v216, %v439
      %v441 = vpop.f32.mrb[0].mxu0
      %v442 = vadd.f32 %v220, %v441
      %v443 = vpop.f32.mrb[0].mxu0
      %v444 = vadd.f32 %v216, %v443
      %v445 = vpop.f32.mrb[0].mxu0
      %v446 = vadd.f32 %v220, %v445
      %447 = vmatprep.mubr.bf16.mxu0 0
      %448 = vmatmul.mubr.bf16.gmra.mrb[0].mxu0 %v334
      %v449 = vpop.f32.mrb[0].mxu0
      %v450 = vadd.f32 %v216, %v449
      %v451 = vpop.f32.mrb[0].mxu0
      %v452 = vadd.f32 %v220, %v451
      %v453 = vpop.f32.mrb[0].mxu0
      %v454 = vadd.f32 %v216, %v453
      %v455 = vpop.f32.mrb[0].mxu0
      %v456 = vadd.f32 %v220, %v455
      %457 = vmatprep.mubr.bf16.mxu0 0
      %458 = vmatmul.mubr.bf16.gmra.mrb[0].mxu0 %v337
      %v459 = vpop.f32.mrb[0].mxu0
      %v460 = vadd.f32 %v216, %v459
      %v461 = vpop.f32.mrb[0].mxu0
      %v462 = vadd.f32 %v220, %v461
      %v463 = vpop.f32.mrb[0].mxu0
      %v464 = vadd.f32 %v216, %v463
      %v465 = vpop.f32.mrb[0].mxu0
      %v466 = vadd.f32 %v220, %v465
      %467 = vmatprep.mubr.bf16.mxu0 0
      %468 = vmatmul.mubr.bf16.gmra.mrb[0].mxu0 %v340
      %v469 = vpop.f32.mrb[0].mxu0
      %v470 = vadd.f32 %v216, %v469
      %v471 = vpop.f32.mrb[0].mxu0
      %v472 = vadd.f32 %v220, %v471
      %v473 = vpop.f32.mrb[0].mxu0
      %v474 = vadd.f32 %v216, %v473
      %v475 = vpop.f32.mrb[0].mxu0
      %v476 = vadd.f32 %v220, %v475
      %477 = vmatprep.mubr.bf16.mxu0 0
      %478 = vmatmul.mubr.bf16.gmra.mrb[0].mxu0 %v343
      %v479 = vpop.f32.mrb[0].mxu0
      %v480 = vadd.f32 %v216, %v479
      %v481 = vpop.f32.mrb[0].mxu0
      %v482 = vadd.f32 %v220, %v481
      %v483 = vpop.f32.mrb[0].mxu0
      %v484 = vadd.f32 %v216, %v483
      %v485 = vpop.f32.mrb[0].mxu0
      %v486 = vadd.f32 %v220, %v485
      %487 = vmatprep.mubr.bf16.mxu0 0
      %488 = vmatmul.mubr.bf16.gmra.mrb[0].mxu0 %v346
      %v489 = vpop.f32.mrb[0].mxu0
      %v490 = vadd.f32 %v216, %v489
      %v491 = vpop.f32.mrb[0].mxu0
      %v492 = vadd.f32 %v220, %v491
      %v493 = vpop.f32.mrb[0].mxu0
      %v494 = vadd.f32 %v216, %v493
      %v495 = vpop.f32.mrb[0].mxu0
      %v496 = vadd.f32 %v220, %v495
      %497 = vmatprep.mubr.bf16.mxu0 0
      %498 = vmatmul.mubr.bf16.gmra.mrb[0].mxu0 %v349
      %v499 = vpop.f32.mrb[0].mxu0
      %v500 = vadd.f32 %v216, %v499
      %v501 = vpop.f32.mrb[0].mxu0
      %v502 = vadd.f32 %v220, %v501
      %v503 = vpop.f32.mrb[0].mxu0
      %v504 = vadd.f32 %v216, %v503
      %v505 = vpop.f32.mrb[0].mxu0
      %v506 = vadd.f32 %v220, %v505
      %507 = vmatprep.mubr.bf16.mxu0 0
      %508 = vmatmul.mubr.bf16.gmra.mrb[0].mxu0 %v352
      %v509 = vpop.f32.mrb[0].mxu0
      %v510 = vadd.f32 %v216, %v509
      %v511 = vpop.f32.mrb[0].mxu0
      %v512 = vadd.f32 %v220, %v511
      %v513 = vpop.f32.mrb[0].mxu0
      %v514 = vadd.f32 %v216, %v513
      %v515 = vpop.f32.mrb[0].mxu0
      %v516 = vadd.f32 %v220, %v515
      %517 = vmatprep.mubr.bf16.mxu0 0
      %518 = vmatmul.mubr.bf16.gmra.mrb[0].mxu0 %v355
      %v519 = vpop.f32.mrb[0].mxu0
      %v520 = vadd.f32 %v216, %v519
      %v521 = vpop.f32.mrb[0].mxu0
      %v522 = vadd.f32 %v220, %v521
      %v523 = vpop.f32.mrb[0].mxu0
      %v524 = vadd.f32 %v216, %v523
      %v525 = vpop.f32.mrb[0].mxu0
      %v526 = vadd.f32 %v220, %v525
      %527 = vmatprep.mubr.bf16.mxu0 0
      %528 = vmatmul.mubr.bf16.gmra.mrb[0].mxu0 %v358
      %v529 = vpop.f32.mrb[0].mxu0
      %v530 = vadd.f32 %v216, %v529
      %v531 = vpop.f32.mrb[0].mxu0
      %v532 = vadd.f32 %v220, %v531
      %v533 = vpop.f32.mrb[0].mxu0
      %v534 = vadd.f32 %v216, %v533
      %v535 = vpop.f32.mrb[0].mxu0
      %v536 = vadd.f32 %v220, %v535
      %537 = vmatprep.mubr.bf16.mxu0 0
      %538 = vmatmul.mubr.bf16.gmra.mrb[0].mxu0 %v361
      %v539 = vpop.f32.mrb[0].mxu0
      %v540 = vadd.f32 %v216, %v539
      %v541 = vpop.f32.mrb[0].mxu0
      %v542 = vadd.f32 %v220, %v541
      %v543 = vpop.f32.mrb[0].mxu0
      %v544 = vadd.f32 %v216, %v543
      %v545 = vpop.f32.mrb[0].mxu0
      %v546 = vadd.f32 %v220, %v545
      %547 = vmatprep.mubr.bf16.mxu0 0
      %548 = vmatmul.mubr.bf16.gmra.mrb[0].mxu0 %v364
      %v549 = vpop.f32.mrb[0].mxu0
      %v550 = vadd.f32 %v216, %v549
      %v551 = vpop.f32.mrb[0].mxu0
      %v552 = vadd.f32 %v220, %v551
      %v553 = vpop.f32.mrb[0].mxu0
      %v554 = vadd.f32 %v216, %v553
      %v555 = vpop.f32.mrb[0].mxu0
      %v556 = vadd.f32 %v220, %v555
      %557 = vmatprep.mubr.bf16.mxu0 0
      %558 = vmatmul.mubr.bf16.gmra.mrb[0].mxu0 %v367
      %v559 = vpop.f32.mrb[0].mxu0
      %v560 = vadd.f32 %v216, %v559
      %v561 = vpop.f32.mrb[0].mxu0
      %v562 = vadd.f32 %v220, %v561
      %v563 = vpop.f32.mrb[0].mxu0
      %v564 = vadd.f32 %v216, %v563
      %v565 = vpop.f32.mrb[0].mxu0
      %v566 = vadd.f32 %v220, %v565
      %567 = vmatprep.mubr.bf16.mxu0 0
      %568 = vmatmul.mubr.bf16.gmra.mrb[0].mxu0 %v370
      %v569 = vpop.f32.mrb[0].mxu0
      %v570 = vadd.f32 %v216, %v569
      %v571 = vpop.f32.mrb[0].mxu0
      %v572 = vadd.f32 %v220, %v571
      %v573 = vpop.f32.mrb[0].mxu0
      %v574 = vadd.f32 %v216, %v573
      %v575 = vpop.f32.mrb[0].mxu0
      %v576 = vadd.f32 %v220, %v575
      %577 = vdwg.mxu0
      %578 = vmatprep.subr.bf16.mxu0 %v383
      %579 = vmatpush1.bf16.msra.mxu0 %v380
      %580 = vmatprep.subr.bf16.mxu0 0
      %581 = vmatpush1.bf16.msra.mxu0 0
      %582 = vmatprep.subr.bf16.mxu0 0
      %583 = vmatpush1.bf16.msra.mxu0 0
      %584 = vmatprep.subr.bf16.mxu0 0
      %585 = vmatpush1.bf16.msra.mxu0 0
      %586 = vmatprep.subr.bf16.mxu0 0
      %587 = vmatpush1.bf16.msra.mxu0 0
      %588 = vmatprep.subr.bf16.mxu0 0
      %589 = vmatpush1.bf16.msra.mxu0 0
      %590 = vmatprep.subr.bf16.mxu0 0
      %591 = vmatpush1.bf16.msra.mxu0 0
      %592 = vmatprep.subr.bf16.mxu0 0
      %593 = vmatpush1.bf16.msra.mxu0 0
      %594 = vmatprep.subr.bf16.mxu0 0
      %595 = vmatpush1.bf16.msra.mxu0 0
      %596 = vmatprep.subr.bf16.mxu0 0
      %597 = vmatpush1.bf16.msra.mxu0 0
      %598 = vmatprep.subr.bf16.mxu0 0
      %599 = vmatpush1.bf16.msra.mxu0 0
      %600 = vmatprep.subr.bf16.mxu0 0
      %601 = vmatpush1.bf16.msra.mxu0 0
      %602 = vmatprep.subr.bf16.mxu0 0
      %603 = vmatpush1.bf16.msra.mxu0 0
      %604 = vmatprep.subr.bf16.mxu0 0
      %605 = vmatpush1.bf16.msra.mxu0 0
      %606 = vmatprep.subr.bf16.mxu0 0
      %607 = vmatpush1.bf16.msra.mxu0 0
      %608 = vmatprep.subr.bf16.mxu0 0
      %609 = vmatpush1.bf16.msra.mxu0 0
      %610 = vmatprep.mubr.bf16.mxu0 0
      %611 = vmatmul.mubr.bf16.gmra.mrb[0].mxu0 %v325
      %v612 = vpop.f32.mrb[0].mxu0
      %v613 = vadd.f32 %v224, %v612
      %v614 = vpop.f32.mrb[0].mxu0
      %v615 = vadd.f32 %v228, %v614
      %v616 = vpop.f32.mrb[0].mxu0
      %v617 = vadd.f32 %v224, %v616
      %v618 = vpop.f32.mrb[0].mxu0
      %v619 = vadd.f32 %v228, %v618
      %620 = vmatprep.mubr.bf16.mxu0 0
      %621 = vmatmul.mubr.bf16.gmra.mrb[0].mxu0 %v328
      %v622 = vpop.f32.mrb[0].mxu0
      %v623 = vadd.f32 %v224, %v622
      %v624 = vpop.f32.mrb[0].mxu0
      %v625 = vadd.f32 %v228, %v624
      %v626 = vpop.f32.mrb[0].mxu0
      %v627 = vadd.f32 %v224, %v626
      %v628 = vpop.f32.mrb[0].mxu0
      %v629 = vadd.f32 %v228, %v628
      %630 = vmatprep.mubr.bf16.mxu0 0
      %631 = vmatmul.mubr.bf16.gmra.mrb[0].mxu0 %v331
      %v632 = vpop.f32.mrb[0].mxu0
      %v633 = vadd.f32 %v224, %v632
      %v634 = vpop.f32.mrb[0].mxu0
      %v635 = vadd.f32 %v228, %v634
      %v636 = vpop.f32.mrb[0].mxu0
      %v637 = vadd.f32 %v224, %v636
      %v638 = vpop.f32.mrb[0].mxu0
      %v639 = vadd.f32 %v228, %v638
      %640 = vmatprep.mubr.bf16.mxu0 0
      %641 = vmatmul.mubr.bf16.gmra.mrb[0].mxu0 %v334
      %v642 = vpop.f32.mrb[0].mxu0
      %v643 = vadd.f32 %v224, %v642
      %v644 = vpop.f32.mrb[0].mxu0
      %v645 = vadd.f32 %v228, %v644
      %v646 = vpop.f32.mrb[0].mxu0
      %v647 = vadd.f32 %v224, %v646
      %v648 = vpop.f32.mrb[0].mxu0
      %v649 = vadd.f32 %v228, %v648
      %650 = vmatprep.mubr.bf16.mxu0 0
      %651 = vmatmul.mubr.bf16.gmra.mrb[0].mxu0 %v337
      %v652 = vpop.f32.mrb[0].mxu0
      %v653 = vadd.f32 %v224, %v652
      %v654 = vpop.f32.mrb[0].mxu0
      %v655 = vadd.f32 %v228, %v654
      %v656 = vpop.f32.mrb[0].mxu0
      %v657 = vadd.f32 %v224, %v656
      %v658 = vpop.f32.mrb[0].mxu0
      %v659 = vadd.f32 %v228, %v658
      %660 = vmatprep.mubr.bf16.mxu0 0
      %661 = vmatmul.mubr.bf16.gmra.mrb[0].mxu0 %v340
      %v662 = vpop.f32.mrb[0].mxu0
      %v663 = vadd.f32 %v224, %v662
      %v664 = vpop.f32.mrb[0].mxu0
      %v665 = vadd.f32 %v228, %v664
      %v666 = vpop.f32.mrb[0].mxu0
      %v667 = vadd.f32 %v224, %v666
      %v668 = vpop.f32.mrb[0].mxu0
      %v669 = vadd.f32 %v228, %v668
      %670 = vmatprep.mubr.bf16.mxu0 0
      %671 = vmatmul.mubr.bf16.gmra.mrb[0].mxu0 %v343
      %v672 = vpop.f32.mrb[0].mxu0
      %v673 = vadd.f32 %v224, %v672
      %v674 = vpop.f32.mrb[0].mxu0
      %v675 = vadd.f32 %v228, %v674
      %v676 = vpop.f32.mrb[0].mxu0
      %v677 = vadd.f32 %v224, %v676
      %v678 = vpop.f32.mrb[0].mxu0
      %v679 = vadd.f32 %v228, %v678
      %680 = vmatprep.mubr.bf16.mxu0 0
      %681 = vmatmul.mubr.bf16.gmra.mrb[0].mxu0 %v346
      %v682 = vpop.f32.mrb[0].mxu0
      %v683 = vadd.f32 %v224, %v682
      %v684 = vpop.f32.mrb[0].mxu0
      %v685 = vadd.f32 %v228, %v684
      %v686 = vpop.f32.mrb[0].mxu0
      %v687 = vadd.f32 %v224, %v686
      %v688 = vpop.f32.mrb[0].mxu0
      %v689 = vadd.f32 %v228, %v688
      %690 = vmatprep.mubr.bf16.mxu0 0
      %691 = vmatmul.mubr.bf16.gmra.mrb[0].mxu0 %v349
      %v692 = vpop.f32.mrb[0].mxu0
      %v693 = vadd.f32 %v224, %v692
      %v694 = vpop.f32.mrb[0].mxu0
      %v695 = vadd.f32 %v228, %v694
      %v696 = vpop.f32.mrb[0].mxu0
      %v697 = vadd.f32 %v224, %v696
      %v698 = vpop.f32.mrb[0].mxu0
      %v699 = vadd.f32 %v228, %v698
      %700 = vmatprep.mubr.bf16.mxu0 0
      %701 = vmatmul.mubr.bf16.gmra.mrb[0].mxu0 %v352
      %v702 = vpop.f32.mrb[0].mxu0
      %v703 = vadd.f32 %v224, %v702
      %v704 = vpop.f32.mrb[0].mxu0
      %v705 = vadd.f32 %v228, %v704
      %v706 = vpop.f32.mrb[0].mxu0
      %v707 = vadd.f32 %v224, %v706
      %v708 = vpop.f32.mrb[0].mxu0
      %v709 = vadd.f32 %v228, %v708
      %710 = vmatprep.mubr.bf16.mxu0 0
      %711 = vmatmul.mubr.bf16.gmra.mrb[0].mxu0 %v355
      %v712 = vpop.f32.mrb[0].mxu0
      %v713 = vadd.f32 %v224, %v712
      %v714 = vpop.f32.mrb[0].mxu0
      %v715 = vadd.f32 %v228, %v714
      %v716 = vpop.f32.mrb[0].mxu0
      %v717 = vadd.f32 %v224, %v716
      %v718 = vpop.f32.mrb[0].mxu0
      %v719 = vadd.f32 %v228, %v718
      %720 = vmatprep.mubr.bf16.mxu0 0
      %721 = vmatmul.mubr.bf16.gmra.mrb[0].mxu0 %v358
      %v722 = vpop.f32.mrb[0].mxu0
      %v723 = vadd.f32 %v224, %v722
      %v724 = vpop.f32.mrb[0].mxu0
      %v725 = vadd.f32 %v228, %v724
      %v726 = vpop.f32.mrb[0].mxu0
      %v727 = vadd.f32 %v224, %v726
      %v728 = vpop.f32.mrb[0].mxu0
      %v729 = vadd.f32 %v228, %v728
      %730 = vmatprep.mubr.bf16.mxu0 0
      %731 = vmatmul.mubr.bf16.gmra.mrb[0].mxu0 %v361
      %v732 = vpop.f32.mrb[0].mxu0
      %v733 = vadd.f32 %v224, %v732
      %v734 = vpop.f32.mrb[0].mxu0
      %v735 = vadd.f32 %v228, %v734
      %v736 = vpop.f32.mrb[0].mxu0
      %v737 = vadd.f32 %v224, %v736
      %v738 = vpop.f32.mrb[0].mxu0
      %v739 = vadd.f32 %v228, %v738
      %740 = vmatprep.mubr.bf16.mxu0 0
      %741 = vmatmul.mubr.bf16.gmra.mrb[0].mxu0 %v364
      %v742 = vpop.f32.mrb[0].mxu0
      %v743 = vadd.f32 %v224, %v742
      %v744 = vpop.f32.mrb[0].mxu0
      %v745 = vadd.f32 %v228, %v744
      %v746 = vpop.f32.mrb[0].mxu0
      %v747 = vadd.f32 %v224, %v746
      %v748 = vpop.f32.mrb[0].mxu0
      %v749 = vadd.f32 %v228, %v748
      %750 = vmatprep.mubr.bf16.mxu0 0
      %751 = vmatmul.mubr.bf16.gmra.mrb[0].mxu0 %v367
      %v752 = vpop.f32.mrb[0].mxu0
      %v753 = vadd.f32 %v224, %v752
      %v754 = vpop.f32.mrb[0].mxu0
      %v755 = vadd.f32 %v228, %v754
      %v756 = vpop.f32.mrb[0].mxu0
      %v757 = vadd.f32 %v224, %v756
      %v758 = vpop.f32.mrb[0].mxu0
      %v759 = vadd.f32 %v228, %v758
      %760 = vmatprep.mubr.bf16.mxu0 0
      %761 = vmatmul.mubr.bf16.gmra.mrb[0].mxu0 %v370
      %v762 = vpop.f32.mrb[0].mxu0
      %v763 = vadd.f32 %v224, %v762
      %v764 = vpop.f32.mrb[0].mxu0
      %v765 = vadd.f32 %v228, %v764
      %v766 = vpop.f32.mrb[0].mxu0
      %v767 = vadd.f32 %v224, %v766
      %v768 = vpop.f32.mrb[0].mxu0
      %v769 = vadd.f32 %v228, %v768
      %770 = vdwg.mxu0
      %771 = vst [vmem:[%s174] sm:$0xff] %v420
      %772 = vst [vmem:[%s174 + $0x8] sm:$0xff] %v422
      %773 = vst [vmem:[%s174 + $0x10] sm:$0xff] %v613
      %774 = vst [vmem:[%s174 + $0x18] sm:$0xff] %v615
      %775 = vst [vmem:[%s174 + $0x20] sm:$0xff] %v424
      %776 = vst [vmem:[%s174 + $0x28] sm:$0xff] %v426
      %777 = vst [vmem:[%s174 + $0x30] sm:$0xff] %v617
      %778 = vst [vmem:[%s174 + $0x38] sm:$0xff] %v619
      %779 = vst [vmem:[%s174 + $0x40] sm:$0xff] %v430
      %780 = vst [vmem:[%s174 + $0x48] sm:$0xff] %v432
      %781 = vst [vmem:[%s174 + $0x50] sm:$0xff] %v623
      %782 = vst [vmem:[%s174 + $0x58] sm:$0xff] %v625
      %783 = vst [vmem:[%s174 + $0x60] sm:$0xff] %v434
      %784 = vst [vmem:[%s174 + $0x68] sm:$0xff] %v436
      %785 = vst [vmem:[%s174 + $0x70] sm:$0xff] %v627
      %786 = vst [vmem:[%s174 + $0x78] sm:$0xff] %v629
      %787 = vst [vmem:[%s174 + $0x80] sm:$0xff] %v440
      %788 = vst [vmem:[%s174 + $0x88] sm:$0xff] %v442
      %789 = vst [vmem:[%s174 + $0x90] sm:$0xff] %v633
      %790 = vst [vmem:[%s174 + $0x98] sm:$0xff] %v635
      %791 = vst [vmem:[%s174 + $0xa0] sm:$0xff] %v444
      %792 = vst [vmem:[%s174 + $0xa8] sm:$0xff] %v446
      %793 = vst [vmem:[%s174 + $0xb0] sm:$0xff] %v637
      %794 = vst [vmem:[%s174 + $0xb8] sm:$0xff] %v639
      %795 = vst [vmem:[%s174 + $0xc0] sm:$0xff] %v450
      %796 = vst [vmem:[%s174 + $0xc8] sm:$0xff] %v452
      %797 = vst [vmem:[%s174 + $0xd0] sm:$0xff] %v643
      %798 = vst [vmem:[%s174 + $0xd8] sm:$0xff] %v645
      %799 = vst [vmem:[%s174 + $0xe0] sm:$0xff] %v454
      %800 = vst [vmem:[%s174 + $0xe8] sm:$0xff] %v456
      %801 = vst [vmem:[%s174 + $0xf0] sm:$0xff] %v647
      %802 = vst [vmem:[%s174 + $0xf8] sm:$0xff] %v649
      %803 = vst [vmem:[%s174 + $0x100] sm:$0xff] %v460
      %804 = vst [vmem:[%s174 + $0x108] sm:$0xff] %v462
      %805 = vst [vmem:[%s174 + $0x110] sm:$0xff] %v653
      %806 = vst [vmem:[%s174 + $0x118] sm:$0xff] %v655
      %807 = vst [vmem:[%s174 + $0x120] sm:$0xff] %v464
      %808 = vst [vmem:[%s174 + $0x128] sm:$0xff] %v466
      %809 = vst [vmem:[%s174 + $0x130] sm:$0xff] %v657
      %810 = vst [vmem:[%s174 + $0x138] sm:$0xff] %v659
      %811 = vst [vmem:[%s174 + $0x140] sm:$0xff] %v470
      %812 = vst [vmem:[%s174 + $0x148] sm:$0xff] %v472
      %813 = vst [vmem:[%s174 + $0x150] sm:$0xff] %v663
      %814 = vst [vmem:[%s174 + $0x158] sm:$0xff] %v665
      %815 = vst [vmem:[%s174 + $0x160] sm:$0xff] %v474
      %816 = vst [vmem:[%s174 + $0x168] sm:$0xff] %v476
      %817 = vst [vmem:[%s174 + $0x170] sm:$0xff] %v667
      %818 = vst [vmem:[%s174 + $0x178] sm:$0xff] %v669
      %819 = vst [vmem:[%s174 + $0x180] sm:$0xff] %v480
      %820 = vst [vmem:[%s174 + $0x188] sm:$0xff] %v482
      %821 = vst [vmem:[%s174 + $0x190] sm:$0xff] %v673
      %822 = vst [vmem:[%s174 + $0x198] sm:$0xff] %v675
      %823 = vst [vmem:[%s174 + $0x1a0] sm:$0xff] %v484
      %824 = vst [vmem:[%s174 + $0x1a8] sm:$0xff] %v486
      %825 = vst [vmem:[%s174 + $0x1b0] sm:$0xff] %v677
      %826 = vst [vmem:[%s174 + $0x1b8] sm:$0xff] %v679
      %827 = vst [vmem:[%s174 + $0x1c0] sm:$0xff] %v490
      %828 = vst [vmem:[%s174 + $0x1c8] sm:$0xff] %v492
      %829 = vst [vmem:[%s174 + $0x1d0] sm:$0xff] %v683
      %830 = vst [vmem:[%s174 + $0x1d8] sm:$0xff] %v685
      %831 = vst [vmem:[%s174 + $0x1e0] sm:$0xff] %v494
      %832 = vst [vmem:[%s174 + $0x1e8] sm:$0xff] %v496
      %833 = vst [vmem:[%s174 + $0x1f0] sm:$0xff] %v687
      %834 = vst [vmem:[%s174 + $0x1f8] sm:$0xff] %v689
      %835 = vst [vmem:[%s174 + $0x200] sm:$0xff] %v500
      %836 = vst [vmem:[%s174 + $0x208] sm:$0xff] %v502
      %837 = vst [vmem:[%s174 + $0x210] sm:$0xff] %v693
      %838 = vst [vmem:[%s174 + $0x218] sm:$0xff] %v695
      %839 = vst [vmem:[%s174 + $0x220] sm:$0xff] %v504
      %840 = vst [vmem:[%s174 + $0x228] sm:$0xff] %v506
      %841 = vst [vmem:[%s174 + $0x230] sm:$0xff] %v697
      %842 = vst [vmem:[%s174 + $0x238] sm:$0xff] %v699
      %843 = vst [vmem:[%s174 + $0x240] sm:$0xff] %v510
      %844 = vst [vmem:[%s174 + $0x248] sm:$0xff] %v512
      %845 = vst [vmem:[%s174 + $0x250] sm:$0xff] %v703
      %846 = vst [vmem:[%s174 + $0x258] sm:$0xff] %v705
      %847 = vst [vmem:[%s174 + $0x260] sm:$0xff] %v514
      %848 = vst [vmem:[%s174 + $0x268] sm:$0xff] %v516
      %849 = vst [vmem:[%s174 + $0x270] sm:$0xff] %v707
      %850 = vst [vmem:[%s174 + $0x278] sm:$0xff] %v709
      %851 = vst [vmem:[%s174 + $0x280] sm:$0xff] %v520
      %852 = vst [vmem:[%s174 + $0x288] sm:$0xff] %v522
      %853 = vst [vmem:[%s174 + $0x290] sm:$0xff] %v713
      %854 = vst [vmem:[%s174 + $0x298] sm:$0xff] %v715
      %855 = vst [vmem:[%s174 + $0x2a0] sm:$0xff] %v524
      %856 = vst [vmem:[%s174 + $0x2a8] sm:$0xff] %v526
      %857 = vst [vmem:[%s174 + $0x2b0] sm:$0xff] %v717
      %858 = vst [vmem:[%s174 + $0x2b8] sm:$0xff] %v719
      %859 = vst [vmem:[%s174 + $0x2c0] sm:$0xff] %v530
      %860 = vst [vmem:[%s174 + $0x2c8] sm:$0xff] %v532
      %861 = vst [vmem:[%s174 + $0x2d0] sm:$0xff] %v723
      %862 = vst [vmem:[%s174 + $0x2d8] sm:$0xff] %v725
      %863 = vst [vmem:[%s174 + $0x2e0] sm:$0xff] %v534
      %864 = vst [vmem:[%s174 + $0x2e8] sm:$0xff] %v536
      %865 = vst [vmem:[%s174 + $0x2f0] sm:$0xff] %v727
      %866 = vst [vmem:[%s174 + $0x2f8] sm:$0xff] %v729
      %867 = vst [vmem:[%s174 + $0x300] sm:$0xff] %v540
      %868 = vst [vmem:[%s174 + $0x308] sm:$0xff] %v542
      %869 = vst [vmem:[%s174 + $0x310] sm:$0xff] %v733
      %870 = vst [vmem:[%s174 + $0x318] sm:$0xff] %v735
      %871 = vst [vmem:[%s174 + $0x320] sm:$0xff] %v544
      %872 = vst [vmem:[%s174 + $0x328] sm:$0xff] %v546
      %873 = vst [vmem:[%s174 + $0x330] sm:$0xff] %v737
      %874 = vst [vmem:[%s174 + $0x338] sm:$0xff] %v739
      %875 = vst [vmem:[%s174 + $0x340] sm:$0xff] %v550
      %876 = vst [vmem:[%s174 + $0x348] sm:$0xff] %v552
      %877 = vst [vmem:[%s174 + $0x350] sm:$0xff] %v743
      %878 = vst [vmem:[%s174 + $0x358] sm:$0xff] %v745
      %879 = vst [vmem:[%s174 + $0x360] sm:$0xff] %v554
      %880 = vst [vmem:[%s174 + $0x368] sm:$0xff] %v556
      %881 = vst [vmem:[%s174 + $0x370] sm:$0xff] %v747
      %882 = vst [vmem:[%s174 + $0x378] sm:$0xff] %v749
      %883 = vst [vmem:[%s174 + $0x380] sm:$0xff] %v560
      %884 = vst [vmem:[%s174 + $0x388] sm:$0xff] %v562
      %885 = vst [vmem:[%s174 + $0x390] sm:$0xff] %v753
      %886 = vst [vmem:[%s174 + $0x398] sm:$0xff] %v755
      %887 = vst [vmem:[%s174 + $0x3a0] sm:$0xff] %v564
      %888 = vst [vmem:[%s174 + $0x3a8] sm:$0xff] %v566
      %889 = vst [vmem:[%s174 + $0x3b0] sm:$0xff] %v757
      %890 = vst [vmem:[%s174 + $0x3b8] sm:$0xff] %v759
      %891 = vst [vmem:[%s174 + $0x3c0] sm:$0xff] %v570
      %892 = vst [vmem:[%s174 + $0x3c8] sm:$0xff] %v572
      %893 = vst [vmem:[%s174 + $0x3d0] sm:$0xff] %v763
      %894 = vst [vmem:[%s174 + $0x3d8] sm:$0xff] %v765
      %895 = vst [vmem:[%s174 + $0x3e0] sm:$0xff] %v574
      %896 = vst [vmem:[%s174 + $0x3e8] sm:$0xff] %v576
      %897 = vst [vmem:[%s174 + $0x3f0] sm:$0xff] %v767
      %898 = vst [vmem:[%s174 + $0x3f8] sm:$0xff] %v769
      %s899 = smul.u32 32, %s14
      %p900 = scmp.lt.s32.totalorder %s899, 63
      %s901 = scalar_select %p900, %s899, 63
      %s902 = smul.addr %s901, 4
      %s903 = smul.addr %s902, 8
      %s904 = scalar_lea.vmem %s3, %s903
      // Predicated region
      $region33: #{decoder_block_forward.5} parent=31 // pred_check
        %p905 = pneg %p100
      $region34: #{decoder_block_forward.5} parent=31 // pred_check_branch
        %907 = sbr.rel (%p905) target = $region36
      $region35: #{decoder_block_forward.5} parent=31 // pred_region
        %s908 = smul.u32 32, %s14
      $region36: #{decoder_block_forward.5} parent=31 // pred_fallthru
        _
    $region32: #{decoder_block_forward.5} parent=5 // pred_fallthru
      _
    %p909 = scmp.le.s32.totalorder 2, %s9
    // Predicated region
    $region37: #{decoder_block_forward.5} parent=5 // pred_check
      %p910 = pneg %p909
    $region38: #{decoder_block_forward.5} parent=5 // pred_check_branch
      %912 = sbr.rel (%p910) target = $region40
    $region39: #{decoder_block_forward.5} parent=5 // pred_region
      %s913 = ssub.s32 %s9, 2
      // Predicated region
      $region41: #{decoder_block_forward.5} parent=39 // pred_check
        %p914 = pneg %p106
      $region42: #{decoder_block_forward.5} parent=39 // pred_check_branch
        %916 = sbr.rel (%p914) target = $region44
      $region43: #{decoder_block_forward.5} parent=39 // pred_region
        %s917 = smul.u32 32, %s15
        %p918 = scmp.lt.s32.totalorder %s917, 63
        %s919 = scalar_select %p918, %s917, 63
        %s920 = smul.addr %s919, 4
        %s921 = smul.addr %s920, 8
        %s922 = scalar_lea.vmem %s3, %s921
      $region44: #{decoder_block_forward.5} parent=39 // pred_fallthru
        _
    $region40: #{decoder_block_forward.5} parent=5 // pred_fallthru
      _
  $region6: #{decoder_block_forward.5} parent=0 // loop_footer
    %s13 = sadd.s32 1, %s9
  $region7: #{decoder_block_forward.5} parent=0 // loop_footer_branch
    %8 = sbr.rel target = $region3
  $region8: #{decoder_block_forward.5} parent=0 // loop_exit
    _

// kernel: decoder_block_forward.7
$region0: #{decoder_block_forward.7}
  #allocation0 [shape = 'u32[]', space=smem, size = 0x4, offset = 0x4, fixed_abs, tag = 'smem constant byte address 0x4 - core index']
  #allocation1 [shape = 'u32[144,128]{1,0:T(1,128)}', space=vmem, size = 0x12000, scoped, tag = 'internal scratch']
  %s0 = inlined_call_operand.vmem [shape: f32[2,32,32,128], index: 0, kind: input, shape index: {}]
  %s1 = inlined_call_operand.vmem [shape: f32[1,128], index: 1, kind: input, shape index: {}]
  %s2 = inlined_call_operand.vmem [shape: f32[1,128], index: 2, kind: input, shape index: {}]
  %s3 = inlined_call_operand.vmem [shape: bf16[2,32,32,128], index: 3, kind: output, shape index: {}]
  %s4 = sld [smem:[#allocation0]]
  $region45: #{decoder_block_forward.7} parent=0
    _
  %s6 = ssub.s32 1, %s4
  %s7 = scalar_select 0, %s6, %s4
  loop: start=0, step=1, limit=10
  $region2: #{decoder_block_forward.7} parent=0 // loop_pre_header
    _
  $region3: #{decoder_block_forward.7} parent=0 // loop_header
    %s9 = sphi 0, %s13
    %p10 = scmp.ge.s32.totalorder %s9, 10
    %s16 = sphi 0, %s28
    %s17 = sphi 0, %s24
    %s18 = sphi 0, %s16
    %s19 = sphi 0, %s17
    %s20 = sphi 0, %s18
    %s21 = sphi 0, %s19
    %s33 = sphi 0, %s35
    %s36 = sphi 0, %s33
    %s37 = sphi 0, %s36
    %s53 = sphi 0, %s37
    %s57 = sphi 0, %s57
    %s59 = sphi 0, %s57
    %s60 = sphi 0, %s59
    %s74 = sphi 0, %s60
    %s78 = sphi 0, %s78
    %s80 = sphi 0, %s78
    %s81 = sphi 0, %s80
    %s95 = sphi 0, %s81
    %s103 = sphi 0, %s105
    %s106 = sphi 0, %s103
    %s107 = sphi 0, %s106
    %s123 = sphi 0, %s107
  $region4: #{decoder_block_forward.7} parent=0 // loop_header_branch
    %12 = sbr.rel (%p10) target = $region8
  $region5: #{decoder_block_forward.7} parent=0 // loop_body
    %s14 = ssub.s32 %s9, 1
    %s15 = ssub.s32 %s9, 2
    %s22 = sadd.s32 1, %s17
    %p23 = scmp.ge.s32.totalorder %s22, 4
    %s24 = scalar_select %p23, 0, %s22
    %s25 = sadd.s32 1, %s16
    %s26 = scalar_select %p23, %s25, %s16
    %p27 = scmp.ge.s32.totalorder %s26, 2
    %s28 = scalar_select %p27, 0, %s26
    %s29 = ssub.s32 %s16, %s28
    %s30 = ssub.s32 %s17, %s24
    %s31 = sor.u32 %s29, %s30
    %p32 = scmp.eq.s32.totalorder %s31, 0
    %s34 = sadd.s32 %s33, 1
    %s35 = scalar_select %p32, %s33, %s34
    %p38 = pneg %p32
    %p39 = scmp.eq.s32.totalorder %s9, 7
    %p40 = por %p38, %p39
    %p41 = scmp.ne.s32.totalorder %s33, %s36
    %p42 = scmp.eq.s32.totalorder %s9, 0
    %p43 = por %p41, %p42
    %p44 = scmp.ne.s32.totalorder %s33, %s36
    %p45 = scmp.eq.s32.totalorder %s14, 7
    %p46 = por %p44, %p45
    %p47 = scmp.ne.s32.totalorder %s36, %s37
    %p48 = scmp.eq.s32.totalorder %s14, 0
    %p49 = por %p47, %p48
    %p50 = scmp.ne.s32.totalorder %s36, %s37
    %p51 = scmp.eq.s32.totalorder %s15, 7
    %p52 = por %p50, %p51
    %p54 = scmp.ne.s32.totalorder %s37, %s53
    %p55 = scmp.eq.s32.totalorder %s15, 0
    %p56 = por %p54, %p55
    %s58 = sadd.s32 %s57, 1
    %p61 = scmp.eq.s32.totalorder %s9, 7
    %p62 = scmp.ne.s32.totalorder %s57, %s59
    %p63 = scmp.eq.s32.totalorder %s9, 0
    %p64 = por %p62, %p63
    %p65 = scmp.ne.s32.totalorder %s57, %s59
    %p66 = scmp.eq.s32.totalorder %s14, 7
    %p67 = por %p65, %p66
    %p68 = scmp.ne.s32.totalorder %s59, %s60
    %p69 = scmp.eq.s32.totalorder %s14, 0
    %p70 = por %p68, %p69
    %p71 = scmp.ne.s32.totalorder %s59, %s60
    %p72 = scmp.eq.s32.totalorder %s15, 7
    %p73 = por %p71, %p72
    %p75 = scmp.ne.s32.totalorder %s60, %s74
    %p76 = scmp.eq.s32.totalorder %s15, 0
    %p77 = por %p75, %p76
    %s79 = sadd.s32 %s78, 1
    %p82 = scmp.eq.s32.totalorder %s9, 7
    %p83 = scmp.ne.s32.totalorder %s78, %s80
    %p84 = scmp.eq.s32.totalorder %s9, 0
    %p85 = por %p83, %p84
    %p86 = scmp.ne.s32.totalorder %s78, %s80
    %p87 = scmp.eq.s32.totalorder %s14, 7
    %p88 = por %p86, %p87
    %p89 = scmp.ne.s32.totalorder %s80, %s81
    %p90 = scmp.eq.s32.totalorder %s14, 0
    %p91 = por %p89, %p90
    %p92 = scmp.ne.s32.totalorder %s80, %s81
    %p93 = scmp.eq.s32.totalorder %s15, 7
    %p94 = por %p92, %p93
    %p96 = scmp.ne.s32.totalorder %s81, %s95
    %p97 = scmp.eq.s32.totalorder %s15, 0
    %p98 = por %p96, %p97
    %s99 = ssub.s32 %s16, %s28
    %s100 = ssub.s32 %s17, %s24
    %s101 = sor.u32 %s99, %s100
    %p102 = scmp.eq.s32.totalorder %s101, 0
    %s104 = sadd.s32 %s103, 1
    %s105 = scalar_select %p102, %s103, %s104
    %p108 = pneg %p102
    %p109 = scmp.eq.s32.totalorder %s9, 7
    %p110 = por %p108, %p109
    %p111 = scmp.ne.s32.totalorder %s103, %s106
    %p112 = scmp.eq.s32.totalorder %s9, 0
    %p113 = por %p111, %p112
    %p114 = scmp.ne.s32.totalorder %s103, %s106
    %p115 = scmp.eq.s32.totalorder %s14, 7
    %p116 = por %p114, %p115
    %p117 = scmp.ne.s32.totalorder %s106, %s107
    %p118 = scmp.eq.s32.totalorder %s14, 0
    %p119 = por %p117, %p118
    %p120 = scmp.ne.s32.totalorder %s106, %s107
    %p121 = scmp.eq.s32.totalorder %s15, 7
    %p122 = por %p120, %p121
    %p124 = scmp.ne.s32.totalorder %s107, %s123
    %p125 = scmp.eq.s32.totalorder %s15, 0
    %p126 = por %p124, %p125
    %p127 = scmp.le.s32.totalorder 1, %s9
    %p128 = scmp.lt.s32.totalorder %s9, 9
    %p129 = pnand %p127, %p128
    %p130 = pneg %p129
    // Predicated region
    $region9: #{decoder_block_forward.7} parent=5 // pred_check
      _
    $region10: #{decoder_block_forward.7} parent=5 // pred_check_branch
      %132 = sbr.rel (%p129) target = $region12
    $region11: #{decoder_block_forward.7} parent=5 // pred_region
      %s133 = ssub.s32 %s9, 1
      // Predicated region
      $region13: #{decoder_block_forward.7} parent=11 // pred_check
        %p134 = pneg %p70
      $region14: #{decoder_block_forward.7} parent=11 // pred_check_branch
        %136 = sbr.rel (%p134) target = $region16
      $region15: #{decoder_block_forward.7} parent=11 // pred_region
        _
      $region16: #{decoder_block_forward.7} parent=11 // pred_fallthru
        _
      // Predicated region
      $region17: #{decoder_block_forward.7} parent=11 // pred_check
        %p137 = pneg %p91
      $region18: #{decoder_block_forward.7} parent=11 // pred_check_branch
        %139 = sbr.rel (%p137) target = $region20
      $region19: #{decoder_block_forward.7} parent=11 // pred_region
        _
      $region20: #{decoder_block_forward.7} parent=11 // pred_fallthru
        _
    $region12: #{decoder_block_forward.7} parent=5 // pred_fallthru
      _
    %p140 = scmp.lt.s32.totalorder %s9, 8
    // Predicated region
    $region21: #{decoder_block_forward.7} parent=5 // pred_check
      %p141 = pneg %p140
    $region22: #{decoder_block_forward.7} parent=5 // pred_check_branch
      %143 = sbr.rel (%p141) target = $region24
    $region23: #{decoder_block_forward.7} parent=5 // pred_region
      // Predicated region
      $region25: #{decoder_block_forward.7} parent=23 // pred_check
        %p144 = pneg %p43
      $region26: #{decoder_block_forward.7} parent=23 // pred_check_branch
        %146 = sbr.rel (%p144) target = $region28
      $region27: #{decoder_block_forward.7} parent=23 // pred_region
        %s147 = smul.u32 8, %s17
        %p148 = scmp.lt.s32.totalorder %s16, 1
        %s149 = scalar_select %p148, %s16, 1
        %p150 = scmp.lt.s32.totalorder %s147, 31
        %s151 = scalar_select %p150, %s147, 31
        %s152 = smul.addr %s151, 4
        %s153 = smul.addr %s149, 128
        %s154 = sadd.s32 %s152, %s153
        %s155 = smul.addr %s154, 8
        %s156 = scalar_lea.vmem %s0, %s155
        %s157 = smul.u32 8, %s17
      $region28: #{decoder_block_forward.7} parent=23 // pred_fallthru
        _
    $region24: #{decoder_block_forward.7} parent=5 // pred_fallthru
      _
    %p158 = scmp.le.s32.totalorder 1, %s9
    %p159 = scmp.lt.s32.totalorder %s9, 9
    %p160 = pnand %p158, %p159
    %p161 = pneg %p160
    // Predicated region
    $region29: #{decoder_block_forward.7} parent=5 // pred_check
      _
    $region30: #{decoder_block_forward.7} parent=5 // pred_check_branch
      %163 = sbr.rel (%p160) target = $region32
    $region31: #{decoder_block_forward.7} parent=5 // pred_region
      %s164 = ssub.s32 %s9, 1
      %s165 = smul.u32 8, %s19
      %p166 = scmp.lt.s32.totalorder %s18, 1
      %s167 = scalar_select %p166, %s18, 1
      %p168 = scmp.lt.s32.totalorder %s165, 31
      %s169 = scalar_select %p168, %s165, 31
      %s170 = smul.addr %s169, 4
      %s171 = smul.addr %s167, 128
      %s172 = sadd.s32 %s170, %s171
      %s173 = smul.addr %s172, 8
      %s174 = scalar_lea.vmem %s0, %s173
      %p175 = pneg %p49
      %p176 = pneg %p46
      %p177 = pneg %p70
      %p178 = pneg %p67
      %p179 = pneg %p91
      %p180 = pneg %p88
      %p181 = pneg %p119
      %p182 = pneg %p116
      %s183 = smul.u32 8, %s19
      %p184 = scmp.lt.s32.totalorder %s18, 1
      %s185 = scalar_select %p184, %s18, 1
      %p186 = scmp.lt.s32.totalorder %s183, 31
      %s187 = scalar_select %p186, %s183, 31
      %s188 = smul.addr %s187, 4
      %s189 = smul.addr %s185, 128
      %s190 = sadd.s32 %s188, %s189
      %s191 = smul.addr %s190, 4
      %s192 = scalar_lea.vmem %s3, %s191
      %s193 = smul.u32 8, %s19
      %p194 = scmp.lt.s32.totalorder %s18, 1
      %s195 = scalar_select %p194, %s18, 1
      %p196 = scmp.lt.s32.totalorder %s193, 31
      %s197 = scalar_select %p196, %s193, 31
      %s198 = smul.addr %s197, 4
      %s199 = smul.addr %s195, 128
      %s200 = sadd.s32 %s198, %s199
      %s201 = smul.addr %s200, 8
      %s202 = scalar_lea.vmem %s0, %s201
      %s203 = smul.u32 8, %s19
      %s204 = smul.u32 8, %s19
      %p205 = scmp.lt.s32.totalorder %s18, 1
      %s206 = scalar_select %p205, %s18, 1
      %p207 = scmp.lt.s32.totalorder %s204, 31
      %s208 = scalar_select %p207, %s204, 31
      %s209 = smul.addr %s208, 4
      %s210 = smul.addr %s206, 128
      %s211 = sadd.s32 %s209, %s210
      %s212 = smul.addr %s211, 4
      %s213 = scalar_lea.vmem %s3, %s212
      %s214 = smul.u32 8, %s19
      %v215 = vld [vmem:[%s202] sm:$0xff]
      %v216 = vld [vmem:[%s202 + $0x8] sm:$0xff]
      %v217 = vld [vmem:[%s202 + $0x10] sm:$0xff]
      %v218 = vld [vmem:[%s202 + $0x18] sm:$0xff]
      %v219 = vld [vmem:[%s202 + $0x20] sm:$0xff]
      %v220 = vld [vmem:[%s202 + $0x28] sm:$0xff]
      %v221 = vld [vmem:[%s202 + $0x30] sm:$0xff]
      %v222 = vld [vmem:[%s202 + $0x38] sm:$0xff]
      %v223 = vld [vmem:[%s202 + $0x40] sm:$0xff]
      %v224 = vld [vmem:[%s202 + $0x48] sm:$0xff]
      %v225 = vld [vmem:[%s202 + $0x50] sm:$0xff]
      %v226 = vld [vmem:[%s202 + $0x58] sm:$0xff]
      %v227 = vld [vmem:[%s202 + $0x60] sm:$0xff]
      %v228 = vld [vmem:[%s202 + $0x68] sm:$0xff]
      %v229 = vld [vmem:[%s202 + $0x70] sm:$0xff]
      %v230 = vld [vmem:[%s202 + $0x78] sm:$0xff]
      %v231 = vld [vmem:[%s202 + $0x80] sm:$0xff]
      %v232 = vld [vmem:[%s202 + $0x88] sm:$0xff]
      %v233 = vld [vmem:[%s202 + $0x90] sm:$0xff]
      %v234 = vld [vmem:[%s202 + $0x98] sm:$0xff]
      %v235 = vld [vmem:[%s202 + $0xa0] sm:$0xff]
      %v236 = vld [vmem:[%s202 + $0xa8] sm:$0xff]
      %v237 = vld [vmem:[%s202 + $0xb0] sm:$0xff]
      %v238 = vld [vmem:[%s202 + $0xb8] sm:$0xff]
      %v239 = vld [vmem:[%s202 + $0xc0] sm:$0xff]
      %v240 = vld [vmem:[%s202 + $0xc8] sm:$0xff]
      %v241 = vld [vmem:[%s202 + $0xd0] sm:$0xff]
      %v242 = vld [vmem:[%s202 + $0xd8] sm:$0xff]
      %v243 = vld [vmem:[%s202 + $0xe0] sm:$0xff]
      %v244 = vld [vmem:[%s202 + $0xe8] sm:$0xff]
      %v245 = vld [vmem:[%s202 + $0xf0] sm:$0xff]
      %v246 = vld [vmem:[%s202 + $0xf8] sm:$0xff]
      %v247 = vld [vmem:[%s1] sm:$0x1]
      %v249 = vlaneseq
      %v250 = vshrl.u32 %v249, 7
      %v251 = vsub.s32 0, %v250
      %v252 = vrot.slane %v247, %v251
      %v254 = vmul.f32 %v215, %v252
      %v255 = vmul.f32 %v216, %v252
      %v256 = vmul.f32 %v217, %v252
      %v257 = vmul.f32 %v218, %v252
      %v258 = vmul.f32 %v219, %v252
      %v259 = vmul.f32 %v220, %v252
      %v260 = vmul.f32 %v221, %v252
      %v261 = vmul.f32 %v222, %v252
      %v262 = vmul.f32 %v223, %v252
      %v263 = vmul.f32 %v224, %v252
      %v264 = vmul.f32 %v225, %v252
      %v265 = vmul.f32 %v226, %v252
      %v266 = vmul.f32 %v227, %v252
      %v267 = vmul.f32 %v228, %v252
      %v268 = vmul.f32 %v229, %v252
      %v269 = vmul.f32 %v230, %v252
      %v270 = vmul.f32 %v231, %v252
      %v271 = vmul.f32 %v232, %v252
      %v272 = vmul.f32 %v233, %v252
      %v273 = vmul.f32 %v234, %v252
      %v274 = vmul.f32 %v235, %v252
      %v275 = vmul.f32 %v236, %v252
      %v276 = vmul.f32 %v237, %v252
      %v277 = vmul.f32 %v238, %v252
      %v278 = vmul.f32 %v239, %v252
      %v279 = vmul.f32 %v240, %v252
      %v280 = vmul.f32 %v241, %v252
      %v281 = vmul.f32 %v242, %v252
      %v282 = vmul.f32 %v243, %v252
      %v283 = vmul.f32 %v244, %v252
      %v284 = vmul.f32 %v245, %v252
      %v285 = vmul.f32 %v246, %v252
      %v286 = vld [vmem:[%s2] sm:$0x1]
      %v288 = vlaneseq
      %v289 = vshrl.u32 %v288, 7
      %v290 = vsub.s32 0, %v289
      %v291 = vrot.slane %v286, %v290
      %v293 = vadd.f32 %v254, %v291
      %v294 = vadd.f32 %v255, %v291
      %v295 = vadd.f32 %v256, %v291
      %v296 = vadd.f32 %v257, %v291
      %v297 = vadd.f32 %v258, %v291
      %v298 = vadd.f32 %v259, %v291
      %v299 = vadd.f32 %v260, %v291
      %v300 = vadd.f32 %v261, %v291
      %v301 = vadd.f32 %v262, %v291
      %v302 = vadd.f32 %v263, %v291
      %v303 = vadd.f32 %v264, %v291
      %v304 = vadd.f32 %v265, %v291
      %v305 = vadd.f32 %v266, %v291
      %v306 = vadd.f32 %v267, %v291
      %v307 = vadd.f32 %v268, %v291
      %v308 = vadd.f32 %v269, %v291
      %v309 = vadd.f32 %v270, %v291
      %v310 = vadd.f32 %v271, %v291
      %v311 = vadd.f32 %v272, %v291
      %v312 = vadd.f32 %v273, %v291
      %v313 = vadd.f32 %v274, %v291
      %v314 = vadd.f32 %v275, %v291
      %v315 = vadd.f32 %v276, %v291
      %v316 = vadd.f32 %v277, %v291
      %v317 = vadd.f32 %v278, %v291
      %v318 = vadd.f32 %v279, %v291
      %v319 = vadd.f32 %v280, %v291
      %v320 = vadd.f32 %v281, %v291
      %v321 = vadd.f32 %v282, %v291
      %v322 = vadd.f32 %v283, %v291
      %v323 = vadd.f32 %v284, %v291
      %v324 = vadd.f32 %v285, %v291
      %v325 = vmax.f32 %v293, 0.0
      %v326 = vmax.f32 %v294, 0.0
      %v327 = vmax.f32 %v295, 0.0
      %v328 = vmax.f32 %v296, 0.0
      %v329 = vmax.f32 %v297, 0.0
      %v330 = vmax.f32 %v298, 0.0
      %v331 = vmax.f32 %v299, 0.0
      %v332 = vmax.f32 %v300, 0.0
      %v333 = vmax.f32 %v301, 0.0
      %v334 = vmax.f32 %v302, 0.0
      %v335 = vmax.f32 %v303, 0.0
      %v336 = vmax.f32 %v304, 0.0
      %v337 = vmax.f32 %v305, 0.0
      %v338 = vmax.f32 %v306, 0.0
      %v339 = vmax.f32 %v307, 0.0
      %v340 = vmax.f32 %v308, 0.0
      %v341 = vmax.f32 %v309, 0.0
      %v342 = vmax.f32 %v310, 0.0
      %v343 = vmax.f32 %v311, 0.0
      %v344 = vmax.f32 %v312, 0.0
      %v345 = vmax.f32 %v313, 0.0
      %v346 = vmax.f32 %v314, 0.0
      %v347 = vmax.f32 %v315, 0.0
      %v348 = vmax.f32 %v316, 0.0
      %v349 = vmax.f32 %v317, 0.0
      %v350 = vmax.f32 %v318, 0.0
      %v351 = vmax.f32 %v319, 0.0
      %v352 = vmax.f32 %v320, 0.0
      %v353 = vmax.f32 %v321, 0.0
      %v354 = vmax.f32 %v322, 0.0
      %v355 = vmax.f32 %v323, 0.0
      %v356 = vmax.f32 %v324, 0.0
      %v357 = vpack.c.bf16 %v326, %v325
      %v358 = vpack.c.bf16 %v328, %v327
      %v359 = vpack.c.bf16 %v330, %v329
      %v360 = vpack.c.bf16 %v332, %v331
      %v361 = vpack.c.bf16 %v334, %v333
      %v362 = vpack.c.bf16 %v336, %v335
      %v363 = vpack.c.bf16 %v338, %v337
      %v364 = vpack.c.bf16 %v340, %v339
      %v365 = vpack.c.bf16 %v342, %v341
      %v366 = vpack.c.bf16 %v344, %v343
      %v367 = vpack.c.bf16 %v346, %v345
      %v368 = vpack.c.bf16 %v348, %v347
      %v369 = vpack.c.bf16 %v350, %v349
      %v370 = vpack.c.bf16 %v352, %v351
      %v371 = vpack.c.bf16 %v354, %v353
      %v372 = vpack.c.bf16 %v356, %v355
      %v389 = vunpack.c.l.b16 %v357
      %v390 = vunpack.c.h.b16 %v357
      %v391 = vunpack.c.l.b16 %v358
      %v392 = vunpack.c.h.b16 %v358
      %v393 = vunpack.c.l.b16 %v359
      %v394 = vunpack.c.h.b16 %v359
      %v395 = vunpack.c.l.b16 %v360
      %v396 = vunpack.c.h.b16 %v360
      %v397 = vunpack.c.l.b16 %v361
      %v398 = vunpack.c.h.b16 %v361
      %v399 = vunpack.c.l.b16 %v362
      %v400 = vunpack.c.h.b16 %v362
      %v401 = vunpack.c.l.b16 %v363
      %v402 = vunpack.c.h.b16 %v363
      %v403 = vunpack.c.l.b16 %v364
      %v404 = vunpack.c.h.b16 %v364
      %v405 = vunpack.c.l.b16 %v365
      %v406 = vunpack.c.h.b16 %v365
      %v407 = vunpack.c.l.b16 %v366
      %v408 = vunpack.c.h.b16 %v366
      %v409 = vunpack.c.l.b16 %v367
      %v410 = vunpack.c.h.b16 %v367
      %v411 = vunpack.c.l.b16 %v368
      %v412 = vunpack.c.h.b16 %v368
      %v413 = vunpack.c.l.b16 %v369
      %v414 = vunpack.c.h.b16 %v369
      %v415 = vunpack.c.l.b16 %v370
      %v416 = vunpack.c.h.b16 %v370
      %v417 = vunpack.c.l.b16 %v371
      %v418 = vunpack.c.h.b16 %v371
      %v419 = vunpack.c.l.b16 %v372
      %v420 = vunpack.c.h.b16 %v372
      %v421 = vpack.c.b16 %v389, %v389
      %v422 = vpack.c.b16 %v390, %v390
      %v423 = vpack.c.b16 %v391, %v391
      %v424 = vpack.c.b16 %v392, %v392
      %v425 = vpack.c.b16 %v393, %v393
      %v426 = vpack.c.b16 %v394, %v394
      %v427 = vpack.c.b16 %v395, %v395
      %v428 = vpack.c.b16 %v396, %v396
      %v429 = vpack.c.b16 %v397, %v397
      %v430 = vpack.c.b16 %v398, %v398
      %v431 = vpack.c.b16 %v399, %v399
      %v432 = vpack.c.b16 %v400, %v400
      %v433 = vpack.c.b16 %v401, %v401
      %v434 = vpack.c.b16 %v402, %v402
      %v435 = vpack.c.b16 %v403, %v403
      %v436 = vpack.c.b16 %v404, %v404
      %v437 = vpack.c.b16 %v405, %v405
      %v438 = vpack.c.b16 %v406, %v406
      %v439 = vpack.c.b16 %v407, %v407
      %v440 = vpack.c.b16 %v408, %v408
      %v441 = vpack.c.b16 %v409, %v409
      %v442 = vpack.c.b16 %v410, %v410
      %v443 = vpack.c.b16 %v411, %v411
      %v444 = vpack.c.b16 %v412, %v412
      %v445 = vpack.c.b16 %v413, %v413
      %v446 = vpack.c.b16 %v414, %v414
      %v447 = vpack.c.b16 %v415, %v415
      %v448 = vpack.c.b16 %v416, %v416
      %v449 = vpack.c.b16 %v417, %v417
      %v450 = vpack.c.b16 %v418, %v418
      %v451 = vpack.c.b16 %v419, %v419
      %v452 = vpack.c.b16 %v420, %v420
      %485 = vst [vmem:[%s213] sm:$0xf] %v421
      %486 = vst [vmem:[%s213 + $0x4] sm:$0xf] %v422
      %487 = vst [vmem:[%s213 + $0x8] sm:$0xf] %v423
      %488 = vst [vmem:[%s213 + $0xc] sm:$0xf] %v424
      %489 = vst [vmem:[%s213 + $0x10] sm:$0xf] %v425
      %490 = vst [vmem:[%s213 + $0x14] sm:$0xf] %v426
      %491 = vst [vmem:[%s213 + $0x18] sm:$0xf] %v427
      %492 = vst [vmem:[%s213 + $0x1c] sm:$0xf] %v428
      %493 = vst [vmem:[%s213 + $0x20] sm:$0xf] %v429
      %494 = vst [vmem:[%s213 + $0x24] sm:$0xf] %v430
      %495 = vst [vmem:[%s213 + $0x28] sm:$0xf] %v431
      %496 = vst [vmem:[%s213 + $0x2c] sm:$0xf] %v432
      %497 = vst [vmem:[%s213 + $0x30] sm:$0xf] %v433
      %498 = vst [vmem:[%s213 + $0x34] sm:$0xf] %v434
      %499 = vst [vmem:[%s213 + $0x38] sm:$0xf] %v435
      %500 = vst [vmem:[%s213 + $0x3c] sm:$0xf] %v436
      %501 = vst [vmem:[%s213 + $0x40] sm:$0xf] %v437
      %502 = vst [vmem:[%s213 + $0x44] sm:$0xf] %v438
      %503 = vst [vmem:[%s213 + $0x48] sm:$0xf] %v439
      %504 = vst [vmem:[%s213 + $0x4c] sm:$0xf] %v440
      %505 = vst [vmem:[%s213 + $0x50] sm:$0xf] %v441
      %506 = vst [vmem:[%s213 + $0x54] sm:$0xf] %v442
      %507 = vst [vmem:[%s213 + $0x58] sm:$0xf] %v443
      %508 = vst [vmem:[%s213 + $0x5c] sm:$0xf] %v444
      %509 = vst [vmem:[%s213 + $0x60] sm:$0xf] %v445
      %510 = vst [vmem:[%s213 + $0x64] sm:$0xf] %v446
      %511 = vst [vmem:[%s213 + $0x68] sm:$0xf] %v447
      %512 = vst [vmem:[%s213 + $0x6c] sm:$0xf] %v448
      %513 = vst [vmem:[%s213 + $0x70] sm:$0xf] %v449
      %514 = vst [vmem:[%s213 + $0x74] sm:$0xf] %v450
      %515 = vst [vmem:[%s213 + $0x78] sm:$0xf] %v451
      %516 = vst [vmem:[%s213 + $0x7c] sm:$0xf] %v452
      %s517 = smul.u32 8, %s19
      %p518 = scmp.lt.s32.totalorder %s18, 1
      %s519 = scalar_select %p518, %s18, 1
      %p520 = scmp.lt.s32.totalorder %s517, 31
      %s521 = scalar_select %p520, %s517, 31
      %s522 = smul.addr %s521, 4
      %s523 = smul.addr %s519, 128
      %s524 = sadd.s32 %s522, %s523
      %s525 = smul.addr %s524, 4
      %s526 = scalar_lea.vmem %s3, %s525
      // Predicated region
      $region33: #{decoder_block_forward.7} parent=31 // pred_check
        %p527 = pneg %p116
      $region34: #{decoder_block_forward.7} parent=31 // pred_check_branch
        %529 = sbr.rel (%p527) target = $region36
      $region35: #{decoder_block_forward.7} parent=31 // pred_region
        %s530 = smul.u32 8, %s19
      $region36: #{decoder_block_forward.7} parent=31 // pred_fallthru
        _
    $region32: #{decoder_block_forward.7} parent=5 // pred_fallthru
      _
    %p531 = scmp.le.s32.totalorder 2, %s9
    // Predicated region
    $region37: #{decoder_block_forward.7} parent=5 // pred_check
      %p532 = pneg %p531
    $region38: #{decoder_block_forward.7} parent=5 // pred_check_branch
      %534 = sbr.rel (%p532) target = $region40
    $region39: #{decoder_block_forward.7} parent=5 // pred_region
      %s535 = ssub.s32 %s9, 2
      // Predicated region
      $region41: #{decoder_block_forward.7} parent=39 // pred_check
        %p536 = pneg %p122
      $region42: #{decoder_block_forward.7} parent=39 // pred_check_branch
        %538 = sbr.rel (%p536) target = $region44
      $region43: #{decoder_block_forward.7} parent=39 // pred_region
        %s539 = smul.u32 8, %s21
        %p540 = scmp.lt.s32.totalorder %s20, 1
        %s541 = scalar_select %p540, %s20, 1
        %p542 = scmp.lt.s32.totalorder %s539, 31
        %s543 = scalar_select %p542, %s539, 31
        %s544 = smul.addr %s543, 4
        %s545 = smul.addr %s541, 128
        %s546 = sadd.s32 %s544, %s545
        %s547 = smul.addr %s546, 4
        %s548 = scalar_lea.vmem %s3, %s547
      $region44: #{decoder_block_forward.7} parent=39 // pred_fallthru
        _
    $region40: #{decoder_block_forward.7} parent=5 // pred_fallthru
      _
  $region6: #{decoder_block_forward.7} parent=0 // loop_footer
    %s13 = sadd.s32 1, %s9
  $region7: #{decoder_block_forward.7} parent=0 // loop_footer_branch
    %8 = sbr.rel target = $region3
  $region8: #{decoder_block_forward.7} parent=0 // loop_exit
    _

// kernel: decoder_block_forward.6
$region0: #{decoder_block_forward.6}
  #allocation0 [shape = 'u32[]', space=smem, size = 0x4, offset = 0x4, fixed_abs, tag = 'smem constant byte address 0x4 - core index']
  #allocation1 [shape = 'u32[144,128]{1,0:T(1,128)}', space=vmem, size = 0x12000, scoped, tag = 'internal scratch']
  %s0 = inlined_call_operand.vmem [shape: bf16[2,34,34,8], index: 0, kind: input, shape index: {}]
  %s1 = inlined_call_operand.vmem [shape: bf16[9,8,128], index: 1, kind: input, shape index: {}]
  %s2 = inlined_call_operand.vmem [shape: f32[1,128], index: 2, kind: input, shape index: {}]
  %s3 = inlined_call_operand.vmem [shape: f32[2,32,32,128], index: 3, kind: output, shape index: {0}]
  %s4 = inlined_call_operand.vmem [shape: f32[2,4,2,128], index: 4, kind: output, shape index: {1}]
  %5 = xla_tuple %s3, %s4
  %s6 = sld [smem:[#allocation0]]
  $region53: #{decoder_block_forward.6} parent=0
    _
  %s8 = ssub.s32 1, %s6
  %s9 = scalar_select 0, %s8, %s6
  loop: start=0, step=1, limit=10
  $region2: #{decoder_block_forward.6} parent=0 // loop_pre_header
    _
  $region3: #{decoder_block_forward.6} parent=0 // loop_header
    %s11 = sphi 0, %s15
    %p12 = scmp.ge.s32.totalorder %s11, 10
    %s18 = sphi 0, %s30
    %s19 = sphi 0, %s26
    %s20 = sphi 0, %s18
    %s21 = sphi 0, %s19
    %s22 = sphi 0, %s20
    %s23 = sphi 0, %s21
    %s33 = sphi 0, %s35
    %s36 = sphi 0, %s33
    %s37 = sphi 0, %s36
    %s53 = sphi 0, %s37
    %s57 = sphi 0, %s57
    %s59 = sphi 0, %s57
    %s60 = sphi 0, %s59
    %s74 = sphi 0, %s60
    %s78 = sphi 0, %s78
    %s80 = sphi 0, %s78
    %s81 = sphi 0, %s80
    %s95 = sphi 0, %s81
    %s103 = sphi 0, %s105
    %s106 = sphi 0, %s103
    %s107 = sphi 0, %s106
    %s123 = sphi 0, %s107
    %s131 = sphi 0, %s133
    %s134 = sphi 0, %s131
    %s135 = sphi 0, %s134
    %s151 = sphi 0, %s135
  $region4: #{decoder_block_forward.6} parent=0 // loop_header_branch
    %14 = sbr.rel (%p12) target = $region8
  $region5: #{decoder_block_forward.6} parent=0 // loop_body
    %s16 = ssub.s32 %s11, 1
    %s17 = ssub.s32 %s11, 2
    %s24 = sadd.s32 1, %s19
    %p25 = scmp.ge.s32.totalorder %s24, 4
    %s26 = scalar_select %p25, 0, %s24
    %s27 = sadd.s32 1, %s18
    %s28 = scalar_select %p25, %s27, %s18
    %p29 = scmp.ge.s32.totalorder %s28, 2
    %s30 = scalar_select %p29, 0, %s28
    %s31 = ssub.s32 %s18, %s30
    %p32 = scmp.eq.s32.totalorder %s31, 0
    %s34 = sadd.s32 %s33, 1
    %s35 = scalar_select %p32, %s33, %s34
    %p38 = pneg %p32
    %p39 = scmp.eq.s32.totalorder %s11, 7
    %p40 = por %p38, %p39
    %p41 = scmp.ne.s32.totalorder %s33, %s36
    %p42 = scmp.eq.s32.totalorder %s11, 0
    %p43 = por %p41, %p42
    %p44 = scmp.ne.s32.totalorder %s33, %s36
    %p45 = scmp.eq.s32.totalorder %s16, 7
    %p46 = por %p44, %p45
    %p47 = scmp.ne.s32.totalorder %s36, %s37
    %p48 = scmp.eq.s32.totalorder %s16, 0
    %p49 = por %p47, %p48
    %p50 = scmp.ne.s32.totalorder %s36, %s37
    %p51 = scmp.eq.s32.totalorder %s17, 7
    %p52 = por %p50, %p51
    %p54 = scmp.ne.s32.totalorder %s37, %s53
    %p55 = scmp.eq.s32.totalorder %s17, 0
    %p56 = por %p54, %p55
    %s58 = sadd.s32 %s57, 1
    %p61 = scmp.eq.s32.totalorder %s11, 7
    %p62 = scmp.ne.s32.totalorder %s57, %s59
    %p63 = scmp.eq.s32.totalorder %s11, 0
    %p64 = por %p62, %p63
    %p65 = scmp.ne.s32.totalorder %s57, %s59
    %p66 = scmp.eq.s32.totalorder %s16, 7
    %p67 = por %p65, %p66
    %p68 = scmp.ne.s32.totalorder %s59, %s60
    %p69 = scmp.eq.s32.totalorder %s16, 0
    %p70 = por %p68, %p69
    %p71 = scmp.ne.s32.totalorder %s59, %s60
    %p72 = scmp.eq.s32.totalorder %s17, 7
    %p73 = por %p71, %p72
    %p75 = scmp.ne.s32.totalorder %s60, %s74
    %p76 = scmp.eq.s32.totalorder %s17, 0
    %p77 = por %p75, %p76
    %s79 = sadd.s32 %s78, 1
    %p82 = scmp.eq.s32.totalorder %s11, 7
    %p83 = scmp.ne.s32.totalorder %s78, %s80
    %p84 = scmp.eq.s32.totalorder %s11, 0
    %p85 = por %p83, %p84
    %p86 = scmp.ne.s32.totalorder %s78, %s80
    %p87 = scmp.eq.s32.totalorder %s16, 7
    %p88 = por %p86, %p87
    %p89 = scmp.ne.s32.totalorder %s80, %s81
    %p90 = scmp.eq.s32.totalorder %s16, 0
    %p91 = por %p89, %p90
    %p92 = scmp.ne.s32.totalorder %s80, %s81
    %p93 = scmp.eq.s32.totalorder %s17, 7
    %p94 = por %p92, %p93
    %p96 = scmp.ne.s32.totalorder %s81, %s95
    %p97 = scmp.eq.s32.totalorder %s17, 0
    %p98 = por %p96, %p97
    %s99 = ssub.s32 %s18, %s30
    %s100 = ssub.s32 %s19, %s26
    %s101 = sor.u32 %s99, %s100
    %p102 = scmp.eq.s32.totalorder %s101, 0
    %s104 = sadd.s32 %s103, 1
    %s105 = scalar_select %p102, %s103, %s104
    %p108 = pneg %p102
    %p109 = scmp.eq.s32.totalorder %s11, 7
    %p110 = por %p108, %p109
    %p111 = scmp.ne.s32.totalorder %s103, %s106
    %p112 = scmp.eq.s32.totalorder %s11, 0
    %p113 = por %p111, %p112
    %p114 = scmp.ne.s32.totalorder %s103, %s106
    %p115 = scmp.eq.s32.totalorder %s16, 7
    %p116 = por %p114, %p115
    %p117 = scmp.ne.s32.totalorder %s106, %s107
    %p118 = scmp.eq.s32.totalorder %s16, 0
    %p119 = por %p117, %p118
    %p120 = scmp.ne.s32.totalorder %s106, %s107
    %p121 = scmp.eq.s32.totalorder %s17, 7
    %p122 = por %p120, %p121
    %p124 = scmp.ne.s32.totalorder %s107, %s123
    %p125 = scmp.eq.s32.totalorder %s17, 0
    %p126 = por %p124, %p125
    %s127 = ssub.s32 %s18, %s30
    %s128 = ssub.s32 %s19, %s26
    %s129 = sor.u32 %s127, %s128
    %p130 = scmp.eq.s32.totalorder %s129, 0
    %s132 = sadd.s32 %s131, 1
    %s133 = scalar_select %p130, %s131, %s132
    %p136 = pneg %p130
    %p137 = scmp.eq.s32.totalorder %s11, 7
    %p138 = por %p136, %p137
    %p139 = scmp.ne.s32.totalorder %s131, %s134
    %p140 = scmp.eq.s32.totalorder %s11, 0
    %p141 = por %p139, %p140
    %p142 = scmp.ne.s32.totalorder %s131, %s134
    %p143 = scmp.eq.s32.totalorder %s16, 7
    %p144 = por %p142, %p143
    %p145 = scmp.ne.s32.totalorder %s134, %s135
    %p146 = scmp.eq.s32.totalorder %s16, 0
    %p147 = por %p145, %p146
    %p148 = scmp.ne.s32.totalorder %s134, %s135
    %p149 = scmp.eq.s32.totalorder %s17, 7
    %p150 = por %p148, %p149
    %p152 = scmp.ne.s32.totalorder %s135, %s151
    %p153 = scmp.eq.s32.totalorder %s17, 0
    %p154 = por %p152, %p153
    %p155 = scmp.le.s32.totalorder 1, %s11
    %p156 = scmp.lt.s32.totalorder %s11, 9
    %p157 = pnand %p155, %p156
    %p158 = pneg %p157
    // Predicated region
    $region9: #{decoder_block_forward.6} parent=5 // pred_check
      _
    $region10: #{decoder_block_forward.6} parent=5 // pred_check_branch
      %160 = sbr.rel (%p157) target = $region12
    $region11: #{decoder_block_forward.6} parent=5 // pred_region
      %s161 = ssub.s32 %s11, 1
      // Predicated region
      $region13: #{decoder_block_forward.6} parent=11 // pred_check
        %p162 = pneg %p70
      $region14: #{decoder_block_forward.6} parent=11 // pred_check_branch
        %164 = sbr.rel (%p162) target = $region16
      $region15: #{decoder_block_forward.6} parent=11 // pred_region
        _
      $region16: #{decoder_block_forward.6} parent=11 // pred_fallthru
        _
      // Predicated region
      $region17: #{decoder_block_forward.6} parent=11 // pred_check
        %p165 = pneg %p91
      $region18: #{decoder_block_forward.6} parent=11 // pred_check_branch
        %167 = sbr.rel (%p165) target = $region20
      $region19: #{decoder_block_forward.6} parent=11 // pred_region
        _
      $region20: #{decoder_block_forward.6} parent=11 // pred_fallthru
        _
    $region12: #{decoder_block_forward.6} parent=5 // pred_fallthru
      _
    %p168 = scmp.lt.s32.totalorder %s11, 8
    // Predicated region
    $region21: #{decoder_block_forward.6} parent=5 // pred_check
      %p169 = pneg %p168
    $region22: #{decoder_block_forward.6} parent=5 // pred_check_branch
      %171 = sbr.rel (%p169) target = $region24
    $region23: #{decoder_block_forward.6} parent=5 // pred_region
      // Predicated region
      $region25: #{decoder_block_forward.6} parent=23 // pred_check
        %p172 = pneg %p43
      $region26: #{decoder_block_forward.6} parent=23 // pred_check_branch
        %174 = sbr.rel (%p172) target = $region28
      $region27: #{decoder_block_forward.6} parent=23 // pred_region
        %p175 = scmp.lt.s32.totalorder %s18, 1
        %s176 = scalar_select %p175, %s18, 1
        %s177 = smul.addr %s176, 170
        %s178 = smul.addr %s177, 4
        %s179 = scalar_lea.vmem %s0, %s178
      $region28: #{decoder_block_forward.6} parent=23 // pred_fallthru
        _
    $region24: #{decoder_block_forward.6} parent=5 // pred_fallthru
      _
    %p180 = scmp.le.s32.totalorder 1, %s11
    %p181 = scmp.lt.s32.totalorder %s11, 9
    %p182 = pnand %p180, %p181
    %p183 = pneg %p182
    // Predicated region
    $region29: #{decoder_block_forward.6} parent=5 // pred_check
      _
    $region30: #{decoder_block_forward.6} parent=5 // pred_check_branch
      %185 = sbr.rel (%p182) target = $region32
    $region31: #{decoder_block_forward.6} parent=5 // pred_region
      %s186 = ssub.s32 %s11, 1
      %p187 = scmp.lt.s32.totalorder %s20, 1
      %s188 = scalar_select %p187, %s20, 1
      %s189 = smul.addr %s188, 170
      %s190 = smul.addr %s189, 4
      %s191 = scalar_lea.vmem %s0, %s190
      %p192 = pneg %p49
      %p193 = pneg %p46
      %p194 = pneg %p70
      %p195 = pneg %p67
      %p196 = pneg %p91
      %p197 = pneg %p88
      %p198 = pneg %p119
      %p199 = pneg %p116
      %s200 = smul.u32 8, %s21
      %p201 = scmp.lt.s32.totalorder %s20, 1
      %s202 = scalar_select %p201, %s20, 1
      %p203 = scmp.lt.s32.totalorder %s200, 31
      %s204 = scalar_select %p203, %s200, 31
      %s205 = smul.addr %s204, 4
      %s206 = smul.addr %s202, 128
      %s207 = sadd.s32 %s205, %s206
      %s208 = smul.addr %s207, 8
      %s209 = scalar_lea.vmem %s3, %s208
      %p210 = pneg %p147
      %p211 = pneg %p144
      %p212 = scmp.lt.s32.totalorder %s20, 1
      %s213 = scalar_select %p212, %s20, 1
      %p214 = scmp.lt.s32.totalorder %s21, 3
      %s215 = scalar_select %p214, %s21, 3
      %s216 = smul.addr %s213, 4
      %s217 = sadd.s32 %s215, %s216
      %s218 = smul.addr %s217, 2
      %s219 = scalar_lea.vmem %s4, %s218
      %p220 = scmp.lt.s32.totalorder %s20, 1
      %s221 = scalar_select %p220, %s20, 1
      %s222 = smul.addr %s221, 170
      %s223 = smul.addr %s222, 4
      %s224 = scalar_lea.vmem %s0, %s223
      %s225 = smul.u32 8, %s21
      %p226 = scmp.lt.s32.totalorder %s20, 1
      %s227 = scalar_select %p226, %s20, 1
      %p228 = scmp.lt.s32.totalorder %s225, 31
      %s229 = scalar_select %p228, %s225, 31
      %s230 = smul.addr %s229, 4
      %s231 = smul.addr %s227, 128
      %s232 = sadd.s32 %s230, %s231
      %s233 = smul.addr %s232, 8
      %s234 = scalar_lea.vmem %s3, %s233
      %s235 = smul.u32 8, %s21
      %p236 = scmp.lt.s32.totalorder %s20, 1
      %s237 = scalar_select %p236, %s20, 1
      %p238 = scmp.lt.s32.totalorder %s21, 3
      %s239 = scalar_select %p238, %s21, 3
      %s240 = smul.addr %s237, 4
      %s241 = sadd.s32 %s239, %s240
      %s242 = smul.addr %s241, 2
      %s243 = scalar_lea.vmem %s4, %s242
      %s245 = smul.u32 %s21, 8
      %s246 = smul.u32 %s245, 5
      %s247 = smul.addr %s246, 4
      %s248 = scalar_lea.vmem %s224, %s247
      %v249 = vld [vmem:[%s248] sm:$0xf]
      %v250 = vld [vmem:[%s248 + $0x4] sm:$0xf]
      %v251 = vld [vmem:[%s248 + $0x8] sm:$0xf]
      %v252 = vld [vmem:[%s248 + $0xc] sm:$0xf]
      %v253 = vld [vmem:[%s248 + $0x14] sm:$0xf]
      %v254 = vld [vmem:[%s248 + $0x18] sm:$0xf]
      %v255 = vld [vmem:[%s248 + $0x1c] sm:$0xf]
      %v256 = vld [vmem:[%s248 + $0x20] sm:$0xf]
      %v257 = vld [vmem:[%s248 + $0x28] sm:$0xf]
      %v258 = vld [vmem:[%s248 + $0x2c] sm:$0xf]
      %v259 = vld [vmem:[%s248 + $0x30] sm:$0xf]
      %v260 = vld [vmem:[%s248 + $0x34] sm:$0xf]
      %v261 = vld [vmem:[%s248 + $0x3c] sm:$0xf]
      %v262 = vld [vmem:[%s248 + $0x40] sm:$0xf]
      %v263 = vld [vmem:[%s248 + $0x44] sm:$0xf]
      %v264 = vld [vmem:[%s248 + $0x48] sm:$0xf]
      %v265 = vld [vmem:[%s248 + $0x50] sm:$0xf]
      %v266 = vld [vmem:[%s248 + $0x54] sm:$0xf]
      %v267 = vld [vmem:[%s248 + $0x58] sm:$0xf]
      %v268 = vld [vmem:[%s248 + $0x5c] sm:$0xf]
      %v269 = vld [vmem:[%s248 + $0x64] sm:$0xf]
      %v270 = vld [vmem:[%s248 + $0x68] sm:$0xf]
      %v271 = vld [vmem:[%s248 + $0x6c] sm:$0xf]
      %v272 = vld [vmem:[%s248 + $0x70] sm:$0xf]
      %v273 = vld [vmem:[%s248 + $0x78] sm:$0xf]
      %v274 = vld [vmem:[%s248 + $0x7c] sm:$0xf]
      %v275 = vld [vmem:[%s248 + $0x80] sm:$0xf]
      %v276 = vld [vmem:[%s248 + $0x84] sm:$0xf]
      %v277 = vld [vmem:[%s248 + $0x8c] sm:$0xf]
      %v278 = vld [vmem:[%s248 + $0x90] sm:$0xf]
      %v279 = vld [vmem:[%s248 + $0x94] sm:$0xf]
      %v280 = vld [vmem:[%s248 + $0x98] sm:$0xf]
      %v281 = vld [vmem:[%s1] sm:$0xf]
      %v282 = vld [vmem:[%s248 + $0x10] sm:$0x1]
      %v283 = vld [vmem:[%s248 + $0x24] sm:$0x1]
      %v284 = vld [vmem:[%s248 + $0x38] sm:$0x1]
      %v285 = vld [vmem:[%s248 + $0x4c] sm:$0x1]
      %v286 = vld [vmem:[%s248 + $0x60] sm:$0x1]
      %v287 = vld [vmem:[%s248 + $0x74] sm:$0x1]
      %v288 = vld [vmem:[%s248 + $0x88] sm:$0x1]
      %v289 = vld [vmem:[%s248 + $0x9c] sm:$0x1]
      %vm290 = vsmask.f32 3328
      %vm291 = vsmask.f32 7440
      %vm292 = vmor %vm290, %vm291
      %v294 = vshrl.u32 %v249, 16
      %v296 = vrot.slane %v294, 4
      %v297 = vshll.u32 %v249, 16
      %v299 = vrot.slane %v297, 5
      %v300 = vor.u32 %v296, %v299
      %v301 = vrot.slane %v300, 4
      %v303 = vshll.u32 %v250, 16
      %v305 = vrot.slane %v303, 5
      %v306 = vsel %vm292, %v301, %v305
      %v307 = vshrl.u32 %v250, 16
      %v309 = vrot.slane %v307, 4
      %v310 = vor.u32 %v309, %v305
      %v311 = vrot.slane %v310, 4
      %v313 = vshll.u32 %v251, 16
      %v315 = vrot.slane %v313, 5
      %v316 = vsel %vm292, %v311, %v315
      %v317 = vshrl.u32 %v251, 16
      %v319 = vrot.slane %v317, 4
      %v320 = vor.u32 %v319, %v315
      %v321 = vrot.slane %v320, 4
      %v323 = vshll.u32 %v252, 16
      %v325 = vrot.slane %v323, 5
      %v326 = vsel %vm292, %v321, %v325
      %v327 = vshrl.u32 %v252, 16
      %v329 = vrot.slane %v327, 4
      %v330 = vor.u32 %v329, %v325
      %v331 = vrot.slane %v330, 4
      %v333 = vshll.u32 %v282, 16
      %v335 = vrot.slane %v333, 5
      %v336 = vsel %vm292, %v331, %v335
      %v338 = vshrl.u32 %v253, 16
      %v340 = vrot.slane %v338, 4
      %v341 = vshll.u32 %v253, 16
      %v343 = vrot.slane %v341, 5
      %v344 = vor.u32 %v340, %v343
      %v345 = vrot.slane %v344, 4
      %v347 = vshll.u32 %v254, 16
      %v349 = vrot.slane %v347, 5
      %v350 = vsel %vm292, %v345, %v349
      %v351 = vshrl.u32 %v254, 16
      %v353 = vrot.slane %v351, 4
      %v354 = vor.u32 %v353, %v349
      %v355 = vrot.slane %v354, 4
      %v357 = vshll.u32 %v255, 16
      %v359 = vrot.slane %v357, 5
      %v360 = vsel %vm292, %v355, %v359
      %v361 = vshrl.u32 %v255, 16
      %v363 = vrot.slane %v361, 4
      %v364 = vor.u32 %v363, %v359
      %v365 = vrot.slane %v364, 4
      %v367 = vshll.u32 %v256, 16
      %v369 = vrot.slane %v367, 5
      %v370 = vsel %vm292, %v365, %v369
      %v371 = vshrl.u32 %v256, 16
      %v373 = vrot.slane %v371, 4
      %v374 = vor.u32 %v373, %v369
      %v375 = vrot.slane %v374, 4
      %v377 = vshll.u32 %v283, 16
      %v379 = vrot.slane %v377, 5
      %v380 = vsel %vm292, %v375, %v379
      %v382 = vshrl.u32 %v257, 16
      %v384 = vrot.slane %v382, 4
      %v385 = vshll.u32 %v257, 16
      %v387 = vrot.slane %v385, 5
      %v388 = vor.u32 %v384, %v387
      %v389 = vrot.slane %v388, 4
      %v391 = vshll.u32 %v258, 16
      %v393 = vrot.slane %v391, 5
      %v394 = vsel %vm292, %v389, %v393
      %v395 = vshrl.u32 %v258, 16
      %v397 = vrot.slane %v395, 4
      %v398 = vor.u32 %v397, %v393
      %v399 = vrot.slane %v398, 4
      %v401 = vshll.u32 %v259, 16
      %v403 = vrot.slane %v401, 5
      %v404 = vsel %vm292, %v399, %v403
      %v405 = vshrl.u32 %v259, 16
      %v407 = vrot.slane %v405, 4
      %v408 = vor.u32 %v407, %v403
      %v409 = vrot.slane %v408, 4
      %v411 = vshll.u32 %v260, 16
      %v413 = vrot.slane %v411, 5
      %v414 = vsel %vm292, %v409, %v413
      %v415 = vshrl.u32 %v260, 16
      %v417 = vrot.slane %v415, 4
      %v418 = vor.u32 %v417, %v413
      %v419 = vrot.slane %v418, 4
      %v421 = vshll.u32 %v284, 16
      %v423 = vrot.slane %v421, 5
      %v424 = vsel %vm292, %v419, %v423
      %v426 = vshrl.u32 %v261, 16
      %v428 = vrot.slane %v426, 4
      %v429 = vshll.u32 %v261, 16
      %v431 = vrot.slane %v429, 5
      %v432 = vor.u32 %v428, %v431
      %v433 = vrot.slane %v432, 4
      %v435 = vshll.u32 %v262, 16
      %v437 = vrot.slane %v435, 5
      %v438 = vsel %vm292, %v433, %v437
      %v439 = vshrl.u32 %v262, 16
      %v441 = vrot.slane %v439, 4
      %v442 = vor.u32 %v441, %v437
      %v443 = vrot.slane %v442, 4
      %v445 = vshll.u32 %v263, 16
      %v447 = vrot.slane %v445, 5
      %v448 = vsel %vm292, %v443, %v447
      %v449 = vshrl.u32 %v263, 16
      %v451 = vrot.slane %v449, 4
      %v452 = vor.u32 %v451, %v447
      %v453 = vrot.slane %v452, 4
      %v455 = vshll.u32 %v264, 16
      %v457 = vrot.slane %v455, 5
      %v458 = vsel %vm292, %v453, %v457
      %v459 = vshrl.u32 %v264, 16
      %v461 = vrot.slane %v459, 4
      %v462 = vor.u32 %v461, %v457
      %v463 = vrot.slane %v462, 4
      %v465 = vshll.u32 %v285, 16
      %v467 = vrot.slane %v465, 5
      %v468 = vsel %vm292, %v463, %v467
      %v470 = vshrl.u32 %v265, 16
      %v472 = vrot.slane %v470, 4
      %v473 = vshll.u32 %v265, 16
      %v475 = vrot.slane %v473, 5
      %v476 = vor.u32 %v472, %v475
      %v477 = vrot.slane %v476, 4
      %v479 = vshll.u32 %v266, 16
      %v481 = vrot.slane %v479, 5
      %v482 = vsel %vm292, %v477, %v481
      %v483 = vshrl.u32 %v266, 16
      %v485 = vrot.slane %v483, 4
      %v486 = vor.u32 %v485, %v481
      %v487 = vrot.slane %v486, 4
      %v489 = vshll.u32 %v267, 16
      %v491 = vrot.slane %v489, 5
      %v492 = vsel %vm292, %v487, %v491
      %v493 = vshrl.u32 %v267, 16
      %v495 = vrot.slane %v493, 4
      %v496 = vor.u32 %v495, %v491
      %v497 = vrot.slane %v496, 4
      %v499 = vshll.u32 %v268, 16
      %v501 = vrot.slane %v499, 5
      %v502 = vsel %vm292, %v497, %v501
      %v503 = vshrl.u32 %v268, 16
      %v505 = vrot.slane %v503, 4
      %v506 = vor.u32 %v505, %v501
      %v507 = vrot.slane %v506, 4
      %v509 = vshll.u32 %v286, 16
      %v511 = vrot.slane %v509, 5
      %v512 = vsel %vm292, %v507, %v511
      %v514 = vshrl.u32 %v269, 16
      %v516 = vrot.slane %v514, 4
      %v517 = vshll.u32 %v269, 16
      %v519 = vrot.slane %v517, 5
      %v520 = vor.u32 %v516, %v519
      %v521 = vrot.slane %v520, 4
      %v523 = vshll.u32 %v270, 16
      %v525 = vrot.slane %v523, 5
      %v526 = vsel %vm292, %v521, %v525
      %v527 = vshrl.u32 %v270, 16
      %v529 = vrot.slane %v527, 4
      %v530 = vor.u32 %v529, %v525
      %v531 = vrot.slane %v530, 4
      %v533 = vshll.u32 %v271, 16
      %v535 = vrot.slane %v533, 5
      %v536 = vsel %vm292, %v531, %v535
      %v537 = vshrl.u32 %v271, 16
      %v539 = vrot.slane %v537, 4
      %v540 = vor.u32 %v539, %v535
      %v541 = vrot.slane %v540, 4
      %v543 = vshll.u32 %v272, 16
      %v545 = vrot.slane %v543, 5
      %v546 = vsel %vm292, %v541, %v545
      %v547 = vshrl.u32 %v272, 16
      %v549 = vrot.slane %v547, 4
      %v550 = vor.u32 %v549, %v545
      %v551 = vrot.slane %v550, 4
      %v553 = vshll.u32 %v287, 16
      %v555 = vrot.slane %v553, 5
      %v556 = vsel %vm292, %v551, %v555
      %v558 = vshrl.u32 %v273, 16
      %v560 = vrot.slane %v558, 4
      %v561 = vshll.u32 %v273, 16
      %v563 = vrot.slane %v561, 5
      %v564 = vor.u32 %v560, %v563
      %v565 = vrot.slane %v564, 4
      %v567 = vshll.u32 %v274, 16
      %v569 = vrot.slane %v567, 5
      %v570 = vsel %vm292, %v565, %v569
      %v571 = vshrl.u32 %v274, 16
      %v573 = vrot.slane %v571, 4
      %v574 = vor.u32 %v573, %v569
      %v575 = vrot.slane %v574, 4
      %v577 = vshll.u32 %v275, 16
      %v579 = vrot.slane %v577, 5
      %v580 = vsel %vm292, %v575, %v579
      %v581 = vshrl.u32 %v275, 16
      %v583 = vrot.slane %v581, 4
      %v584 = vor.u32 %v583, %v579
      %v585 = vrot.slane %v584, 4
      %v587 = vshll.u32 %v276, 16
      %v589 = vrot.slane %v587, 5
      %v590 = vsel %vm292, %v585, %v589
      %v591 = vshrl.u32 %v276, 16
      %v593 = vrot.slane %v591, 4
      %v594 = vor.u32 %v593, %v589
      %v595 = vrot.slane %v594, 4
      %v597 = vshll.u32 %v288, 16
      %v599 = vrot.slane %v597, 5
      %v600 = vsel %vm292, %v595, %v599
      %v602 = vshrl.u32 %v277, 16
      %v604 = vrot.slane %v602, 4
      %v605 = vshll.u32 %v277, 16
      %v607 = vrot.slane %v605, 5
      %v608 = vor.u32 %v604, %v607
      %v609 = vrot.slane %v608, 4
      %v611 = vshll.u32 %v278, 16
      %v613 = vrot.slane %v611, 5
      %v614 = vsel %vm292, %v609, %v613
      %v615 = vshrl.u32 %v278, 16
      %v617 = vrot.slane %v615, 4
      %v618 = vor.u32 %v617, %v613
      %v619 = vrot.slane %v618, 4
      %v621 = vshll.u32 %v279, 16
      %v623 = vrot.slane %v621, 5
      %v624 = vsel %vm292, %v619, %v623
      %v625 = vshrl.u32 %v279, 16
      %v627 = vrot.slane %v625, 4
      %v628 = vor.u32 %v627, %v623
      %v629 = vrot.slane %v628, 4
      %v631 = vshll.u32 %v280, 16
      %v633 = vrot.slane %v631, 5
      %v634 = vsel %vm292, %v629, %v633
      %v635 = vshrl.u32 %v280, 16
      %v637 = vrot.slane %v635, 4
      %v638 = vor.u32 %v637, %v633
      %v639 = vrot.slane %v638, 4
      %v641 = vshll.u32 %v289, 16
      %v643 = vrot.slane %v641, 5
      %v644 = vsel %vm292, %v639, %v643
      %s645 = scalar_lea.vmem %s1, 4
      %v646 = vld [vmem:[%s645] sm:$0xf]
      %v647 = vunpack.c.l.b16 %v306
      %v648 = vunpack.c.l.b16 %v316
      %v649 = vunpack.c.l.b16 %v326
      %v650 = vunpack.c.l.b16 %v336
      %v651 = vunpack.c.l.b16 %v350
      %v652 = vunpack.c.l.b16 %v360
      %v653 = vunpack.c.l.b16 %v370
      %v654 = vunpack.c.l.b16 %v380
      %v655 = vunpack.c.l.b16 %v394
      %v656 = vunpack.c.l.b16 %v404
      %v657 = vunpack.c.l.b16 %v414
      %v658 = vunpack.c.l.b16 %v424
      %v659 = vunpack.c.l.b16 %v438
      %v660 = vunpack.c.l.b16 %v448
      %v661 = vunpack.c.l.b16 %v458
      %v662 = vunpack.c.l.b16 %v468
      %v663 = vunpack.c.l.b16 %v482
      %v664 = vunpack.c.l.b16 %v492
      %v665 = vunpack.c.l.b16 %v502
      %v666 = vunpack.c.l.b16 %v512
      %v667 = vunpack.c.l.b16 %v526
      %v668 = vunpack.c.l.b16 %v536
      %v669 = vunpack.c.l.b16 %v546
      %v670 = vunpack.c.l.b16 %v556
      %v671 = vunpack.c.l.b16 %v570
      %v672 = vunpack.c.l.b16 %v580
      %v673 = vunpack.c.l.b16 %v590
      %v674 = vunpack.c.l.b16 %v600
      %v675 = vunpack.c.l.b16 %v614
      %v676 = vunpack.c.l.b16 %v624
      %v677 = vunpack.c.l.b16 %v634
      %v678 = vunpack.c.l.b16 %v644
      %v679 = vpack.c.b16 %v648, %v647
      %v680 = vpack.c.b16 %v650, %v649
      %v681 = vpack.c.b16 %v652, %v651
      %v682 = vpack.c.b16 %v654, %v653
      %v683 = vpack.c.b16 %v656, %v655
      %v684 = vpack.c.b16 %v658, %v657
      %v685 = vpack.c.b16 %v660, %v659
      %v686 = vpack.c.b16 %v662, %v661
      %v687 = vpack.c.b16 %v664, %v663
      %v688 = vpack.c.b16 %v666, %v665
      %v689 = vpack.c.b16 %v668, %v667
      %v690 = vpack.c.b16 %v670, %v669
      %v691 = vpack.c.b16 %v672, %v671
      %v692 = vpack.c.b16 %v674, %v673
      %v693 = vpack.c.b16 %v676, %v675
      %v694 = vpack.c.b16 %v678, %v677
      %vm695 = vcmask 64512
      %v697 = vsel %vm695, %v679, 0
      %v700 = vsel %vm695, %v680, 0
      %v703 = vsel %vm695, %v681, 0
      %v706 = vsel %vm695, %v682, 0
      %v709 = vsel %vm695, %v683, 0
      %v712 = vsel %vm695, %v684, 0
      %v715 = vsel %vm695, %v685, 0
      %v718 = vsel %vm695, %v686, 0
      %v721 = vsel %vm695, %v687, 0
      %v724 = vsel %vm695, %v688, 0
      %v727 = vsel %vm695, %v689, 0
      %v730 = vsel %vm695, %v690, 0
      %v733 = vsel %vm695, %v691, 0
      %v736 = vsel %vm695, %v692, 0
      %v739 = vsel %vm695, %v693, 0
      %v742 = vsel %vm695, %v694, 0
      %vm744 = vcmask 1043456
      %v746 = vsel %vm744, %v646, 0
      %748 = vmatprep.subr.bf16.mxu0 0
      %749 = vmatpush1.bf16.msra.mxu0 %v746
      %750 = vmatprep.subr.bf16.mxu0 0
      %751 = vmatpush1.bf16.msra.mxu0 0
      %752 = vmatprep.subr.bf16.mxu0 0
      %753 = vmatpush1.bf16.msra.mxu0 0
      %754 = vmatprep.subr.bf16.mxu0 0
      %755 = vmatpush1.bf16.msra.mxu0 0
      %756 = vmatprep.subr.bf16.mxu0 0
      %757 = vmatpush1.bf16.msra.mxu0 0
      %758 = vmatprep.subr.bf16.mxu0 0
      %759 = vmatpush1.bf16.msra.mxu0 0
      %760 = vmatprep.subr.bf16.mxu0 0
      %761 = vmatpush1.bf16.msra.mxu0 0
      %762 = vmatprep.subr.bf16.mxu0 0
      %763 = vmatpush1.bf16.msra.mxu0 0
      %764 = vmatprep.subr.bf16.mxu0 0
      %765 = vmatpush1.bf16.msra.mxu0 0
      %766 = vmatprep.subr.bf16.mxu0 0
      %767 = vmatpush1.bf16.msra.mxu0 0
      %768 = vmatprep.subr.bf16.mxu0 0
      %769 = vmatpush1.bf16.msra.mxu0 0
      %770 = vmatprep.subr.bf16.mxu0 0
      %771 = vmatpush1.bf16.msra.mxu0 0
      %772 = vmatprep.subr.bf16.mxu0 0
      %773 = vmatpush1.bf16.msra.mxu0 0
      %774 = vmatprep.subr.bf16.mxu0 0
      %775 = vmatpush1.bf16.msra.mxu0 0
      %776 = vmatprep.subr.bf16.mxu0 0
      %777 = vmatpush1.bf16.msra.mxu0 0
      %778 = vmatprep.subr.bf16.mxu0 0
      %779 = vmatpush1.bf16.msra.mxu0 0
      %780 = vmatprep.mubr.bf16.mxu0 0
      %781 = vmatmul.mubr.bf16.gmra.mrb[0].mxu0 %v697
      %v782 = vpop.f32.mrb[0].mxu0
      %v783 = vadd.f32 0.0, %v782
      %v784 = vpop.f32.mrb[0].mxu0
      %v785 = vpop.f32.mrb[0].mxu0
      %v786 = vadd.f32 0.0, %v785
      %v787 = vpop.f32.mrb[0].mxu0
      %788 = vmatprep.mubr.bf16.mxu0 0
      %789 = vmatmul.mubr.bf16.gmra.mrb[0].mxu0 %v700
      %v790 = vpop.f32.mrb[0].mxu0
      %v791 = vadd.f32 0.0, %v790
      %v792 = vpop.f32.mrb[0].mxu0
      %v793 = vpop.f32.mrb[0].mxu0
      %v794 = vadd.f32 0.0, %v793
      %v795 = vpop.f32.mrb[0].mxu0
      %796 = vmatprep.mubr.bf16.mxu0 0
      %797 = vmatmul.mubr.bf16.gmra.mrb[0].mxu0 %v703
      %v798 = vpop.f32.mrb[0].mxu0
      %v799 = vadd.f32 0.0, %v798
      %v800 = vpop.f32.mrb[0].mxu0
      %v801 = vpop.f32.mrb[0].mxu0
      %v802 = vadd.f32 0.0, %v801
      %v803 = vpop.f32.mrb[0].mxu0
      %804 = vmatprep.mubr.bf16.mxu0 0
      %805 = vmatmul.mubr.bf16.gmra.mrb[0].mxu0 %v706
      %v806 = vpop.f32.mrb[0].mxu0
      %v807 = vadd.f32 0.0, %v806
      %v808 = vpop.f32.mrb[0].mxu0
      %v809 = vpop.f32.mrb[0].mxu0
      %v810 = vadd.f32 0.0, %v809
      %v811 = vpop.f32.mrb[0].mxu0
      %812 = vmatprep.mubr.bf16.mxu0 0
      %813 = vmatmul.mubr.bf16.gmra.mrb[0].mxu0 %v709
      %v814 = vpop.f32.mrb[0].mxu0
      %v815 = vadd.f32 0.0, %v814
      %v816 = vpop.f32.mrb[0].mxu0
      %v817 = vpop.f32.mrb[0].mxu0
      %v818 = vadd.f32 0.0, %v817
      %v819 = vpop.f32.mrb[0].mxu0
      %820 = vmatprep.mubr.bf16.mxu0 0
      %821 = vmatmul.mubr.bf16.gmra.mrb[0].mxu0 %v712
      %v822 = vpop.f32.mrb[0].mxu0
      %v823 = vadd.f32 0.0, %v822
      %v824 = vpop.f32.mrb[0].mxu0
      %v825 = vpop.f32.mrb[0].mxu0
      %v826 = vadd.f32 0.0, %v825
      %v827 = vpop.f32.mrb[0].mxu0
      %828 = vmatprep.mubr.bf16.mxu0 0
      %829 = vmatmul.mubr.bf16.gmra.mrb[0].mxu0 %v715
      %v830 = vpop.f32.mrb[0].mxu0
      %v831 = vadd.f32 0.0, %v830
      %v832 = vpop.f32.mrb[0].mxu0
      %v833 = vpop.f32.mrb[0].mxu0
      %v834 = vadd.f32 0.0, %v833
      %v835 = vpop.f32.mrb[0].mxu0
      %836 = vmatprep.mubr.bf16.mxu0 0
      %837 = vmatmul.mubr.bf16.gmra.mrb[0].mxu0 %v718
      %v838 = vpop.f32.mrb[0].mxu0
      %v839 = vadd.f32 0.0, %v838
      %v840 = vpop.f32.mrb[0].mxu0
      %v841 = vpop.f32.mrb[0].mxu0
      %v842 = vadd.f32 0.0, %v841
      %v843 = vpop.f32.mrb[0].mxu0
      %844 = vmatprep.mubr.bf16.mxu0 0
      %845 = vmatmul.mubr.bf16.gmra.mrb[0].mxu0 %v721
      %v846 = vpop.f32.mrb[0].mxu0
      %v847 = vadd.f32 0.0, %v846
      %v848 = vpop.f32.mrb[0].mxu0
      %v849 = vpop.f32.mrb[0].mxu0
      %v850 = vadd.f32 0.0, %v849
      %v851 = vpop.f32.mrb[0].mxu0
      %852 = vmatprep.mubr.bf16.mxu0 0
      %853 = vmatmul.mubr.bf16.gmra.mrb[0].mxu0 %v724
      %v854 = vpop.f32.mrb[0].mxu0
      %v855 = vadd.f32 0.0, %v854
      %v856 = vpop.f32.mrb[0].mxu0
      %v857 = vpop.f32.mrb[0].mxu0
      %v858 = vadd.f32 0.0, %v857
      %v859 = vpop.f32.mrb[0].mxu0
      %860 = vmatprep.mubr.bf16.mxu0 0
      %861 = vmatmul.mubr.bf16.gmra.mrb[0].mxu0 %v727
      %v862 = vpop.f32.mrb[0].mxu0
      %v863 = vadd.f32 0.0, %v862
      %v864 = vpop.f32.mrb[0].mxu0
      %v865 = vpop.f32.mrb[0].mxu0
      %v866 = vadd.f32 0.0, %v865
      %v867 = vpop.f32.mrb[0].mxu0
      %868 = vmatprep.mubr.bf16.mxu0 0
      %869 = vmatmul.mubr.bf16.gmra.mrb[0].mxu0 %v730
      %v870 = vpop.f32.mrb[0].mxu0
      %v871 = vadd.f32 0.0, %v870
      %v872 = vpop.f32.mrb[0].mxu0
      %v873 = vpop.f32.mrb[0].mxu0
      %v874 = vadd.f32 0.0, %v873
      %v875 = vpop.f32.mrb[0].mxu0
      %876 = vmatprep.mubr.bf16.mxu0 0
      %877 = vmatmul.mubr.bf16.gmra.mrb[0].mxu0 %v733
      %v878 = vpop.f32.mrb[0].mxu0
      %v879 = vadd.f32 0.0, %v878
      %v880 = vpop.f32.mrb[0].mxu0
      %v881 = vpop.f32.mrb[0].mxu0
      %v882 = vadd.f32 0.0, %v881
      %v883 = vpop.f32.mrb[0].mxu0
      %884 = vmatprep.mubr.bf16.mxu0 0
      %885 = vmatmul.mubr.bf16.gmra.mrb[0].mxu0 %v736
      %v886 = vpop.f32.mrb[0].mxu0
      %v887 = vadd.f32 0.0, %v886
      %v888 = vpop.f32.mrb[0].mxu0
      %v889 = vpop.f32.mrb[0].mxu0
      %v890 = vadd.f32 0.0, %v889
      %v891 = vpop.f32.mrb[0].mxu0
      %892 = vmatprep.mubr.bf16.mxu0 0
      %893 = vmatmul.mubr.bf16.gmra.mrb[0].mxu0 %v739
      %v894 = vpop.f32.mrb[0].mxu0
      %v895 = vadd.f32 0.0, %v894
      %v896 = vpop.f32.mrb[0].mxu0
      %v897 = vpop.f32.mrb[0].mxu0
      %v898 = vadd.f32 0.0, %v897
      %v899 = vpop.f32.mrb[0].mxu0
      %900 = vmatprep.mubr.bf16.mxu0 0
      %901 = vmatmul.mubr.bf16.gmra.mrb[0].mxu0 %v742
      %v902 = vpop.f32.mrb[0].mxu0
      %v903 = vadd.f32 0.0, %v902
      %v904 = vpop.f32.mrb[0].mxu0
      %v905 = vpop.f32.mrb[0].mxu0
      %v906 = vadd.f32 0.0, %v905
      %v907 = vpop.f32.mrb[0].mxu0
      %908 = vdwg.mxu0
      %v941 = vunpack.c.l.b16 %v249
      %v942 = vunpack.c.l.b16 %v250
      %v943 = vunpack.c.l.b16 %v251
      %v944 = vunpack.c.l.b16 %v252
      %v945 = vunpack.c.l.b16 %v253
      %v946 = vunpack.c.l.b16 %v254
      %v947 = vunpack.c.l.b16 %v255
      %v948 = vunpack.c.l.b16 %v256
      %v949 = vunpack.c.l.b16 %v257
      %v950 = vunpack.c.l.b16 %v258
      %v951 = vunpack.c.l.b16 %v259
      %v952 = vunpack.c.l.b16 %v260
      %v953 = vunpack.c.l.b16 %v261
      %v954 = vunpack.c.l.b16 %v262
      %v955 = vunpack.c.l.b16 %v263
      %v956 = vunpack.c.l.b16 %v264
      %v957 = vunpack.c.l.b16 %v265
      %v958 = vunpack.c.l.b16 %v266
      %v959 = vunpack.c.l.b16 %v267
      %v960 = vunpack.c.l.b16 %v268
      %v961 = vunpack.c.l.b16 %v269
      %v962 = vunpack.c.l.b16 %v270
      %v963 = vunpack.c.l.b16 %v271
      %v964 = vunpack.c.l.b16 %v272
      %v965 = vunpack.c.l.b16 %v273
      %v966 = vunpack.c.l.b16 %v274
      %v967 = vunpack.c.l.b16 %v275
      %v968 = vunpack.c.l.b16 %v276
      %v969 = vunpack.c.l.b16 %v277
      %v970 = vunpack.c.l.b16 %v278
      %v971 = vunpack.c.l.b16 %v279
      %v972 = vunpack.c.l.b16 %v280
      %v973 = vpack.c.b16 %v942, %v941
      %v974 = vpack.c.b16 %v944, %v943
      %v975 = vpack.c.b16 %v946, %v945
      %v976 = vpack.c.b16 %v948, %v947
      %v977 = vpack.c.b16 %v950, %v949
      %v978 = vpack.c.b16 %v952, %v951
      %v979 = vpack.c.b16 %v954, %v953
      %v980 = vpack.c.b16 %v956, %v955
      %v981 = vpack.c.b16 %v958, %v957
      %v982 = vpack.c.b16 %v960, %v959
      %v983 = vpack.c.b16 %v962, %v961
      %v984 = vpack.c.b16 %v964, %v963
      %v985 = vpack.c.b16 %v966, %v965
      %v986 = vpack.c.b16 %v968, %v967
      %v987 = vpack.c.b16 %v970, %v969
      %v988 = vpack.c.b16 %v972, %v971
      %v990 = vsel %vm695, %v973, 0
      %v993 = vsel %vm695, %v974, 0
      %v996 = vsel %vm695, %v975, 0
      %v999 = vsel %vm695, %v976, 0
      %v1002 = vsel %vm695, %v977, 0
      %v1005 = vsel %vm695, %v978, 0
      %v1008 = vsel %vm695, %v979, 0
      %v1011 = vsel %vm695, %v980, 0
      %v1014 = vsel %vm695, %v981, 0
      %v1017 = vsel %vm695, %v982, 0
      %v1020 = vsel %vm695, %v983, 0
      %v1023 = vsel %vm695, %v984, 0
      %v1026 = vsel %vm695, %v985, 0
      %v1029 = vsel %vm695, %v986, 0
      %v1032 = vsel %vm695, %v987, 0
      %v1035 = vsel %vm695, %v988, 0
      %v1038 = vsel %vm744, %v281, 0
      %1040 = vmatprep.subr.bf16.mxu0 0
      %1041 = vmatpush1.bf16.msra.mxu0 %v1038
      %1042 = vmatprep.subr.bf16.mxu0 0
      %1043 = vmatpush1.bf16.msra.mxu0 0
      %1044 = vmatprep.subr.bf16.mxu0 0
      %1045 = vmatpush1.bf16.msra.mxu0 0
      %1046 = vmatprep.subr.bf16.mxu0 0
      %1047 = vmatpush1.bf16.msra.mxu0 0
      %1048 = vmatprep.subr.bf16.mxu0 0
      %1049 = vmatpush1.bf16.msra.mxu0 0
      %1050 = vmatprep.subr.bf16.mxu0 0
      %1051 = vmatpush1.bf16.msra.mxu0 0
      %1052 = vmatprep.subr.bf16.mxu0 0
      %1053 = vmatpush1.bf16.msra.mxu0 0
      %1054 = vmatprep.subr.bf16.mxu0 0
      %1055 = vmatpush1.bf16.msra.mxu0 0
      %1056 = vmatprep.subr.bf16.mxu0 0
      %1057 = vmatpush1.bf16.msra.mxu0 0
      %1058 = vmatprep.subr.bf16.mxu0 0
      %1059 = vmatpush1.bf16.msra.mxu0 0
      %1060 = vmatprep.subr.bf16.mxu0 0
      %1061 = vmatpush1.bf16.msra.mxu0 0
      %1062 = vmatprep.subr.bf16.mxu0 0
      %1063 = vmatpush1.bf16.msra.mxu0 0
      %1064 = vmatprep.subr.bf16.mxu0 0
      %1065 = vmatpush1.bf16.msra.mxu0 0
      %1066 = vmatprep.subr.bf16.mxu0 0
      %1067 = vmatpush1.bf16.msra.mxu0 0
      %1068 = vmatprep.subr.bf16.mxu0 0
      %1069 = vmatpush1.bf16.msra.mxu0 0
      %1070 = vmatprep.subr.bf16.mxu0 0
      %1071 = vmatpush1.bf16.msra.mxu0 0
      %1072 = vmatprep.mubr.bf16.mxu0 0
      %1073 = vmatmul.mubr.bf16.gmra.mrb[0].mxu0 %v990
      %v1074 = vpop.f32.mrb[0].mxu0
      %v1075 = vadd.f32 %v783, %v1074
      %v1076 = vpop.f32.mrb[0].mxu0
      %v1077 = vpop.f32.mrb[0].mxu0
      %v1078 = vadd.f32 %v786, %v1077
      %v1079 = vpop.f32.mrb[0].mxu0
      %1080 = vmatprep.mubr.bf16.mxu0 0
      %1081 = vmatmul.mubr.bf16.gmra.mrb[0].mxu0 %v993
      %v1082 = vpop.f32.mrb[0].mxu0
      %v1083 = vadd.f32 %v791, %v1082
      %v1084 = vpop.f32.mrb[0].mxu0
      %v1085 = vpop.f32.mrb[0].mxu0
      %v1086 = vadd.f32 %v794, %v1085
      %v1087 = vpop.f32.mrb[0].mxu0
      %1088 = vmatprep.mubr.bf16.mxu0 0
      %1089 = vmatmul.mubr.bf16.gmra.mrb[0].mxu0 %v996
      %v1090 = vpop.f32.mrb[0].mxu0
      %v1091 = vadd.f32 %v799, %v1090
      %v1092 = vpop.f32.mrb[0].mxu0
      %v1093 = vpop.f32.mrb[0].mxu0
      %v1094 = vadd.f32 %v802, %v1093
      %v1095 = vpop.f32.mrb[0].mxu0
      %1096 = vmatprep.mubr.bf16.mxu0 0
      %1097 = vmatmul.mubr.bf16.gmra.mrb[0].mxu0 %v999
      %v1098 = vpop.f32.mrb[0].mxu0
      %v1099 = vadd.f32 %v807, %v1098
      %v1100 = vpop.f32.mrb[0].mxu0
      %v1101 = vpop.f32.mrb[0].mxu0
      %v1102 = vadd.f32 %v810, %v1101
      %v1103 = vpop.f32.mrb[0].mxu0
      %1104 = vmatprep.mubr.bf16.mxu0 0
      %1105 = vmatmul.mubr.bf16.gmra.mrb[0].mxu0 %v1002
      %v1106 = vpop.f32.mrb[0].mxu0
      %v1107 = vadd.f32 %v815, %v1106
      %v1108 = vpop.f32.mrb[0].mxu0
      %v1109 = vpop.f32.mrb[0].mxu0
      %v1110 = vadd.f32 %v818, %v1109
      %v1111 = vpop.f32.mrb[0].mxu0
      %1112 = vmatprep.mubr.bf16.mxu0 0
      %1113 = vmatmul.mubr.bf16.gmra.mrb[0].mxu0 %v1005
      %v1114 = vpop.f32.mrb[0].mxu0
      %v1115 = vadd.f32 %v823, %v1114
      %v1116 = vpop.f32.mrb[0].mxu0
      %v1117 = vpop.f32.mrb[0].mxu0
      %v1118 = vadd.f32 %v826, %v1117
      %v1119 = vpop.f32.mrb[0].mxu0
      %1120 = vmatprep.mubr.bf16.mxu0 0
      %1121 = vmatmul.mubr.bf16.gmra.mrb[0].mxu0 %v1008
      %v1122 = vpop.f32.mrb[0].mxu0
      %v1123 = vadd.f32 %v831, %v1122
      %v1124 = vpop.f32.mrb[0].mxu0
      %v1125 = vpop.f32.mrb[0].mxu0
      %v1126 = vadd.f32 %v834, %v1125
      %v1127 = vpop.f32.mrb[0].mxu0
      %1128 = vmatprep.mubr.bf16.mxu0 0
      %1129 = vmatmul.mubr.bf16.gmra.mrb[0].mxu0 %v1011
      %v1130 = vpop.f32.mrb[0].mxu0
      %v1131 = vadd.f32 %v839, %v1130
      %v1132 = vpop.f32.mrb[0].mxu0
      %v1133 = vpop.f32.mrb[0].mxu0
      %v1134 = vadd.f32 %v842, %v1133
      %v1135 = vpop.f32.mrb[0].mxu0
      %1136 = vmatprep.mubr.bf16.mxu0 0
      %1137 = vmatmul.mubr.bf16.gmra.mrb[0].mxu0 %v1014
      %v1138 = vpop.f32.mrb[0].mxu0
      %v1139 = vadd.f32 %v847, %v1138
      %v1140 = vpop.f32.mrb[0].mxu0
      %v1141 = vpop.f32.mrb[0].mxu0
      %v1142 = vadd.f32 %v850, %v1141
      %v1143 = vpop.f32.mrb[0].mxu0
      %1144 = vmatprep.mubr.bf16.mxu0 0
      %1145 = vmatmul.mubr.bf16.gmra.mrb[0].mxu0 %v1017
      %v1146 = vpop.f32.mrb[0].mxu0
      %v1147 = vadd.f32 %v855, %v1146
      %v1148 = vpop.f32.mrb[0].mxu0
      %v1149 = vpop.f32.mrb[0].mxu0
      %v1150 = vadd.f32 %v858, %v1149
      %v1151 = vpop.f32.mrb[0].mxu0
      %1152 = vmatprep.mubr.bf16.mxu0 0
      %1153 = vmatmul.mubr.bf16.gmra.mrb[0].mxu0 %v1020
      %v1154 = vpop.f32.mrb[0].mxu0
      %v1155 = vadd.f32 %v863, %v1154
      %v1156 = vpop.f32.mrb[0].mxu0
      %v1157 = vpop.f32.mrb[0].mxu0
      %v1158 = vadd.f32 %v866, %v1157
      %v1159 = vpop.f32.mrb[0].mxu0
      %1160 = vmatprep.mubr.bf16.mxu0 0
      %1161 = vmatmul.mubr.bf16.gmra.mrb[0].mxu0 %v1023
      %v1162 = vpop.f32.mrb[0].mxu0
      %v1163 = vadd.f32 %v871, %v1162
      %v1164 = vpop.f32.mrb[0].mxu0
      %v1165 = vpop.f32.mrb[0].mxu0
      %v1166 = vadd.f32 %v874, %v1165
      %v1167 = vpop.f32.mrb[0].mxu0
      %1168 = vmatprep.mubr.bf16.mxu0 0
      %1169 = vmatmul.mubr.bf16.gmra.mrb[0].mxu0 %v1026
      %v1170 = vpop.f32.mrb[0].mxu0
      %v1171 = vadd.f32 %v879, %v1170
      %v1172 = vpop.f32.mrb[0].mxu0
      %v1173 = vpop.f32.mrb[0].mxu0
      %v1174 = vadd.f32 %v882, %v1173
      %v1175 = vpop.f32.mrb[0].mxu0
      %1176 = vmatprep.mubr.bf16.mxu0 0
      %1177 = vmatmul.mubr.bf16.gmra.mrb[0].mxu0 %v1029
      %v1178 = vpop.f32.mrb[0].mxu0
      %v1179 = vadd.f32 %v887, %v1178
      %v1180 = vpop.f32.mrb[0].mxu0
      %v1181 = vpop.f32.mrb[0].mxu0
      %v1182 = vadd.f32 %v890, %v1181
      %v1183 = vpop.f32.mrb[0].mxu0
      %1184 = vmatprep.mubr.bf16.mxu0 0
      %1185 = vmatmul.mubr.bf16.gmra.mrb[0].mxu0 %v1032
      %v1186 = vpop.f32.mrb[0].mxu0
      %v1187 = vadd.f32 %v895, %v1186
      %v1188 = vpop.f32.mrb[0].mxu0
      %v1189 = vpop.f32.mrb[0].mxu0
      %v1190 = vadd.f32 %v898, %v1189
      %v1191 = vpop.f32.mrb[0].mxu0
      %1192 = vmatprep.mubr.bf16.mxu0 0
      %1193 = vmatmul.mubr.bf16.gmra.mrb[0].mxu0 %v1035
      %v1194 = vpop.f32.mrb[0].mxu0
      %v1195 = vadd.f32 %v903, %v1194
      %v1196 = vpop.f32.mrb[0].mxu0
      %v1197 = vpop.f32.mrb[0].mxu0
      %v1198 = vadd.f32 %v906, %v1197
      %v1199 = vpop.f32.mrb[0].mxu0
      %1200 = vdwg.mxu0
      %v1201 = vld [vmem:[%s248] sm:$0xe]
      %v1202 = vld [vmem:[%s248 + $0x14] sm:$0xe]
      %v1203 = vld [vmem:[%s248 + $0x28] sm:$0xe]
      %v1204 = vld [vmem:[%s248 + $0x3c] sm:$0xe]
      %v1205 = vld [vmem:[%s248 + $0x50] sm:$0xe]
      %v1206 = vld [vmem:[%s248 + $0x64] sm:$0xe]
      %v1207 = vld [vmem:[%s248 + $0x78] sm:$0xe]
      %v1208 = vld [vmem:[%s248 + $0x8c] sm:$0xe]
      %vm1225 = vcmask 1042432
      %vm1226 = vcmask 1046532
      %vm1227 = vmor %vm1225, %vm1226
      %v1228 = vrot.slane %v1201, 5
      %v1229 = vrot.slane %v1228, 4
      %v1230 = vrot.slane %v250, 5
      %v1231 = vsel %vm1227, %v1229, %v1230
      %v1232 = vrot.slane %v1230, 4
      %v1233 = vrot.slane %v251, 5
      %v1234 = vsel %vm1227, %v1232, %v1233
      %v1235 = vrot.slane %v1233, 4
      %v1236 = vrot.slane %v252, 5
      %v1237 = vsel %vm1227, %v1235, %v1236
      %v1238 = vrot.slane %v1236, 4
      %v1239 = vrot.slane %v282, 5
      %v1240 = vsel %vm1227, %v1238, %v1239
      %v1241 = vrot.slane %v1202, 5
      %v1242 = vrot.slane %v1241, 4
      %v1243 = vrot.slane %v254, 5
      %v1244 = vsel %vm1227, %v1242, %v1243
      %v1245 = vrot.slane %v1243, 4
      %v1246 = vrot.slane %v255, 5
      %v1247 = vsel %vm1227, %v1245, %v1246
      %v1248 = vrot.slane %v1246, 4
      %v1249 = vrot.slane %v256, 5
      %v1250 = vsel %vm1227, %v1248, %v1249
      %v1251 = vrot.slane %v1249, 4
      %v1252 = vrot.slane %v283, 5
      %v1253 = vsel %vm1227, %v1251, %v1252
      %v1254 = vrot.slane %v1203, 5
      %v1255 = vrot.slane %v1254, 4
      %v1256 = vrot.slane %v258, 5
      %v1257 = vsel %vm1227, %v1255, %v1256
      %v1258 = vrot.slane %v1256, 4
      %v1259 = vrot.slane %v259, 5
      %v1260 = vsel %vm1227, %v1258, %v1259
      %v1261 = vrot.slane %v1259, 4
      %v1262 = vrot.slane %v260, 5
      %v1263 = vsel %vm1227, %v1261, %v1262
      %v1264 = vrot.slane %v1262, 4
      %v1265 = vrot.slane %v284, 5
      %v1266 = vsel %vm1227, %v1264, %v1265
      %v1267 = vrot.slane %v1204, 5
      %v1268 = vrot.slane %v1267, 4
      %v1269 = vrot.slane %v262, 5
      %v1270 = vsel %vm1227, %v1268, %v1269
      %v1271 = vrot.slane %v1269, 4
      %v1272 = vrot.slane %v263, 5
      %v1273 = vsel %vm1227, %v1271, %v1272
      %v1274 = vrot.slane %v1272, 4
      %v1275 = vrot.slane %v264, 5
      %v1276 = vsel %vm1227, %v1274, %v1275
      %v1277 = vrot.slane %v1275, 4
      %v1278 = vrot.slane %v285, 5
      %v1279 = vsel %vm1227, %v1277, %v1278
      %v1280 = vrot.slane %v1205, 5
      %v1281 = vrot.slane %v1280, 4
      %v1282 = vrot.slane %v266, 5
      %v1283 = vsel %vm1227, %v1281, %v1282
      %v1284 = vrot.slane %v1282, 4
      %v1285 = vrot.slane %v267, 5
      %v1286 = vsel %vm1227, %v1284, %v1285
      %v1287 = vrot.slane %v1285, 4
      %v1288 = vrot.slane %v268, 5
      %v1289 = vsel %vm1227, %v1287, %v1288
      %v1290 = vrot.slane %v1288, 4
      %v1291 = vrot.slane %v286, 5
      %v1292 = vsel %vm1227, %v1290, %v1291
      %v1293 = vrot.slane %v1206, 5
      %v1294 = vrot.slane %v1293, 4
      %v1295 = vrot.slane %v270, 5
      %v1296 = vsel %vm1227, %v1294, %v1295
      %v1297 = vrot.slane %v1295, 4
      %v1298 = vrot.slane %v271, 5
      %v1299 = vsel %vm1227, %v1297, %v1298
      %v1300 = vrot.slane %v1298, 4
      %v1301 = vrot.slane %v272, 5
      %v1302 = vsel %vm1227, %v1300, %v1301
      %v1303 = vrot.slane %v1301, 4
      %v1304 = vrot.slane %v287, 5
      %v1305 = vsel %vm1227, %v1303, %v1304
      %v1306 = vrot.slane %v1207, 5
      %v1307 = vrot.slane %v1306, 4
      %v1308 = vrot.slane %v274, 5
      %v1309 = vsel %vm1227, %v1307, %v1308
      %v1310 = vrot.slane %v1308, 4
      %v1311 = vrot.slane %v275, 5
      %v1312 = vsel %vm1227, %v1310, %v1311
      %v1313 = vrot.slane %v1311, 4
      %v1314 = vrot.slane %v276, 5
      %v1315 = vsel %vm1227, %v1313, %v1314
      %v1316 = vrot.slane %v1314, 4
      %v1317 = vrot.slane %v288, 5
      %v1318 = vsel %vm1227, %v1316, %v1317
      %v1319 = vrot.slane %v1208, 5
      %v1320 = vrot.slane %v1319, 4
      %v1321 = vrot.slane %v278, 5
      %v1322 = vsel %vm1227, %v1320, %v1321
      %v1323 = vrot.slane %v1321, 4
      %v1324 = vrot.slane %v279, 5
      %v1325 = vsel %vm1227, %v1323, %v1324
      %v1326 = vrot.slane %v1324, 4
      %v1327 = vrot.slane %v280, 5
      %v1328 = vsel %vm1227, %v1326, %v1327
      %v1329 = vrot.slane %v1327, 4
      %v1330 = vrot.slane %v289, 5
      %v1331 = vsel %vm1227, %v1329, %v1330
      %s1332 = scalar_lea.vmem %s1, 8
      %v1333 = vld [vmem:[%s1332] sm:$0xf]
      %v1334 = vunpack.c.l.b16 %v1231
      %v1335 = vunpack.c.l.b16 %v1234
      %v1336 = vunpack.c.l.b16 %v1237
      %v1337 = vunpack.c.l.b16 %v1240
      %v1338 = vunpack.c.l.b16 %v1244
      %v1339 = vunpack.c.l.b16 %v1247
      %v1340 = vunpack.c.l.b16 %v1250
      %v1341 = vunpack.c.l.b16 %v1253
      %v1342 = vunpack.c.l.b16 %v1257
      %v1343 = vunpack.c.l.b16 %v1260
      %v1344 = vunpack.c.l.b16 %v1263
      %v1345 = vunpack.c.l.b16 %v1266
      %v1346 = vunpack.c.l.b16 %v1270
      %v1347 = vunpack.c.l.b16 %v1273
      %v1348 = vunpack.c.l.b16 %v1276
      %v1349 = vunpack.c.l.b16 %v1279
      %v1350 = vunpack.c.l.b16 %v1283
      %v1351 = vunpack.c.l.b16 %v1286
      %v1352 = vunpack.c.l.b16 %v1289
      %v1353 = vunpack.c.l.b16 %v1292
      %v1354 = vunpack.c.l.b16 %v1296
      %v1355 = vunpack.c.l.b16 %v1299
      %v1356 = vunpack.c.l.b16 %v1302
      %v1357 = vunpack.c.l.b16 %v1305
      %v1358 = vunpack.c.l.b16 %v1309
      %v1359 = vunpack.c.l.b16 %v1312
      %v1360 = vunpack.c.l.b16 %v1315
      %v1361 = vunpack.c.l.b16 %v1318
      %v1362 = vunpack.c.l.b16 %v1322
      %v1363 = vunpack.c.l.b16 %v1325
      %v1364 = vunpack.c.l.b16 %v1328
      %v1365 = vunpack.c.l.b16 %v1331
      %v1366 = vpack.c.b16 %v1335, %v1334
      %v1367 = vpack.c.b16 %v1337, %v1336
      %v1368 = vpack.c.b16 %v1339, %v1338
      %v1369 = vpack.c.b16 %v1341, %v1340
      %v1370 = vpack.c.b16 %v1343, %v1342
      %v1371 = vpack.c.b16 %v1345, %v1344
      %v1372 = vpack.c.b16 %v1347, %v1346
      %v1373 = vpack.c.b16 %v1349, %v1348
      %v1374 = vpack.c.b16 %v1351, %v1350
      %v1375 = vpack.c.b16 %v1353, %v1352
      %v1376 = vpack.c.b16 %v1355, %v1354
      %v1377 = vpack.c.b16 %v1357, %v1356
      %v1378 = vpack.c.b16 %v1359, %v1358
      %v1379 = vpack.c.b16 %v1361, %v1360
      %v1380 = vpack.c.b16 %v1363, %v1362
      %v1381 = vpack.c.b16 %v1365, %v1364
      %v1383 = vsel %vm695, %v1366, 0
      %v1386 = vsel %vm695, %v1367, 0
      %v1389 = vsel %vm695, %v1368, 0
      %v1392 = vsel %vm695, %v1369, 0
      %v1395 = vsel %vm695, %v1370, 0
      %v1398 = vsel %vm695, %v1371, 0
      %v1401 = vsel %vm695, %v1372, 0
      %v1404 = vsel %vm695, %v1373, 0
      %v1407 = vsel %vm695, %v1374, 0
      %v1410 = vsel %vm695, %v1375, 0
      %v1413 = vsel %vm695, %v1376, 0
      %v1416 = vsel %vm695, %v1377, 0
      %v1419 = vsel %vm695, %v1378, 0
      %v1422 = vsel %vm695, %v1379, 0
      %v1425 = vsel %vm695, %v1380, 0
      %v1428 = vsel %vm695, %v1381, 0
      %v1431 = vsel %vm744, %v1333, 0
      %1433 = vmatprep.subr.bf16.mxu0 0
      %1434 = vmatpush1.bf16.msra.mxu0 %v1431
      %1435 = vmatprep.subr.bf16.mxu0 0
      %1436 = vmatpush1.bf16.msra.mxu0 0
      %1437 = vmatprep.subr.bf16.mxu0 0
      %1438 = vmatpush1.bf16.msra.mxu0 0
      %1439 = vmatprep.subr.bf16.mxu0 0
      %1440 = vmatpush1.bf16.msra.mxu0 0
      %1441 = vmatprep.subr.bf16.mxu0 0
      %1442 = vmatpush1.bf16.msra.mxu0 0
      %1443 = vmatprep.subr.bf16.mxu0 0
      %1444 = vmatpush1.bf16.msra.mxu0 0
      %1445 = vmatprep.subr.bf16.mxu0 0
      %1446 = vmatpush1.bf16.msra.mxu0 0
      %1447 = vmatprep.subr.bf16.mxu0 0
      %1448 = vmatpush1.bf16.msra.mxu0 0
      %1449 = vmatprep.subr.bf16.mxu0 0
      %1450 = vmatpush1.bf16.msra.mxu0 0
      %1451 = vmatprep.subr.bf16.mxu0 0
      %1452 = vmatpush1.bf16.msra.mxu0 0
      %1453 = vmatprep.subr.bf16.mxu0 0
      %1454 = vmatpush1.bf16.msra.mxu0 0
      %1455 = vmatprep.subr.bf16.mxu0 0
      %1456 = vmatpush1.bf16.msra.mxu0 0
      %1457 = vmatprep.subr.bf16.mxu0 0
      %1458 = vmatpush1.bf16.msra.mxu0 0
      %1459 = vmatprep.subr.bf16.mxu0 0
      %1460 = vmatpush1.bf16.msra.mxu0 0
      %1461 = vmatprep.subr.bf16.mxu0 0
      %1462 = vmatpush1.bf16.msra.mxu0 0
      %1463 = vmatprep.subr.bf16.mxu0 0
      %1464 = vmatpush1.bf16.msra.mxu0 0
      %1465 = vmatprep.mubr.bf16.mxu0 0
      %1466 = vmatmul.mubr.bf16.gmra.mrb[0].mxu0 %v1383
      %v1467 = vpop.f32.mrb[0].mxu0
      %v1468 = vadd.f32 0.0, %v1467
      %v1469 = vpop.f32.mrb[0].mxu0
      %v1470 = vpop.f32.mrb[0].mxu0
      %v1471 = vadd.f32 0.0, %v1470
      %v1472 = vpop.f32.mrb[0].mxu0
      %1473 = vmatprep.mubr.bf16.mxu0 0
      %1474 = vmatmul.mubr.bf16.gmra.mrb[0].mxu0 %v1386
      %v1475 = vpop.f32.mrb[0].mxu0
      %v1476 = vadd.f32 0.0, %v1475
      %v1477 = vpop.f32.mrb[0].mxu0
      %v1478 = vpop.f32.mrb[0].mxu0
      %v1479 = vadd.f32 0.0, %v1478
      %v1480 = vpop.f32.mrb[0].mxu0
      %1481 = vmatprep.mubr.bf16.mxu0 0
      %1482 = vmatmul.mubr.bf16.gmra.mrb[0].mxu0 %v1389
      %v1483 = vpop.f32.mrb[0].mxu0
      %v1484 = vadd.f32 0.0, %v1483
      %v1485 = vpop.f32.mrb[0].mxu0
      %v1486 = vpop.f32.mrb[0].mxu0
      %v1487 = vadd.f32 0.0, %v1486
      %v1488 = vpop.f32.mrb[0].mxu0
      %1489 = vmatprep.mubr.bf16.mxu0 0
      %1490 = vmatmul.mubr.bf16.gmra.mrb[0].mxu0 %v1392
      %v1491 = vpop.f32.mrb[0].mxu0
      %v1492 = vadd.f32 0.0, %v1491
      %v1493 = vpop.f32.mrb[0].mxu0
      %v1494 = vpop.f32.mrb[0].mxu0
      %v1495 = vadd.f32 0.0, %v1494
      %v1496 = vpop.f32.mrb[0].mxu0
      %1497 = vmatprep.mubr.bf16.mxu0 0
      %1498 = vmatmul.mubr.bf16.gmra.mrb[0].mxu0 %v1395
      %v1499 = vpop.f32.mrb[0].mxu0
      %v1500 = vadd.f32 0.0, %v1499
      %v1501 = vpop.f32.mrb[0].mxu0
      %v1502 = vpop.f32.mrb[0].mxu0
      %v1503 = vadd.f32 0.0, %v1502
      %v1504 = vpop.f32.mrb[0].mxu0
      %1505 = vmatprep.mubr.bf16.mxu0 0
      %1506 = vmatmul.mubr.bf16.gmra.mrb[0].mxu0 %v1398
      %v1507 = vpop.f32.mrb[0].mxu0
      %v1508 = vadd.f32 0.0, %v1507
      %v1509 = vpop.f32.mrb[0].mxu0
      %v1510 = vpop.f32.mrb[0].mxu0
      %v1511 = vadd.f32 0.0, %v1510
      %v1512 = vpop.f32.mrb[0].mxu0
      %1513 = vmatprep.mubr.bf16.mxu0 0
      %1514 = vmatmul.mubr.bf16.gmra.mrb[0].mxu0 %v1401
      %v1515 = vpop.f32.mrb[0].mxu0
      %v1516 = vadd.f32 0.0, %v1515
      %v1517 = vpop.f32.mrb[0].mxu0
      %v1518 = vpop.f32.mrb[0].mxu0
      %v1519 = vadd.f32 0.0, %v1518
      %v1520 = vpop.f32.mrb[0].mxu0
      %1521 = vmatprep.mubr.bf16.mxu0 0
      %1522 = vmatmul.mubr.bf16.gmra.mrb[0].mxu0 %v1404
      %v1523 = vpop.f32.mrb[0].mxu0
      %v1524 = vadd.f32 0.0, %v1523
      %v1525 = vpop.f32.mrb[0].mxu0
      %v1526 = vpop.f32.mrb[0].mxu0
      %v1527 = vadd.f32 0.0, %v1526
      %v1528 = vpop.f32.mrb[0].mxu0
      %1529 = vmatprep.mubr.bf16.mxu0 0
      %1530 = vmatmul.mubr.bf16.gmra.mrb[0].mxu0 %v1407
      %v1531 = vpop.f32.mrb[0].mxu0
      %v1532 = vadd.f32 0.0, %v1531
      %v1533 = vpop.f32.mrb[0].mxu0
      %v1534 = vpop.f32.mrb[0].mxu0
      %v1535 = vadd.f32 0.0, %v1534
      %v1536 = vpop.f32.mrb[0].mxu0
      %1537 = vmatprep.mubr.bf16.mxu0 0
      %1538 = vmatmul.mubr.bf16.gmra.mrb[0].mxu0 %v1410
      %v1539 = vpop.f32.mrb[0].mxu0
      %v1540 = vadd.f32 0.0, %v1539
      %v1541 = vpop.f32.mrb[0].mxu0
      %v1542 = vpop.f32.mrb[0].mxu0
      %v1543 = vadd.f32 0.0, %v1542
      %v1544 = vpop.f32.mrb[0].mxu0
      %1545 = vmatprep.mubr.bf16.mxu0 0
      %1546 = vmatmul.mubr.bf16.gmra.mrb[0].mxu0 %v1413
      %v1547 = vpop.f32.mrb[0].mxu0
      %v1548 = vadd.f32 0.0, %v1547
      %v1549 = vpop.f32.mrb[0].mxu0
      %v1550 = vpop.f32.mrb[0].mxu0
      %v1551 = vadd.f32 0.0, %v1550
      %v1552 = vpop.f32.mrb[0].mxu0
      %1553 = vmatprep.mubr.bf16.mxu0 0
      %1554 = vmatmul.mubr.bf16.gmra.mrb[0].mxu0 %v1416
      %v1555 = vpop.f32.mrb[0].mxu0
      %v1556 = vadd.f32 0.0, %v1555
      %v1557 = vpop.f32.mrb[0].mxu0
      %v1558 = vpop.f32.mrb[0].mxu0
      %v1559 = vadd.f32 0.0, %v1558
      %v1560 = vpop.f32.mrb[0].mxu0
      %1561 = vmatprep.mubr.bf16.mxu0 0
      %1562 = vmatmul.mubr.bf16.gmra.mrb[0].mxu0 %v1419
      %v1563 = vpop.f32.mrb[0].mxu0
      %v1564 = vadd.f32 0.0, %v1563
      %v1565 = vpop.f32.mrb[0].mxu0
      %v1566 = vpop.f32.mrb[0].mxu0
      %v1567 = vadd.f32 0.0, %v1566
      %v1568 = vpop.f32.mrb[0].mxu0
      %1569 = vmatprep.mubr.bf16.mxu0 0
      %1570 = vmatmul.mubr.bf16.gmra.mrb[0].mxu0 %v1422
      %v1571 = vpop.f32.mrb[0].mxu0
      %v1572 = vadd.f32 0.0, %v1571
      %v1573 = vpop.f32.mrb[0].mxu0
      %v1574 = vpop.f32.mrb[0].mxu0
      %v1575 = vadd.f32 0.0, %v1574
      %v1576 = vpop.f32.mrb[0].mxu0
      %1577 = vmatprep.mubr.bf16.mxu0 0
      %1578 = vmatmul.mubr.bf16.gmra.mrb[0].mxu0 %v1425
      %v1579 = vpop.f32.mrb[0].mxu0
      %v1580 = vadd.f32 0.0, %v1579
      %v1581 = vpop.f32.mrb[0].mxu0
      %v1582 = vpop.f32.mrb[0].mxu0
      %v1583 = vadd.f32 0.0, %v1582
      %v1584 = vpop.f32.mrb[0].mxu0
      %1585 = vmatprep.mubr.bf16.mxu0 0
      %1586 = vmatmul.mubr.bf16.gmra.mrb[0].mxu0 %v1428
      %v1587 = vpop.f32.mrb[0].mxu0
      %v1588 = vadd.f32 0.0, %v1587
      %v1589 = vpop.f32.mrb[0].mxu0
      %v1590 = vpop.f32.mrb[0].mxu0
      %v1591 = vadd.f32 0.0, %v1590
      %v1592 = vpop.f32.mrb[0].mxu0
      %1593 = vdwg.mxu0
      %v1594 = vadd.f32 %v1075, %v1468
      %v1595 = vadd.f32 %v1078, %v1471
      %v1596 = vadd.f32 %v1083, %v1476
      %v1597 = vadd.f32 %v1086, %v1479
      %v1598 = vadd.f32 %v1091, %v1484
      %v1599 = vadd.f32 %v1094, %v1487
      %v1600 = vadd.f32 %v1099, %v1492
      %v1601 = vadd.f32 %v1102, %v1495
      %v1602 = vadd.f32 %v1107, %v1500
      %v1603 = vadd.f32 %v1110, %v1503
      %v1604 = vadd.f32 %v1115, %v1508
      %v1605 = vadd.f32 %v1118, %v1511
      %v1606 = vadd.f32 %v1123, %v1516
      %v1607 = vadd.f32 %v1126, %v1519
      %v1608 = vadd.f32 %v1131, %v1524
      %v1609 = vadd.f32 %v1134, %v1527
      %v1610 = vadd.f32 %v1139, %v1532
      %v1611 = vadd.f32 %v1142, %v1535
      %v1612 = vadd.f32 %v1147, %v1540
      %v1613 = vadd.f32 %v1150, %v1543
      %v1614 = vadd.f32 %v1155, %v1548
      %v1615 = vadd.f32 %v1158, %v1551
      %v1616 = vadd.f32 %v1163, %v1556
      %v1617 = vadd.f32 %v1166, %v1559
      %v1618 = vadd.f32 %v1171, %v1564
      %v1619 = vadd.f32 %v1174, %v1567
      %v1620 = vadd.f32 %v1179, %v1572
      %v1621 = vadd.f32 %v1182, %v1575
      %v1622 = vadd.f32 %v1187, %v1580
      %v1623 = vadd.f32 %v1190, %v1583
      %v1624 = vadd.f32 %v1195, %v1588
      %v1625 = vadd.f32 %v1198, %v1591
      %s1626 = sadd.s32 %s245, 1
      %s1627 = smul.u32 %s1626, 5
      %s1628 = smul.addr %s1627, 4
      %s1629 = scalar_lea.vmem %s224, %s1628
      %v1630 = vld [vmem:[%s1629] sm:$0xf]
      %v1631 = vld [vmem:[%s1629 + $0x4] sm:$0xf]
      %v1632 = vld [vmem:[%s1629 + $0x8] sm:$0xf]
      %v1633 = vld [vmem:[%s1629 + $0xc] sm:$0xf]
      %v1634 = vld [vmem:[%s1629 + $0x14] sm:$0xf]
      %v1635 = vld [vmem:[%s1629 + $0x18] sm:$0xf]
      %v1636 = vld [vmem:[%s1629 + $0x1c] sm:$0xf]
      %v1637 = vld [vmem:[%s1629 + $0x20] sm:$0xf]
      %v1638 = vld [vmem:[%s1629 + $0x28] sm:$0xf]
      %v1639 = vld [vmem:[%s1629 + $0x2c] sm:$0xf]
      %v1640 = vld [vmem:[%s1629 + $0x30] sm:$0xf]
      %v1641 = vld [vmem:[%s1629 + $0x34] sm:$0xf]
      %v1642 = vld [vmem:[%s1629 + $0x3c] sm:$0xf]
      %v1643 = vld [vmem:[%s1629 + $0x40] sm:$0xf]
      %v1644 = vld [vmem:[%s1629 + $0x44] sm:$0xf]
      %v1645 = vld [vmem:[%s1629 + $0x48] sm:$0xf]
      %v1646 = vld [vmem:[%s1629 + $0x50] sm:$0xf]
      %v1647 = vld [vmem:[%s1629 + $0x54] sm:$0xf]
      %v1648 = vld [vmem:[%s1629 + $0x58] sm:$0xf]
      %v1649 = vld [vmem:[%s1629 + $0x5c] sm:$0xf]
      %v1650 = vld [vmem:[%s1629 + $0x64] sm:$0xf]
      %v1651 = vld [vmem:[%s1629 + $0x68] sm:$0xf]
      %v1652 = vld [vmem:[%s1629 + $0x6c] sm:$0xf]
      %v1653 = vld [vmem:[%s1629 + $0x70] sm:$0xf]
      %v1654 = vld [vmem:[%s1629 + $0x78] sm:$0xf]
      %v1655 = vld [vmem:[%s1629 + $0x7c] sm:$0xf]
      %v1656 = vld [vmem:[%s1629 + $0x80] sm:$0xf]
      %v1657 = vld [vmem:[%s1629 + $0x84] sm:$0xf]
      %v1658 = vld [vmem:[%s1629 + $0x8c] sm:$0xf]
      %v1659 = vld [vmem:[%s1629 + $0x90] sm:$0xf]
      %v1660 = vld [vmem:[%s1629 + $0x94] sm:$0xf]
      %v1661 = vld [vmem:[%s1629 + $0x98] sm:$0xf]
      %s1662 = scalar_lea.vmem %s1, 12
      %v1663 = vld [vmem:[%s1662] sm:$0xf]
      %v1696 = vunpack.c.l.b16 %v1630
      %v1697 = vunpack.c.l.b16 %v1631
      %v1698 = vunpack.c.l.b16 %v1632
      %v1699 = vunpack.c.l.b16 %v1633
      %v1700 = vunpack.c.l.b16 %v1634
      %v1701 = vunpack.c.l.b16 %v1635
      %v1702 = vunpack.c.l.b16 %v1636
      %v1703 = vunpack.c.l.b16 %v1637
      %v1704 = vunpack.c.l.b16 %v1638
      %v1705 = vunpack.c.l.b16 %v1639
      %v1706 = vunpack.c.l.b16 %v1640
      %v1707 = vunpack.c.l.b16 %v1641
      %v1708 = vunpack.c.l.b16 %v1642
      %v1709 = vunpack.c.l.b16 %v1643
      %v1710 = vunpack.c.l.b16 %v1644
      %v1711 = vunpack.c.l.b16 %v1645
      %v1712 = vunpack.c.l.b16 %v1646
      %v1713 = vunpack.c.l.b16 %v1647
      %v1714 = vunpack.c.l.b16 %v1648
      %v1715 = vunpack.c.l.b16 %v1649
      %v1716 = vunpack.c.l.b16 %v1650
      %v1717 = vunpack.c.l.b16 %v1651
      %v1718 = vunpack.c.l.b16 %v1652
      %v1719 = vunpack.c.l.b16 %v1653
      %v1720 = vunpack.c.l.b16 %v1654
      %v1721 = vunpack.c.l.b16 %v1655
      %v1722 = vunpack.c.l.b16 %v1656
      %v1723 = vunpack.c.l.b16 %v1657
      %v1724 = vunpack.c.l.b16 %v1658
      %v1725 = vunpack.c.l.b16 %v1659
      %v1726 = vunpack.c.l.b16 %v1660
      %v1727 = vunpack.c.l.b16 %v1661
      %v1728 = vpack.c.b16 %v1697, %v1696
      %v1729 = vpack.c.b16 %v1699, %v1698
      %v1730 = vpack.c.b16 %v1701, %v1700
      %v1731 = vpack.c.b16 %v1703, %v1702
      %v1732 = vpack.c.b16 %v1705, %v1704
      %v1733 = vpack.c.b16 %v1707, %v1706
      %v1734 = vpack.c.b16 %v1709, %v1708
      %v1735 = vpack.c.b16 %v1711, %v1710
      %v1736 = vpack.c.b16 %v1713, %v1712
      %v1737 = vpack.c.b16 %v1715, %v1714
      %v1738 = vpack.c.b16 %v1717, %v1716
      %v1739 = vpack.c.b16 %v1719, %v1718
      %v1740 = vpack.c.b16 %v1721, %v1720
      %v1741 = vpack.c.b16 %v1723, %v1722
      %v1742 = vpack.c.b16 %v1725, %v1724
      %v1743 = vpack.c.b16 %v1727, %v1726
      %v1745 = vsel %vm695, %v1728, 0
      %v1748 = vsel %vm695, %v1729, 0
      %v1751 = vsel %vm695, %v1730, 0
      %v1754 = vsel %vm695, %v1731, 0
      %v1757 = vsel %vm695, %v1732, 0
      %v1760 = vsel %vm695, %v1733, 0
      %v1763 = vsel %vm695, %v1734, 0
      %v1766 = vsel %vm695, %v1735, 0
      %v1769 = vsel %vm695, %v1736, 0
      %v1772 = vsel %vm695, %v1737, 0
      %v1775 = vsel %vm695, %v1738, 0
      %v1778 = vsel %vm695, %v1739, 0
      %v1781 = vsel %vm695, %v1740, 0
      %v1784 = vsel %vm695, %v1741, 0
      %v1787 = vsel %vm695, %v1742, 0
      %v1790 = vsel %vm695, %v1743, 0
      %v1793 = vsel %vm744, %v1663, 0
      %1795 = vmatprep.subr.bf16.mxu0 0
      %1796 = vmatpush1.bf16.msra.mxu0 %v1793
      %1797 = vmatprep.subr.bf16.mxu0 0
      %1798 = vmatpush1.bf16.msra.mxu0 0
      %1799 = vmatprep.subr.bf16.mxu0 0
      %1800 = vmatpush1.bf16.msra.mxu0 0
      %1801 = vmatprep.subr.bf16.mxu0 0
      %1802 = vmatpush1.bf16.msra.mxu0 0
      %1803 = vmatprep.subr.bf16.mxu0 0
      %1804 = vmatpush1.bf16.msra.mxu0 0
      %1805 = vmatprep.subr.bf16.mxu0 0
      %1806 = vmatpush1.bf16.msra.mxu0 0
      %1807 = vmatprep.subr.bf16.mxu0 0
      %1808 = vmatpush1.bf16.msra.mxu0 0
      %1809 = vmatprep.subr.bf16.mxu0 0
      %1810 = vmatpush1.bf16.msra.mxu0 0
      %1811 = vmatprep.subr.bf16.mxu0 0
      %1812 = vmatpush1.bf16.msra.mxu0 0
      %1813 = vmatprep.subr.bf16.mxu0 0
      %1814 = vmatpush1.bf16.msra.mxu0 0
      %1815 = vmatprep.subr.bf16.mxu0 0
      %1816 = vmatpush1.bf16.msra.mxu0 0
      %1817 = vmatprep.subr.bf16.mxu0 0
      %1818 = vmatpush1.bf16.msra.mxu0 0
      %1819 = vmatprep.subr.bf16.mxu0 0
      %1820 = vmatpush1.bf16.msra.mxu0 0
      %1821 = vmatprep.subr.bf16.mxu0 0
      %1822 = vmatpush1.bf16.msra.mxu0 0
      %1823 = vmatprep.subr.bf16.mxu0 0
      %1824 = vmatpush1.bf16.msra.mxu0 0
      %1825 = vmatprep.subr.bf16.mxu0 0
      %1826 = vmatpush1.bf16.msra.mxu0 0
      %1827 = vmatprep.mubr.bf16.mxu0 0
      %1828 = vmatmul.mubr.bf16.gmra.mrb[0].mxu0 %v1745
      %v1829 = vpop.f32.mrb[0].mxu0
      %v1830 = vadd.f32 0.0, %v1829
      %v1831 = vpop.f32.mrb[0].mxu0
      %v1832 = vpop.f32.mrb[0].mxu0
      %v1833 = vadd.f32 0.0, %v1832
      %v1834 = vpop.f32.mrb[0].mxu0
      %1835 = vmatprep.mubr.bf16.mxu0 0
      %1836 = vmatmul.mubr.bf16.gmra.mrb[0].mxu0 %v1748
      %v1837 = vpop.f32.mrb[0].mxu0
      %v1838 = vadd.f32 0.0, %v1837
      %v1839 = vpop.f32.mrb[0].mxu0
      %v1840 = vpop.f32.mrb[0].mxu0
      %v1841 = vadd.f32 0.0, %v1840
      %v1842 = vpop.f32.mrb[0].mxu0
      %1843 = vmatprep.mubr.bf16.mxu0 0
      %1844 = vmatmul.mubr.bf16.gmra.mrb[0].mxu0 %v1751
      %v1845 = vpop.f32.mrb[0].mxu0
      %v1846 = vadd.f32 0.0, %v1845
      %v1847 = vpop.f32.mrb[0].mxu0
      %v1848 = vpop.f32.mrb[0].mxu0
      %v1849 = vadd.f32 0.0, %v1848
      %v1850 = vpop.f32.mrb[0].mxu0
      %1851 = vmatprep.mubr.bf16.mxu0 0
      %1852 = vmatmul.mubr.bf16.gmra.mrb[0].mxu0 %v1754
      %v1853 = vpop.f32.mrb[0].mxu0
      %v1854 = vadd.f32 0.0, %v1853
      %v1855 = vpop.f32.mrb[0].mxu0
      %v1856 = vpop.f32.mrb[0].mxu0
      %v1857 = vadd.f32 0.0, %v1856
      %v1858 = vpop.f32.mrb[0].mxu0
      %1859 = vmatprep.mubr.bf16.mxu0 0
      %1860 = vmatmul.mubr.bf16.gmra.mrb[0].mxu0 %v1757
      %v1861 = vpop.f32.mrb[0].mxu0
      %v1862 = vadd.f32 0.0, %v1861
      %v1863 = vpop.f32.mrb[0].mxu0
      %v1864 = vpop.f32.mrb[0].mxu0
      %v1865 = vadd.f32 0.0, %v1864
      %v1866 = vpop.f32.mrb[0].mxu0
      %1867 = vmatprep.mubr.bf16.mxu0 0
      %1868 = vmatmul.mubr.bf16.gmra.mrb[0].mxu0 %v1760
      %v1869 = vpop.f32.mrb[0].mxu0
      %v1870 = vadd.f32 0.0, %v1869
      %v1871 = vpop.f32.mrb[0].mxu0
      %v1872 = vpop.f32.mrb[0].mxu0
      %v1873 = vadd.f32 0.0, %v1872
      %v1874 = vpop.f32.mrb[0].mxu0
      %1875 = vmatprep.mubr.bf16.mxu0 0
      %1876 = vmatmul.mubr.bf16.gmra.mrb[0].mxu0 %v1763
      %v1877 = vpop.f32.mrb[0].mxu0
      %v1878 = vadd.f32 0.0, %v1877
      %v1879 = vpop.f32.mrb[0].mxu0
      %v1880 = vpop.f32.mrb[0].mxu0
      %v1881 = vadd.f32 0.0, %v1880
      %v1882 = vpop.f32.mrb[0].mxu0
      %1883 = vmatprep.mubr.bf16.mxu0 0
      %1884 = vmatmul.mubr.bf16.gmra.mrb[0].mxu0 %v1766
      %v1885 = vpop.f32.mrb[0].mxu0
      %v1886 = vadd.f32 0.0, %v1885
      %v1887 = vpop.f32.mrb[0].mxu0
      %v1888 = vpop.f32.mrb[0].mxu0
      %v1889 = vadd.f32 0.0, %v1888
      %v1890 = vpop.f32.mrb[0].mxu0
      %1891 = vmatprep.mubr.bf16.mxu0 0
      %1892 = vmatmul.mubr.bf16.gmra.mrb[0].mxu0 %v1769
      %v1893 = vpop.f32.mrb[0].mxu0
      %v1894 = vadd.f32 0.0, %v1893
      %v1895 = vpop.f32.mrb[0].mxu0
      %v1896 = vpop.f32.mrb[0].mxu0
      %v1897 = vadd.f32 0.0, %v1896
      %v1898 = vpop.f32.mrb[0].mxu0
      %1899 = vmatprep.mubr.bf16.mxu0 0
      %1900 = vmatmul.mubr.bf16.gmra.mrb[0].mxu0 %v1772
      %v1901 = vpop.f32.mrb[0].mxu0
      %v1902 = vadd.f32 0.0, %v1901
      %v1903 = vpop.f32.mrb[0].mxu0
      %v1904 = vpop.f32.mrb[0].mxu0
      %v1905 = vadd.f32 0.0, %v1904
      %v1906 = vpop.f32.mrb[0].mxu0
      %1907 = vmatprep.mubr.bf16.mxu0 0
      %1908 = vmatmul.mubr.bf16.gmra.mrb[0].mxu0 %v1775
      %v1909 = vpop.f32.mrb[0].mxu0
      %v1910 = vadd.f32 0.0, %v1909
      %v1911 = vpop.f32.mrb[0].mxu0
      %v1912 = vpop.f32.mrb[0].mxu0
      %v1913 = vadd.f32 0.0, %v1912
      %v1914 = vpop.f32.mrb[0].mxu0
      %1915 = vmatprep.mubr.bf16.mxu0 0
      %1916 = vmatmul.mubr.bf16.gmra.mrb[0].mxu0 %v1778
      %v1917 = vpop.f32.mrb[0].mxu0
      %v1918 = vadd.f32 0.0, %v1917
      %v1919 = vpop.f32.mrb[0].mxu0
      %v1920 = vpop.f32.mrb[0].mxu0
      %v1921 = vadd.f32 0.0, %v1920
      %v1922 = vpop.f32.mrb[0].mxu0
      %1923 = vmatprep.mubr.bf16.mxu0 0
      %1924 = vmatmul.mubr.bf16.gmra.mrb[0].mxu0 %v1781
      %v1925 = vpop.f32.mrb[0].mxu0
      %v1926 = vadd.f32 0.0, %v1925
      %v1927 = vpop.f32.mrb[0].mxu0
      %v1928 = vpop.f32.mrb[0].mxu0
      %v1929 = vadd.f32 0.0, %v1928
      %v1930 = vpop.f32.mrb[0].mxu0
      %1931 = vmatprep.mubr.bf16.mxu0 0
      %1932 = vmatmul.mubr.bf16.gmra.mrb[0].mxu0 %v1784
      %v1933 = vpop.f32.mrb[0].mxu0
      %v1934 = vadd.f32 0.0, %v1933
      %v1935 = vpop.f32.mrb[0].mxu0
      %v1936 = vpop.f32.mrb[0].mxu0
      %v1937 = vadd.f32 0.0, %v1936
      %v1938 = vpop.f32.mrb[0].mxu0
      %1939 = vmatprep.mubr.bf16.mxu0 0
      %1940 = vmatmul.mubr.bf16.gmra.mrb[0].mxu0 %v1787
      %v1941 = vpop.f32.mrb[0].mxu0
      %v1942 = vadd.f32 0.0, %v1941
      %v1943 = vpop.f32.mrb[0].mxu0
      %v1944 = vpop.f32.mrb[0].mxu0
      %v1945 = vadd.f32 0.0, %v1944
      %v1946 = vpop.f32.mrb[0].mxu0
      %1947 = vmatprep.mubr.bf16.mxu0 0
      %1948 = vmatmul.mubr.bf16.gmra.mrb[0].mxu0 %v1790
      %v1949 = vpop.f32.mrb[0].mxu0
      %v1950 = vadd.f32 0.0, %v1949
      %v1951 = vpop.f32.mrb[0].mxu0
      %v1952 = vpop.f32.mrb[0].mxu0
      %v1953 = vadd.f32 0.0, %v1952
      %v1954 = vpop.f32.mrb[0].mxu0
      %1955 = vdwg.mxu0
      %v1956 = vadd.f32 %v1594, %v1830
      %v1957 = vadd.f32 %v1595, %v1833
      %v1958 = vadd.f32 %v1596, %v1838
      %v1959 = vadd.f32 %v1597, %v1841
      %v1960 = vadd.f32 %v1598, %v1846
      %v1961 = vadd.f32 %v1599, %v1849
      %v1962 = vadd.f32 %v1600, %v1854
      %v1963 = vadd.f32 %v1601, %v1857
      %v1964 = vadd.f32 %v1602, %v1862
      %v1965 = vadd.f32 %v1603, %v1865
      %v1966 = vadd.f32 %v1604, %v1870
      %v1967 = vadd.f32 %v1605, %v1873
      %v1968 = vadd.f32 %v1606, %v1878
      %v1969 = vadd.f32 %v1607, %v1881
      %v1970 = vadd.f32 %v1608, %v1886
      %v1971 = vadd.f32 %v1609, %v1889
      %v1972 = vadd.f32 %v1610, %v1894
      %v1973 = vadd.f32 %v1611, %v1897
      %v1974 = vadd.f32 %v1612, %v1902
      %v1975 = vadd.f32 %v1613, %v1905
      %v1976 = vadd.f32 %v1614, %v1910
      %v1977 = vadd.f32 %v1615, %v1913
      %v1978 = vadd.f32 %v1616, %v1918
      %v1979 = vadd.f32 %v1617, %v1921
      %v1980 = vadd.f32 %v1618, %v1926
      %v1981 = vadd.f32 %v1619, %v1929
      %v1982 = vadd.f32 %v1620, %v1934
      %v1983 = vadd.f32 %v1621, %v1937
      %v1984 = vadd.f32 %v1622, %v1942
      %v1985 = vadd.f32 %v1623, %v1945
      %v1986 = vadd.f32 %v1624, %v1950
      %v1987 = vadd.f32 %v1625, %v1953
      %v1988 = vld [vmem:[%s1629] sm:$0xf]
      %v1989 = vld [vmem:[%s1629 + $0x4] sm:$0xf]
      %v1990 = vld [vmem:[%s1629 + $0x8] sm:$0xf]
      %v1991 = vld [vmem:[%s1629 + $0xc] sm:$0xf]
      %v1992 = vld [vmem:[%s1629 + $0x10] sm:$0x1]
      %v1993 = vld [vmem:[%s1629 + $0x14] sm:$0xf]
      %v1994 = vld [vmem:[%s1629 + $0x18] sm:$0xf]
      %v1995 = vld [vmem:[%s1629 + $0x1c] sm:$0xf]
      %v1996 = vld [vmem:[%s1629 + $0x20] sm:$0xf]
      %v1997 = vld [vmem:[%s1629 + $0x24] sm:$0x1]
      %v1998 = vld [vmem:[%s1629 + $0x28] sm:$0xf]
      %v1999 = vld [vmem:[%s1629 + $0x2c] sm:$0xf]
      %v2000 = vld [vmem:[%s1629 + $0x30] sm:$0xf]
      %v2001 = vld [vmem:[%s1629 + $0x34] sm:$0xf]
      %v2002 = vld [vmem:[%s1629 + $0x38] sm:$0x1]
      %v2003 = vld [vmem:[%s1629 + $0x3c] sm:$0xf]
      %v2004 = vld [vmem:[%s1629 + $0x40] sm:$0xf]
      %v2005 = vld [vmem:[%s1629 + $0x44] sm:$0xf]
      %v2006 = vld [vmem:[%s1629 + $0x48] sm:$0xf]
      %v2007 = vld [vmem:[%s1629 + $0x4c] sm:$0x1]
      %v2008 = vld [vmem:[%s1629 + $0x50] sm:$0xf]
      %v2009 = vld [vmem:[%s1629 + $0x54] sm:$0xf]
      %v2010 = vld [vmem:[%s1629 + $0x58] sm:$0xf]
      %v2011 = vld [vmem:[%s1629 + $0x5c] sm:$0xf]
      %v2012 = vld [vmem:[%s1629 + $0x60] sm:$0x1]
      %v2013 = vld [vmem:[%s1629 + $0x64] sm:$0xf]
      %v2014 = vld [vmem:[%s1629 + $0x68] sm:$0xf]
      %v2015 = vld [vmem:[%s1629 + $0x6c] sm:$0xf]
      %v2016 = vld [vmem:[%s1629 + $0x70] sm:$0xf]
      %v2017 = vld [vmem:[%s1629 + $0x74] sm:$0x1]
      %v2018 = vld [vmem:[%s1629 + $0x78] sm:$0xf]
      %v2019 = vld [vmem:[%s1629 + $0x7c] sm:$0xf]
      %v2020 = vld [vmem:[%s1629 + $0x80] sm:$0xf]
      %v2021 = vld [vmem:[%s1629 + $0x84] sm:$0xf]
      %v2022 = vld [vmem:[%s1629 + $0x88] sm:$0x1]
      %v2023 = vld [vmem:[%s1629 + $0x8c] sm:$0xf]
      %v2024 = vld [vmem:[%s1629 + $0x90] sm:$0xf]
      %v2025 = vld [vmem:[%s1629 + $0x94] sm:$0xf]
      %v2026 = vld [vmem:[%s1629 + $0x98] sm:$0xf]
      %v2027 = vld [vmem:[%s1629 + $0x9c] sm:$0x1]
      %v2029 = vshrl.u32 %v1988, 16
      %v2031 = vrot.slane %v2029, 4
      %v2032 = vshll.u32 %v1988, 16
      %v2034 = vrot.slane %v2032, 5
      %v2035 = vor.u32 %v2031, %v2034
      %v2036 = vrot.slane %v2035, 4
      %v2038 = vshll.u32 %v1989, 16
      %v2040 = vrot.slane %v2038, 5
      %v2041 = vsel %vm292, %v2036, %v2040
      %v2042 = vshrl.u32 %v1989, 16
      %v2044 = vrot.slane %v2042, 4
      %v2045 = vor.u32 %v2044, %v2040
      %v2046 = vrot.slane %v2045, 4
      %v2048 = vshll.u32 %v1990, 16
      %v2050 = vrot.slane %v2048, 5
      %v2051 = vsel %vm292, %v2046, %v2050
      %v2052 = vshrl.u32 %v1990, 16
      %v2054 = vrot.slane %v2052, 4
      %v2055 = vor.u32 %v2054, %v2050
      %v2056 = vrot.slane %v2055, 4
      %v2058 = vshll.u32 %v1991, 16
      %v2060 = vrot.slane %v2058, 5
      %v2061 = vsel %vm292, %v2056, %v2060
      %v2062 = vshrl.u32 %v1991, 16
      %v2064 = vrot.slane %v2062, 4
      %v2065 = vor.u32 %v2064, %v2060
      %v2066 = vrot.slane %v2065, 4
      %v2068 = vshll.u32 %v1992, 16
      %v2070 = vrot.slane %v2068, 5
      %v2071 = vsel %vm292, %v2066, %v2070
      %v2073 = vshrl.u32 %v1993, 16
      %v2075 = vrot.slane %v2073, 4
      %v2076 = vshll.u32 %v1993, 16
      %v2078 = vrot.slane %v2076, 5
      %v2079 = vor.u32 %v2075, %v2078
      %v2080 = vrot.slane %v2079, 4
      %v2082 = vshll.u32 %v1994, 16
      %v2084 = vrot.slane %v2082, 5
      %v2085 = vsel %vm292, %v2080, %v2084
      %v2086 = vshrl.u32 %v1994, 16
      %v2088 = vrot.slane %v2086, 4
      %v2089 = vor.u32 %v2088, %v2084
      %v2090 = vrot.slane %v2089, 4
      %v2092 = vshll.u32 %v1995, 16
      %v2094 = vrot.slane %v2092, 5
      %v2095 = vsel %vm292, %v2090, %v2094
      %v2096 = vshrl.u32 %v1995, 16
      %v2098 = vrot.slane %v2096, 4
      %v2099 = vor.u32 %v2098, %v2094
      %v2100 = vrot.slane %v2099, 4
      %v2102 = vshll.u32 %v1996, 16
      %v2104 = vrot.slane %v2102, 5
      %v2105 = vsel %vm292, %v2100, %v2104
      %v2106 = vshrl.u32 %v1996, 16
      %v2108 = vrot.slane %v2106, 4
      %v2109 = vor.u32 %v2108, %v2104
      %v2110 = vrot.slane %v2109, 4
      %v2112 = vshll.u32 %v1997, 16
      %v2114 = vrot.slane %v2112, 5
      %v2115 = vsel %vm292, %v2110, %v2114
      %v2117 = vshrl.u32 %v1998, 16
      %v2119 = vrot.slane %v2117, 4
      %v2120 = vshll.u32 %v1998, 16
      %v2122 = vrot.slane %v2120, 5
      %v2123 = vor.u32 %v2119, %v2122
      %v2124 = vrot.slane %v2123, 4
      %v2126 = vshll.u32 %v1999, 16
      %v2128 = vrot.slane %v2126, 5
      %v2129 = vsel %vm292, %v2124, %v2128
      %v2130 = vshrl.u32 %v1999, 16
      %v2132 = vrot.slane %v2130, 4
      %v2133 = vor.u32 %v2132, %v2128
      %v2134 = vrot.slane %v2133, 4
      %v2136 = vshll.u32 %v2000, 16
      %v2138 = vrot.slane %v2136, 5
      %v2139 = vsel %vm292, %v2134, %v2138
      %v2140 = vshrl.u32 %v2000, 16
      %v2142 = vrot.slane %v2140, 4
      %v2143 = vor.u32 %v2142, %v2138
      %v2144 = vrot.slane %v2143, 4
      %v2146 = vshll.u32 %v2001, 16
      %v2148 = vrot.slane %v2146, 5
      %v2149 = vsel %vm292, %v2144, %v2148
      %v2150 = vshrl.u32 %v2001, 16
      %v2152 = vrot.slane %v2150, 4
      %v2153 = vor.u32 %v2152, %v2148
      %v2154 = vrot.slane %v2153, 4
      %v2156 = vshll.u32 %v2002, 16
      %v2158 = vrot.slane %v2156, 5
      %v2159 = vsel %vm292, %v2154, %v2158
      %v2161 = vshrl.u32 %v2003, 16
      %v2163 = vrot.slane %v2161, 4
      %v2164 = vshll.u32 %v2003, 16
      %v2166 = vrot.slane %v2164, 5
      %v2167 = vor.u32 %v2163, %v2166
      %v2168 = vrot.slane %v2167, 4
      %v2170 = vshll.u32 %v2004, 16
      %v2172 = vrot.slane %v2170, 5
      %v2173 = vsel %vm292, %v2168, %v2172
      %v2174 = vshrl.u32 %v2004, 16
      %v2176 = vrot.slane %v2174, 4
      %v2177 = vor.u32 %v2176, %v2172
      %v2178 = vrot.slane %v2177, 4
      %v2180 = vshll.u32 %v2005, 16
      %v2182 = vrot.slane %v2180, 5
      %v2183 = vsel %vm292, %v2178, %v2182
      %v2184 = vshrl.u32 %v2005, 16
      %v2186 = vrot.slane %v2184, 4
      %v2187 = vor.u32 %v2186, %v2182
      %v2188 = vrot.slane %v2187, 4
      %v2190 = vshll.u32 %v2006, 16
      %v2192 = vrot.slane %v2190, 5
      %v2193 = vsel %vm292, %v2188, %v2192
      %v2194 = vshrl.u32 %v2006, 16
      %v2196 = vrot.slane %v2194, 4
      %v2197 = vor.u32 %v2196, %v2192
      %v2198 = vrot.slane %v2197, 4
      %v2200 = vshll.u32 %v2007, 16
      %v2202 = vrot.slane %v2200, 5
      %v2203 = vsel %vm292, %v2198, %v2202
      %v2205 = vshrl.u32 %v2008, 16
      %v2207 = vrot.slane %v2205, 4
      %v2208 = vshll.u32 %v2008, 16
      %v2210 = vrot.slane %v2208, 5
      %v2211 = vor.u32 %v2207, %v2210
      %v2212 = vrot.slane %v2211, 4
      %v2214 = vshll.u32 %v2009, 16
      %v2216 = vrot.slane %v2214, 5
      %v2217 = vsel %vm292, %v2212, %v2216
      %v2218 = vshrl.u32 %v2009, 16
      %v2220 = vrot.slane %v2218, 4
      %v2221 = vor.u32 %v2220, %v2216
      %v2222 = vrot.slane %v2221, 4
      %v2224 = vshll.u32 %v2010, 16
      %v2226 = vrot.slane %v2224, 5
      %v2227 = vsel %vm292, %v2222, %v2226
      %v2228 = vshrl.u32 %v2010, 16
      %v2230 = vrot.slane %v2228, 4
      %v2231 = vor.u32 %v2230, %v2226
      %v2232 = vrot.slane %v2231, 4
      %v2234 = vshll.u32 %v2011, 16
      %v2236 = vrot.slane %v2234, 5
      %v2237 = vsel %vm292, %v2232, %v2236
      %v2238 = vshrl.u32 %v2011, 16
      %v2240 = vrot.slane %v2238, 4
      %v2241 = vor.u32 %v2240, %v2236
      %v2242 = vrot.slane %v2241, 4
      %v2244 = vshll.u32 %v2012, 16
      %v2246 = vrot.slane %v2244, 5
      %v2247 = vsel %vm292, %v2242, %v2246
      %v2249 = vshrl.u32 %v2013, 16
      %v2251 = vrot.slane %v2249, 4
      %v2252 = vshll.u32 %v2013, 16
      %v2254 = vrot.slane %v2252, 5
      %v2255 = vor.u32 %v2251, %v2254
      %v2256 = vrot.slane %v2255, 4
      %v2258 = vshll.u32 %v2014, 16
      %v2260 = vrot.slane %v2258, 5
      %v2261 = vsel %vm292, %v2256, %v2260
      %v2262 = vshrl.u32 %v2014, 16
      %v2264 = vrot.slane %v2262, 4
      %v2265 = vor.u32 %v2264, %v2260
      %v2266 = vrot.slane %v2265, 4
      %v2268 = vshll.u32 %v2015, 16
      %v2270 = vrot.slane %v2268, 5
      %v2271 = vsel %vm292, %v2266, %v2270
      %v2272 = vshrl.u32 %v2015, 16
      %v2274 = vrot.slane %v2272, 4
      %v2275 = vor.u32 %v2274, %v2270
      %v2276 = vrot.slane %v2275, 4
      %v2278 = vshll.u32 %v2016, 16
      %v2280 = vrot.slane %v2278, 5
      %v2281 = vsel %vm292, %v2276, %v2280
      %v2282 = vshrl.u32 %v2016, 16
      %v2284 = vrot.slane %v2282, 4
      %v2285 = vor.u32 %v2284, %v2280
      %v2286 = vrot.slane %v2285, 4
      %v2288 = vshll.u32 %v2017, 16
      %v2290 = vrot.slane %v2288, 5
      %v2291 = vsel %vm292, %v2286, %v2290
      %v2293 = vshrl.u32 %v2018, 16
      %v2295 = vrot.slane %v2293, 4
      %v2296 = vshll.u32 %v2018, 16
      %v2298 = vrot.slane %v2296, 5
      %v2299 = vor.u32 %v2295, %v2298
      %v2300 = vrot.slane %v2299, 4
      %v2302 = vshll.u32 %v2019, 16
      %v2304 = vrot.slane %v2302, 5
      %v2305 = vsel %vm292, %v2300, %v2304
      %v2306 = vshrl.u32 %v2019, 16
      %v2308 = vrot.slane %v2306, 4
      %v2309 = vor.u32 %v2308, %v2304
      %v2310 = vrot.slane %v2309, 4
      %v2312 = vshll.u32 %v2020, 16
      %v2314 = vrot.slane %v2312, 5
      %v2315 = vsel %vm292, %v2310, %v2314
      %v2316 = vshrl.u32 %v2020, 16
      %v2318 = vrot.slane %v2316, 4
      %v2319 = vor.u32 %v2318, %v2314
      %v2320 = vrot.slane %v2319, 4
      %v2322 = vshll.u32 %v2021, 16
      %v2324 = vrot.slane %v2322, 5
      %v2325 = vsel %vm292, %v2320, %v2324
      %v2326 = vshrl.u32 %v2021, 16
      %v2328 = vrot.slane %v2326, 4
      %v2329 = vor.u32 %v2328, %v2324
      %v2330 = vrot.slane %v2329, 4
      %v2332 = vshll.u32 %v2022, 16
      %v2334 = vrot.slane %v2332, 5
      %v2335 = vsel %vm292, %v2330, %v2334
      %v2337 = vshrl.u32 %v2023, 16
      %v2339 = vrot.slane %v2337, 4
      %v2340 = vshll.u32 %v2023, 16
      %v2342 = vrot.slane %v2340, 5
      %v2343 = vor.u32 %v2339, %v2342
      %v2344 = vrot.slane %v2343, 4
      %v2346 = vshll.u32 %v2024, 16
      %v2348 = vrot.slane %v2346, 5
      %v2349 = vsel %vm292, %v2344, %v2348
      %v2350 = vshrl.u32 %v2024, 16
      %v2352 = vrot.slane %v2350, 4
      %v2353 = vor.u32 %v2352, %v2348
      %v2354 = vrot.slane %v2353, 4
      %v2356 = vshll.u32 %v2025, 16
      %v2358 = vrot.slane %v2356, 5
      %v2359 = vsel %vm292, %v2354, %v2358
      %v2360 = vshrl.u32 %v2025, 16
      %v2362 = vrot.slane %v2360, 4
      %v2363 = vor.u32 %v2362, %v2358
      %v2364 = vrot.slane %v2363, 4
      %v2366 = vshll.u32 %v2026, 16
      %v2368 = vrot.slane %v2366, 5
      %v2369 = vsel %vm292, %v2364, %v2368
      %v2370 = vshrl.u32 %v2026, 16
      %v2372 = vrot.slane %v2370, 4
      %v2373 = vor.u32 %v2372, %v2368
      %v2374 = vrot.slane %v2373, 4
      %v2376 = vshll.u32 %v2027, 16
      %v2378 = vrot.slane %v2376, 5
      %v2379 = vsel %vm292, %v2374, %v2378
      %s2380 = scalar_lea.vmem %s1, 16
      %v2381 = vld [vmem:[%s2380] sm:$0xf]
      %v2382 = vunpack.c.l.b16 %v2041
      %v2383 = vunpack.c.l.b16 %v2051
      %v2384 = vunpack.c.l.b16 %v2061
      %v2385 = vunpack.c.l.b16 %v2071
      %v2386 = vunpack.c.l.b16 %v2085
      %v2387 = vunpack.c.l.b16 %v2095
      %v2388 = vunpack.c.l.b16 %v2105
      %v2389 = vunpack.c.l.b16 %v2115
      %v2390 = vunpack.c.l.b16 %v2129
      %v2391 = vunpack.c.l.b16 %v2139
      %v2392 = vunpack.c.l.b16 %v2149
      %v2393 = vunpack.c.l.b16 %v2159
      %v2394 = vunpack.c.l.b16 %v2173
      %v2395 = vunpack.c.l.b16 %v2183
      %v2396 = vunpack.c.l.b16 %v2193
      %v2397 = vunpack.c.l.b16 %v2203
      %v2398 = vunpack.c.l.b16 %v2217
      %v2399 = vunpack.c.l.b16 %v2227
      %v2400 = vunpack.c.l.b16 %v2237
      %v2401 = vunpack.c.l.b16 %v2247
      %v2402 = vunpack.c.l.b16 %v2261
      %v2403 = vunpack.c.l.b16 %v2271
      %v2404 = vunpack.c.l.b16 %v2281
      %v2405 = vunpack.c.l.b16 %v2291
      %v2406 = vunpack.c.l.b16 %v2305
      %v2407 = vunpack.c.l.b16 %v2315
      %v2408 = vunpack.c.l.b16 %v2325
      %v2409 = vunpack.c.l.b16 %v2335
      %v2410 = vunpack.c.l.b16 %v2349
      %v2411 = vunpack.c.l.b16 %v2359
      %v2412 = vunpack.c.l.b16 %v2369
      %v2413 = vunpack.c.l.b16 %v2379
      %v2414 = vpack.c.b16 %v2383, %v2382
      %v2415 = vpack.c.b16 %v2385, %v2384
      %v2416 = vpack.c.b16 %v2387, %v2386
      %v2417 = vpack.c.b16 %v2389, %v2388
      %v2418 = vpack.c.b16 %v2391, %v2390
      %v2419 = vpack.c.b16 %v2393, %v2392
      %v2420 = vpack.c.b16 %v2395, %v2394
      %v2421 = vpack.c.b16 %v2397, %v2396
      %v2422 = vpack.c.b16 %v2399, %v2398
      %v2423 = vpack.c.b16 %v2401, %v2400
      %v2424 = vpack.c.b16 %v2403, %v2402
      %v2425 = vpack.c.b16 %v2405, %v2404
      %v2426 = vpack.c.b16 %v2407, %v2406
      %v2427 = vpack.c.b16 %v2409, %v2408
      %v2428 = vpack.c.b16 %v2411, %v2410
      %v2429 = vpack.c.b16 %v2413, %v2412
      %v2431 = vsel %vm695, %v2414, 0
      %v2434 = vsel %vm695, %v2415, 0
      %v2437 = vsel %vm695, %v2416, 0
      %v2440 = vsel %vm695, %v2417, 0
      %v2443 = vsel %vm695, %v2418, 0
      %v2446 = vsel %vm695, %v2419, 0
      %v2449 = vsel %vm695, %v2420, 0
      %v2452 = vsel %vm695, %v2421, 0
      %v2455 = vsel %vm695, %v2422, 0
      %v2458 = vsel %vm695, %v2423, 0
      %v2461 = vsel %vm695, %v2424, 0
      %v2464 = vsel %vm695, %v2425, 0
      %v2467 = vsel %vm695, %v2426, 0
      %v2470 = vsel %vm695, %v2427, 0
      %v2473 = vsel %vm695, %v2428, 0
      %v2476 = vsel %vm695, %v2429, 0
      %v2479 = vsel %vm744, %v2381, 0
      %2481 = vmatprep.subr.bf16.mxu0 0
      %2482 = vmatpush1.bf16.msra.mxu0 %v2479
      %2483 = vmatprep.subr.bf16.mxu0 0
      %2484 = vmatpush1.bf16.msra.mxu0 0
      %2485 = vmatprep.subr.bf16.mxu0 0
      %2486 = vmatpush1.bf16.msra.mxu0 0
      %2487 = vmatprep.subr.bf16.mxu0 0
      %2488 = vmatpush1.bf16.msra.mxu0 0
      %2489 = vmatprep.subr.bf16.mxu0 0
      %2490 = vmatpush1.bf16.msra.mxu0 0
      %2491 = vmatprep.subr.bf16.mxu0 0
      %2492 = vmatpush1.bf16.msra.mxu0 0
      %2493 = vmatprep.subr.bf16.mxu0 0
      %2494 = vmatpush1.bf16.msra.mxu0 0
      %2495 = vmatprep.subr.bf16.mxu0 0
      %2496 = vmatpush1.bf16.msra.mxu0 0
      %2497 = vmatprep.subr.bf16.mxu0 0
      %2498 = vmatpush1.bf16.msra.mxu0 0
      %2499 = vmatprep.subr.bf16.mxu0 0
      %2500 = vmatpush1.bf16.msra.mxu0 0
      %2501 = vmatprep.subr.bf16.mxu0 0
      %2502 = vmatpush1.bf16.msra.mxu0 0
      %2503 = vmatprep.subr.bf16.mxu0 0
      %2504 = vmatpush1.bf16.msra.mxu0 0
      %2505 = vmatprep.subr.bf16.mxu0 0
      %2506 = vmatpush1.bf16.msra.mxu0 0
      %2507 = vmatprep.subr.bf16.mxu0 0
      %2508 = vmatpush1.bf16.msra.mxu0 0
      %2509 = vmatprep.subr.bf16.mxu0 0
      %2510 = vmatpush1.bf16.msra.mxu0 0
      %2511 = vmatprep.subr.bf16.mxu0 0
      %2512 = vmatpush1.bf16.msra.mxu0 0
      %2513 = vmatprep.mubr.bf16.mxu0 0
      %2514 = vmatmul.mubr.bf16.gmra.mrb[0].mxu0 %v2431
      %v2515 = vpop.f32.mrb[0].mxu0
      %v2516 = vadd.f32 0.0, %v2515
      %v2517 = vpop.f32.mrb[0].mxu0
      %v2518 = vpop.f32.mrb[0].mxu0
      %v2519 = vadd.f32 0.0, %v2518
      %v2520 = vpop.f32.mrb[0].mxu0
      %2521 = vmatprep.mubr.bf16.mxu0 0
      %2522 = vmatmul.mubr.bf16.gmra.mrb[0].mxu0 %v2434
      %v2523 = vpop.f32.mrb[0].mxu0
      %v2524 = vadd.f32 0.0, %v2523
      %v2525 = vpop.f32.mrb[0].mxu0
      %v2526 = vpop.f32.mrb[0].mxu0
      %v2527 = vadd.f32 0.0, %v2526
      %v2528 = vpop.f32.mrb[0].mxu0
      %2529 = vmatprep.mubr.bf16.mxu0 0
      %2530 = vmatmul.mubr.bf16.gmra.mrb[0].mxu0 %v2437
      %v2531 = vpop.f32.mrb[0].mxu0
      %v2532 = vadd.f32 0.0, %v2531
      %v2533 = vpop.f32.mrb[0].mxu0
      %v2534 = vpop.f32.mrb[0].mxu0
      %v2535 = vadd.f32 0.0, %v2534
      %v2536 = vpop.f32.mrb[0].mxu0
      %2537 = vmatprep.mubr.bf16.mxu0 0
      %2538 = vmatmul.mubr.bf16.gmra.mrb[0].mxu0 %v2440
      %v2539 = vpop.f32.mrb[0].mxu0
      %v2540 = vadd.f32 0.0, %v2539
      %v2541 = vpop.f32.mrb[0].mxu0
      %v2542 = vpop.f32.mrb[0].mxu0
      %v2543 = vadd.f32 0.0, %v2542
      %v2544 = vpop.f32.mrb[0].mxu0
      %2545 = vmatprep.mubr.bf16.mxu0 0
      %2546 = vmatmul.mubr.bf16.gmra.mrb[0].mxu0 %v2443
      %v2547 = vpop.f32.mrb[0].mxu0
      %v2548 = vadd.f32 0.0, %v2547
      %v2549 = vpop.f32.mrb[0].mxu0
      %v2550 = vpop.f32.mrb[0].mxu0
      %v2551 = vadd.f32 0.0, %v2550
      %v2552 = vpop.f32.mrb[0].mxu0
      %2553 = vmatprep.mubr.bf16.mxu0 0
      %2554 = vmatmul.mubr.bf16.gmra.mrb[0].mxu0 %v2446
      %v2555 = vpop.f32.mrb[0].mxu0
      %v2556 = vadd.f32 0.0, %v2555
      %v2557 = vpop.f32.mrb[0].mxu0
      %v2558 = vpop.f32.mrb[0].mxu0
      %v2559 = vadd.f32 0.0, %v2558
      %v2560 = vpop.f32.mrb[0].mxu0
      %2561 = vmatprep.mubr.bf16.mxu0 0
      %2562 = vmatmul.mubr.bf16.gmra.mrb[0].mxu0 %v2449
      %v2563 = vpop.f32.mrb[0].mxu0
      %v2564 = vadd.f32 0.0, %v2563
      %v2565 = vpop.f32.mrb[0].mxu0
      %v2566 = vpop.f32.mrb[0].mxu0
      %v2567 = vadd.f32 0.0, %v2566
      %v2568 = vpop.f32.mrb[0].mxu0
      %2569 = vmatprep.mubr.bf16.mxu0 0
      %2570 = vmatmul.mubr.bf16.gmra.mrb[0].mxu0 %v2452
      %v2571 = vpop.f32.mrb[0].mxu0
      %v2572 = vadd.f32 0.0, %v2571
      %v2573 = vpop.f32.mrb[0].mxu0
      %v2574 = vpop.f32.mrb[0].mxu0
      %v2575 = vadd.f32 0.0, %v2574
      %v2576 = vpop.f32.mrb[0].mxu0
      %2577 = vmatprep.mubr.bf16.mxu0 0
      %2578 = vmatmul.mubr.bf16.gmra.mrb[0].mxu0 %v2455
      %v2579 = vpop.f32.mrb[0].mxu0
      %v2580 = vadd.f32 0.0, %v2579
      %v2581 = vpop.f32.mrb[0].mxu0
      %v2582 = vpop.f32.mrb[0].mxu0
      %v2583 = vadd.f32 0.0, %v2582
      %v2584 = vpop.f32.mrb[0].mxu0
      %2585 = vmatprep.mubr.bf16.mxu0 0
      %2586 = vmatmul.mubr.bf16.gmra.mrb[0].mxu0 %v2458
      %v2587 = vpop.f32.mrb[0].mxu0
      %v2588 = vadd.f32 0.0, %v2587
      %v2589 = vpop.f32.mrb[0].mxu0
      %v2590 = vpop.f32.mrb[0].mxu0
      %v2591 = vadd.f32 0.0, %v2590
      %v2592 = vpop.f32.mrb[0].mxu0
      %2593 = vmatprep.mubr.bf16.mxu0 0
      %2594 = vmatmul.mubr.bf16.gmra.mrb[0].mxu0 %v2461
      %v2595 = vpop.f32.mrb[0].mxu0
      %v2596 = vadd.f32 0.0, %v2595
      %v2597 = vpop.f32.mrb[0].mxu0
      %v2598 = vpop.f32.mrb[0].mxu0
      %v2599 = vadd.f32 0.0, %v2598
      %v2600 = vpop.f32.mrb[0].mxu0
      %2601 = vmatprep.mubr.bf16.mxu0 0
      %2602 = vmatmul.mubr.bf16.gmra.mrb[0].mxu0 %v2464
      %v2603 = vpop.f32.mrb[0].mxu0
      %v2604 = vadd.f32 0.0, %v2603
      %v2605 = vpop.f32.mrb[0].mxu0
      %v2606 = vpop.f32.mrb[0].mxu0
      %v2607 = vadd.f32 0.0, %v2606
      %v2608 = vpop.f32.mrb[0].mxu0
      %2609 = vmatprep.mubr.bf16.mxu0 0
      %2610 = vmatmul.mubr.bf16.gmra.mrb[0].mxu0 %v2467
      %v2611 = vpop.f32.mrb[0].mxu0
      %v2612 = vadd.f32 0.0, %v2611
      %v2613 = vpop.f32.mrb[0].mxu0
      %v2614 = vpop.f32.mrb[0].mxu0
      %v2615 = vadd.f32 0.0, %v2614
      %v2616 = vpop.f32.mrb[0].mxu0
      %2617 = vmatprep.mubr.bf16.mxu0 0
      %2618 = vmatmul.mubr.bf16.gmra.mrb[0].mxu0 %v2470
      %v2619 = vpop.f32.mrb[0].mxu0
      %v2620 = vadd.f32 0.0, %v2619
      %v2621 = vpop.f32.mrb[0].mxu0
      %v2622 = vpop.f32.mrb[0].mxu0
      %v2623 = vadd.f32 0.0, %v2622
      %v2624 = vpop.f32.mrb[0].mxu0
      %2625 = vmatprep.mubr.bf16.mxu0 0
      %2626 = vmatmul.mubr.bf16.gmra.mrb[0].mxu0 %v2473
      %v2627 = vpop.f32.mrb[0].mxu0
      %v2628 = vadd.f32 0.0, %v2627
      %v2629 = vpop.f32.mrb[0].mxu0
      %v2630 = vpop.f32.mrb[0].mxu0
      %v2631 = vadd.f32 0.0, %v2630
      %v2632 = vpop.f32.mrb[0].mxu0
      %2633 = vmatprep.mubr.bf16.mxu0 0
      %2634 = vmatmul.mubr.bf16.gmra.mrb[0].mxu0 %v2476
      %v2635 = vpop.f32.mrb[0].mxu0
      %v2636 = vadd.f32 0.0, %v2635
      %v2637 = vpop.f32.mrb[0].mxu0
      %v2638 = vpop.f32.mrb[0].mxu0
      %v2639 = vadd.f32 0.0, %v2638
      %v2640 = vpop.f32.mrb[0].mxu0
      %2641 = vdwg.mxu0
      %v2642 = vadd.f32 %v1956, %v2516
      %v2643 = vadd.f32 %v1957, %v2519
      %v2644 = vadd.f32 %v1958, %v2524
      %v2645 = vadd.f32 %v1959, %v2527
      %v2646 = vadd.f32 %v1960, %v2532
      %v2647 = vadd.f32 %v1961, %v2535
      %v2648 = vadd.f32 %v1962, %v2540
      %v2649 = vadd.f32 %v1963, %v2543
      %v2650 = vadd.f32 %v1964, %v2548
      %v2651 = vadd.f32 %v1965, %v2551
      %v2652 = vadd.f32 %v1966, %v2556
      %v2653 = vadd.f32 %v1967, %v2559
      %v2654 = vadd.f32 %v1968, %v2564
      %v2655 = vadd.f32 %v1969, %v2567
      %v2656 = vadd.f32 %v1970, %v2572
      %v2657 = vadd.f32 %v1971, %v2575
      %v2658 = vadd.f32 %v1972, %v2580
      %v2659 = vadd.f32 %v1973, %v2583
      %v2660 = vadd.f32 %v1974, %v2588
      %v2661 = vadd.f32 %v1975, %v2591
      %v2662 = vadd.f32 %v1976, %v2596
      %v2663 = vadd.f32 %v1977, %v2599
      %v2664 = vadd.f32 %v1978, %v2604
      %v2665 = vadd.f32 %v1979, %v2607
      %v2666 = vadd.f32 %v1980, %v2612
      %v2667 = vadd.f32 %v1981, %v2615
      %v2668 = vadd.f32 %v1982, %v2620
      %v2669 = vadd.f32 %v1983, %v2623
      %v2670 = vadd.f32 %v1984, %v2628
      %v2671 = vadd.f32 %v1985, %v2631
      %v2672 = vadd.f32 %v1986, %v2636
      %v2673 = vadd.f32 %v1987, %v2639
      %v2674 = vld [vmem:[%s1629] sm:$0xe]
      %v2675 = vld [vmem:[%s1629 + $0x14] sm:$0xe]
      %v2676 = vld [vmem:[%s1629 + $0x28] sm:$0xe]
      %v2677 = vld [vmem:[%s1629 + $0x3c] sm:$0xe]
      %v2678 = vld [vmem:[%s1629 + $0x50] sm:$0xe]
      %v2679 = vld [vmem:[%s1629 + $0x64] sm:$0xe]
      %v2680 = vld [vmem:[%s1629 + $0x78] sm:$0xe]
      %v2681 = vld [vmem:[%s1629 + $0x8c] sm:$0xe]
      %v2722 = vrot.slane %v2674, 5
      %v2723 = vrot.slane %v2722, 4
      %v2724 = vrot.slane %v1989, 5
      %v2725 = vsel %vm1227, %v2723, %v2724
      %v2726 = vrot.slane %v2724, 4
      %v2727 = vrot.slane %v1990, 5
      %v2728 = vsel %vm1227, %v2726, %v2727
      %v2729 = vrot.slane %v2727, 4
      %v2730 = vrot.slane %v1991, 5
      %v2731 = vsel %vm1227, %v2729, %v2730
      %v2732 = vrot.slane %v2730, 4
      %v2733 = vrot.slane %v1992, 5
      %v2734 = vsel %vm1227, %v2732, %v2733
      %v2735 = vrot.slane %v2675, 5
      %v2736 = vrot.slane %v2735, 4
      %v2737 = vrot.slane %v1994, 5
      %v2738 = vsel %vm1227, %v2736, %v2737
      %v2739 = vrot.slane %v2737, 4
      %v2740 = vrot.slane %v1995, 5
      %v2741 = vsel %vm1227, %v2739, %v2740
      %v2742 = vrot.slane %v2740, 4
      %v2743 = vrot.slane %v1996, 5
      %v2744 = vsel %vm1227, %v2742, %v2743
      %v2745 = vrot.slane %v2743, 4
      %v2746 = vrot.slane %v1997, 5
      %v2747 = vsel %vm1227, %v2745, %v2746
      %v2748 = vrot.slane %v2676, 5
      %v2749 = vrot.slane %v2748, 4
      %v2750 = vrot.slane %v1999, 5
      %v2751 = vsel %vm1227, %v2749, %v2750
      %v2752 = vrot.slane %v2750, 4
      %v2753 = vrot.slane %v2000, 5
      %v2754 = vsel %vm1227, %v2752, %v2753
      %v2755 = vrot.slane %v2753, 4
      %v2756 = vrot.slane %v2001, 5
      %v2757 = vsel %vm1227, %v2755, %v2756
      %v2758 = vrot.slane %v2756, 4
      %v2759 = vrot.slane %v2002, 5
      %v2760 = vsel %vm1227, %v2758, %v2759
      %v2761 = vrot.slane %v2677, 5
      %v2762 = vrot.slane %v2761, 4
      %v2763 = vrot.slane %v2004, 5
      %v2764 = vsel %vm1227, %v2762, %v2763
      %v2765 = vrot.slane %v2763, 4
      %v2766 = vrot.slane %v2005, 5
      %v2767 = vsel %vm1227, %v2765, %v2766
      %v2768 = vrot.slane %v2766, 4
      %v2769 = vrot.slane %v2006, 5
      %v2770 = vsel %vm1227, %v2768, %v2769
      %v2771 = vrot.slane %v2769, 4
      %v2772 = vrot.slane %v2007, 5
      %v2773 = vsel %vm1227, %v2771, %v2772
      %v2774 = vrot.slane %v2678, 5
      %v2775 = vrot.slane %v2774, 4
      %v2776 = vrot.slane %v2009, 5
      %v2777 = vsel %vm1227, %v2775, %v2776
      %v2778 = vrot.slane %v2776, 4
      %v2779 = vrot.slane %v2010, 5
      %v2780 = vsel %vm1227, %v2778, %v2779
      %v2781 = vrot.slane %v2779, 4
      %v2782 = vrot.slane %v2011, 5
      %v2783 = vsel %vm1227, %v2781, %v2782
      %v2784 = vrot.slane %v2782, 4
      %v2785 = vrot.slane %v2012, 5
      %v2786 = vsel %vm1227, %v2784, %v2785
      %v2787 = vrot.slane %v2679, 5
      %v2788 = vrot.slane %v2787, 4
      %v2789 = vrot.slane %v2014, 5
      %v2790 = vsel %vm1227, %v2788, %v2789
      %v2791 = vrot.slane %v2789, 4
      %v2792 = vrot.slane %v2015, 5
      %v2793 = vsel %vm1227, %v2791, %v2792
      %v2794 = vrot.slane %v2792, 4
      %v2795 = vrot.slane %v2016, 5
      %v2796 = vsel %vm1227, %v2794, %v2795
      %v2797 = vrot.slane %v2795, 4
      %v2798 = vrot.slane %v2017, 5
      %v2799 = vsel %vm1227, %v2797, %v2798
      %v2800 = vrot.slane %v2680, 5
      %v2801 = vrot.slane %v2800, 4
      %v2802 = vrot.slane %v2019, 5
      %v2803 = vsel %vm1227, %v2801, %v2802
      %v2804 = vrot.slane %v2802, 4
      %v2805 = vrot.slane %v2020, 5
      %v2806 = vsel %vm1227, %v2804, %v2805
      %v2807 = vrot.slane %v2805, 4
      %v2808 = vrot.slane %v2021, 5
      %v2809 = vsel %vm1227, %v2807, %v2808
      %v2810 = vrot.slane %v2808, 4
      %v2811 = vrot.slane %v2022, 5
      %v2812 = vsel %vm1227, %v2810, %v2811
      %v2813 = vrot.slane %v2681, 5
      %v2814 = vrot.slane %v2813, 4
      %v2815 = vrot.slane %v2024, 5
      %v2816 = vsel %vm1227, %v2814, %v2815
      %v2817 = vrot.slane %v2815, 4
      %v2818 = vrot.slane %v2025, 5
      %v2819 = vsel %vm1227, %v2817, %v2818
      %v2820 = vrot.slane %v2818, 4
      %v2821 = vrot.slane %v2026, 5
      %v2822 = vsel %vm1227, %v2820, %v2821
      %v2823 = vrot.slane %v2821, 4
      %v2824 = vrot.slane %v2027, 5
      %v2825 = vsel %vm1227, %v2823, %v2824
      %s2826 = scalar_lea.vmem %s1, 20
      %v2827 = vld [vmem:[%s2826] sm:$0xf]
      %v2828 = vunpack.c.l.b16 %v2725
      %v2829 = vunpack.c.l.b16 %v2728
      %v2830 = vunpack.c.l.b16 %v2731
      %v2831 = vunpack.c.l.b16 %v2734
      %v2832 = vunpack.c.l.b16 %v2738
      %v2833 = vunpack.c.l.b16 %v2741
      %v2834 = vunpack.c.l.b16 %v2744
      %v2835 = vunpack.c.l.b16 %v2747
      %v2836 = vunpack.c.l.b16 %v2751
      %v2837 = vunpack.c.l.b16 %v2754
      %v2838 = vunpack.c.l.b16 %v2757
      %v2839 = vunpack.c.l.b16 %v2760
      %v2840 = vunpack.c.l.b16 %v2764
      %v2841 = vunpack.c.l.b16 %v2767
      %v2842 = vunpack.c.l.b16 %v2770
      %v2843 = vunpack.c.l.b16 %v2773
      %v2844 = vunpack.c.l.b16 %v2777
      %v2845 = vunpack.c.l.b16 %v2780
      %v2846 = vunpack.c.l.b16 %v2783
      %v2847 = vunpack.c.l.b16 %v2786
      %v2848 = vunpack.c.l.b16 %v2790
      %v2849 = vunpack.c.l.b16 %v2793
      %v2850 = vunpack.c.l.b16 %v2796
      %v2851 = vunpack.c.l.b16 %v2799
      %v2852 = vunpack.c.l.b16 %v2803
      %v2853 = vunpack.c.l.b16 %v2806
      %v2854 = vunpack.c.l.b16 %v2809
      %v2855 = vunpack.c.l.b16 %v2812
      %v2856 = vunpack.c.l.b16 %v2816
      %v2857 = vunpack.c.l.b16 %v2819
      %v2858 = vunpack.c.l.b16 %v2822
      %v2859 = vunpack.c.l.b16 %v2825
      %v2860 = vpack.c.b16 %v2829, %v2828
      %v2861 = vpack.c.b16 %v2831, %v2830
      %v2862 = vpack.c.b16 %v2833, %v2832
      %v2863 = vpack.c.b16 %v2835, %v2834
      %v2864 = vpack.c.b16 %v2837, %v2836
      %v2865 = vpack.c.b16 %v2839, %v2838
      %v2866 = vpack.c.b16 %v2841, %v2840
      %v2867 = vpack.c.b16 %v2843, %v2842
      %v2868 = vpack.c.b16 %v2845, %v2844
      %v2869 = vpack.c.b16 %v2847, %v2846
      %v2870 = vpack.c.b16 %v2849, %v2848
      %v2871 = vpack.c.b16 %v2851, %v2850
      %v2872 = vpack.c.b16 %v2853, %v2852
      %v2873 = vpack.c.b16 %v2855, %v2854
      %v2874 = vpack.c.b16 %v2857, %v2856
      %v2875 = vpack.c.b16 %v2859, %v2858
      %v2877 = vsel %vm695, %v2860, 0
      %v2880 = vsel %vm695, %v2861, 0
      %v2883 = vsel %vm695, %v2862, 0
      %v2886 = vsel %vm695, %v2863, 0
      %v2889 = vsel %vm695, %v2864, 0
      %v2892 = vsel %vm695, %v2865, 0
      %v2895 = vsel %vm695, %v2866, 0
      %v2898 = vsel %vm695, %v2867, 0
      %v2901 = vsel %vm695, %v2868, 0
      %v2904 = vsel %vm695, %v2869, 0
      %v2907 = vsel %vm695, %v2870, 0
      %v2910 = vsel %vm695, %v2871, 0
      %v2913 = vsel %vm695, %v2872, 0
      %v2916 = vsel %vm695, %v2873, 0
      %v2919 = vsel %vm695, %v2874, 0
      %v2922 = vsel %vm695, %v2875, 0
      %v2925 = vsel %vm744, %v2827, 0
      %2927 = vmatprep.subr.bf16.mxu0 0
      %2928 = vmatpush1.bf16.msra.mxu0 %v2925
      %2929 = vmatprep.subr.bf16.mxu0 0
      %2930 = vmatpush1.bf16.msra.mxu0 0
      %2931 = vmatprep.subr.bf16.mxu0 0
      %2932 = vmatpush1.bf16.msra.mxu0 0
      %2933 = vmatprep.subr.bf16.mxu0 0
      %2934 = vmatpush1.bf16.msra.mxu0 0
      %2935 = vmatprep.subr.bf16.mxu0 0
      %2936 = vmatpush1.bf16.msra.mxu0 0
      %2937 = vmatprep.subr.bf16.mxu0 0
      %2938 = vmatpush1.bf16.msra.mxu0 0
      %2939 = vmatprep.subr.bf16.mxu0 0
      %2940 = vmatpush1.bf16.msra.mxu0 0
      %2941 = vmatprep.subr.bf16.mxu0 0
      %2942 = vmatpush1.bf16.msra.mxu0 0
      %2943 = vmatprep.subr.bf16.mxu0 0
      %2944 = vmatpush1.bf16.msra.mxu0 0
      %2945 = vmatprep.subr.bf16.mxu0 0
      %2946 = vmatpush1.bf16.msra.mxu0 0
      %2947 = vmatprep.subr.bf16.mxu0 0
      %2948 = vmatpush1.bf16.msra.mxu0 0
      %2949 = vmatprep.subr.bf16.mxu0 0
      %2950 = vmatpush1.bf16.msra.mxu0 0
      %2951 = vmatprep.subr.bf16.mxu0 0
      %2952 = vmatpush1.bf16.msra.mxu0 0
      %2953 = vmatprep.subr.bf16.mxu0 0
      %2954 = vmatpush1.bf16.msra.mxu0 0
      %2955 = vmatprep.subr.bf16.mxu0 0
      %2956 = vmatpush1.bf16.msra.mxu0 0
      %2957 = vmatprep.subr.bf16.mxu0 0
      %2958 = vmatpush1.bf16.msra.mxu0 0
      %2959 = vmatprep.mubr.bf16.mxu0 0
      %2960 = vmatmul.mubr.bf16.gmra.mrb[0].mxu0 %v2877
      %v2961 = vpop.f32.mrb[0].mxu0
      %v2962 = vadd.f32 0.0, %v2961
      %v2963 = vpop.f32.mrb[0].mxu0
      %v2964 = vpop.f32.mrb[0].mxu0
      %v2965 = vadd.f32 0.0, %v2964
      %v2966 = vpop.f32.mrb[0].mxu0
      %2967 = vmatprep.mubr.bf16.mxu0 0
      %2968 = vmatmul.mubr.bf16.gmra.mrb[0].mxu0 %v2880
      %v2969 = vpop.f32.mrb[0].mxu0
      %v2970 = vadd.f32 0.0, %v2969
      %v2971 = vpop.f32.mrb[0].mxu0
      %v2972 = vpop.f32.mrb[0].mxu0
      %v2973 = vadd.f32 0.0, %v2972
      %v2974 = vpop.f32.mrb[0].mxu0
      %2975 = vmatprep.mubr.bf16.mxu0 0
      %2976 = vmatmul.mubr.bf16.gmra.mrb[0].mxu0 %v2883
      %v2977 = vpop.f32.mrb[0].mxu0
      %v2978 = vadd.f32 0.0, %v2977
      %v2979 = vpop.f32.mrb[0].mxu0
      %v2980 = vpop.f32.mrb[0].mxu0
      %v2981 = vadd.f32 0.0, %v2980
      %v2982 = vpop.f32.mrb[0].mxu0
      %2983 = vmatprep.mubr.bf16.mxu0 0
      %2984 = vmatmul.mubr.bf16.gmra.mrb[0].mxu0 %v2886
      %v2985 = vpop.f32.mrb[0].mxu0
      %v2986 = vadd.f32 0.0, %v2985
      %v2987 = vpop.f32.mrb[0].mxu0
      %v2988 = vpop.f32.mrb[0].mxu0
      %v2989 = vadd.f32 0.0, %v2988
      %v2990 = vpop.f32.mrb[0].mxu0
      %2991 = vmatprep.mubr.bf16.mxu0 0
      %2992 = vmatmul.mubr.bf16.gmra.mrb[0].mxu0 %v2889
      %v2993 = vpop.f32.mrb[0].mxu0
      %v2994 = vadd.f32 0.0, %v2993
      %v2995 = vpop.f32.mrb[0].mxu0
      %v2996 = vpop.f32.mrb[0].mxu0
      %v2997 = vadd.f32 0.0, %v2996
      %v2998 = vpop.f32.mrb[0].mxu0
      %2999 = vmatprep.mubr.bf16.mxu0 0
      %3000 = vmatmul.mubr.bf16.gmra.mrb[0].mxu0 %v2892
      %v3001 = vpop.f32.mrb[0].mxu0
      %v3002 = vadd.f32 0.0, %v3001
      %v3003 = vpop.f32.mrb[0].mxu0
      %v3004 = vpop.f32.mrb[0].mxu0
      %v3005 = vadd.f32 0.0, %v3004
      %v3006 = vpop.f32.mrb[0].mxu0
      %3007 = vmatprep.mubr.bf16.mxu0 0
      %3008 = vmatmul.mubr.bf16.gmra.mrb[0].mxu0 %v2895
      %v3009 = vpop.f32.mrb[0].mxu0
      %v3010 = vadd.f32 0.0, %v3009
      %v3011 = vpop.f32.mrb[0].mxu0
      %v3012 = vpop.f32.mrb[0].mxu0
      %v3013 = vadd.f32 0.0, %v3012
      %v3014 = vpop.f32.mrb[0].mxu0
      %3015 = vmatprep.mubr.bf16.mxu0 0
      %3016 = vmatmul.mubr.bf16.gmra.mrb[0].mxu0 %v2898
      %v3017 = vpop.f32.mrb[0].mxu0
      %v3018 = vadd.f32 0.0, %v3017
      %v3019 = vpop.f32.mrb[0].mxu0
      %v3020 = vpop.f32.mrb[0].mxu0
      %v3021 = vadd.f32 0.0, %v3020
      %v3022 = vpop.f32.mrb[0].mxu0
      %3023 = vmatprep.mubr.bf16.mxu0 0
      %3024 = vmatmul.mubr.bf16.gmra.mrb[0].mxu0 %v2901
      %v3025 = vpop.f32.mrb[0].mxu0
      %v3026 = vadd.f32 0.0, %v3025
      %v3027 = vpop.f32.mrb[0].mxu0
      %v3028 = vpop.f32.mrb[0].mxu0
      %v3029 = vadd.f32 0.0, %v3028
      %v3030 = vpop.f32.mrb[0].mxu0
      %3031 = vmatprep.mubr.bf16.mxu0 0
      %3032 = vmatmul.mubr.bf16.gmra.mrb[0].mxu0 %v2904
      %v3033 = vpop.f32.mrb[0].mxu0
      %v3034 = vadd.f32 0.0, %v3033
      %v3035 = vpop.f32.mrb[0].mxu0
      %v3036 = vpop.f32.mrb[0].mxu0
      %v3037 = vadd.f32 0.0, %v3036
      %v3038 = vpop.f32.mrb[0].mxu0
      %3039 = vmatprep.mubr.bf16.mxu0 0
      %3040 = vmatmul.mubr.bf16.gmra.mrb[0].mxu0 %v2907
      %v3041 = vpop.f32.mrb[0].mxu0
      %v3042 = vadd.f32 0.0, %v3041
      %v3043 = vpop.f32.mrb[0].mxu0
      %v3044 = vpop.f32.mrb[0].mxu0
      %v3045 = vadd.f32 0.0, %v3044
      %v3046 = vpop.f32.mrb[0].mxu0
      %3047 = vmatprep.mubr.bf16.mxu0 0
      %3048 = vmatmul.mubr.bf16.gmra.mrb[0].mxu0 %v2910
      %v3049 = vpop.f32.mrb[0].mxu0
      %v3050 = vadd.f32 0.0, %v3049
      %v3051 = vpop.f32.mrb[0].mxu0
      %v3052 = vpop.f32.mrb[0].mxu0
      %v3053 = vadd.f32 0.0, %v3052
      %v3054 = vpop.f32.mrb[0].mxu0
      %3055 = vmatprep.mubr.bf16.mxu0 0
      %3056 = vmatmul.mubr.bf16.gmra.mrb[0].mxu0 %v2913
      %v3057 = vpop.f32.mrb[0].mxu0
      %v3058 = vadd.f32 0.0, %v3057
      %v3059 = vpop.f32.mrb[0].mxu0
      %v3060 = vpop.f32.mrb[0].mxu0
      %v3061 = vadd.f32 0.0, %v3060
      %v3062 = vpop.f32.mrb[0].mxu0
      %3063 = vmatprep.mubr.bf16.mxu0 0
      %3064 = vmatmul.mubr.bf16.gmra.mrb[0].mxu0 %v2916
      %v3065 = vpop.f32.mrb[0].mxu0
      %v3066 = vadd.f32 0.0, %v3065
      %v3067 = vpop.f32.mrb[0].mxu0
      %v3068 = vpop.f32.mrb[0].mxu0
      %v3069 = vadd.f32 0.0, %v3068
      %v3070 = vpop.f32.mrb[0].mxu0
      %3071 = vmatprep.mubr.bf16.mxu0 0
      %3072 = vmatmul.mubr.bf16.gmra.mrb[0].mxu0 %v2919
      %v3073 = vpop.f32.mrb[0].mxu0
      %v3074 = vadd.f32 0.0, %v3073
      %v3075 = vpop.f32.mrb[0].mxu0
      %v3076 = vpop.f32.mrb[0].mxu0
      %v3077 = vadd.f32 0.0, %v3076
      %v3078 = vpop.f32.mrb[0].mxu0
      %3079 = vmatprep.mubr.bf16.mxu0 0
      %3080 = vmatmul.mubr.bf16.gmra.mrb[0].mxu0 %v2922
      %v3081 = vpop.f32.mrb[0].mxu0
      %v3082 = vadd.f32 0.0, %v3081
      %v3083 = vpop.f32.mrb[0].mxu0
      %v3084 = vpop.f32.mrb[0].mxu0
      %v3085 = vadd.f32 0.0, %v3084
      %v3086 = vpop.f32.mrb[0].mxu0
      %3087 = vdwg.mxu0
      %v3088 = vadd.f32 %v2642, %v2962
      %v3089 = vadd.f32 %v2643, %v2965
      %v3090 = vadd.f32 %v2644, %v2970
      %v3091 = vadd.f32 %v2645, %v2973
      %v3092 = vadd.f32 %v2646, %v2978
      %v3093 = vadd.f32 %v2647, %v2981
      %v3094 = vadd.f32 %v2648, %v2986
      %v3095 = vadd.f32 %v2649, %v2989
      %v3096 = vadd.f32 %v2650, %v2994
      %v3097 = vadd.f32 %v2651, %v2997
      %v3098 = vadd.f32 %v2652, %v3002
      %v3099 = vadd.f32 %v2653, %v3005
      %v3100 = vadd.f32 %v2654, %v3010
      %v3101 = vadd.f32 %v2655, %v3013
      %v3102 = vadd.f32 %v2656, %v3018
      %v3103 = vadd.f32 %v2657, %v3021
      %v3104 = vadd.f32 %v2658, %v3026
      %v3105 = vadd.f32 %v2659, %v3029
      %v3106 = vadd.f32 %v2660, %v3034
      %v3107 = vadd.f32 %v2661, %v3037
      %v3108 = vadd.f32 %v2662, %v3042
      %v3109 = vadd.f32 %v2663, %v3045
      %v3110 = vadd.f32 %v2664, %v3050
      %v3111 = vadd.f32 %v2665, %v3053
      %v3112 = vadd.f32 %v2666, %v3058
      %v3113 = vadd.f32 %v2667, %v3061
      %v3114 = vadd.f32 %v2668, %v3066
      %v3115 = vadd.f32 %v2669, %v3069
      %v3116 = vadd.f32 %v2670, %v3074
      %v3117 = vadd.f32 %v2671, %v3077
      %v3118 = vadd.f32 %v2672, %v3082
      %v3119 = vadd.f32 %v2673, %v3085
      %s3120 = sadd.s32 %s245, 2
      %s3121 = smul.u32 %s3120, 5
      %s3122 = smul.addr %s3121, 4
      %s3123 = scalar_lea.vmem %s224, %s3122
      %v3124 = vld [vmem:[%s3123] sm:$0xf]
      %v3125 = vld [vmem:[%s3123 + $0x4] sm:$0xf]
      %v3126 = vld [vmem:[%s3123 + $0x8] sm:$0xf]
      %v3127 = vld [vmem:[%s3123 + $0xc] sm:$0xf]
      %v3128 = vld [vmem:[%s3123 + $0x14] sm:$0xf]
      %v3129 = vld [vmem:[%s3123 + $0x18] sm:$0xf]
      %v3130 = vld [vmem:[%s3123 + $0x1c] sm:$0xf]
      %v3131 = vld [vmem:[%s3123 + $0x20] sm:$0xf]
      %v3132 = vld [vmem:[%s3123 + $0x28] sm:$0xf]
      %v3133 = vld [vmem:[%s3123 + $0x2c] sm:$0xf]
      %v3134 = vld [vmem:[%s3123 + $0x30] sm:$0xf]
      %v3135 = vld [vmem:[%s3123 + $0x34] sm:$0xf]
      %v3136 = vld [vmem:[%s3123 + $0x3c] sm:$0xf]
      %v3137 = vld [vmem:[%s3123 + $0x40] sm:$0xf]
      %v3138 = vld [vmem:[%s3123 + $0x44] sm:$0xf]
      %v3139 = vld [vmem:[%s3123 + $0x48] sm:$0xf]
      %v3140 = vld [vmem:[%s3123 + $0x50] sm:$0xf]
      %v3141 = vld [vmem:[%s3123 + $0x54] sm:$0xf]
      %v3142 = vld [vmem:[%s3123 + $0x58] sm:$0xf]
      %v3143 = vld [vmem:[%s3123 + $0x5c] sm:$0xf]
      %v3144 = vld [vmem:[%s3123 + $0x64] sm:$0xf]
      %v3145 = vld [vmem:[%s3123 + $0x68] sm:$0xf]
      %v3146 = vld [vmem:[%s3123 + $0x6c] sm:$0xf]
      %v3147 = vld [vmem:[%s3123 + $0x70] sm:$0xf]
      %v3148 = vld [vmem:[%s3123 + $0x78] sm:$0xf]
      %v3149 = vld [vmem:[%s3123 + $0x7c] sm:$0xf]
      %v3150 = vld [vmem:[%s3123 + $0x80] sm:$0xf]
      %v3151 = vld [vmem:[%s3123 + $0x84] sm:$0xf]
      %v3152 = vld [vmem:[%s3123 + $0x8c] sm:$0xf]
      %v3153 = vld [vmem:[%s3123 + $0x90] sm:$0xf]
      %v3154 = vld [vmem:[%s3123 + $0x94] sm:$0xf]
      %v3155 = vld [vmem:[%s3123 + $0x98] sm:$0xf]
      %s3156 = scalar_lea.vmem %s1, 24
      %v3157 = vld [vmem:[%s3156] sm:$0xf]
      %v3190 = vunpack.c.l.b16 %v3124
      %v3191 = vunpack.c.l.b16 %v3125
      %v3192 = vunpack.c.l.b16 %v3126
      %v3193 = vunpack.c.l.b16 %v3127
      %v3194 = vunpack.c.l.b16 %v3128
      %v3195 = vunpack.c.l.b16 %v3129
      %v3196 = vunpack.c.l.b16 %v3130
      %v3197 = vunpack.c.l.b16 %v3131
      %v3198 = vunpack.c.l.b16 %v3132
      %v3199 = vunpack.c.l.b16 %v3133
      %v3200 = vunpack.c.l.b16 %v3134
      %v3201 = vunpack.c.l.b16 %v3135
      %v3202 = vunpack.c.l.b16 %v3136
      %v3203 = vunpack.c.l.b16 %v3137
      %v3204 = vunpack.c.l.b16 %v3138
      %v3205 = vunpack.c.l.b16 %v3139
      %v3206 = vunpack.c.l.b16 %v3140
      %v3207 = vunpack.c.l.b16 %v3141
      %v3208 = vunpack.c.l.b16 %v3142
      %v3209 = vunpack.c.l.b16 %v3143
      %v3210 = vunpack.c.l.b16 %v3144
      %v3211 = vunpack.c.l.b16 %v3145
      %v3212 = vunpack.c.l.b16 %v3146
      %v3213 = vunpack.c.l.b16 %v3147
      %v3214 = vunpack.c.l.b16 %v3148
      %v3215 = vunpack.c.l.b16 %v3149
      %v3216 = vunpack.c.l.b16 %v3150
      %v3217 = vunpack.c.l.b16 %v3151
      %v3218 = vunpack.c.l.b16 %v3152
      %v3219 = vunpack.c.l.b16 %v3153
      %v3220 = vunpack.c.l.b16 %v3154
      %v3221 = vunpack.c.l.b16 %v3155
      %v3222 = vpack.c.b16 %v3191, %v3190
      %v3223 = vpack.c.b16 %v3193, %v3192
      %v3224 = vpack.c.b16 %v3195, %v3194
      %v3225 = vpack.c.b16 %v3197, %v3196
      %v3226 = vpack.c.b16 %v3199, %v3198
      %v3227 = vpack.c.b16 %v3201, %v3200
      %v3228 = vpack.c.b16 %v3203, %v3202
      %v3229 = vpack.c.b16 %v3205, %v3204
      %v3230 = vpack.c.b16 %v3207, %v3206
      %v3231 = vpack.c.b16 %v3209, %v3208
      %v3232 = vpack.c.b16 %v3211, %v3210
      %v3233 = vpack.c.b16 %v3213, %v3212
      %v3234 = vpack.c.b16 %v3215, %v3214
      %v3235 = vpack.c.b16 %v3217, %v3216
      %v3236 = vpack.c.b16 %v3219, %v3218
      %v3237 = vpack.c.b16 %v3221, %v3220
      %v3239 = vsel %vm695, %v3222, 0
      %v3242 = vsel %vm695, %v3223, 0
      %v3245 = vsel %vm695, %v3224, 0
      %v3248 = vsel %vm695, %v3225, 0
      %v3251 = vsel %vm695, %v3226, 0
      %v3254 = vsel %vm695, %v3227, 0
      %v3257 = vsel %vm695, %v3228, 0
      %v3260 = vsel %vm695, %v3229, 0
      %v3263 = vsel %vm695, %v3230, 0
      %v3266 = vsel %vm695, %v3231, 0
      %v3269 = vsel %vm695, %v3232, 0
      %v3272 = vsel %vm695, %v3233, 0
      %v3275 = vsel %vm695, %v3234, 0
      %v3278 = vsel %vm695, %v3235, 0
      %v3281 = vsel %vm695, %v3236, 0
      %v3284 = vsel %vm695, %v3237, 0
      %v3287 = vsel %vm744, %v3157, 0
      %3289 = vmatprep.subr.bf16.mxu0 0
      %3290 = vmatpush1.bf16.msra.mxu0 %v3287
      %3291 = vmatprep.subr.bf16.mxu0 0
      %3292 = vmatpush1.bf16.msra.mxu0 0
      %3293 = vmatprep.subr.bf16.mxu0 0
      %3294 = vmatpush1.bf16.msra.mxu0 0
      %3295 = vmatprep.subr.bf16.mxu0 0
      %3296 = vmatpush1.bf16.msra.mxu0 0
      %3297 = vmatprep.subr.bf16.mxu0 0
      %3298 = vmatpush1.bf16.msra.mxu0 0
      %3299 = vmatprep.subr.bf16.mxu0 0
      %3300 = vmatpush1.bf16.msra.mxu0 0
      %3301 = vmatprep.subr.bf16.mxu0 0
      %3302 = vmatpush1.bf16.msra.mxu0 0
      %3303 = vmatprep.subr.bf16.mxu0 0
      %3304 = vmatpush1.bf16.msra.mxu0 0
      %3305 = vmatprep.subr.bf16.mxu0 0
      %3306 = vmatpush1.bf16.msra.mxu0 0
      %3307 = vmatprep.subr.bf16.mxu0 0
      %3308 = vmatpush1.bf16.msra.mxu0 0
      %3309 = vmatprep.subr.bf16.mxu0 0
      %3310 = vmatpush1.bf16.msra.mxu0 0
      %3311 = vmatprep.subr.bf16.mxu0 0
      %3312 = vmatpush1.bf16.msra.mxu0 0
      %3313 = vmatprep.subr.bf16.mxu0 0
      %3314 = vmatpush1.bf16.msra.mxu0 0
      %3315 = vmatprep.subr.bf16.mxu0 0
      %3316 = vmatpush1.bf16.msra.mxu0 0
      %3317 = vmatprep.subr.bf16.mxu0 0
      %3318 = vmatpush1.bf16.msra.mxu0 0
      %3319 = vmatprep.subr.bf16.mxu0 0
      %3320 = vmatpush1.bf16.msra.mxu0 0
      %3321 = vmatprep.mubr.bf16.mxu0 0
      %3322 = vmatmul.mubr.bf16.gmra.mrb[0].mxu0 %v3239
      %v3323 = vpop.f32.mrb[0].mxu0
      %v3324 = vadd.f32 0.0, %v3323
      %v3325 = vpop.f32.mrb[0].mxu0
      %v3326 = vpop.f32.mrb[0].mxu0
      %v3327 = vadd.f32 0.0, %v3326
      %v3328 = vpop.f32.mrb[0].mxu0
      %3329 = vmatprep.mubr.bf16.mxu0 0
      %3330 = vmatmul.mubr.bf16.gmra.mrb[0].mxu0 %v3242
      %v3331 = vpop.f32.mrb[0].mxu0
      %v3332 = vadd.f32 0.0, %v3331
      %v3333 = vpop.f32.mrb[0].mxu0
      %v3334 = vpop.f32.mrb[0].mxu0
      %v3335 = vadd.f32 0.0, %v3334
      %v3336 = vpop.f32.mrb[0].mxu0
      %3337 = vmatprep.mubr.bf16.mxu0 0
      %3338 = vmatmul.mubr.bf16.gmra.mrb[0].mxu0 %v3245
      %v3339 = vpop.f32.mrb[0].mxu0
      %v3340 = vadd.f32 0.0, %v3339
      %v3341 = vpop.f32.mrb[0].mxu0
      %v3342 = vpop.f32.mrb[0].mxu0
      %v3343 = vadd.f32 0.0, %v3342
      %v3344 = vpop.f32.mrb[0].mxu0
      %3345 = vmatprep.mubr.bf16.mxu0 0
      %3346 = vmatmul.mubr.bf16.gmra.mrb[0].mxu0 %v3248
      %v3347 = vpop.f32.mrb[0].mxu0
      %v3348 = vadd.f32 0.0, %v3347
      %v3349 = vpop.f32.mrb[0].mxu0
      %v3350 = vpop.f32.mrb[0].mxu0
      %v3351 = vadd.f32 0.0, %v3350
      %v3352 = vpop.f32.mrb[0].mxu0
      %3353 = vmatprep.mubr.bf16.mxu0 0
      %3354 = vmatmul.mubr.bf16.gmra.mrb[0].mxu0 %v3251
      %v3355 = vpop.f32.mrb[0].mxu0
      %v3356 = vadd.f32 0.0, %v3355
      %v3357 = vpop.f32.mrb[0].mxu0
      %v3358 = vpop.f32.mrb[0].mxu0
      %v3359 = vadd.f32 0.0, %v3358
      %v3360 = vpop.f32.mrb[0].mxu0
      %3361 = vmatprep.mubr.bf16.mxu0 0
      %3362 = vmatmul.mubr.bf16.gmra.mrb[0].mxu0 %v3254
      %v3363 = vpop.f32.mrb[0].mxu0
      %v3364 = vadd.f32 0.0, %v3363
      %v3365 = vpop.f32.mrb[0].mxu0
      %v3366 = vpop.f32.mrb[0].mxu0
      %v3367 = vadd.f32 0.0, %v3366
      %v3368 = vpop.f32.mrb[0].mxu0
      %3369 = vmatprep.mubr.bf16.mxu0 0
      %3370 = vmatmul.mubr.bf16.gmra.mrb[0].mxu0 %v3257
      %v3371 = vpop.f32.mrb[0].mxu0
      %v3372 = vadd.f32 0.0, %v3371
      %v3373 = vpop.f32.mrb[0].mxu0
      %v3374 = vpop.f32.mrb[0].mxu0
      %v3375 = vadd.f32 0.0, %v3374
      %v3376 = vpop.f32.mrb[0].mxu0
      %3377 = vmatprep.mubr.bf16.mxu0 0
      %3378 = vmatmul.mubr.bf16.gmra.mrb[0].mxu0 %v3260
      %v3379 = vpop.f32.mrb[0].mxu0
      %v3380 = vadd.f32 0.0, %v3379
      %v3381 = vpop.f32.mrb[0].mxu0
      %v3382 = vpop.f32.mrb[0].mxu0
      %v3383 = vadd.f32 0.0, %v3382
      %v3384 = vpop.f32.mrb[0].mxu0
      %3385 = vmatprep.mubr.bf16.mxu0 0
      %3386 = vmatmul.mubr.bf16.gmra.mrb[0].mxu0 %v3263
      %v3387 = vpop.f32.mrb[0].mxu0
      %v3388 = vadd.f32 0.0, %v3387
      %v3389 = vpop.f32.mrb[0].mxu0
      %v3390 = vpop.f32.mrb[0].mxu0
      %v3391 = vadd.f32 0.0, %v3390
      %v3392 = vpop.f32.mrb[0].mxu0
      %3393 = vmatprep.mubr.bf16.mxu0 0
      %3394 = vmatmul.mubr.bf16.gmra.mrb[0].mxu0 %v3266
      %v3395 = vpop.f32.mrb[0].mxu0
      %v3396 = vadd.f32 0.0, %v3395
      %v3397 = vpop.f32.mrb[0].mxu0
      %v3398 = vpop.f32.mrb[0].mxu0
      %v3399 = vadd.f32 0.0, %v3398
      %v3400 = vpop.f32.mrb[0].mxu0
      %3401 = vmatprep.mubr.bf16.mxu0 0
      %3402 = vmatmul.mubr.bf16.gmra.mrb[0].mxu0 %v3269
      %v3403 = vpop.f32.mrb[0].mxu0
      %v3404 = vadd.f32 0.0, %v3403
      %v3405 = vpop.f32.mrb[0].mxu0
      %v3406 = vpop.f32.mrb[0].mxu0
      %v3407 = vadd.f32 0.0, %v3406
      %v3408 = vpop.f32.mrb[0].mxu0
      %3409 = vmatprep.mubr.bf16.mxu0 0
      %3410 = vmatmul.mubr.bf16.gmra.mrb[0].mxu0 %v3272
      %v3411 = vpop.f32.mrb[0].mxu0
      %v3412 = vadd.f32 0.0, %v3411
      %v3413 = vpop.f32.mrb[0].mxu0
      %v3414 = vpop.f32.mrb[0].mxu0
      %v3415 = vadd.f32 0.0, %v3414
      %v3416 = vpop.f32.mrb[0].mxu0
      %3417 = vmatprep.mubr.bf16.mxu0 0
      %3418 = vmatmul.mubr.bf16.gmra.mrb[0].mxu0 %v3275
      %v3419 = vpop.f32.mrb[0].mxu0
      %v3420 = vadd.f32 0.0, %v3419
      %v3421 = vpop.f32.mrb[0].mxu0
      %v3422 = vpop.f32.mrb[0].mxu0
      %v3423 = vadd.f32 0.0, %v3422
      %v3424 = vpop.f32.mrb[0].mxu0
      %3425 = vmatprep.mubr.bf16.mxu0 0
      %3426 = vmatmul.mubr.bf16.gmra.mrb[0].mxu0 %v3278
      %v3427 = vpop.f32.mrb[0].mxu0
      %v3428 = vadd.f32 0.0, %v3427
      %v3429 = vpop.f32.mrb[0].mxu0
      %v3430 = vpop.f32.mrb[0].mxu0
      %v3431 = vadd.f32 0.0, %v3430
      %v3432 = vpop.f32.mrb[0].mxu0
      %3433 = vmatprep.mubr.bf16.mxu0 0
      %3434 = vmatmul.mubr.bf16.gmra.mrb[0].mxu0 %v3281
      %v3435 = vpop.f32.mrb[0].mxu0
      %v3436 = vadd.f32 0.0, %v3435
      %v3437 = vpop.f32.mrb[0].mxu0
      %v3438 = vpop.f32.mrb[0].mxu0
      %v3439 = vadd.f32 0.0, %v3438
      %v3440 = vpop.f32.mrb[0].mxu0
      %3441 = vmatprep.mubr.bf16.mxu0 0
      %3442 = vmatmul.mubr.bf16.gmra.mrb[0].mxu0 %v3284
      %v3443 = vpop.f32.mrb[0].mxu0
      %v3444 = vadd.f32 0.0, %v3443
      %v3445 = vpop.f32.mrb[0].mxu0
      %v3446 = vpop.f32.mrb[0].mxu0
      %v3447 = vadd.f32 0.0, %v3446
      %v3448 = vpop.f32.mrb[0].mxu0
      %3449 = vdwg.mxu0
      %v3450 = vadd.f32 %v3088, %v3324
      %v3451 = vadd.f32 %v3089, %v3327
      %v3452 = vadd.f32 %v3090, %v3332
      %v3453 = vadd.f32 %v3091, %v3335
      %v3454 = vadd.f32 %v3092, %v3340
      %v3455 = vadd.f32 %v3093, %v3343
      %v3456 = vadd.f32 %v3094, %v3348
      %v3457 = vadd.f32 %v3095, %v3351
      %v3458 = vadd.f32 %v3096, %v3356
      %v3459 = vadd.f32 %v3097, %v3359
      %v3460 = vadd.f32 %v3098, %v3364
      %v3461 = vadd.f32 %v3099, %v3367
      %v3462 = vadd.f32 %v3100, %v3372
      %v3463 = vadd.f32 %v3101, %v3375
      %v3464 = vadd.f32 %v3102, %v3380
      %v3465 = vadd.f32 %v3103, %v3383
      %v3466 = vadd.f32 %v3104, %v3388
      %v3467 = vadd.f32 %v3105, %v3391
      %v3468 = vadd.f32 %v3106, %v3396
      %v3469 = vadd.f32 %v3107, %v3399
      %v3470 = vadd.f32 %v3108, %v3404
      %v3471 = vadd.f32 %v3109, %v3407
      %v3472 = vadd.f32 %v3110, %v3412
      %v3473 = vadd.f32 %v3111, %v3415
      %v3474 = vadd.f32 %v3112, %v3420
      %v3475 = vadd.f32 %v3113, %v3423
      %v3476 = vadd.f32 %v3114, %v3428
      %v3477 = vadd.f32 %v3115, %v3431
      %v3478 = vadd.f32 %v3116, %v3436
      %v3479 = vadd.f32 %v3117, %v3439
      %v3480 = vadd.f32 %v3118, %v3444
      %v3481 = vadd.f32 %v3119, %v3447
      %v3482 = vld [vmem:[%s3123] sm:$0xf]
      %v3483 = vld [vmem:[%s3123 + $0x4] sm:$0xf]
      %v3484 = vld [vmem:[%s3123 + $0x8] sm:$0xf]
      %v3485 = vld [vmem:[%s3123 + $0xc] sm:$0xf]
      %v3486 = vld [vmem:[%s3123 + $0x10] sm:$0x1]
      %v3487 = vld [vmem:[%s3123 + $0x14] sm:$0xf]
      %v3488 = vld [vmem:[%s3123 + $0x18] sm:$0xf]
      %v3489 = vld [vmem:[%s3123 + $0x1c] sm:$0xf]
      %v3490 = vld [vmem:[%s3123 + $0x20] sm:$0xf]
      %v3491 = vld [vmem:[%s3123 + $0x24] sm:$0x1]
      %v3492 = vld [vmem:[%s3123 + $0x28] sm:$0xf]
      %v3493 = vld [vmem:[%s3123 + $0x2c] sm:$0xf]
      %v3494 = vld [vmem:[%s3123 + $0x30] sm:$0xf]
      %v3495 = vld [vmem:[%s3123 + $0x34] sm:$0xf]
      %v3496 = vld [vmem:[%s3123 + $0x38] sm:$0x1]
      %v3497 = vld [vmem:[%s3123 + $0x3c] sm:$0xf]
      %v3498 = vld [vmem:[%s3123 + $0x40] sm:$0xf]
      %v3499 = vld [vmem:[%s3123 + $0x44] sm:$0xf]
      %v3500 = vld [vmem:[%s3123 + $0x48] sm:$0xf]
      %v3501 = vld [vmem:[%s3123 + $0x4c] sm:$0x1]
      %v3502 = vld [vmem:[%s3123 + $0x50] sm:$0xf]
      %v3503 = vld [vmem:[%s3123 + $0x54] sm:$0xf]
      %v3504 = vld [vmem:[%s3123 + $0x58] sm:$0xf]
      %v3505 = vld [vmem:[%s3123 + $0x5c] sm:$0xf]
      %v3506 = vld [vmem:[%s3123 + $0x60] sm:$0x1]
      %v3507 = vld [vmem:[%s3123 + $0x64] sm:$0xf]
      %v3508 = vld [vmem:[%s3123 + $0x68] sm:$0xf]
      %v3509 = vld [vmem:[%s3123 + $0x6c] sm:$0xf]
      %v3510 = vld [vmem:[%s3123 + $0x70] sm:$0xf]
      %v3511 = vld [vmem:[%s3123 + $0x74] sm:$0x1]
      %v3512 = vld [vmem:[%s3123 + $0x78] sm:$0xf]
      %v3513 = vld [vmem:[%s3123 + $0x7c] sm:$0xf]
      %v3514 = vld [vmem:[%s3123 + $0x80] sm:$0xf]
      %v3515 = vld [vmem:[%s3123 + $0x84] sm:$0xf]
      %v3516 = vld [vmem:[%s3123 + $0x88] sm:$0x1]
      %v3517 = vld [vmem:[%s3123 + $0x8c] sm:$0xf]
      %v3518 = vld [vmem:[%s3123 + $0x90] sm:$0xf]
      %v3519 = vld [vmem:[%s3123 + $0x94] sm:$0xf]
      %v3520 = vld [vmem:[%s3123 + $0x98] sm:$0xf]
      %v3521 = vld [vmem:[%s3123 + $0x9c] sm:$0x1]
      %v3523 = vshrl.u32 %v3482, 16
      %v3525 = vrot.slane %v3523, 4
      %v3526 = vshll.u32 %v3482, 16
      %v3528 = vrot.slane %v3526, 5
      %v3529 = vor.u32 %v3525, %v3528
      %v3530 = vrot.slane %v3529, 4
      %v3532 = vshll.u32 %v3483, 16
      %v3534 = vrot.slane %v3532, 5
      %v3535 = vsel %vm292, %v3530, %v3534
      %v3536 = vshrl.u32 %v3483, 16
      %v3538 = vrot.slane %v3536, 4
      %v3539 = vor.u32 %v3538, %v3534
      %v3540 = vrot.slane %v3539, 4
      %v3542 = vshll.u32 %v3484, 16
      %v3544 = vrot.slane %v3542, 5
      %v3545 = vsel %vm292, %v3540, %v3544
      %v3546 = vshrl.u32 %v3484, 16
      %v3548 = vrot.slane %v3546, 4
      %v3549 = vor.u32 %v3548, %v3544
      %v3550 = vrot.slane %v3549, 4
      %v3552 = vshll.u32 %v3485, 16
      %v3554 = vrot.slane %v3552, 5
      %v3555 = vsel %vm292, %v3550, %v3554
      %v3556 = vshrl.u32 %v3485, 16
      %v3558 = vrot.slane %v3556, 4
      %v3559 = vor.u32 %v3558, %v3554
      %v3560 = vrot.slane %v3559, 4
      %v3562 = vshll.u32 %v3486, 16
      %v3564 = vrot.slane %v3562, 5
      %v3565 = vsel %vm292, %v3560, %v3564
      %v3567 = vshrl.u32 %v3487, 16
      %v3569 = vrot.slane %v3567, 4
      %v3570 = vshll.u32 %v3487, 16
      %v3572 = vrot.slane %v3570, 5
      %v3573 = vor.u32 %v3569, %v3572
      %v3574 = vrot.slane %v3573, 4
      %v3576 = vshll.u32 %v3488, 16
      %v3578 = vrot.slane %v3576, 5
      %v3579 = vsel %vm292, %v3574, %v3578
      %v3580 = vshrl.u32 %v3488, 16
      %v3582 = vrot.slane %v3580, 4
      %v3583 = vor.u32 %v3582, %v3578
      %v3584 = vrot.slane %v3583, 4
      %v3586 = vshll.u32 %v3489, 16
      %v3588 = vrot.slane %v3586, 5
      %v3589 = vsel %vm292, %v3584, %v3588
      %v3590 = vshrl.u32 %v3489, 16
      %v3592 = vrot.slane %v3590, 4
      %v3593 = vor.u32 %v3592, %v3588
      %v3594 = vrot.slane %v3593, 4
      %v3596 = vshll.u32 %v3490, 16
      %v3598 = vrot.slane %v3596, 5
      %v3599 = vsel %vm292, %v3594, %v3598
      %v3600 = vshrl.u32 %v3490, 16
      %v3602 = vrot.slane %v3600, 4
      %v3603 = vor.u32 %v3602, %v3598
      %v3604 = vrot.slane %v3603, 4
      %v3606 = vshll.u32 %v3491, 16
      %v3608 = vrot.slane %v3606, 5
      %v3609 = vsel %vm292, %v3604, %v3608
      %v3611 = vshrl.u32 %v3492, 16
      %v3613 = vrot.slane %v3611, 4
      %v3614 = vshll.u32 %v3492, 16
      %v3616 = vrot.slane %v3614, 5
      %v3617 = vor.u32 %v3613, %v3616
      %v3618 = vrot.slane %v3617, 4
      %v3620 = vshll.u32 %v3493, 16
      %v3622 = vrot.slane %v3620, 5
      %v3623 = vsel %vm292, %v3618, %v3622
      %v3624 = vshrl.u32 %v3493, 16
      %v3626 = vrot.slane %v3624, 4
      %v3627 = vor.u32 %v3626, %v3622
      %v3628 = vrot.slane %v3627, 4
      %v3630 = vshll.u32 %v3494, 16
      %v3632 = vrot.slane %v3630, 5
      %v3633 = vsel %vm292, %v3628, %v3632
      %v3634 = vshrl.u32 %v3494, 16
      %v3636 = vrot.slane %v3634, 4
      %v3637 = vor.u32 %v3636, %v3632
      %v3638 = vrot.slane %v3637, 4
      %v3640 = vshll.u32 %v3495, 16
      %v3642 = vrot.slane %v3640, 5
      %v3643 = vsel %vm292, %v3638, %v3642
      %v3644 = vshrl.u32 %v3495, 16
      %v3646 = vrot.slane %v3644, 4
      %v3647 = vor.u32 %v3646, %v3642
      %v3648 = vrot.slane %v3647, 4
      %v3650 = vshll.u32 %v3496, 16
      %v3652 = vrot.slane %v3650, 5
      %v3653 = vsel %vm292, %v3648, %v3652
      %v3655 = vshrl.u32 %v3497, 16
      %v3657 = vrot.slane %v3655, 4
      %v3658 = vshll.u32 %v3497, 16
      %v3660 = vrot.slane %v3658, 5
      %v3661 = vor.u32 %v3657, %v3660
      %v3662 = vrot.slane %v3661, 4
      %v3664 = vshll.u32 %v3498, 16
      %v3666 = vrot.slane %v3664, 5
      %v3667 = vsel %vm292, %v3662, %v3666
      %v3668 = vshrl.u32 %v3498, 16
      %v3670 = vrot.slane %v3668, 4
      %v3671 = vor.u32 %v3670, %v3666
      %v3672 = vrot.slane %v3671, 4
      %v3674 = vshll.u32 %v3499, 16
      %v3676 = vrot.slane %v3674, 5
      %v3677 = vsel %vm292, %v3672, %v3676
      %v3678 = vshrl.u32 %v3499, 16
      %v3680 = vrot.slane %v3678, 4
      %v3681 = vor.u32 %v3680, %v3676
      %v3682 = vrot.slane %v3681, 4
      %v3684 = vshll.u32 %v3500, 16
      %v3686 = vrot.slane %v3684, 5
      %v3687 = vsel %vm292, %v3682, %v3686
      %v3688 = vshrl.u32 %v3500, 16
      %v3690 = vrot.slane %v3688, 4
      %v3691 = vor.u32 %v3690, %v3686
      %v3692 = vrot.slane %v3691, 4
      %v3694 = vshll.u32 %v3501, 16
      %v3696 = vrot.slane %v3694, 5
      %v3697 = vsel %vm292, %v3692, %v3696
      %v3699 = vshrl.u32 %v3502, 16
      %v3701 = vrot.slane %v3699, 4
      %v3702 = vshll.u32 %v3502, 16
      %v3704 = vrot.slane %v3702, 5
      %v3705 = vor.u32 %v3701, %v3704
      %v3706 = vrot.slane %v3705, 4
      %v3708 = vshll.u32 %v3503, 16
      %v3710 = vrot.slane %v3708, 5
      %v3711 = vsel %vm292, %v3706, %v3710
      %v3712 = vshrl.u32 %v3503, 16
      %v3714 = vrot.slane %v3712, 4
      %v3715 = vor.u32 %v3714, %v3710
      %v3716 = vrot.slane %v3715, 4
      %v3718 = vshll.u32 %v3504, 16
      %v3720 = vrot.slane %v3718, 5
      %v3721 = vsel %vm292, %v3716, %v3720
      %v3722 = vshrl.u32 %v3504, 16
      %v3724 = vrot.slane %v3722, 4
      %v3725 = vor.u32 %v3724, %v3720
      %v3726 = vrot.slane %v3725, 4
      %v3728 = vshll.u32 %v3505, 16
      %v3730 = vrot.slane %v3728, 5
      %v3731 = vsel %vm292, %v3726, %v3730
      %v3732 = vshrl.u32 %v3505, 16
      %v3734 = vrot.slane %v3732, 4
      %v3735 = vor.u32 %v3734, %v3730
      %v3736 = vrot.slane %v3735, 4
      %v3738 = vshll.u32 %v3506, 16
      %v3740 = vrot.slane %v3738, 5
      %v3741 = vsel %vm292, %v3736, %v3740
      %v3743 = vshrl.u32 %v3507, 16
      %v3745 = vrot.slane %v3743, 4
      %v3746 = vshll.u32 %v3507, 16
      %v3748 = vrot.slane %v3746, 5
      %v3749 = vor.u32 %v3745, %v3748
      %v3750 = vrot.slane %v3749, 4
      %v3752 = vshll.u32 %v3508, 16
      %v3754 = vrot.slane %v3752, 5
      %v3755 = vsel %vm292, %v3750, %v3754
      %v3756 = vshrl.u32 %v3508, 16
      %v3758 = vrot.slane %v3756, 4
      %v3759 = vor.u32 %v3758, %v3754
      %v3760 = vrot.slane %v3759, 4
      %v3762 = vshll.u32 %v3509, 16
      %v3764 = vrot.slane %v3762, 5
      %v3765 = vsel %vm292, %v3760, %v3764
      %v3766 = vshrl.u32 %v3509, 16
      %v3768 = vrot.slane %v3766, 4
      %v3769 = vor.u32 %v3768, %v3764
      %v3770 = vrot.slane %v3769, 4
      %v3772 = vshll.u32 %v3510, 16
      %v3774 = vrot.slane %v3772, 5
      %v3775 = vsel %vm292, %v3770, %v3774
      %v3776 = vshrl.u32 %v3510, 16
      %v3778 = vrot.slane %v3776, 4
      %v3779 = vor.u32 %v3778, %v3774
      %v3780 = vrot.slane %v3779, 4
      %v3782 = vshll.u32 %v3511, 16
      %v3784 = vrot.slane %v3782, 5
      %v3785 = vsel %vm292, %v3780, %v3784
      %v3787 = vshrl.u32 %v3512, 16
      %v3789 = vrot.slane %v3787, 4
      %v3790 = vshll.u32 %v3512, 16
      %v3792 = vrot.slane %v3790, 5
      %v3793 = vor.u32 %v3789, %v3792
      %v3794 = vrot.slane %v3793, 4
      %v3796 = vshll.u32 %v3513, 16
      %v3798 = vrot.slane %v3796, 5
      %v3799 = vsel %vm292, %v3794, %v3798
      %v3800 = vshrl.u32 %v3513, 16
      %v3802 = vrot.slane %v3800, 4
      %v3803 = vor.u32 %v3802, %v3798
      %v3804 = vrot.slane %v3803, 4
      %v3806 = vshll.u32 %v3514, 16
      %v3808 = vrot.slane %v3806, 5
      %v3809 = vsel %vm292, %v3804, %v3808
      %v3810 = vshrl.u32 %v3514, 16
      %v3812 = vrot.slane %v3810, 4
      %v3813 = vor.u32 %v3812, %v3808
      %v3814 = vrot.slane %v3813, 4
      %v3816 = vshll.u32 %v3515, 16
      %v3818 = vrot.slane %v3816, 5
      %v3819 = vsel %vm292, %v3814, %v3818
      %v3820 = vshrl.u32 %v3515, 16
      %v3822 = vrot.slane %v3820, 4
      %v3823 = vor.u32 %v3822, %v3818
      %v3824 = vrot.slane %v3823, 4
      %v3826 = vshll.u32 %v3516, 16
      %v3828 = vrot.slane %v3826, 5
      %v3829 = vsel %vm292, %v3824, %v3828
      %v3831 = vshrl.u32 %v3517, 16
      %v3833 = vrot.slane %v3831, 4
      %v3834 = vshll.u32 %v3517, 16
      %v3836 = vrot.slane %v3834, 5
      %v3837 = vor.u32 %v3833, %v3836
      %v3838 = vrot.slane %v3837, 4
      %v3840 = vshll.u32 %v3518, 16
      %v3842 = vrot.slane %v3840, 5
      %v3843 = vsel %vm292, %v3838, %v3842
      %v3844 = vshrl.u32 %v3518, 16
      %v3846 = vrot.slane %v3844, 4
      %v3847 = vor.u32 %v3846, %v3842
      %v3848 = vrot.slane %v3847, 4
      %v3850 = vshll.u32 %v3519, 16
      %v3852 = vrot.slane %v3850, 5
      %v3853 = vsel %vm292, %v3848, %v3852
      %v3854 = vshrl.u32 %v3519, 16
      %v3856 = vrot.slane %v3854, 4
      %v3857 = vor.u32 %v3856, %v3852
      %v3858 = vrot.slane %v3857, 4
      %v3860 = vshll.u32 %v3520, 16
      %v3862 = vrot.slane %v3860, 5
      %v3863 = vsel %vm292, %v3858, %v3862
      %v3864 = vshrl.u32 %v3520, 16
      %v3866 = vrot.slane %v3864, 4
      %v3867 = vor.u32 %v3866, %v3862
      %v3868 = vrot.slane %v3867, 4
      %v3870 = vshll.u32 %v3521, 16
      %v3872 = vrot.slane %v3870, 5
      %v3873 = vsel %vm292, %v3868, %v3872
      %s3874 = scalar_lea.vmem %s1, 28
      %v3875 = vld [vmem:[%s3874] sm:$0xf]
      %v3876 = vunpack.c.l.b16 %v3535
      %v3877 = vunpack.c.l.b16 %v3545
      %v3878 = vunpack.c.l.b16 %v3555
      %v3879 = vunpack.c.l.b16 %v3565
      %v3880 = vunpack.c.l.b16 %v3579
      %v3881 = vunpack.c.l.b16 %v3589
      %v3882 = vunpack.c.l.b16 %v3599
      %v3883 = vunpack.c.l.b16 %v3609
      %v3884 = vunpack.c.l.b16 %v3623
      %v3885 = vunpack.c.l.b16 %v3633
      %v3886 = vunpack.c.l.b16 %v3643
      %v3887 = vunpack.c.l.b16 %v3653
      %v3888 = vunpack.c.l.b16 %v3667
      %v3889 = vunpack.c.l.b16 %v3677
      %v3890 = vunpack.c.l.b16 %v3687
      %v3891 = vunpack.c.l.b16 %v3697
      %v3892 = vunpack.c.l.b16 %v3711
      %v3893 = vunpack.c.l.b16 %v3721
      %v3894 = vunpack.c.l.b16 %v3731
      %v3895 = vunpack.c.l.b16 %v3741
      %v3896 = vunpack.c.l.b16 %v3755
      %v3897 = vunpack.c.l.b16 %v3765
      %v3898 = vunpack.c.l.b16 %v3775
      %v3899 = vunpack.c.l.b16 %v3785
      %v3900 = vunpack.c.l.b16 %v3799
      %v3901 = vunpack.c.l.b16 %v3809
      %v3902 = vunpack.c.l.b16 %v3819
      %v3903 = vunpack.c.l.b16 %v3829
      %v3904 = vunpack.c.l.b16 %v3843
      %v3905 = vunpack.c.l.b16 %v3853
      %v3906 = vunpack.c.l.b16 %v3863
      %v3907 = vunpack.c.l.b16 %v3873
      %v3908 = vpack.c.b16 %v3877, %v3876
      %v3909 = vpack.c.b16 %v3879, %v3878
      %v3910 = vpack.c.b16 %v3881, %v3880
      %v3911 = vpack.c.b16 %v3883, %v3882
      %v3912 = vpack.c.b16 %v3885, %v3884
      %v3913 = vpack.c.b16 %v3887, %v3886
      %v3914 = vpack.c.b16 %v3889, %v3888
      %v3915 = vpack.c.b16 %v3891, %v3890
      %v3916 = vpack.c.b16 %v3893, %v3892
      %v3917 = vpack.c.b16 %v3895, %v3894
      %v3918 = vpack.c.b16 %v3897, %v3896
      %v3919 = vpack.c.b16 %v3899, %v3898
      %v3920 = vpack.c.b16 %v3901, %v3900
      %v3921 = vpack.c.b16 %v3903, %v3902
      %v3922 = vpack.c.b16 %v3905, %v3904
      %v3923 = vpack.c.b16 %v3907, %v3906
      %v3925 = vsel %vm695, %v3908, 0
      %v3928 = vsel %vm695, %v3909, 0
      %v3931 = vsel %vm695, %v3910, 0
      %v3934 = vsel %vm695, %v3911, 0
      %v3937 = vsel %vm695, %v3912, 0
      %v3940 = vsel %vm695, %v3913, 0
      %v3943 = vsel %vm695, %v3914, 0
      %v3946 = vsel %vm695, %v3915, 0
      %v3949 = vsel %vm695, %v3916, 0
      %v3952 = vsel %vm695, %v3917, 0
      %v3955 = vsel %vm695, %v3918, 0
      %v3958 = vsel %vm695, %v3919, 0
      %v3961 = vsel %vm695, %v3920, 0
      %v3964 = vsel %vm695, %v3921, 0
      %v3967 = vsel %vm695, %v3922, 0
      %v3970 = vsel %vm695, %v3923, 0
      %v3973 = vsel %vm744, %v3875, 0
      %3975 = vmatprep.subr.bf16.mxu0 0
      %3976 = vmatpush1.bf16.msra.mxu0 %v3973
      %3977 = vmatprep.subr.bf16.mxu0 0
      %3978 = vmatpush1.bf16.msra.mxu0 0
      %3979 = vmatprep.subr.bf16.mxu0 0
      %3980 = vmatpush1.bf16.msra.mxu0 0
      %3981 = vmatprep.subr.bf16.mxu0 0
      %3982 = vmatpush1.bf16.msra.mxu0 0
      %3983 = vmatprep.subr.bf16.mxu0 0
      %3984 = vmatpush1.bf16.msra.mxu0 0
      %3985 = vmatprep.subr.bf16.mxu0 0
      %3986 = vmatpush1.bf16.msra.mxu0 0
      %3987 = vmatprep.subr.bf16.mxu0 0
      %3988 = vmatpush1.bf16.msra.mxu0 0
      %3989 = vmatprep.subr.bf16.mxu0 0
      %3990 = vmatpush1.bf16.msra.mxu0 0
      %3991 = vmatprep.subr.bf16.mxu0 0
      %3992 = vmatpush1.bf16.msra.mxu0 0
      %3993 = vmatprep.subr.bf16.mxu0 0
      %3994 = vmatpush1.bf16.msra.mxu0 0
      %3995 = vmatprep.subr.bf16.mxu0 0
      %3996 = vmatpush1.bf16.msra.mxu0 0
      %3997 = vmatprep.subr.bf16.mxu0 0
      %3998 = vmatpush1.bf16.msra.mxu0 0
      %3999 = vmatprep.subr.bf16.mxu0 0
      %4000 = vmatpush1.bf16.msra.mxu0 0
      %4001 = vmatprep.subr.bf16.mxu0 0
      %4002 = vmatpush1.bf16.msra.mxu0 0
      %4003 = vmatprep.subr.bf16.mxu0 0
      %4004 = vmatpush1.bf16.msra.mxu0 0
      %4005 = vmatprep.subr.bf16.mxu0 0
      %4006 = vmatpush1.bf16.msra.mxu0 0
      %4007 = vmatprep.mubr.bf16.mxu0 0
      %4008 = vmatmul.mubr.bf16.gmra.mrb[0].mxu0 %v3925
      %v4009 = vpop.f32.mrb[0].mxu0
      %v4010 = vadd.f32 0.0, %v4009
      %v4011 = vpop.f32.mrb[0].mxu0
      %v4012 = vpop.f32.mrb[0].mxu0
      %v4013 = vadd.f32 0.0, %v4012
      %v4014 = vpop.f32.mrb[0].mxu0
      %4015 = vmatprep.mubr.bf16.mxu0 0
      %4016 = vmatmul.mubr.bf16.gmra.mrb[0].mxu0 %v3928
      %v4017 = vpop.f32.mrb[0].mxu0
      %v4018 = vadd.f32 0.0, %v4017
      %v4019 = vpop.f32.mrb[0].mxu0
      %v4020 = vpop.f32.mrb[0].mxu0
      %v4021 = vadd.f32 0.0, %v4020
      %v4022 = vpop.f32.mrb[0].mxu0
      %4023 = vmatprep.mubr.bf16.mxu0 0
      %4024 = vmatmul.mubr.bf16.gmra.mrb[0].mxu0 %v3931
      %v4025 = vpop.f32.mrb[0].mxu0
      %v4026 = vadd.f32 0.0, %v4025
      %v4027 = vpop.f32.mrb[0].mxu0
      %v4028 = vpop.f32.mrb[0].mxu0
      %v4029 = vadd.f32 0.0, %v4028
      %v4030 = vpop.f32.mrb[0].mxu0
      %4031 = vmatprep.mubr.bf16.mxu0 0
      %4032 = vmatmul.mubr.bf16.gmra.mrb[0].mxu0 %v3934
      %v4033 = vpop.f32.mrb[0].mxu0
      %v4034 = vadd.f32 0.0, %v4033
      %v4035 = vpop.f32.mrb[0].mxu0
      %v4036 = vpop.f32.mrb[0].mxu0
      %v4037 = vadd.f32 0.0, %v4036
      %v4038 = vpop.f32.mrb[0].mxu0
      %4039 = vmatprep.mubr.bf16.mxu0 0
      %4040 = vmatmul.mubr.bf16.gmra.mrb[0].mxu0 %v3937
      %v4041 = vpop.f32.mrb[0].mxu0
      %v4042 = vadd.f32 0.0, %v4041
      %v4043 = vpop.f32.mrb[0].mxu0
      %v4044 = vpop.f32.mrb[0].mxu0
      %v4045 = vadd.f32 0.0, %v4044
      %v4046 = vpop.f32.mrb[0].mxu0
      %4047 = vmatprep.mubr.bf16.mxu0 0
      %4048 = vmatmul.mubr.bf16.gmra.mrb[0].mxu0 %v3940
      %v4049 = vpop.f32.mrb[0].mxu0
      %v4050 = vadd.f32 0.0, %v4049
      %v4051 = vpop.f32.mrb[0].mxu0
      %v4052 = vpop.f32.mrb[0].mxu0
      %v4053 = vadd.f32 0.0, %v4052
      %v4054 = vpop.f32.mrb[0].mxu0
      %4055 = vmatprep.mubr.bf16.mxu0 0
      %4056 = vmatmul.mubr.bf16.gmra.mrb[0].mxu0 %v3943
      %v4057 = vpop.f32.mrb[0].mxu0
      %v4058 = vadd.f32 0.0, %v4057
      %v4059 = vpop.f32.mrb[0].mxu0
      %v4060 = vpop.f32.mrb[0].mxu0
      %v4061 = vadd.f32 0.0, %v4060
      %v4062 = vpop.f32.mrb[0].mxu0
      %4063 = vmatprep.mubr.bf16.mxu0 0
      %4064 = vmatmul.mubr.bf16.gmra.mrb[0].mxu0 %v3946
      %v4065 = vpop.f32.mrb[0].mxu0
      %v4066 = vadd.f32 0.0, %v4065
      %v4067 = vpop.f32.mrb[0].mxu0
      %v4068 = vpop.f32.mrb[0].mxu0
      %v4069 = vadd.f32 0.0, %v4068
      %v4070 = vpop.f32.mrb[0].mxu0
      %4071 = vmatprep.mubr.bf16.mxu0 0
      %4072 = vmatmul.mubr.bf16.gmra.mrb[0].mxu0 %v3949
      %v4073 = vpop.f32.mrb[0].mxu0
      %v4074 = vadd.f32 0.0, %v4073
      %v4075 = vpop.f32.mrb[0].mxu0
      %v4076 = vpop.f32.mrb[0].mxu0
      %v4077 = vadd.f32 0.0, %v4076
      %v4078 = vpop.f32.mrb[0].mxu0
      %4079 = vmatprep.mubr.bf16.mxu0 0
      %4080 = vmatmul.mubr.bf16.gmra.mrb[0].mxu0 %v3952
      %v4081 = vpop.f32.mrb[0].mxu0
      %v4082 = vadd.f32 0.0, %v4081
      %v4083 = vpop.f32.mrb[0].mxu0
      %v4084 = vpop.f32.mrb[0].mxu0
      %v4085 = vadd.f32 0.0, %v4084
      %v4086 = vpop.f32.mrb[0].mxu0
      %4087 = vmatprep.mubr.bf16.mxu0 0
      %4088 = vmatmul.mubr.bf16.gmra.mrb[0].mxu0 %v3955
      %v4089 = vpop.f32.mrb[0].mxu0
      %v4090 = vadd.f32 0.0, %v4089
      %v4091 = vpop.f32.mrb[0].mxu0
      %v4092 = vpop.f32.mrb[0].mxu0
      %v4093 = vadd.f32 0.0, %v4092
      %v4094 = vpop.f32.mrb[0].mxu0
      %4095 = vmatprep.mubr.bf16.mxu0 0
      %4096 = vmatmul.mubr.bf16.gmra.mrb[0].mxu0 %v3958
      %v4097 = vpop.f32.mrb[0].mxu0
      %v4098 = vadd.f32 0.0, %v4097
      %v4099 = vpop.f32.mrb[0].mxu0
      %v4100 = vpop.f32.mrb[0].mxu0
      %v4101 = vadd.f32 0.0, %v4100
      %v4102 = vpop.f32.mrb[0].mxu0
      %4103 = vmatprep.mubr.bf16.mxu0 0
      %4104 = vmatmul.mubr.bf16.gmra.mrb[0].mxu0 %v3961
      %v4105 = vpop.f32.mrb[0].mxu0
      %v4106 = vadd.f32 0.0, %v4105
      %v4107 = vpop.f32.mrb[0].mxu0
      %v4108 = vpop.f32.mrb[0].mxu0
      %v4109 = vadd.f32 0.0, %v4108
      %v4110 = vpop.f32.mrb[0].mxu0
      %4111 = vmatprep.mubr.bf16.mxu0 0
      %4112 = vmatmul.mubr.bf16.gmra.mrb[0].mxu0 %v3964
      %v4113 = vpop.f32.mrb[0].mxu0
      %v4114 = vadd.f32 0.0, %v4113
      %v4115 = vpop.f32.mrb[0].mxu0
      %v4116 = vpop.f32.mrb[0].mxu0
      %v4117 = vadd.f32 0.0, %v4116
      %v4118 = vpop.f32.mrb[0].mxu0
      %4119 = vmatprep.mubr.bf16.mxu0 0
      %4120 = vmatmul.mubr.bf16.gmra.mrb[0].mxu0 %v3967
      %v4121 = vpop.f32.mrb[0].mxu0
      %v4122 = vadd.f32 0.0, %v4121
      %v4123 = vpop.f32.mrb[0].mxu0
      %v4124 = vpop.f32.mrb[0].mxu0
      %v4125 = vadd.f32 0.0, %v4124
      %v4126 = vpop.f32.mrb[0].mxu0
      %4127 = vmatprep.mubr.bf16.mxu0 0
      %4128 = vmatmul.mubr.bf16.gmra.mrb[0].mxu0 %v3970
      %v4129 = vpop.f32.mrb[0].mxu0
      %v4130 = vadd.f32 0.0, %v4129
      %v4131 = vpop.f32.mrb[0].mxu0
      %v4132 = vpop.f32.mrb[0].mxu0
      %v4133 = vadd.f32 0.0, %v4132
      %v4134 = vpop.f32.mrb[0].mxu0
      %4135 = vdwg.mxu0
      %v4136 = vadd.f32 %v3450, %v4010
      %v4137 = vadd.f32 %v3451, %v4013
      %v4138 = vadd.f32 %v3452, %v4018
      %v4139 = vadd.f32 %v3453, %v4021
      %v4140 = vadd.f32 %v3454, %v4026
      %v4141 = vadd.f32 %v3455, %v4029
      %v4142 = vadd.f32 %v3456, %v4034
      %v4143 = vadd.f32 %v3457, %v4037
      %v4144 = vadd.f32 %v3458, %v4042
      %v4145 = vadd.f32 %v3459, %v4045
      %v4146 = vadd.f32 %v3460, %v4050
      %v4147 = vadd.f32 %v3461, %v4053
      %v4148 = vadd.f32 %v3462, %v4058
      %v4149 = vadd.f32 %v3463, %v4061
      %v4150 = vadd.f32 %v3464, %v4066
      %v4151 = vadd.f32 %v3465, %v4069
      %v4152 = vadd.f32 %v3466, %v4074
      %v4153 = vadd.f32 %v3467, %v4077
      %v4154 = vadd.f32 %v3468, %v4082
      %v4155 = vadd.f32 %v3469, %v4085
      %v4156 = vadd.f32 %v3470, %v4090
      %v4157 = vadd.f32 %v3471, %v4093
      %v4158 = vadd.f32 %v3472, %v4098
      %v4159 = vadd.f32 %v3473, %v4101
      %v4160 = vadd.f32 %v3474, %v4106
      %v4161 = vadd.f32 %v3475, %v4109
      %v4162 = vadd.f32 %v3476, %v4114
      %v4163 = vadd.f32 %v3477, %v4117
      %v4164 = vadd.f32 %v3478, %v4122
      %v4165 = vadd.f32 %v3479, %v4125
      %v4166 = vadd.f32 %v3480, %v4130
      %v4167 = vadd.f32 %v3481, %v4133
      %v4168 = vld [vmem:[%s3123] sm:$0xe]
      %v4169 = vld [vmem:[%s3123 + $0x14] sm:$0xe]
      %v4170 = vld [vmem:[%s3123 + $0x28] sm:$0xe]
      %v4171 = vld [vmem:[%s3123 + $0x3c] sm:$0xe]
      %v4172 = vld [vmem:[%s3123 + $0x50] sm:$0xe]
      %v4173 = vld [vmem:[%s3123 + $0x64] sm:$0xe]
      %v4174 = vld [vmem:[%s3123 + $0x78] sm:$0xe]
      %v4175 = vld [vmem:[%s3123 + $0x8c] sm:$0xe]
      %v4216 = vrot.slane %v4168, 5
      %v4217 = vrot.slane %v4216, 4
      %v4218 = vrot.slane %v3483, 5
      %v4219 = vsel %vm1227, %v4217, %v4218
      %v4220 = vrot.slane %v4218, 4
      %v4221 = vrot.slane %v3484, 5
      %v4222 = vsel %vm1227, %v4220, %v4221
      %v4223 = vrot.slane %v4221, 4
      %v4224 = vrot.slane %v3485, 5
      %v4225 = vsel %vm1227, %v4223, %v4224
      %v4226 = vrot.slane %v4224, 4
      %v4227 = vrot.slane %v3486, 5
      %v4228 = vsel %vm1227, %v4226, %v4227
      %v4229 = vrot.slane %v4169, 5
      %v4230 = vrot.slane %v4229, 4
      %v4231 = vrot.slane %v3488, 5
      %v4232 = vsel %vm1227, %v4230, %v4231
      %v4233 = vrot.slane %v4231, 4
      %v4234 = vrot.slane %v3489, 5
      %v4235 = vsel %vm1227, %v4233, %v4234
      %v4236 = vrot.slane %v4234, 4
      %v4237 = vrot.slane %v3490, 5
      %v4238 = vsel %vm1227, %v4236, %v4237
      %v4239 = vrot.slane %v4237, 4
      %v4240 = vrot.slane %v3491, 5
      %v4241 = vsel %vm1227, %v4239, %v4240
      %v4242 = vrot.slane %v4170, 5
      %v4243 = vrot.slane %v4242, 4
      %v4244 = vrot.slane %v3493, 5
      %v4245 = vsel %vm1227, %v4243, %v4244
      %v4246 = vrot.slane %v4244, 4
      %v4247 = vrot.slane %v3494, 5
      %v4248 = vsel %vm1227, %v4246, %v4247
      %v4249 = vrot.slane %v4247, 4
      %v4250 = vrot.slane %v3495, 5
      %v4251 = vsel %vm1227, %v4249, %v4250
      %v4252 = vrot.slane %v4250, 4
      %v4253 = vrot.slane %v3496, 5
      %v4254 = vsel %vm1227, %v4252, %v4253
      %v4255 = vrot.slane %v4171, 5
      %v4256 = vrot.slane %v4255, 4
      %v4257 = vrot.slane %v3498, 5
      %v4258 = vsel %vm1227, %v4256, %v4257
      %v4259 = vrot.slane %v4257, 4
      %v4260 = vrot.slane %v3499, 5
      %v4261 = vsel %vm1227, %v4259, %v4260
      %v4262 = vrot.slane %v4260, 4
      %v4263 = vrot.slane %v3500, 5
      %v4264 = vsel %vm1227, %v4262, %v4263
      %v4265 = vrot.slane %v4263, 4
      %v4266 = vrot.slane %v3501, 5
      %v4267 = vsel %vm1227, %v4265, %v4266
      %v4268 = vrot.slane %v4172, 5
      %v4269 = vrot.slane %v4268, 4
      %v4270 = vrot.slane %v3503, 5
      %v4271 = vsel %vm1227, %v4269, %v4270
      %v4272 = vrot.slane %v4270, 4
      %v4273 = vrot.slane %v3504, 5
      %v4274 = vsel %vm1227, %v4272, %v4273
      %v4275 = vrot.slane %v4273, 4
      %v4276 = vrot.slane %v3505, 5
      %v4277 = vsel %vm1227, %v4275, %v4276
      %v4278 = vrot.slane %v4276, 4
      %v4279 = vrot.slane %v3506, 5
      %v4280 = vsel %vm1227, %v4278, %v4279
      %v4281 = vrot.slane %v4173, 5
      %v4282 = vrot.slane %v4281, 4
      %v4283 = vrot.slane %v3508, 5
      %v4284 = vsel %vm1227, %v4282, %v4283
      %v4285 = vrot.slane %v4283, 4
      %v4286 = vrot.slane %v3509, 5
      %v4287 = vsel %vm1227, %v4285, %v4286
      %v4288 = vrot.slane %v4286, 4
      %v4289 = vrot.slane %v3510, 5
      %v4290 = vsel %vm1227, %v4288, %v4289
      %v4291 = vrot.slane %v4289, 4
      %v4292 = vrot.slane %v3511, 5
      %v4293 = vsel %vm1227, %v4291, %v4292
      %v4294 = vrot.slane %v4174, 5
      %v4295 = vrot.slane %v4294, 4
      %v4296 = vrot.slane %v3513, 5
      %v4297 = vsel %vm1227, %v4295, %v4296
      %v4298 = vrot.slane %v4296, 4
      %v4299 = vrot.slane %v3514, 5
      %v4300 = vsel %vm1227, %v4298, %v4299
      %v4301 = vrot.slane %v4299, 4
      %v4302 = vrot.slane %v3515, 5
      %v4303 = vsel %vm1227, %v4301, %v4302
      %v4304 = vrot.slane %v4302, 4
      %v4305 = vrot.slane %v3516, 5
      %v4306 = vsel %vm1227, %v4304, %v4305
      %v4307 = vrot.slane %v4175, 5
      %v4308 = vrot.slane %v4307, 4
      %v4309 = vrot.slane %v3518, 5
      %v4310 = vsel %vm1227, %v4308, %v4309
      %v4311 = vrot.slane %v4309, 4
      %v4312 = vrot.slane %v3519, 5
      %v4313 = vsel %vm1227, %v4311, %v4312
      %v4314 = vrot.slane %v4312, 4
      %v4315 = vrot.slane %v3520, 5
      %v4316 = vsel %vm1227, %v4314, %v4315
      %v4317 = vrot.slane %v4315, 4
      %v4318 = vrot.slane %v3521, 5
      %v4319 = vsel %vm1227, %v4317, %v4318
      %s4320 = scalar_lea.vmem %s1, 32
      %v4321 = vld [vmem:[%s4320] sm:$0xf]
      %v4322 = vunpack.c.l.b16 %v4219
      %v4323 = vunpack.c.l.b16 %v4222
      %v4324 = vunpack.c.l.b16 %v4225
      %v4325 = vunpack.c.l.b16 %v4228
      %v4326 = vunpack.c.l.b16 %v4232
      %v4327 = vunpack.c.l.b16 %v4235
      %v4328 = vunpack.c.l.b16 %v4238
      %v4329 = vunpack.c.l.b16 %v4241
      %v4330 = vunpack.c.l.b16 %v4245
      %v4331 = vunpack.c.l.b16 %v4248
      %v4332 = vunpack.c.l.b16 %v4251
      %v4333 = vunpack.c.l.b16 %v4254
      %v4334 = vunpack.c.l.b16 %v4258
      %v4335 = vunpack.c.l.b16 %v4261
      %v4336 = vunpack.c.l.b16 %v4264
      %v4337 = vunpack.c.l.b16 %v4267
      %v4338 = vunpack.c.l.b16 %v4271
      %v4339 = vunpack.c.l.b16 %v4274
      %v4340 = vunpack.c.l.b16 %v4277
      %v4341 = vunpack.c.l.b16 %v4280
      %v4342 = vunpack.c.l.b16 %v4284
      %v4343 = vunpack.c.l.b16 %v4287
      %v4344 = vunpack.c.l.b16 %v4290
      %v4345 = vunpack.c.l.b16 %v4293
      %v4346 = vunpack.c.l.b16 %v4297
      %v4347 = vunpack.c.l.b16 %v4300
      %v4348 = vunpack.c.l.b16 %v4303
      %v4349 = vunpack.c.l.b16 %v4306
      %v4350 = vunpack.c.l.b16 %v4310
      %v4351 = vunpack.c.l.b16 %v4313
      %v4352 = vunpack.c.l.b16 %v4316
      %v4353 = vunpack.c.l.b16 %v4319
      %v4354 = vpack.c.b16 %v4323, %v4322
      %v4355 = vpack.c.b16 %v4325, %v4324
      %v4356 = vpack.c.b16 %v4327, %v4326
      %v4357 = vpack.c.b16 %v4329, %v4328
      %v4358 = vpack.c.b16 %v4331, %v4330
      %v4359 = vpack.c.b16 %v4333, %v4332
      %v4360 = vpack.c.b16 %v4335, %v4334
      %v4361 = vpack.c.b16 %v4337, %v4336
      %v4362 = vpack.c.b16 %v4339, %v4338
      %v4363 = vpack.c.b16 %v4341, %v4340
      %v4364 = vpack.c.b16 %v4343, %v4342
      %v4365 = vpack.c.b16 %v4345, %v4344
      %v4366 = vpack.c.b16 %v4347, %v4346
      %v4367 = vpack.c.b16 %v4349, %v4348
      %v4368 = vpack.c.b16 %v4351, %v4350
      %v4369 = vpack.c.b16 %v4353, %v4352
      %v4371 = vsel %vm695, %v4354, 0
      %v4374 = vsel %vm695, %v4355, 0
      %v4377 = vsel %vm695, %v4356, 0
      %v4380 = vsel %vm695, %v4357, 0
      %v4383 = vsel %vm695, %v4358, 0
      %v4386 = vsel %vm695, %v4359, 0
      %v4389 = vsel %vm695, %v4360, 0
      %v4392 = vsel %vm695, %v4361, 0
      %v4395 = vsel %vm695, %v4362, 0
      %v4398 = vsel %vm695, %v4363, 0
      %v4401 = vsel %vm695, %v4364, 0
      %v4404 = vsel %vm695, %v4365, 0
      %v4407 = vsel %vm695, %v4366, 0
      %v4410 = vsel %vm695, %v4367, 0
      %v4413 = vsel %vm695, %v4368, 0
      %v4416 = vsel %vm695, %v4369, 0
      %v4419 = vsel %vm744, %v4321, 0
      %4421 = vmatprep.subr.bf16.mxu0 0
      %4422 = vmatpush1.bf16.msra.mxu0 %v4419
      %4423 = vmatprep.subr.bf16.mxu0 0
      %4424 = vmatpush1.bf16.msra.mxu0 0
      %4425 = vmatprep.subr.bf16.mxu0 0
      %4426 = vmatpush1.bf16.msra.mxu0 0
      %4427 = vmatprep.subr.bf16.mxu0 0
      %4428 = vmatpush1.bf16.msra.mxu0 0
      %4429 = vmatprep.subr.bf16.mxu0 0
      %4430 = vmatpush1.bf16.msra.mxu0 0
      %4431 = vmatprep.subr.bf16.mxu0 0
      %4432 = vmatpush1.bf16.msra.mxu0 0
      %4433 = vmatprep.subr.bf16.mxu0 0
      %4434 = vmatpush1.bf16.msra.mxu0 0
      %4435 = vmatprep.subr.bf16.mxu0 0
      %4436 = vmatpush1.bf16.msra.mxu0 0
      %4437 = vmatprep.subr.bf16.mxu0 0
      %4438 = vmatpush1.bf16.msra.mxu0 0
      %4439 = vmatprep.subr.bf16.mxu0 0
      %4440 = vmatpush1.bf16.msra.mxu0 0
      %4441 = vmatprep.subr.bf16.mxu0 0
      %4442 = vmatpush1.bf16.msra.mxu0 0
      %4443 = vmatprep.subr.bf16.mxu0 0
      %4444 = vmatpush1.bf16.msra.mxu0 0
      %4445 = vmatprep.subr.bf16.mxu0 0
      %4446 = vmatpush1.bf16.msra.mxu0 0
      %4447 = vmatprep.subr.bf16.mxu0 0
      %4448 = vmatpush1.bf16.msra.mxu0 0
      %4449 = vmatprep.subr.bf16.mxu0 0
      %4450 = vmatpush1.bf16.msra.mxu0 0
      %4451 = vmatprep.subr.bf16.mxu0 0
      %4452 = vmatpush1.bf16.msra.mxu0 0
      %4453 = vmatprep.mubr.bf16.mxu0 0
      %4454 = vmatmul.mubr.bf16.gmra.mrb[0].mxu0 %v4371
      %v4455 = vpop.f32.mrb[0].mxu0
      %v4456 = vadd.f32 0.0, %v4455
      %v4457 = vpop.f32.mrb[0].mxu0
      %v4458 = vpop.f32.mrb[0].mxu0
      %v4459 = vadd.f32 0.0, %v4458
      %v4460 = vpop.f32.mrb[0].mxu0
      %4461 = vmatprep.mubr.bf16.mxu0 0
      %4462 = vmatmul.mubr.bf16.gmra.mrb[0].mxu0 %v4374
      %v4463 = vpop.f32.mrb[0].mxu0
      %v4464 = vadd.f32 0.0, %v4463
      %v4465 = vpop.f32.mrb[0].mxu0
      %v4466 = vpop.f32.mrb[0].mxu0
      %v4467 = vadd.f32 0.0, %v4466
      %v4468 = vpop.f32.mrb[0].mxu0
      %4469 = vmatprep.mubr.bf16.mxu0 0
      %4470 = vmatmul.mubr.bf16.gmra.mrb[0].mxu0 %v4377
      %v4471 = vpop.f32.mrb[0].mxu0
      %v4472 = vadd.f32 0.0, %v4471
      %v4473 = vpop.f32.mrb[0].mxu0
      %v4474 = vpop.f32.mrb[0].mxu0
      %v4475 = vadd.f32 0.0, %v4474
      %v4476 = vpop.f32.mrb[0].mxu0
      %4477 = vmatprep.mubr.bf16.mxu0 0
      %4478 = vmatmul.mubr.bf16.gmra.mrb[0].mxu0 %v4380
      %v4479 = vpop.f32.mrb[0].mxu0
      %v4480 = vadd.f32 0.0, %v4479
      %v4481 = vpop.f32.mrb[0].mxu0
      %v4482 = vpop.f32.mrb[0].mxu0
      %v4483 = vadd.f32 0.0, %v4482
      %v4484 = vpop.f32.mrb[0].mxu0
      %4485 = vmatprep.mubr.bf16.mxu0 0
      %4486 = vmatmul.mubr.bf16.gmra.mrb[0].mxu0 %v4383
      %v4487 = vpop.f32.mrb[0].mxu0
      %v4488 = vadd.f32 0.0, %v4487
      %v4489 = vpop.f32.mrb[0].mxu0
      %v4490 = vpop.f32.mrb[0].mxu0
      %v4491 = vadd.f32 0.0, %v4490
      %v4492 = vpop.f32.mrb[0].mxu0
      %4493 = vmatprep.mubr.bf16.mxu0 0
      %4494 = vmatmul.mubr.bf16.gmra.mrb[0].mxu0 %v4386
      %v4495 = vpop.f32.mrb[0].mxu0
      %v4496 = vadd.f32 0.0, %v4495
      %v4497 = vpop.f32.mrb[0].mxu0
      %v4498 = vpop.f32.mrb[0].mxu0
      %v4499 = vadd.f32 0.0, %v4498
      %v4500 = vpop.f32.mrb[0].mxu0
      %4501 = vmatprep.mubr.bf16.mxu0 0
      %4502 = vmatmul.mubr.bf16.gmra.mrb[0].mxu0 %v4389
      %v4503 = vpop.f32.mrb[0].mxu0
      %v4504 = vadd.f32 0.0, %v4503
      %v4505 = vpop.f32.mrb[0].mxu0
      %v4506 = vpop.f32.mrb[0].mxu0
      %v4507 = vadd.f32 0.0, %v4506
      %v4508 = vpop.f32.mrb[0].mxu0
      %4509 = vmatprep.mubr.bf16.mxu0 0
      %4510 = vmatmul.mubr.bf16.gmra.mrb[0].mxu0 %v4392
      %v4511 = vpop.f32.mrb[0].mxu0
      %v4512 = vadd.f32 0.0, %v4511
      %v4513 = vpop.f32.mrb[0].mxu0
      %v4514 = vpop.f32.mrb[0].mxu0
      %v4515 = vadd.f32 0.0, %v4514
      %v4516 = vpop.f32.mrb[0].mxu0
      %4517 = vmatprep.mubr.bf16.mxu0 0
      %4518 = vmatmul.mubr.bf16.gmra.mrb[0].mxu0 %v4395
      %v4519 = vpop.f32.mrb[0].mxu0
      %v4520 = vadd.f32 0.0, %v4519
      %v4521 = vpop.f32.mrb[0].mxu0
      %v4522 = vpop.f32.mrb[0].mxu0
      %v4523 = vadd.f32 0.0, %v4522
      %v4524 = vpop.f32.mrb[0].mxu0
      %4525 = vmatprep.mubr.bf16.mxu0 0
      %4526 = vmatmul.mubr.bf16.gmra.mrb[0].mxu0 %v4398
      %v4527 = vpop.f32.mrb[0].mxu0
      %v4528 = vadd.f32 0.0, %v4527
      %v4529 = vpop.f32.mrb[0].mxu0
      %v4530 = vpop.f32.mrb[0].mxu0
      %v4531 = vadd.f32 0.0, %v4530
      %v4532 = vpop.f32.mrb[0].mxu0
      %4533 = vmatprep.mubr.bf16.mxu0 0
      %4534 = vmatmul.mubr.bf16.gmra.mrb[0].mxu0 %v4401
      %v4535 = vpop.f32.mrb[0].mxu0
      %v4536 = vadd.f32 0.0, %v4535
      %v4537 = vpop.f32.mrb[0].mxu0
      %v4538 = vpop.f32.mrb[0].mxu0
      %v4539 = vadd.f32 0.0, %v4538
      %v4540 = vpop.f32.mrb[0].mxu0
      %4541 = vmatprep.mubr.bf16.mxu0 0
      %4542 = vmatmul.mubr.bf16.gmra.mrb[0].mxu0 %v4404
      %v4543 = vpop.f32.mrb[0].mxu0
      %v4544 = vadd.f32 0.0, %v4543
      %v4545 = vpop.f32.mrb[0].mxu0
      %v4546 = vpop.f32.mrb[0].mxu0
      %v4547 = vadd.f32 0.0, %v4546
      %v4548 = vpop.f32.mrb[0].mxu0
      %4549 = vmatprep.mubr.bf16.mxu0 0
      %4550 = vmatmul.mubr.bf16.gmra.mrb[0].mxu0 %v4407
      %v4551 = vpop.f32.mrb[0].mxu0
      %v4552 = vadd.f32 0.0, %v4551
      %v4553 = vpop.f32.mrb[0].mxu0
      %v4554 = vpop.f32.mrb[0].mxu0
      %v4555 = vadd.f32 0.0, %v4554
      %v4556 = vpop.f32.mrb[0].mxu0
      %4557 = vmatprep.mubr.bf16.mxu0 0
      %4558 = vmatmul.mubr.bf16.gmra.mrb[0].mxu0 %v4410
      %v4559 = vpop.f32.mrb[0].mxu0
      %v4560 = vadd.f32 0.0, %v4559
      %v4561 = vpop.f32.mrb[0].mxu0
      %v4562 = vpop.f32.mrb[0].mxu0
      %v4563 = vadd.f32 0.0, %v4562
      %v4564 = vpop.f32.mrb[0].mxu0
      %4565 = vmatprep.mubr.bf16.mxu0 0
      %4566 = vmatmul.mubr.bf16.gmra.mrb[0].mxu0 %v4413
      %v4567 = vpop.f32.mrb[0].mxu0
      %v4568 = vadd.f32 0.0, %v4567
      %v4569 = vpop.f32.mrb[0].mxu0
      %v4570 = vpop.f32.mrb[0].mxu0
      %v4571 = vadd.f32 0.0, %v4570
      %v4572 = vpop.f32.mrb[0].mxu0
      %4573 = vmatprep.mubr.bf16.mxu0 0
      %4574 = vmatmul.mubr.bf16.gmra.mrb[0].mxu0 %v4416
      %v4575 = vpop.f32.mrb[0].mxu0
      %v4576 = vadd.f32 0.0, %v4575
      %v4577 = vpop.f32.mrb[0].mxu0
      %v4578 = vpop.f32.mrb[0].mxu0
      %v4579 = vadd.f32 0.0, %v4578
      %v4580 = vpop.f32.mrb[0].mxu0
      %4581 = vdwg.mxu0
      %v4582 = vadd.f32 %v4136, %v4456
      %v4583 = vadd.f32 %v4137, %v4459
      %v4584 = vadd.f32 %v4138, %v4464
      %v4585 = vadd.f32 %v4139, %v4467
      %v4586 = vadd.f32 %v4140, %v4472
      %v4587 = vadd.f32 %v4141, %v4475
      %v4588 = vadd.f32 %v4142, %v4480
      %v4589 = vadd.f32 %v4143, %v4483
      %v4590 = vadd.f32 %v4144, %v4488
      %v4591 = vadd.f32 %v4145, %v4491
      %v4592 = vadd.f32 %v4146, %v4496
      %v4593 = vadd.f32 %v4147, %v4499
      %v4594 = vadd.f32 %v4148, %v4504
      %v4595 = vadd.f32 %v4149, %v4507
      %v4596 = vadd.f32 %v4150, %v4512
      %v4597 = vadd.f32 %v4151, %v4515
      %v4598 = vadd.f32 %v4152, %v4520
      %v4599 = vadd.f32 %v4153, %v4523
      %v4600 = vadd.f32 %v4154, %v4528
      %v4601 = vadd.f32 %v4155, %v4531
      %v4602 = vadd.f32 %v4156, %v4536
      %v4603 = vadd.f32 %v4157, %v4539
      %v4604 = vadd.f32 %v4158, %v4544
      %v4605 = vadd.f32 %v4159, %v4547
      %v4606 = vadd.f32 %v4160, %v4552
      %v4607 = vadd.f32 %v4161, %v4555
      %v4608 = vadd.f32 %v4162, %v4560
      %v4609 = vadd.f32 %v4163, %v4563
      %v4610 = vadd.f32 %v4164, %v4568
      %v4611 = vadd.f32 %v4165, %v4571
      %v4612 = vadd.f32 %v4166, %v4576
      %v4613 = vadd.f32 %v4167, %v4579
      %v4614 = vld [vmem:[%s2] sm:$0x1]
      %v4616 = vlaneseq
      %v4617 = vshrl.u32 %v4616, 7
      %v4618 = vsub.s32 0, %v4617
      %v4619 = vrot.slane %v4614, %v4618
      %v4621 = vadd.f32 %v4582, %v4619
      %v4622 = vadd.f32 %v4583, %v4619
      %v4623 = vadd.f32 %v4584, %v4619
      %v4624 = vadd.f32 %v4585, %v4619
      %v4625 = vadd.f32 %v4586, %v4619
      %v4626 = vadd.f32 %v4587, %v4619
      %v4627 = vadd.f32 %v4588, %v4619
      %v4628 = vadd.f32 %v4589, %v4619
      %v4629 = vadd.f32 %v4590, %v4619
      %v4630 = vadd.f32 %v4591, %v4619
      %v4631 = vadd.f32 %v4592, %v4619
      %v4632 = vadd.f32 %v4593, %v4619
      %v4633 = vadd.f32 %v4594, %v4619
      %v4634 = vadd.f32 %v4595, %v4619
      %v4635 = vadd.f32 %v4596, %v4619
      %v4636 = vadd.f32 %v4597, %v4619
      %v4637 = vadd.f32 %v4598, %v4619
      %v4638 = vadd.f32 %v4599, %v4619
      %v4639 = vadd.f32 %v4600, %v4619
      %v4640 = vadd.f32 %v4601, %v4619
      %v4641 = vadd.f32 %v4602, %v4619
      %v4642 = vadd.f32 %v4603, %v4619
      %v4643 = vadd.f32 %v4604, %v4619
      %v4644 = vadd.f32 %v4605, %v4619
      %v4645 = vadd.f32 %v4606, %v4619
      %v4646 = vadd.f32 %v4607, %v4619
      %v4647 = vadd.f32 %v4608, %v4619
      %v4648 = vadd.f32 %v4609, %v4619
      %v4649 = vadd.f32 %v4610, %v4619
      %v4650 = vadd.f32 %v4611, %v4619
      %v4651 = vadd.f32 %v4612, %v4619
      %v4652 = vadd.f32 %v4613, %v4619
      %4653 = vst [vmem:[%s234] sm:$0xff] %v4621
      %4654 = vst [vmem:[%s234 + $0x8] sm:$0xff] %v4622
      %4655 = vst [vmem:[%s234 + $0x10] sm:$0xff] %v4623
      %4656 = vst [vmem:[%s234 + $0x18] sm:$0xff] %v4624
      %4657 = vst [vmem:[%s234 + $0x20] sm:$0xff] %v4625
      %4658 = vst [vmem:[%s234 + $0x28] sm:$0xff] %v4626
      %4659 = vst [vmem:[%s234 + $0x30] sm:$0xff] %v4627
      %4660 = vst [vmem:[%s234 + $0x38] sm:$0xff] %v4628
      %4661 = vst [vmem:[%s234 + $0x40] sm:$0xff] %v4629
      %4662 = vst [vmem:[%s234 + $0x48] sm:$0xff] %v4630
      %4663 = vst [vmem:[%s234 + $0x50] sm:$0xff] %v4631
      %4664 = vst [vmem:[%s234 + $0x58] sm:$0xff] %v4632
      %4665 = vst [vmem:[%s234 + $0x60] sm:$0xff] %v4633
      %4666 = vst [vmem:[%s234 + $0x68] sm:$0xff] %v4634
      %4667 = vst [vmem:[%s234 + $0x70] sm:$0xff] %v4635
      %4668 = vst [vmem:[%s234 + $0x78] sm:$0xff] %v4636
      %4669 = vst [vmem:[%s234 + $0x80] sm:$0xff] %v4637
      %4670 = vst [vmem:[%s234 + $0x88] sm:$0xff] %v4638
      %4671 = vst [vmem:[%s234 + $0x90] sm:$0xff] %v4639
      %4672 = vst [vmem:[%s234 + $0x98] sm:$0xff] %v4640
      %4673 = vst [vmem:[%s234 + $0xa0] sm:$0xff] %v4641
      %4674 = vst [vmem:[%s234 + $0xa8] sm:$0xff] %v4642
      %4675 = vst [vmem:[%s234 + $0xb0] sm:$0xff] %v4643
      %4676 = vst [vmem:[%s234 + $0xb8] sm:$0xff] %v4644
      %4677 = vst [vmem:[%s234 + $0xc0] sm:$0xff] %v4645
      %4678 = vst [vmem:[%s234 + $0xc8] sm:$0xff] %v4646
      %4679 = vst [vmem:[%s234 + $0xd0] sm:$0xff] %v4647
      %4680 = vst [vmem:[%s234 + $0xd8] sm:$0xff] %v4648
      %4681 = vst [vmem:[%s234 + $0xe0] sm:$0xff] %v4649
      %4682 = vst [vmem:[%s234 + $0xe8] sm:$0xff] %v4650
      %4683 = vst [vmem:[%s234 + $0xf0] sm:$0xff] %v4651
      %4684 = vst [vmem:[%s234 + $0xf8] sm:$0xff] %v4652
      %v4685 = vadd.f32 %v4621, %v4622
      %v4686 = vadd.f32 %v4685, %v4623
      %v4687 = vadd.f32 %v4686, %v4624
      %v4688 = vadd.f32 %v4687, %v4625
      %v4689 = vadd.f32 %v4688, %v4626
      %v4690 = vadd.f32 %v4689, %v4627
      %v4691 = vadd.f32 %v4690, %v4628
      %v4692 = vadd.f32 %v4691, %v4629
      %v4693 = vadd.f32 %v4692, %v4630
      %v4694 = vadd.f32 %v4693, %v4631
      %v4695 = vadd.f32 %v4694, %v4632
      %v4696 = vadd.f32 %v4695, %v4633
      %v4697 = vadd.f32 %v4696, %v4634
      %v4698 = vadd.f32 %v4697, %v4635
      %v4699 = vadd.f32 %v4698, %v4636
      %v4700 = vadd.f32 %v4699, %v4637
      %v4701 = vadd.f32 %v4700, %v4638
      %v4702 = vadd.f32 %v4701, %v4639
      %v4703 = vadd.f32 %v4702, %v4640
      %v4704 = vadd.f32 %v4703, %v4641
      %v4705 = vadd.f32 %v4704, %v4642
      %v4706 = vadd.f32 %v4705, %v4643
      %v4707 = vadd.f32 %v4706, %v4644
      %v4708 = vadd.f32 %v4707, %v4645
      %v4709 = vadd.f32 %v4708, %v4646
      %v4710 = vadd.f32 %v4709, %v4647
      %v4711 = vadd.f32 %v4710, %v4648
      %v4712 = vadd.f32 %v4711, %v4649
      %v4713 = vadd.f32 %v4712, %v4650
      %v4714 = vadd.f32 %v4713, %v4651
      %v4715 = vadd.f32 %v4714, %v4652
      %v4716 = vrot.slane %v4715, 4
      %v4717 = vadd.f32 %v4715, %v4716
      %v4718 = vrot.slane %v4717, 2
      %v4719 = vadd.f32 %v4717, %v4718
      %v4720 = vrot.slane %v4719, 1
      %v4721 = vadd.f32 %v4719, %v4720
      %v4722 = vmul.f32 %v4621, %v4621
      %v4723 = vmul.f32 %v4622, %v4622
      %v4724 = vmul.f32 %v4623, %v4623
      %v4725 = vmul.f32 %v4624, %v4624
      %v4726 = vmul.f32 %v4625, %v4625
      %v4727 = vmul.f32 %v4626, %v4626
      %v4728 = vmul.f32 %v4627, %v4627
      %v4729 = vmul.f32 %v4628, %v4628
      %v4730 = vmul.f32 %v4629, %v4629
      %v4731 = vmul.f32 %v4630, %v4630
      %v4732 = vmul.f32 %v4631, %v4631
      %v4733 = vmul.f32 %v4632, %v4632
      %v4734 = vmul.f32 %v4633, %v4633
      %v4735 = vmul.f32 %v4634, %v4634
      %v4736 = vmul.f32 %v4635, %v4635
      %v4737 = vmul.f32 %v4636, %v4636
      %v4738 = vmul.f32 %v4637, %v4637
      %v4739 = vmul.f32 %v4638, %v4638
      %v4740 = vmul.f32 %v4639, %v4639
      %v4741 = vmul.f32 %v4640, %v4640
      %v4742 = vmul.f32 %v4641, %v4641
      %v4743 = vmul.f32 %v4642, %v4642
      %v4744 = vmul.f32 %v4643, %v4643
      %v4745 = vmul.f32 %v4644, %v4644
      %v4746 = vmul.f32 %v4645, %v4645
      %v4747 = vmul.f32 %v4646, %v4646
      %v4748 = vmul.f32 %v4647, %v4647
      %v4749 = vmul.f32 %v4648, %v4648
      %v4750 = vmul.f32 %v4649, %v4649
      %v4751 = vmul.f32 %v4650, %v4650
      %v4752 = vmul.f32 %v4651, %v4651
      %v4753 = vmul.f32 %v4652, %v4652
      %v4754 = vadd.f32 %v4722, %v4723
      %v4755 = vadd.f32 %v4754, %v4724
      %v4756 = vadd.f32 %v4755, %v4725
      %v4757 = vadd.f32 %v4756, %v4726
      %v4758 = vadd.f32 %v4757, %v4727
      %v4759 = vadd.f32 %v4758, %v4728
      %v4760 = vadd.f32 %v4759, %v4729
      %v4761 = vadd.f32 %v4760, %v4730
      %v4762 = vadd.f32 %v4761, %v4731
      %v4763 = vadd.f32 %v4762, %v4732
      %v4764 = vadd.f32 %v4763, %v4733
      %v4765 = vadd.f32 %v4764, %v4734
      %v4766 = vadd.f32 %v4765, %v4735
      %v4767 = vadd.f32 %v4766, %v4736
      %v4768 = vadd.f32 %v4767, %v4737
      %v4769 = vadd.f32 %v4768, %v4738
      %v4770 = vadd.f32 %v4769, %v4739
      %v4771 = vadd.f32 %v4770, %v4740
      %v4772 = vadd.f32 %v4771, %v4741
      %v4773 = vadd.f32 %v4772, %v4742
      %v4774 = vadd.f32 %v4773, %v4743
      %v4775 = vadd.f32 %v4774, %v4744
      %v4776 = vadd.f32 %v4775, %v4745
      %v4777 = vadd.f32 %v4776, %v4746
      %v4778 = vadd.f32 %v4777, %v4747
      %v4779 = vadd.f32 %v4778, %v4748
      %v4780 = vadd.f32 %v4779, %v4749
      %v4781 = vadd.f32 %v4780, %v4750
      %v4782 = vadd.f32 %v4781, %v4751
      %v4783 = vadd.f32 %v4782, %v4752
      %v4784 = vadd.f32 %v4783, %v4753
      %v4785 = vrot.slane %v4784, 4
      %v4786 = vadd.f32 %v4784, %v4785
      %v4787 = vrot.slane %v4786, 2
      %v4788 = vadd.f32 %v4786, %v4787
      %v4789 = vrot.slane %v4788, 1
      %v4790 = vadd.f32 %v4788, %v4789
      %vm4791 = vcmask 1040384
      %v4792 = vsel %vm4791, %v4721, %v4790
      %4793 = vst [vmem:[%s243] sm:$0x3] %v4792
      %s4794 = smul.u32 8, %s21
      %p4795 = scmp.lt.s32.totalorder %s20, 1
      %s4796 = scalar_select %p4795, %s20, 1
      %p4797 = scmp.lt.s32.totalorder %s4794, 31
      %s4798 = scalar_select %p4797, %s4794, 31
      %s4799 = smul.addr %s4798, 4
      %s4800 = smul.addr %s4796, 128
      %s4801 = sadd.s32 %s4799, %s4800
      %s4802 = smul.addr %s4801, 8
      %s4803 = scalar_lea.vmem %s3, %s4802
      %p4804 = scmp.lt.s32.totalorder %s20, 1
      %s4805 = scalar_select %p4804, %s20, 1
      %p4806 = scmp.lt.s32.totalorder %s21, 3
      %s4807 = scalar_select %p4806, %s21, 3
      %s4808 = smul.addr %s4805, 4
      %s4809 = sadd.s32 %s4807, %s4808
      %s4810 = smul.addr %s4809, 2
      %s4811 = scalar_lea.vmem %s4, %s4810
      // Predicated region
      $region33: #{decoder_block_forward.6} parent=31 // pred_check
        %p4812 = pneg %p116
      $region34: #{decoder_block_forward.6} parent=31 // pred_check_branch
        %4814 = sbr.rel (%p4812) target = $region36
      $region35: #{decoder_block_forward.6} parent=31 // pred_region
        %s4815 = smul.u32 8, %s21
      $region36: #{decoder_block_forward.6} parent=31 // pred_fallthru
        _
      // Predicated region
      $region37: #{decoder_block_forward.6} parent=31 // pred_check
        %p4816 = pneg %p144
      $region38: #{decoder_block_forward.6} parent=31 // pred_check_branch
        %4818 = sbr.rel (%p4816) target = $region40
      $region39: #{decoder_block_forward.6} parent=31 // pred_region
        _
      $region40: #{decoder_block_forward.6} parent=31 // pred_fallthru
        _
    $region32: #{decoder_block_forward.6} parent=5 // pred_fallthru
      _
    %p4819 = scmp.le.s32.totalorder 2, %s11
    // Predicated region
    $region41: #{decoder_block_forward.6} parent=5 // pred_check
      %p4820 = pneg %p4819
    $region42: #{decoder_block_forward.6} parent=5 // pred_check_branch
      %4822 = sbr.rel (%p4820) target = $region44
    $region43: #{decoder_block_forward.6} parent=5 // pred_region
      %s4823 = ssub.s32 %s11, 2
      // Predicated region
      $region45: #{decoder_block_forward.6} parent=43 // pred_check
        %p4824 = pneg %p122
      $region46: #{decoder_block_forward.6} parent=43 // pred_check_branch
        %4826 = sbr.rel (%p4824) target = $region48
      $region47: #{decoder_block_forward.6} parent=43 // pred_region
        %s4827 = smul.u32 8, %s23
        %p4828 = scmp.lt.s32.totalorder %s22, 1
        %s4829 = scalar_select %p4828, %s22, 1
        %p4830 = scmp.lt.s32.totalorder %s4827, 31
        %s4831 = scalar_select %p4830, %s4827, 31
        %s4832 = smul.addr %s4831, 4
        %s4833 = smul.addr %s4829, 128
        %s4834 = sadd.s32 %s4832, %s4833
        %s4835 = smul.addr %s4834, 8
        %s4836 = scalar_lea.vmem %s3, %s4835
      $region48: #{decoder_block_forward.6} parent=43 // pred_fallthru
        _
      // Predicated region
      $region49: #{decoder_block_forward.6} parent=43 // pred_check
        %p4837 = pneg %p150
      $region50: #{decoder_block_forward.6} parent=43 // pred_check_branch
        %4839 = sbr.rel (%p4837) target = $region52
      $region51: #{decoder_block_forward.6} parent=43 // pred_region
        %p4840 = scmp.lt.s32.totalorder %s22, 1
        %s4841 = scalar_select %p4840, %s22, 1
        %p4842 = scmp.lt.s32.totalorder %s23, 3
        %s4843 = scalar_select %p4842, %s23, 3
        %s4844 = smul.addr %s4841, 4
        %s4845 = sadd.s32 %s4843, %s4844
        %s4846 = smul.addr %s4845, 2
        %s4847 = scalar_lea.vmem %s4, %s4846
      $region52: #{decoder_block_forward.6} parent=43 // pred_fallthru
        _
    $region44: #{decoder_block_forward.6} parent=5 // pred_fallthru
      _
  $region6: #{decoder_block_forward.6} parent=0 // loop_footer
    %s15 = sadd.s32 1, %s11
  $region7: #{decoder_block_forward.6} parent=0 // loop_footer_branch
    %10 = sbr.rel target = $region3
  $region8: #{decoder_block_forward.6} parent=0 // loop_exit
    _

// kernel: decoder_block_forward.9
$region0: #{decoder_block_forward.9}
  #allocation0 [shape = 'u32[]', space=smem, size = 0x4, offset = 0x4, fixed_abs, tag = 'smem constant byte address 0x4 - core index']
  #allocation1 [shape = 'u32[144,128]{1,0:T(1,128)}', space=vmem, size = 0x12000, scoped, tag = 'internal scratch']
  %s0 = inlined_call_operand.vmem [shape: f32[2,32,32,128], index: 0, kind: input, shape index: {}]
  %s1 = inlined_call_operand.vmem [shape: f32[1,128], index: 1, kind: input, shape index: {}]
  %s2 = inlined_call_operand.vmem [shape: f32[1,128], index: 2, kind: input, shape index: {}]
  %s3 = inlined_call_operand.vmem [shape: f32[2,1,128], index: 3, kind: input, shape index: {}]
  %s4 = inlined_call_operand.vmem [shape: f32[2,32,32,128], index: 4, kind: output, shape index: {}]
  %s5 = sld [smem:[#allocation0]]
  $region49: #{decoder_block_forward.9} parent=0
    _
  %s7 = ssub.s32 1, %s5
  %s8 = scalar_select 0, %s7, %s5
  loop: start=0, step=1, limit=10
  $region2: #{decoder_block_forward.9} parent=0 // loop_pre_header
    _
  $region3: #{decoder_block_forward.9} parent=0 // loop_header
    %s10 = sphi 0, %s14
    %p11 = scmp.ge.s32.totalorder %s10, 10
    %s17 = sphi 0, %s29
    %s18 = sphi 0, %s25
    %s19 = sphi 0, %s17
    %s20 = sphi 0, %s18
    %s21 = sphi 0, %s19
    %s22 = sphi 0, %s20
    %s34 = sphi 0, %s36
    %s37 = sphi 0, %s34
    %s38 = sphi 0, %s37
    %s54 = sphi 0, %s38
    %s58 = sphi 0, %s58
    %s60 = sphi 0, %s58
    %s61 = sphi 0, %s60
    %s75 = sphi 0, %s61
    %s79 = sphi 0, %s79
    %s81 = sphi 0, %s79
    %s82 = sphi 0, %s81
    %s96 = sphi 0, %s82
    %s102 = sphi 0, %s104
    %s105 = sphi 0, %s102
    %s106 = sphi 0, %s105
    %s122 = sphi 0, %s106
    %s130 = sphi 0, %s132
    %s133 = sphi 0, %s130
    %s134 = sphi 0, %s133
    %s150 = sphi 0, %s134
  $region4: #{decoder_block_forward.9} parent=0 // loop_header_branch
    %13 = sbr.rel (%p11) target = $region8
  $region5: #{decoder_block_forward.9} parent=0 // loop_body
    %s15 = ssub.s32 %s10, 1
    %s16 = ssub.s32 %s10, 2
    %s23 = sadd.s32 1, %s18
    %p24 = scmp.ge.s32.totalorder %s23, 4
    %s25 = scalar_select %p24, 0, %s23
    %s26 = sadd.s32 1, %s17
    %s27 = scalar_select %p24, %s26, %s17
    %p28 = scmp.ge.s32.totalorder %s27, 2
    %s29 = scalar_select %p28, 0, %s27
    %s30 = ssub.s32 %s17, %s29
    %s31 = ssub.s32 %s18, %s25
    %s32 = sor.u32 %s30, %s31
    %p33 = scmp.eq.s32.totalorder %s32, 0
    %s35 = sadd.s32 %s34, 1
    %s36 = scalar_select %p33, %s34, %s35
    %p39 = pneg %p33
    %p40 = scmp.eq.s32.totalorder %s10, 7
    %p41 = por %p39, %p40
    %p42 = scmp.ne.s32.totalorder %s34, %s37
    %p43 = scmp.eq.s32.totalorder %s10, 0
    %p44 = por %p42, %p43
    %p45 = scmp.ne.s32.totalorder %s34, %s37
    %p46 = scmp.eq.s32.totalorder %s15, 7
    %p47 = por %p45, %p46
    %p48 = scmp.ne.s32.totalorder %s37, %s38
    %p49 = scmp.eq.s32.totalorder %s15, 0
    %p50 = por %p48, %p49
    %p51 = scmp.ne.s32.totalorder %s37, %s38
    %p52 = scmp.eq.s32.totalorder %s16, 7
    %p53 = por %p51, %p52
    %p55 = scmp.ne.s32.totalorder %s38, %s54
    %p56 = scmp.eq.s32.totalorder %s16, 0
    %p57 = por %p55, %p56
    %s59 = sadd.s32 %s58, 1
    %p62 = scmp.eq.s32.totalorder %s10, 7
    %p63 = scmp.ne.s32.totalorder %s58, %s60
    %p64 = scmp.eq.s32.totalorder %s10, 0
    %p65 = por %p63, %p64
    %p66 = scmp.ne.s32.totalorder %s58, %s60
    %p67 = scmp.eq.s32.totalorder %s15, 7
    %p68 = por %p66, %p67
    %p69 = scmp.ne.s32.totalorder %s60, %s61
    %p70 = scmp.eq.s32.totalorder %s15, 0
    %p71 = por %p69, %p70
    %p72 = scmp.ne.s32.totalorder %s60, %s61
    %p73 = scmp.eq.s32.totalorder %s16, 7
    %p74 = por %p72, %p73
    %p76 = scmp.ne.s32.totalorder %s61, %s75
    %p77 = scmp.eq.s32.totalorder %s16, 0
    %p78 = por %p76, %p77
    %s80 = sadd.s32 %s79, 1
    %p83 = scmp.eq.s32.totalorder %s10, 7
    %p84 = scmp.ne.s32.totalorder %s79, %s81
    %p85 = scmp.eq.s32.totalorder %s10, 0
    %p86 = por %p84, %p85
    %p87 = scmp.ne.s32.totalorder %s79, %s81
    %p88 = scmp.eq.s32.totalorder %s15, 7
    %p89 = por %p87, %p88
    %p90 = scmp.ne.s32.totalorder %s81, %s82
    %p91 = scmp.eq.s32.totalorder %s15, 0
    %p92 = por %p90, %p91
    %p93 = scmp.ne.s32.totalorder %s81, %s82
    %p94 = scmp.eq.s32.totalorder %s16, 7
    %p95 = por %p93, %p94
    %p97 = scmp.ne.s32.totalorder %s82, %s96
    %p98 = scmp.eq.s32.totalorder %s16, 0
    %p99 = por %p97, %p98
    %s100 = ssub.s32 %s17, %s29
    %p101 = scmp.eq.s32.totalorder %s100, 0
    %s103 = sadd.s32 %s102, 1
    %s104 = scalar_select %p101, %s102, %s103
    %p107 = pneg %p101
    %p108 = scmp.eq.s32.totalorder %s10, 7
    %p109 = por %p107, %p108
    %p110 = scmp.ne.s32.totalorder %s102, %s105
    %p111 = scmp.eq.s32.totalorder %s10, 0
    %p112 = por %p110, %p111
    %p113 = scmp.ne.s32.totalorder %s102, %s105
    %p114 = scmp.eq.s32.totalorder %s15, 7
    %p115 = por %p113, %p114
    %p116 = scmp.ne.s32.totalorder %s105, %s106
    %p117 = scmp.eq.s32.totalorder %s15, 0
    %p118 = por %p116, %p117
    %p119 = scmp.ne.s32.totalorder %s105, %s106
    %p120 = scmp.eq.s32.totalorder %s16, 7
    %p121 = por %p119, %p120
    %p123 = scmp.ne.s32.totalorder %s106, %s122
    %p124 = scmp.eq.s32.totalorder %s16, 0
    %p125 = por %p123, %p124
    %s126 = ssub.s32 %s17, %s29
    %s127 = ssub.s32 %s18, %s25
    %s128 = sor.u32 %s126, %s127
    %p129 = scmp.eq.s32.totalorder %s128, 0
    %s131 = sadd.s32 %s130, 1
    %s132 = scalar_select %p129, %s130, %s131
    %p135 = pneg %p129
    %p136 = scmp.eq.s32.totalorder %s10, 7
    %p137 = por %p135, %p136
    %p138 = scmp.ne.s32.totalorder %s130, %s133
    %p139 = scmp.eq.s32.totalorder %s10, 0
    %p140 = por %p138, %p139
    %p141 = scmp.ne.s32.totalorder %s130, %s133
    %p142 = scmp.eq.s32.totalorder %s15, 7
    %p143 = por %p141, %p142
    %p144 = scmp.ne.s32.totalorder %s133, %s134
    %p145 = scmp.eq.s32.totalorder %s15, 0
    %p146 = por %p144, %p145
    %p147 = scmp.ne.s32.totalorder %s133, %s134
    %p148 = scmp.eq.s32.totalorder %s16, 7
    %p149 = por %p147, %p148
    %p151 = scmp.ne.s32.totalorder %s134, %s150
    %p152 = scmp.eq.s32.totalorder %s16, 0
    %p153 = por %p151, %p152
    %p154 = scmp.le.s32.totalorder 1, %s10
    %p155 = scmp.lt.s32.totalorder %s10, 9
    %p156 = pnand %p154, %p155
    %p157 = pneg %p156
    // Predicated region
    $region9: #{decoder_block_forward.9} parent=5 // pred_check
      _
    $region10: #{decoder_block_forward.9} parent=5 // pred_check_branch
      %159 = sbr.rel (%p156) target = $region12
    $region11: #{decoder_block_forward.9} parent=5 // pred_region
      %s160 = ssub.s32 %s10, 1
      // Predicated region
      $region13: #{decoder_block_forward.9} parent=11 // pred_check
        %p161 = pneg %p71
      $region14: #{decoder_block_forward.9} parent=11 // pred_check_branch
        %163 = sbr.rel (%p161) target = $region16
      $region15: #{decoder_block_forward.9} parent=11 // pred_region
        _
      $region16: #{decoder_block_forward.9} parent=11 // pred_fallthru
        _
      // Predicated region
      $region17: #{decoder_block_forward.9} parent=11 // pred_check
        %p164 = pneg %p92
      $region18: #{decoder_block_forward.9} parent=11 // pred_check_branch
        %166 = sbr.rel (%p164) target = $region20
      $region19: #{decoder_block_forward.9} parent=11 // pred_region
        _
      $region20: #{decoder_block_forward.9} parent=11 // pred_fallthru
        _
    $region12: #{decoder_block_forward.9} parent=5 // pred_fallthru
      _
    %p167 = scmp.lt.s32.totalorder %s10, 8
    // Predicated region
    $region21: #{decoder_block_forward.9} parent=5 // pred_check
      %p168 = pneg %p167
    $region22: #{decoder_block_forward.9} parent=5 // pred_check_branch
      %170 = sbr.rel (%p168) target = $region24
    $region23: #{decoder_block_forward.9} parent=5 // pred_region
      // Predicated region
      $region25: #{decoder_block_forward.9} parent=23 // pred_check
        %p171 = pneg %p44
      $region26: #{decoder_block_forward.9} parent=23 // pred_check_branch
        %173 = sbr.rel (%p171) target = $region28
      $region27: #{decoder_block_forward.9} parent=23 // pred_region
        %s174 = smul.u32 8, %s18
        %p175 = scmp.lt.s32.totalorder %s17, 1
        %s176 = scalar_select %p175, %s17, 1
        %p177 = scmp.lt.s32.totalorder %s174, 31
        %s178 = scalar_select %p177, %s174, 31
        %s179 = smul.addr %s178, 4
        %s180 = smul.addr %s176, 128
        %s181 = sadd.s32 %s179, %s180
        %s182 = smul.addr %s181, 8
        %s183 = scalar_lea.vmem %s0, %s182
        %s184 = smul.u32 8, %s18
      $region28: #{decoder_block_forward.9} parent=23 // pred_fallthru
        _
      // Predicated region
      $region29: #{decoder_block_forward.9} parent=23 // pred_check
        %p185 = pneg %p112
      $region30: #{decoder_block_forward.9} parent=23 // pred_check_branch
        %187 = sbr.rel (%p185) target = $region32
      $region31: #{decoder_block_forward.9} parent=23 // pred_region
        %p188 = scmp.lt.s32.totalorder %s17, 1
        %s189 = scalar_select %p188, %s17, 1
        %s190 = scalar_lea.vmem %s3, %s189
      $region32: #{decoder_block_forward.9} parent=23 // pred_fallthru
        _
    $region24: #{decoder_block_forward.9} parent=5 // pred_fallthru
      _
    %p191 = scmp.le.s32.totalorder 1, %s10
    %p192 = scmp.lt.s32.totalorder %s10, 9
    %p193 = pnand %p191, %p192
    %p194 = pneg %p193
    // Predicated region
    $region33: #{decoder_block_forward.9} parent=5 // pred_check
      _
    $region34: #{decoder_block_forward.9} parent=5 // pred_check_branch
      %196 = sbr.rel (%p193) target = $region36
    $region35: #{decoder_block_forward.9} parent=5 // pred_region
      %s197 = ssub.s32 %s10, 1
      %s198 = smul.u32 8, %s20
      %p199 = scmp.lt.s32.totalorder %s19, 1
      %s200 = scalar_select %p199, %s19, 1
      %p201 = scmp.lt.s32.totalorder %s198, 31
      %s202 = scalar_select %p201, %s198, 31
      %s203 = smul.addr %s202, 4
      %s204 = smul.addr %s200, 128
      %s205 = sadd.s32 %s203, %s204
      %s206 = smul.addr %s205, 8
      %s207 = scalar_lea.vmem %s0, %s206
      %p208 = pneg %p50
      %p209 = pneg %p47
      %p210 = pneg %p71
      %p211 = pneg %p68
      %p212 = pneg %p92
      %p213 = pneg %p89
      %p214 = scmp.lt.s32.totalorder %s19, 1
      %s215 = scalar_select %p214, %s19, 1
      %s216 = scalar_lea.vmem %s3, %s215
      %p217 = pneg %p118
      %p218 = pneg %p115
      %p219 = pneg %p146
      %p220 = pneg %p143
      %s221 = smul.u32 8, %s20
      %p222 = scmp.lt.s32.totalorder %s19, 1
      %s223 = scalar_select %p222, %s19, 1
      %p224 = scmp.lt.s32.totalorder %s221, 31
      %s225 = scalar_select %p224, %s221, 31
      %s226 = smul.addr %s225, 4
      %s227 = smul.addr %s223, 128
      %s228 = sadd.s32 %s226, %s227
      %s229 = smul.addr %s228, 8
      %s230 = scalar_lea.vmem %s4, %s229
      %s231 = smul.u32 8, %s20
      %p232 = scmp.lt.s32.totalorder %s19, 1
      %s233 = scalar_select %p232, %s19, 1
      %p234 = scmp.lt.s32.totalorder %s231, 31
      %s235 = scalar_select %p234, %s231, 31
      %s236 = smul.addr %s235, 4
      %s237 = smul.addr %s233, 128
      %s238 = sadd.s32 %s236, %s237
      %s239 = smul.addr %s238, 8
      %s240 = scalar_lea.vmem %s0, %s239
      %s241 = smul.u32 8, %s20
      %p242 = scmp.lt.s32.totalorder %s19, 1
      %s243 = scalar_select %p242, %s19, 1
      %s244 = scalar_lea.vmem %s3, %s243
      %s245 = smul.u32 8, %s20
      %p246 = scmp.lt.s32.totalorder %s19, 1
      %s247 = scalar_select %p246, %s19, 1
      %p248 = scmp.lt.s32.totalorder %s245, 31
      %s249 = scalar_select %p248, %s245, 31
      %s250 = smul.addr %s249, 4
      %s251 = smul.addr %s247, 128
      %s252 = sadd.s32 %s250, %s251
      %s253 = smul.addr %s252, 8
      %s254 = scalar_lea.vmem %s4, %s253
      %s255 = smul.u32 8, %s20
      %v256 = vld [vmem:[%s240] sm:$0xff]
      %v257 = vld [vmem:[%s240 + $0x8] sm:$0xff]
      %v258 = vld [vmem:[%s240 + $0x10] sm:$0xff]
      %v259 = vld [vmem:[%s240 + $0x18] sm:$0xff]
      %v260 = vld [vmem:[%s240 + $0x20] sm:$0xff]
      %v261 = vld [vmem:[%s240 + $0x28] sm:$0xff]
      %v262 = vld [vmem:[%s240 + $0x30] sm:$0xff]
      %v263 = vld [vmem:[%s240 + $0x38] sm:$0xff]
      %v264 = vld [vmem:[%s240 + $0x40] sm:$0xff]
      %v265 = vld [vmem:[%s240 + $0x48] sm:$0xff]
      %v266 = vld [vmem:[%s240 + $0x50] sm:$0xff]
      %v267 = vld [vmem:[%s240 + $0x58] sm:$0xff]
      %v268 = vld [vmem:[%s240 + $0x60] sm:$0xff]
      %v269 = vld [vmem:[%s240 + $0x68] sm:$0xff]
      %v270 = vld [vmem:[%s240 + $0x70] sm:$0xff]
      %v271 = vld [vmem:[%s240 + $0x78] sm:$0xff]
      %v272 = vld [vmem:[%s240 + $0x80] sm:$0xff]
      %v273 = vld [vmem:[%s240 + $0x88] sm:$0xff]
      %v274 = vld [vmem:[%s240 + $0x90] sm:$0xff]
      %v275 = vld [vmem:[%s240 + $0x98] sm:$0xff]
      %v276 = vld [vmem:[%s240 + $0xa0] sm:$0xff]
      %v277 = vld [vmem:[%s240 + $0xa8] sm:$0xff]
      %v278 = vld [vmem:[%s240 + $0xb0] sm:$0xff]
      %v279 = vld [vmem:[%s240 + $0xb8] sm:$0xff]
      %v280 = vld [vmem:[%s240 + $0xc0] sm:$0xff]
      %v281 = vld [vmem:[%s240 + $0xc8] sm:$0xff]
      %v282 = vld [vmem:[%s240 + $0xd0] sm:$0xff]
      %v283 = vld [vmem:[%s240 + $0xd8] sm:$0xff]
      %v284 = vld [vmem:[%s240 + $0xe0] sm:$0xff]
      %v285 = vld [vmem:[%s240 + $0xe8] sm:$0xff]
      %v286 = vld [vmem:[%s240 + $0xf0] sm:$0xff]
      %v287 = vld [vmem:[%s240 + $0xf8] sm:$0xff]
      %v288 = vld [vmem:[%s1] sm:$0x1]
      %v290 = vlaneseq
      %v291 = vshrl.u32 %v290, 7
      %v292 = vsub.s32 0, %v291
      %v293 = vrot.slane %v288, %v292
      %v295 = vmul.f32 %v256, %v293
      %v296 = vmul.f32 %v257, %v293
      %v297 = vmul.f32 %v258, %v293
      %v298 = vmul.f32 %v259, %v293
      %v299 = vmul.f32 %v260, %v293
      %v300 = vmul.f32 %v261, %v293
      %v301 = vmul.f32 %v262, %v293
      %v302 = vmul.f32 %v263, %v293
      %v303 = vmul.f32 %v264, %v293
      %v304 = vmul.f32 %v265, %v293
      %v305 = vmul.f32 %v266, %v293
      %v306 = vmul.f32 %v267, %v293
      %v307 = vmul.f32 %v268, %v293
      %v308 = vmul.f32 %v269, %v293
      %v309 = vmul.f32 %v270, %v293
      %v310 = vmul.f32 %v271, %v293
      %v311 = vmul.f32 %v272, %v293
      %v312 = vmul.f32 %v273, %v293
      %v313 = vmul.f32 %v274, %v293
      %v314 = vmul.f32 %v275, %v293
      %v315 = vmul.f32 %v276, %v293
      %v316 = vmul.f32 %v277, %v293
      %v317 = vmul.f32 %v278, %v293
      %v318 = vmul.f32 %v279, %v293
      %v319 = vmul.f32 %v280, %v293
      %v320 = vmul.f32 %v281, %v293
      %v321 = vmul.f32 %v282, %v293
      %v322 = vmul.f32 %v283, %v293
      %v323 = vmul.f32 %v284, %v293
      %v324 = vmul.f32 %v285, %v293
      %v325 = vmul.f32 %v286, %v293
      %v326 = vmul.f32 %v287, %v293
      %v327 = vld [vmem:[%s2] sm:$0x1]
      %v329 = vlaneseq
      %v330 = vshrl.u32 %v329, 7
      %v331 = vsub.s32 0, %v330
      %v332 = vrot.slane %v327, %v331
      %v334 = vadd.f32 %v295, %v332
      %v335 = vadd.f32 %v296, %v332
      %v336 = vadd.f32 %v297, %v332
      %v337 = vadd.f32 %v298, %v332
      %v338 = vadd.f32 %v299, %v332
      %v339 = vadd.f32 %v300, %v332
      %v340 = vadd.f32 %v301, %v332
      %v341 = vadd.f32 %v302, %v332
      %v342 = vadd.f32 %v303, %v332
      %v343 = vadd.f32 %v304, %v332
      %v344 = vadd.f32 %v305, %v332
      %v345 = vadd.f32 %v306, %v332
      %v346 = vadd.f32 %v307, %v332
      %v347 = vadd.f32 %v308, %v332
      %v348 = vadd.f32 %v309, %v332
      %v349 = vadd.f32 %v310, %v332
      %v350 = vadd.f32 %v311, %v332
      %v351 = vadd.f32 %v312, %v332
      %v352 = vadd.f32 %v313, %v332
      %v353 = vadd.f32 %v314, %v332
      %v354 = vadd.f32 %v315, %v332
      %v355 = vadd.f32 %v316, %v332
      %v356 = vadd.f32 %v317, %v332
      %v357 = vadd.f32 %v318, %v332
      %v358 = vadd.f32 %v319, %v332
      %v359 = vadd.f32 %v320, %v332
      %v360 = vadd.f32 %v321, %v332
      %v361 = vadd.f32 %v322, %v332
      %v362 = vadd.f32 %v323, %v332
      %v363 = vadd.f32 %v324, %v332
      %v364 = vadd.f32 %v325, %v332
      %v365 = vadd.f32 %v326, %v332
      %v366 = vmax.f32 %v334, 0.0
      %v367 = vmax.f32 %v335, 0.0
      %v368 = vmax.f32 %v336, 0.0
      %v369 = vmax.f32 %v337, 0.0
      %v370 = vmax.f32 %v338, 0.0
      %v371 = vmax.f32 %v339, 0.0
      %v372 = vmax.f32 %v340, 0.0
      %v373 = vmax.f32 %v341, 0.0
      %v374 = vmax.f32 %v342, 0.0
      %v375 = vmax.f32 %v343, 0.0
      %v376 = vmax.f32 %v344, 0.0
      %v377 = vmax.f32 %v345, 0.0
      %v378 = vmax.f32 %v346, 0.0
      %v379 = vmax.f32 %v347, 0.0
      %v380 = vmax.f32 %v348, 0.0
      %v381 = vmax.f32 %v349, 0.0
      %v382 = vmax.f32 %v350, 0.0
      %v383 = vmax.f32 %v351, 0.0
      %v384 = vmax.f32 %v352, 0.0
      %v385 = vmax.f32 %v353, 0.0
      %v386 = vmax.f32 %v354, 0.0
      %v387 = vmax.f32 %v355, 0.0
      %v388 = vmax.f32 %v356, 0.0
      %v389 = vmax.f32 %v357, 0.0
      %v390 = vmax.f32 %v358, 0.0
      %v391 = vmax.f32 %v359, 0.0
      %v392 = vmax.f32 %v360, 0.0
      %v393 = vmax.f32 %v361, 0.0
      %v394 = vmax.f32 %v362, 0.0
      %v395 = vmax.f32 %v363, 0.0
      %v396 = vmax.f32 %v364, 0.0
      %v397 = vmax.f32 %v365, 0.0
      %v398 = vld [vmem:[%s244] sm:$0x1]
      %v400 = vlaneseq
      %v401 = vshrl.u32 %v400, 7
      %v402 = vsub.s32 0, %v401
      %v403 = vrot.slane %v398, %v402
      %v405 = vadd.f32 %v366, %v403
      %v406 = vadd.f32 %v367, %v403
      %v407 = vadd.f32 %v368, %v403
      %v408 = vadd.f32 %v369, %v403
      %v409 = vadd.f32 %v370, %v403
      %v410 = vadd.f32 %v371, %v403
      %v411 = vadd.f32 %v372, %v403
      %v412 = vadd.f32 %v373, %v403
      %v413 = vadd.f32 %v374, %v403
      %v414 = vadd.f32 %v375, %v403
      %v415 = vadd.f32 %v376, %v403
      %v416 = vadd.f32 %v377, %v403
      %v417 = vadd.f32 %v378, %v403
      %v418 = vadd.f32 %v379, %v403
      %v419 = vadd.f32 %v380, %v403
      %v420 = vadd.f32 %v381, %v403
      %v421 = vadd.f32 %v382, %v403
      %v422 = vadd.f32 %v383, %v403
      %v423 = vadd.f32 %v384, %v403
      %v424 = vadd.f32 %v385, %v403
      %v425 = vadd.f32 %v386, %v403
      %v426 = vadd.f32 %v387, %v403
      %v427 = vadd.f32 %v388, %v403
      %v428 = vadd.f32 %v389, %v403
      %v429 = vadd.f32 %v390, %v403
      %v430 = vadd.f32 %v391, %v403
      %v431 = vadd.f32 %v392, %v403
      %v432 = vadd.f32 %v393, %v403
      %v433 = vadd.f32 %v394, %v403
      %v434 = vadd.f32 %v395, %v403
      %v435 = vadd.f32 %v396, %v403
      %v436 = vadd.f32 %v397, %v403
      %437 = vst [vmem:[%s254] sm:$0xff] %v405
      %438 = vst [vmem:[%s254 + $0x8] sm:$0xff] %v406
      %439 = vst [vmem:[%s254 + $0x10] sm:$0xff] %v407
      %440 = vst [vmem:[%s254 + $0x18] sm:$0xff] %v408
      %441 = vst [vmem:[%s254 + $0x20] sm:$0xff] %v409
      %442 = vst [vmem:[%s254 + $0x28] sm:$0xff] %v410
      %443 = vst [vmem:[%s254 + $0x30] sm:$0xff] %v411
      %444 = vst [vmem:[%s254 + $0x38] sm:$0xff] %v412
      %445 = vst [vmem:[%s254 + $0x40] sm:$0xff] %v413
      %446 = vst [vmem:[%s254 + $0x48] sm:$0xff] %v414
      %447 = vst [vmem:[%s254 + $0x50] sm:$0xff] %v415
      %448 = vst [vmem:[%s254 + $0x58] sm:$0xff] %v416
      %449 = vst [vmem:[%s254 + $0x60] sm:$0xff] %v417
      %450 = vst [vmem:[%s254 + $0x68] sm:$0xff] %v418
      %451 = vst [vmem:[%s254 + $0x70] sm:$0xff] %v419
      %452 = vst [vmem:[%s254 + $0x78] sm:$0xff] %v420
      %453 = vst [vmem:[%s254 + $0x80] sm:$0xff] %v421
      %454 = vst [vmem:[%s254 + $0x88] sm:$0xff] %v422
      %455 = vst [vmem:[%s254 + $0x90] sm:$0xff] %v423
      %456 = vst [vmem:[%s254 + $0x98] sm:$0xff] %v424
      %457 = vst [vmem:[%s254 + $0xa0] sm:$0xff] %v425
      %458 = vst [vmem:[%s254 + $0xa8] sm:$0xff] %v426
      %459 = vst [vmem:[%s254 + $0xb0] sm:$0xff] %v427
      %460 = vst [vmem:[%s254 + $0xb8] sm:$0xff] %v428
      %461 = vst [vmem:[%s254 + $0xc0] sm:$0xff] %v429
      %462 = vst [vmem:[%s254 + $0xc8] sm:$0xff] %v430
      %463 = vst [vmem:[%s254 + $0xd0] sm:$0xff] %v431
      %464 = vst [vmem:[%s254 + $0xd8] sm:$0xff] %v432
      %465 = vst [vmem:[%s254 + $0xe0] sm:$0xff] %v433
      %466 = vst [vmem:[%s254 + $0xe8] sm:$0xff] %v434
      %467 = vst [vmem:[%s254 + $0xf0] sm:$0xff] %v435
      %468 = vst [vmem:[%s254 + $0xf8] sm:$0xff] %v436
      %s469 = smul.u32 8, %s20
      %p470 = scmp.lt.s32.totalorder %s19, 1
      %s471 = scalar_select %p470, %s19, 1
      %p472 = scmp.lt.s32.totalorder %s469, 31
      %s473 = scalar_select %p472, %s469, 31
      %s474 = smul.addr %s473, 4
      %s475 = smul.addr %s471, 128
      %s476 = sadd.s32 %s474, %s475
      %s477 = smul.addr %s476, 8
      %s478 = scalar_lea.vmem %s4, %s477
      // Predicated region
      $region37: #{decoder_block_forward.9} parent=35 // pred_check
        %p479 = pneg %p143
      $region38: #{decoder_block_forward.9} parent=35 // pred_check_branch
        %481 = sbr.rel (%p479) target = $region40
      $region39: #{decoder_block_forward.9} parent=35 // pred_region
        %s482 = smul.u32 8, %s20
      $region40: #{decoder_block_forward.9} parent=35 // pred_fallthru
        _
    $region36: #{decoder_block_forward.9} parent=5 // pred_fallthru
      _
    %p483 = scmp.le.s32.totalorder 2, %s10
    // Predicated region
    $region41: #{decoder_block_forward.9} parent=5 // pred_check
      %p484 = pneg %p483
    $region42: #{decoder_block_forward.9} parent=5 // pred_check_branch
      %486 = sbr.rel (%p484) target = $region44
    $region43: #{decoder_block_forward.9} parent=5 // pred_region
      %s487 = ssub.s32 %s10, 2
      // Predicated region
      $region45: #{decoder_block_forward.9} parent=43 // pred_check
        %p488 = pneg %p149
      $region46: #{decoder_block_forward.9} parent=43 // pred_check_branch
        %490 = sbr.rel (%p488) target = $region48
      $region47: #{decoder_block_forward.9} parent=43 // pred_region
        %s491 = smul.u32 8, %s22
        %p492 = scmp.lt.s32.totalorder %s21, 1
        %s493 = scalar_select %p492, %s21, 1
        %p494 = scmp.lt.s32.totalorder %s491, 31
        %s495 = scalar_select %p494, %s491, 31
        %s496 = smul.addr %s495, 4
        %s497 = smul.addr %s493, 128
        %s498 = sadd.s32 %s496, %s497
        %s499 = smul.addr %s498, 8
        %s500 = scalar_lea.vmem %s4, %s499
      $region48: #{decoder_block_forward.9} parent=43 // pred_fallthru
        _
    $region44: #{decoder_block_forward.9} parent=5 // pred_fallthru
      _
  $region6: #{decoder_block_forward.9} parent=0 // loop_footer
    %s14 = sadd.s32 1, %s10
  $region7: #{decoder_block_forward.9} parent=0 // loop_footer_branch
    %9 = sbr.rel target = $region3
  $region8: #{decoder_block_forward.9} parent=0 // loop_exit
    _

// kernel: decoder_block_forward.8
$region0: #{decoder_block_forward.8}
  #allocation0 [shape = 'u32[]', space=smem, size = 0x4, offset = 0x4, fixed_abs, tag = 'smem constant byte address 0x4 - core index']
  #allocation1 [shape = 'u32[144,128]{1,0:T(1,128)}', space=vmem, size = 0x12000, scoped, tag = 'internal scratch']
  %s0 = inlined_call_operand.vmem [shape: bf16[2,34,34,128], index: 0, kind: input, shape index: {}]
  %s1 = inlined_call_operand.vmem [shape: bf16[9,128,128], index: 1, kind: input, shape index: {}]
  %s2 = inlined_call_operand.vmem [shape: f32[1,128], index: 2, kind: input, shape index: {}]
  %s3 = inlined_call_operand.vmem [shape: f32[2,32,32,128], index: 3, kind: output, shape index: {0}]
  %s4 = inlined_call_operand.vmem [shape: f32[2,4,2,128], index: 4, kind: output, shape index: {1}]
  %5 = xla_tuple %s3, %s4
  %s6 = sld [smem:[#allocation0]]
  $region53: #{decoder_block_forward.8} parent=0
    _
  %s8 = ssub.s32 1, %s6
  %s9 = scalar_select 0, %s8, %s6
  loop: start=0, step=1, limit=10
  $region2: #{decoder_block_forward.8} parent=0 // loop_pre_header
    _
  $region3: #{decoder_block_forward.8} parent=0 // loop_header
    %s11 = sphi 0, %s15
    %p12 = scmp.ge.s32.totalorder %s11, 10
    %s18 = sphi 0, %s30
    %s19 = sphi 0, %s26
    %s20 = sphi 0, %s18
    %s21 = sphi 0, %s19
    %s22 = sphi 0, %s20
    %s23 = sphi 0, %s21
    %s33 = sphi 0, %s35
    %s36 = sphi 0, %s33
    %s37 = sphi 0, %s36
    %s53 = sphi 0, %s37
    %s57 = sphi 0, %s57
    %s59 = sphi 0, %s57
    %s60 = sphi 0, %s59
    %s74 = sphi 0, %s60
    %s78 = sphi 0, %s78
    %s80 = sphi 0, %s78
    %s81 = sphi 0, %s80
    %s95 = sphi 0, %s81
    %s103 = sphi 0, %s105
    %s106 = sphi 0, %s103
    %s107 = sphi 0, %s106
    %s123 = sphi 0, %s107
    %s131 = sphi 0, %s133
    %s134 = sphi 0, %s131
    %s135 = sphi 0, %s134
    %s151 = sphi 0, %s135
  $region4: #{decoder_block_forward.8} parent=0 // loop_header_branch
    %14 = sbr.rel (%p12) target = $region8
  $region5: #{decoder_block_forward.8} parent=0 // loop_body
    %s16 = ssub.s32 %s11, 1
    %s17 = ssub.s32 %s11, 2
    %s24 = sadd.s32 1, %s19
    %p25 = scmp.ge.s32.totalorder %s24, 4
    %s26 = scalar_select %p25, 0, %s24
    %s27 = sadd.s32 1, %s18
    %s28 = scalar_select %p25, %s27, %s18
    %p29 = scmp.ge.s32.totalorder %s28, 2
    %s30 = scalar_select %p29, 0, %s28
    %s31 = ssub.s32 %s18, %s30
    %p32 = scmp.eq.s32.totalorder %s31, 0
    %s34 = sadd.s32 %s33, 1
    %s35 = scalar_select %p32, %s33, %s34
    %p38 = pneg %p32
    %p39 = scmp.eq.s32.totalorder %s11, 7
    %p40 = por %p38, %p39
    %p41 = scmp.ne.s32.totalorder %s33, %s36
    %p42 = scmp.eq.s32.totalorder %s11, 0
    %p43 = por %p41, %p42
    %p44 = scmp.ne.s32.totalorder %s33, %s36
    %p45 = scmp.eq.s32.totalorder %s16, 7
    %p46 = por %p44, %p45
    %p47 = scmp.ne.s32.totalorder %s36, %s37
    %p48 = scmp.eq.s32.totalorder %s16, 0
    %p49 = por %p47, %p48
    %p50 = scmp.ne.s32.totalorder %s36, %s37
    %p51 = scmp.eq.s32.totalorder %s17, 7
    %p52 = por %p50, %p51
    %p54 = scmp.ne.s32.totalorder %s37, %s53
    %p55 = scmp.eq.s32.totalorder %s17, 0
    %p56 = por %p54, %p55
    %s58 = sadd.s32 %s57, 1
    %p61 = scmp.eq.s32.totalorder %s11, 7
    %p62 = scmp.ne.s32.totalorder %s57, %s59
    %p63 = scmp.eq.s32.totalorder %s11, 0
    %p64 = por %p62, %p63
    %p65 = scmp.ne.s32.totalorder %s57, %s59
    %p66 = scmp.eq.s32.totalorder %s16, 7
    %p67 = por %p65, %p66
    %p68 = scmp.ne.s32.totalorder %s59, %s60
    %p69 = scmp.eq.s32.totalorder %s16, 0
    %p70 = por %p68, %p69
    %p71 = scmp.ne.s32.totalorder %s59, %s60
    %p72 = scmp.eq.s32.totalorder %s17, 7
    %p73 = por %p71, %p72
    %p75 = scmp.ne.s32.totalorder %s60, %s74
    %p76 = scmp.eq.s32.totalorder %s17, 0
    %p77 = por %p75, %p76
    %s79 = sadd.s32 %s78, 1
    %p82 = scmp.eq.s32.totalorder %s11, 7
    %p83 = scmp.ne.s32.totalorder %s78, %s80
    %p84 = scmp.eq.s32.totalorder %s11, 0
    %p85 = por %p83, %p84
    %p86 = scmp.ne.s32.totalorder %s78, %s80
    %p87 = scmp.eq.s32.totalorder %s16, 7
    %p88 = por %p86, %p87
    %p89 = scmp.ne.s32.totalorder %s80, %s81
    %p90 = scmp.eq.s32.totalorder %s16, 0
    %p91 = por %p89, %p90
    %p92 = scmp.ne.s32.totalorder %s80, %s81
    %p93 = scmp.eq.s32.totalorder %s17, 7
    %p94 = por %p92, %p93
    %p96 = scmp.ne.s32.totalorder %s81, %s95
    %p97 = scmp.eq.s32.totalorder %s17, 0
    %p98 = por %p96, %p97
    %s99 = ssub.s32 %s18, %s30
    %s100 = ssub.s32 %s19, %s26
    %s101 = sor.u32 %s99, %s100
    %p102 = scmp.eq.s32.totalorder %s101, 0
    %s104 = sadd.s32 %s103, 1
    %s105 = scalar_select %p102, %s103, %s104
    %p108 = pneg %p102
    %p109 = scmp.eq.s32.totalorder %s11, 7
    %p110 = por %p108, %p109
    %p111 = scmp.ne.s32.totalorder %s103, %s106
    %p112 = scmp.eq.s32.totalorder %s11, 0
    %p113 = por %p111, %p112
    %p114 = scmp.ne.s32.totalorder %s103, %s106
    %p115 = scmp.eq.s32.totalorder %s16, 7
    %p116 = por %p114, %p115
    %p117 = scmp.ne.s32.totalorder %s106, %s107
    %p118 = scmp.eq.s32.totalorder %s16, 0
    %p119 = por %p117, %p118
    %p120 = scmp.ne.s32.totalorder %s106, %s107
    %p121 = scmp.eq.s32.totalorder %s17, 7
    %p122 = por %p120, %p121
    %p124 = scmp.ne.s32.totalorder %s107, %s123
    %p125 = scmp.eq.s32.totalorder %s17, 0
    %p126 = por %p124, %p125
    %s127 = ssub.s32 %s18, %s30
    %s128 = ssub.s32 %s19, %s26
    %s129 = sor.u32 %s127, %s128
    %p130 = scmp.eq.s32.totalorder %s129, 0
    %s132 = sadd.s32 %s131, 1
    %s133 = scalar_select %p130, %s131, %s132
    %p136 = pneg %p130
    %p137 = scmp.eq.s32.totalorder %s11, 7
    %p138 = por %p136, %p137
    %p139 = scmp.ne.s32.totalorder %s131, %s134
    %p140 = scmp.eq.s32.totalorder %s11, 0
    %p141 = por %p139, %p140
    %p142 = scmp.ne.s32.totalorder %s131, %s134
    %p143 = scmp.eq.s32.totalorder %s16, 7
    %p144 = por %p142, %p143
    %p145 = scmp.ne.s32.totalorder %s134, %s135
    %p146 = scmp.eq.s32.totalorder %s16, 0
    %p147 = por %p145, %p146
    %p148 = scmp.ne.s32.totalorder %s134, %s135
    %p149 = scmp.eq.s32.totalorder %s17, 7
    %p150 = por %p148, %p149
    %p152 = scmp.ne.s32.totalorder %s135, %s151
    %p153 = scmp.eq.s32.totalorder %s17, 0
    %p154 = por %p152, %p153
    %p155 = scmp.le.s32.totalorder 1, %s11
    %p156 = scmp.lt.s32.totalorder %s11, 9
    %p157 = pnand %p155, %p156
    %p158 = pneg %p157
    // Predicated region
    $region9: #{decoder_block_forward.8} parent=5 // pred_check
      _
    $region10: #{decoder_block_forward.8} parent=5 // pred_check_branch
      %160 = sbr.rel (%p157) target = $region12
    $region11: #{decoder_block_forward.8} parent=5 // pred_region
      %s161 = ssub.s32 %s11, 1
      // Predicated region
      $region13: #{decoder_block_forward.8} parent=11 // pred_check
        %p162 = pneg %p70
      $region14: #{decoder_block_forward.8} parent=11 // pred_check_branch
        %164 = sbr.rel (%p162) target = $region16
      $region15: #{decoder_block_forward.8} parent=11 // pred_region
        _
      $region16: #{decoder_block_forward.8} parent=11 // pred_fallthru
        _
      // Predicated region
      $region17: #{decoder_block_forward.8} parent=11 // pred_check
        %p165 = pneg %p91
      $region18: #{decoder_block_forward.8} parent=11 // pred_check_branch
        %167 = sbr.rel (%p165) target = $region20
      $region19: #{decoder_block_forward.8} parent=11 // pred_region
        _
      $region20: #{decoder_block_forward.8} parent=11 // pred_fallthru
        _
    $region12: #{decoder_block_forward.8} parent=5 // pred_fallthru
      _
    %p168 = scmp.lt.s32.totalorder %s11, 8
    // Predicated region
    $region21: #{decoder_block_forward.8} parent=5 // pred_check
      %p169 = pneg %p168
    $region22: #{decoder_block_forward.8} parent=5 // pred_check_branch
      %171 = sbr.rel (%p169) target = $region24
    $region23: #{decoder_block_forward.8} parent=5 // pred_region
      // Predicated region
      $region25: #{decoder_block_forward.8} parent=23 // pred_check
        %p172 = pneg %p43
      $region26: #{decoder_block_forward.8} parent=23 // pred_check_branch
        %174 = sbr.rel (%p172) target = $region28
      $region27: #{decoder_block_forward.8} parent=23 // pred_region
        %p175 = scmp.lt.s32.totalorder %s18, 1
        %s176 = scalar_select %p175, %s18, 1
        %s177 = smul.addr %s176, 170
        %s178 = smul.addr %s177, 4
        %s179 = scalar_lea.vmem %s0, %s178
      $region28: #{decoder_block_forward.8} parent=23 // pred_fallthru
        _
    $region24: #{decoder_block_forward.8} parent=5 // pred_fallthru
      _
    %p180 = scmp.le.s32.totalorder 1, %s11
    %p181 = scmp.lt.s32.totalorder %s11, 9
    %p182 = pnand %p180, %p181
    %p183 = pneg %p182
    // Predicated region
    $region29: #{decoder_block_forward.8} parent=5 // pred_check
      _
    $region30: #{decoder_block_forward.8} parent=5 // pred_check_branch
      %185 = sbr.rel (%p182) target = $region32
    $region31: #{decoder_block_forward.8} parent=5 // pred_region
      %s186 = ssub.s32 %s11, 1
      %p187 = scmp.lt.s32.totalorder %s20, 1
      %s188 = scalar_select %p187, %s20, 1
      %s189 = smul.addr %s188, 170
      %s190 = smul.addr %s189, 4
      %s191 = scalar_lea.vmem %s0, %s190
      %p192 = pneg %p49
      %p193 = pneg %p46
      %p194 = pneg %p70
      %p195 = pneg %p67
      %p196 = pneg %p91
      %p197 = pneg %p88
      %p198 = pneg %p119
      %p199 = pneg %p116
      %s200 = smul.u32 8, %s21
      %p201 = scmp.lt.s32.totalorder %s20, 1
      %s202 = scalar_select %p201, %s20, 1
      %p203 = scmp.lt.s32.totalorder %s200, 31
      %s204 = scalar_select %p203, %s200, 31
      %s205 = smul.addr %s204, 4
      %s206 = smul.addr %s202, 128
      %s207 = sadd.s32 %s205, %s206
      %s208 = smul.addr %s207, 8
      %s209 = scalar_lea.vmem %s3, %s208
      %p210 = pneg %p147
      %p211 = pneg %p144
      %p212 = scmp.lt.s32.totalorder %s20, 1
      %s213 = scalar_select %p212, %s20, 1
      %p214 = scmp.lt.s32.totalorder %s21, 3
      %s215 = scalar_select %p214, %s21, 3
      %s216 = smul.addr %s213, 4
      %s217 = sadd.s32 %s215, %s216
      %s218 = smul.addr %s217, 2
      %s219 = scalar_lea.vmem %s4, %s218
      %p220 = scmp.lt.s32.totalorder %s20, 1
      %s221 = scalar_select %p220, %s20, 1
      %s222 = smul.addr %s221, 170
      %s223 = smul.addr %s222, 4
      %s224 = scalar_lea.vmem %s0, %s223
      %s225 = smul.u32 8, %s21
      %p226 = scmp.lt.s32.totalorder %s20, 1
      %s227 = scalar_select %p226, %s20, 1
      %p228 = scmp.lt.s32.totalorder %s225, 31
      %s229 = scalar_select %p228, %s225, 31
      %s230 = smul.addr %s229, 4
      %s231 = smul.addr %s227, 128
      %s232 = sadd.s32 %s230, %s231
      %s233 = smul.addr %s232, 8
      %s234 = scalar_lea.vmem %s3, %s233
      %s235 = smul.u32 8, %s21
      %p236 = scmp.lt.s32.totalorder %s20, 1
      %s237 = scalar_select %p236, %s20, 1
      %p238 = scmp.lt.s32.totalorder %s21, 3
      %s239 = scalar_select %p238, %s21, 3
      %s240 = smul.addr %s237, 4
      %s241 = sadd.s32 %s239, %s240
      %s242 = smul.addr %s241, 2
      %s243 = scalar_lea.vmem %s4, %s242
      %s245 = smul.u32 %s21, 8
      %s246 = smul.u32 %s245, 5
      %s247 = smul.addr %s246, 4
      %s248 = scalar_lea.vmem %s224, %s247
      %v249 = vld [vmem:[%s248] sm:$0xf]
      %v250 = vld [vmem:[%s248 + $0x4] sm:$0xf]
      %v251 = vld [vmem:[%s248 + $0x8] sm:$0xf]
      %v252 = vld [vmem:[%s248 + $0xc] sm:$0xf]
      %v253 = vld [vmem:[%s248 + $0x14] sm:$0xf]
      %v254 = vld [vmem:[%s248 + $0x18] sm:$0xf]
      %v255 = vld [vmem:[%s248 + $0x1c] sm:$0xf]
      %v256 = vld [vmem:[%s248 + $0x20] sm:$0xf]
      %v257 = vld [vmem:[%s248 + $0x28] sm:$0xf]
      %v258 = vld [vmem:[%s248 + $0x2c] sm:$0xf]
      %v259 = vld [vmem:[%s248 + $0x30] sm:$0xf]
      %v260 = vld [vmem:[%s248 + $0x34] sm:$0xf]
      %v261 = vld [vmem:[%s248 + $0x3c] sm:$0xf]
      %v262 = vld [vmem:[%s248 + $0x40] sm:$0xf]
      %v263 = vld [vmem:[%s248 + $0x44] sm:$0xf]
      %v264 = vld [vmem:[%s248 + $0x48] sm:$0xf]
      %v265 = vld [vmem:[%s248 + $0x50] sm:$0xf]
      %v266 = vld [vmem:[%s248 + $0x54] sm:$0xf]
      %v267 = vld [vmem:[%s248 + $0x58] sm:$0xf]
      %v268 = vld [vmem:[%s248 + $0x5c] sm:$0xf]
      %v269 = vld [vmem:[%s248 + $0x64] sm:$0xf]
      %v270 = vld [vmem:[%s248 + $0x68] sm:$0xf]
      %v271 = vld [vmem:[%s248 + $0x6c] sm:$0xf]
      %v272 = vld [vmem:[%s248 + $0x70] sm:$0xf]
      %v273 = vld [vmem:[%s248 + $0x78] sm:$0xf]
      %v274 = vld [vmem:[%s248 + $0x7c] sm:$0xf]
      %v275 = vld [vmem:[%s248 + $0x80] sm:$0xf]
      %v276 = vld [vmem:[%s248 + $0x84] sm:$0xf]
      %v277 = vld [vmem:[%s248 + $0x8c] sm:$0xf]
      %v278 = vld [vmem:[%s248 + $0x90] sm:$0xf]
      %v279 = vld [vmem:[%s248 + $0x94] sm:$0xf]
      %v280 = vld [vmem:[%s248 + $0x98] sm:$0xf]
      %v281 = vld [vmem:[%s1] sm:$0xf]
      %v282 = vld [vmem:[%s1 + $0x4] sm:$0xf]
      %v283 = vld [vmem:[%s1 + $0x8] sm:$0xf]
      %v284 = vld [vmem:[%s1 + $0xc] sm:$0xf]
      %v285 = vld [vmem:[%s1 + $0x10] sm:$0xf]
      %v286 = vld [vmem:[%s1 + $0x14] sm:$0xf]
      %v287 = vld [vmem:[%s1 + $0x18] sm:$0xf]
      %v288 = vld [vmem:[%s1 + $0x1c] sm:$0xf]
      %v289 = vld [vmem:[%s1 + $0x20] sm:$0xf]
      %v290 = vld [vmem:[%s1 + $0x24] sm:$0xf]
      %v291 = vld [vmem:[%s1 + $0x28] sm:$0xf]
      %v292 = vld [vmem:[%s1 + $0x2c] sm:$0xf]
      %v293 = vld [vmem:[%s1 + $0x30] sm:$0xf]
      %v294 = vld [vmem:[%s1 + $0x34] sm:$0xf]
      %v295 = vld [vmem:[%s1 + $0x38] sm:$0xf]
      %v296 = vld [vmem:[%s1 + $0x3c] sm:$0xf]
      %v297 = vld [vmem:[%s248 + $0x10] sm:$0x1]
      %v298 = vld [vmem:[%s248 + $0x24] sm:$0x1]
      %v299 = vld [vmem:[%s248 + $0x38] sm:$0x1]
      %v300 = vld [vmem:[%s248 + $0x4c] sm:$0x1]
      %v301 = vld [vmem:[%s248 + $0x60] sm:$0x1]
      %v302 = vld [vmem:[%s248 + $0x74] sm:$0x1]
      %v303 = vld [vmem:[%s248 + $0x88] sm:$0x1]
      %v304 = vld [vmem:[%s248 + $0x9c] sm:$0x1]
      %vm305 = vsmask.f32 3328
      %vm306 = vsmask.f32 7440
      %vm307 = vmor %vm305, %vm306
      %v309 = vshrl.u32 %v249, 16
      %v311 = vrot.slane %v309, 4
      %v312 = vshll.u32 %v249, 16
      %v314 = vrot.slane %v312, 5
      %v315 = vor.u32 %v311, %v314
      %v316 = vrot.slane %v315, 4
      %v318 = vshll.u32 %v250, 16
      %v320 = vrot.slane %v318, 5
      %v321 = vsel %vm307, %v316, %v320
      %v322 = vshrl.u32 %v250, 16
      %v324 = vrot.slane %v322, 4
      %v325 = vor.u32 %v324, %v320
      %v326 = vrot.slane %v325, 4
      %v328 = vshll.u32 %v251, 16
      %v330 = vrot.slane %v328, 5
      %v331 = vsel %vm307, %v326, %v330
      %v332 = vshrl.u32 %v251, 16
      %v334 = vrot.slane %v332, 4
      %v335 = vor.u32 %v334, %v330
      %v336 = vrot.slane %v335, 4
      %v338 = vshll.u32 %v252, 16
      %v340 = vrot.slane %v338, 5
      %v341 = vsel %vm307, %v336, %v340
      %v342 = vshrl.u32 %v252, 16
      %v344 = vrot.slane %v342, 4
      %v345 = vor.u32 %v344, %v340
      %v346 = vrot.slane %v345, 4
      %v348 = vshll.u32 %v297, 16
      %v350 = vrot.slane %v348, 5
      %v351 = vsel %vm307, %v346, %v350
      %v353 = vshrl.u32 %v253, 16
      %v355 = vrot.slane %v353, 4
      %v356 = vshll.u32 %v253, 16
      %v358 = vrot.slane %v356, 5
      %v359 = vor.u32 %v355, %v358
      %v360 = vrot.slane %v359, 4
      %v362 = vshll.u32 %v254, 16
      %v364 = vrot.slane %v362, 5
      %v365 = vsel %vm307, %v360, %v364
      %v366 = vshrl.u32 %v254, 16
      %v368 = vrot.slane %v366, 4
      %v369 = vor.u32 %v368, %v364
      %v370 = vrot.slane %v369, 4
      %v372 = vshll.u32 %v255, 16
      %v374 = vrot.slane %v372, 5
      %v375 = vsel %vm307, %v370, %v374
      %v376 = vshrl.u32 %v255, 16
      %v378 = vrot.slane %v376, 4
      %v379 = vor.u32 %v378, %v374
      %v380 = vrot.slane %v379, 4
      %v382 = vshll.u32 %v256, 16
      %v384 = vrot.slane %v382, 5
      %v385 = vsel %vm307, %v380, %v384
      %v386 = vshrl.u32 %v256, 16
      %v388 = vrot.slane %v386, 4
      %v389 = vor.u32 %v388, %v384
      %v390 = vrot.slane %v389, 4
      %v392 = vshll.u32 %v298, 16
      %v394 = vrot.slane %v392, 5
      %v395 = vsel %vm307, %v390, %v394
      %v397 = vshrl.u32 %v257, 16
      %v399 = vrot.slane %v397, 4
      %v400 = vshll.u32 %v257, 16
      %v402 = vrot.slane %v400, 5
      %v403 = vor.u32 %v399, %v402
      %v404 = vrot.slane %v403, 4
      %v406 = vshll.u32 %v258, 16
      %v408 = vrot.slane %v406, 5
      %v409 = vsel %vm307, %v404, %v408
      %v410 = vshrl.u32 %v258, 16
      %v412 = vrot.slane %v410, 4
      %v413 = vor.u32 %v412, %v408
      %v414 = vrot.slane %v413, 4
      %v416 = vshll.u32 %v259, 16
      %v418 = vrot.slane %v416, 5
      %v419 = vsel %vm307, %v414, %v418
      %v420 = vshrl.u32 %v259, 16
      %v422 = vrot.slane %v420, 4
      %v423 = vor.u32 %v422, %v418
      %v424 = vrot.slane %v423, 4
      %v426 = vshll.u32 %v260, 16
      %v428 = vrot.slane %v426, 5
      %v429 = vsel %vm307, %v424, %v428
      %v430 = vshrl.u32 %v260, 16
      %v432 = vrot.slane %v430, 4
      %v433 = vor.u32 %v432, %v428
      %v434 = vrot.slane %v433, 4
      %v436 = vshll.u32 %v299, 16
      %v438 = vrot.slane %v436, 5
      %v439 = vsel %vm307, %v434, %v438
      %v441 = vshrl.u32 %v261, 16
      %v443 = vrot.slane %v441, 4
      %v444 = vshll.u32 %v261, 16
      %v446 = vrot.slane %v444, 5
      %v447 = vor.u32 %v443, %v446
      %v448 = vrot.slane %v447, 4
      %v450 = vshll.u32 %v262, 16
      %v452 = vrot.slane %v450, 5
      %v453 = vsel %vm307, %v448, %v452
      %v454 = vshrl.u32 %v262, 16
      %v456 = vrot.slane %v454, 4
      %v457 = vor.u32 %v456, %v452
      %v458 = vrot.slane %v457, 4
      %v460 = vshll.u32 %v263, 16
      %v462 = vrot.slane %v460, 5
      %v463 = vsel %vm307, %v458, %v462
      %v464 = vshrl.u32 %v263, 16
      %v466 = vrot.slane %v464, 4
      %v467 = vor.u32 %v466, %v462
      %v468 = vrot.slane %v467, 4
      %v470 = vshll.u32 %v264, 16
      %v472 = vrot.slane %v470, 5
      %v473 = vsel %vm307, %v468, %v472
      %v474 = vshrl.u32 %v264, 16
      %v476 = vrot.slane %v474, 4
      %v477 = vor.u32 %v476, %v472
      %v478 = vrot.slane %v477, 4
      %v480 = vshll.u32 %v300, 16
      %v482 = vrot.slane %v480, 5
      %v483 = vsel %vm307, %v478, %v482
      %v485 = vshrl.u32 %v265, 16
      %v487 = vrot.slane %v485, 4
      %v488 = vshll.u32 %v265, 16
      %v490 = vrot.slane %v488, 5
      %v491 = vor.u32 %v487, %v490
      %v492 = vrot.slane %v491, 4
      %v494 = vshll.u32 %v266, 16
      %v496 = vrot.slane %v494, 5
      %v497 = vsel %vm307, %v492, %v496
      %v498 = vshrl.u32 %v266, 16
      %v500 = vrot.slane %v498, 4
      %v501 = vor.u32 %v500, %v496
      %v502 = vrot.slane %v501, 4
      %v504 = vshll.u32 %v267, 16
      %v506 = vrot.slane %v504, 5
      %v507 = vsel %vm307, %v502, %v506
      %v508 = vshrl.u32 %v267, 16
      %v510 = vrot.slane %v508, 4
      %v511 = vor.u32 %v510, %v506
      %v512 = vrot.slane %v511, 4
      %v514 = vshll.u32 %v268, 16
      %v516 = vrot.slane %v514, 5
      %v517 = vsel %vm307, %v512, %v516
      %v518 = vshrl.u32 %v268, 16
      %v520 = vrot.slane %v518, 4
      %v521 = vor.u32 %v520, %v516
      %v522 = vrot.slane %v521, 4
      %v524 = vshll.u32 %v301, 16
      %v526 = vrot.slane %v524, 5
      %v527 = vsel %vm307, %v522, %v526
      %v529 = vshrl.u32 %v269, 16
      %v531 = vrot.slane %v529, 4
      %v532 = vshll.u32 %v269, 16
      %v534 = vrot.slane %v532, 5
      %v535 = vor.u32 %v531, %v534
      %v536 = vrot.slane %v535, 4
      %v538 = vshll.u32 %v270, 16
      %v540 = vrot.slane %v538, 5
      %v541 = vsel %vm307, %v536, %v540
      %v542 = vshrl.u32 %v270, 16
      %v544 = vrot.slane %v542, 4
      %v545 = vor.u32 %v544, %v540
      %v546 = vrot.slane %v545, 4
      %v548 = vshll.u32 %v271, 16
      %v550 = vrot.slane %v548, 5
      %v551 = vsel %vm307, %v546, %v550
      %v552 = vshrl.u32 %v271, 16
      %v554 = vrot.slane %v552, 4
      %v555 = vor.u32 %v554, %v550
      %v556 = vrot.slane %v555, 4
      %v558 = vshll.u32 %v272, 16
      %v560 = vrot.slane %v558, 5
      %v561 = vsel %vm307, %v556, %v560
      %v562 = vshrl.u32 %v272, 16
      %v564 = vrot.slane %v562, 4
      %v565 = vor.u32 %v564, %v560
      %v566 = vrot.slane %v565, 4
      %v568 = vshll.u32 %v302, 16
      %v570 = vrot.slane %v568, 5
      %v571 = vsel %vm307, %v566, %v570
      %v573 = vshrl.u32 %v273, 16
      %v575 = vrot.slane %v573, 4
      %v576 = vshll.u32 %v273, 16
      %v578 = vrot.slane %v576, 5
      %v579 = vor.u32 %v575, %v578
      %v580 = vrot.slane %v579, 4
      %v582 = vshll.u32 %v274, 16
      %v584 = vrot.slane %v582, 5
      %v585 = vsel %vm307, %v580, %v584
      %v586 = vshrl.u32 %v274, 16
      %v588 = vrot.slane %v586, 4
      %v589 = vor.u32 %v588, %v584
      %v590 = vrot.slane %v589, 4
      %v592 = vshll.u32 %v275, 16
      %v594 = vrot.slane %v592, 5
      %v595 = vsel %vm307, %v590, %v594
      %v596 = vshrl.u32 %v275, 16
      %v598 = vrot.slane %v596, 4
      %v599 = vor.u32 %v598, %v594
      %v600 = vrot.slane %v599, 4
      %v602 = vshll.u32 %v276, 16
      %v604 = vrot.slane %v602, 5
      %v605 = vsel %vm307, %v600, %v604
      %v606 = vshrl.u32 %v276, 16
      %v608 = vrot.slane %v606, 4
      %v609 = vor.u32 %v608, %v604
      %v610 = vrot.slane %v609, 4
      %v612 = vshll.u32 %v303, 16
      %v614 = vrot.slane %v612, 5
      %v615 = vsel %vm307, %v610, %v614
      %v617 = vshrl.u32 %v277, 16
      %v619 = vrot.slane %v617, 4
      %v620 = vshll.u32 %v277, 16
      %v622 = vrot.slane %v620, 5
      %v623 = vor.u32 %v619, %v622
      %v624 = vrot.slane %v623, 4
      %v626 = vshll.u32 %v278, 16
      %v628 = vrot.slane %v626, 5
      %v629 = vsel %vm307, %v624, %v628
      %v630 = vshrl.u32 %v278, 16
      %v632 = vrot.slane %v630, 4
      %v633 = vor.u32 %v632, %v628
      %v634 = vrot.slane %v633, 4
      %v636 = vshll.u32 %v279, 16
      %v638 = vrot.slane %v636, 5
      %v639 = vsel %vm307, %v634, %v638
      %v640 = vshrl.u32 %v279, 16
      %v642 = vrot.slane %v640, 4
      %v643 = vor.u32 %v642, %v638
      %v644 = vrot.slane %v643, 4
      %v646 = vshll.u32 %v280, 16
      %v648 = vrot.slane %v646, 5
      %v649 = vsel %vm307, %v644, %v648
      %v650 = vshrl.u32 %v280, 16
      %v652 = vrot.slane %v650, 4
      %v653 = vor.u32 %v652, %v648
      %v654 = vrot.slane %v653, 4
      %v656 = vshll.u32 %v304, 16
      %v658 = vrot.slane %v656, 5
      %v659 = vsel %vm307, %v654, %v658
      %s660 = scalar_lea.vmem %s1, 64
      %v661 = vld [vmem:[%s660] sm:$0xf]
      %v662 = vld [vmem:[%s660 + $0x4] sm:$0xf]
      %v663 = vld [vmem:[%s660 + $0x8] sm:$0xf]
      %v664 = vld [vmem:[%s660 + $0xc] sm:$0xf]
      %v665 = vld [vmem:[%s660 + $0x10] sm:$0xf]
      %v666 = vld [vmem:[%s660 + $0x14] sm:$0xf]
      %v667 = vld [vmem:[%s660 + $0x18] sm:$0xf]
      %v668 = vld [vmem:[%s660 + $0x1c] sm:$0xf]
      %v669 = vld [vmem:[%s660 + $0x20] sm:$0xf]
      %v670 = vld [vmem:[%s660 + $0x24] sm:$0xf]
      %v671 = vld [vmem:[%s660 + $0x28] sm:$0xf]
      %v672 = vld [vmem:[%s660 + $0x2c] sm:$0xf]
      %v673 = vld [vmem:[%s660 + $0x30] sm:$0xf]
      %v674 = vld [vmem:[%s660 + $0x34] sm:$0xf]
      %v675 = vld [vmem:[%s660 + $0x38] sm:$0xf]
      %v676 = vld [vmem:[%s660 + $0x3c] sm:$0xf]
      %v677 = vunpack.c.l.b16 %v321
      %v678 = vunpack.c.l.b16 %v331
      %v679 = vunpack.c.l.b16 %v341
      %v680 = vunpack.c.l.b16 %v351
      %v681 = vunpack.c.l.b16 %v365
      %v682 = vunpack.c.l.b16 %v375
      %v683 = vunpack.c.l.b16 %v385
      %v684 = vunpack.c.l.b16 %v395
      %v685 = vunpack.c.l.b16 %v409
      %v686 = vunpack.c.l.b16 %v419
      %v687 = vunpack.c.l.b16 %v429
      %v688 = vunpack.c.l.b16 %v439
      %v689 = vunpack.c.l.b16 %v453
      %v690 = vunpack.c.l.b16 %v463
      %v691 = vunpack.c.l.b16 %v473
      %v692 = vunpack.c.l.b16 %v483
      %v693 = vunpack.c.l.b16 %v497
      %v694 = vunpack.c.l.b16 %v507
      %v695 = vunpack.c.l.b16 %v517
      %v696 = vunpack.c.l.b16 %v527
      %v697 = vunpack.c.l.b16 %v541
      %v698 = vunpack.c.l.b16 %v551
      %v699 = vunpack.c.l.b16 %v561
      %v700 = vunpack.c.l.b16 %v571
      %v701 = vunpack.c.l.b16 %v585
      %v702 = vunpack.c.l.b16 %v595
      %v703 = vunpack.c.l.b16 %v605
      %v704 = vunpack.c.l.b16 %v615
      %v705 = vunpack.c.l.b16 %v629
      %v706 = vunpack.c.l.b16 %v639
      %v707 = vunpack.c.l.b16 %v649
      %v708 = vunpack.c.l.b16 %v659
      %v709 = vpack.c.b16 %v678, %v677
      %v710 = vpack.c.b16 %v680, %v679
      %v711 = vpack.c.b16 %v682, %v681
      %v712 = vpack.c.b16 %v684, %v683
      %v713 = vpack.c.b16 %v686, %v685
      %v714 = vpack.c.b16 %v688, %v687
      %v715 = vpack.c.b16 %v690, %v689
      %v716 = vpack.c.b16 %v692, %v691
      %v717 = vpack.c.b16 %v694, %v693
      %v718 = vpack.c.b16 %v696, %v695
      %v719 = vpack.c.b16 %v698, %v697
      %v720 = vpack.c.b16 %v700, %v699
      %v721 = vpack.c.b16 %v702, %v701
      %v722 = vpack.c.b16 %v704, %v703
      %v723 = vpack.c.b16 %v706, %v705
      %v724 = vpack.c.b16 %v708, %v707
      %v757 = vunpack.c.l.b16 %v661
      %v758 = vunpack.c.l.b16 %v662
      %v759 = vunpack.c.l.b16 %v663
      %v760 = vunpack.c.l.b16 %v664
      %v761 = vunpack.c.l.b16 %v665
      %v762 = vunpack.c.l.b16 %v666
      %v763 = vunpack.c.l.b16 %v667
      %v764 = vunpack.c.l.b16 %v668
      %v765 = vunpack.c.l.b16 %v669
      %v766 = vunpack.c.l.b16 %v670
      %v767 = vunpack.c.l.b16 %v671
      %v768 = vunpack.c.l.b16 %v672
      %v769 = vunpack.c.l.b16 %v673
      %v770 = vunpack.c.l.b16 %v674
      %v771 = vunpack.c.l.b16 %v675
      %v772 = vunpack.c.l.b16 %v676
      %v773 = vpack.c.b16 %v758, %v757
      %v774 = vpack.c.b16 %v760, %v759
      %v775 = vpack.c.b16 %v762, %v761
      %v776 = vpack.c.b16 %v764, %v763
      %v777 = vpack.c.b16 %v766, %v765
      %v778 = vpack.c.b16 %v768, %v767
      %v779 = vpack.c.b16 %v770, %v769
      %v780 = vpack.c.b16 %v772, %v771
      %789 = vmatprep.subr.bf16.mxu0 0
      %790 = vmatpush1.bf16.msra.mxu0 %v773
      %791 = vmatprep.subr.bf16.mxu0 0
      %792 = vmatpush1.bf16.msra.mxu0 %v774
      %793 = vmatprep.subr.bf16.mxu0 0
      %794 = vmatpush1.bf16.msra.mxu0 %v775
      %795 = vmatprep.subr.bf16.mxu0 0
      %796 = vmatpush1.bf16.msra.mxu0 %v776
      %797 = vmatprep.subr.bf16.mxu0 0
      %798 = vmatpush1.bf16.msra.mxu0 %v777
      %799 = vmatprep.subr.bf16.mxu0 0
      %800 = vmatpush1.bf16.msra.mxu0 %v778
      %801 = vmatprep.subr.bf16.mxu0 0
      %802 = vmatpush1.bf16.msra.mxu0 %v779
      %803 = vmatprep.subr.bf16.mxu0 0
      %804 = vmatpush1.bf16.msra.mxu0 %v780
      %805 = vmatprep.subr.bf16.mxu0 0
      %806 = vmatpush1.bf16.msra.mxu0 0
      %807 = vmatprep.subr.bf16.mxu0 0
      %808 = vmatpush1.bf16.msra.mxu0 0
      %809 = vmatprep.subr.bf16.mxu0 0
      %810 = vmatpush1.bf16.msra.mxu0 0
      %811 = vmatprep.subr.bf16.mxu0 0
      %812 = vmatpush1.bf16.msra.mxu0 0
      %813 = vmatprep.subr.bf16.mxu0 0
      %814 = vmatpush1.bf16.msra.mxu0 0
      %815 = vmatprep.subr.bf16.mxu0 0
      %816 = vmatpush1.bf16.msra.mxu0 0
      %817 = vmatprep.subr.bf16.mxu0 0
      %818 = vmatpush1.bf16.msra.mxu0 0
      %819 = vmatprep.subr.bf16.mxu0 0
      %820 = vmatpush1.bf16.msra.mxu0 0
      %821 = vmatprep.mubr.bf16.mxu0 0
      %822 = vmatmul.mubr.bf16.gmra.mrb[0].mxu0 %v709
      %v823 = vpop.f32.mrb[0].mxu0
      %v824 = vadd.f32 0.0, %v823
      %v825 = vpop.f32.mrb[0].mxu0
      %v826 = vpop.f32.mrb[0].mxu0
      %v827 = vadd.f32 0.0, %v826
      %v828 = vpop.f32.mrb[0].mxu0
      %829 = vmatprep.mubr.bf16.mxu0 0
      %830 = vmatmul.mubr.bf16.gmra.mrb[0].mxu0 %v710
      %v831 = vpop.f32.mrb[0].mxu0
      %v832 = vadd.f32 0.0, %v831
      %v833 = vpop.f32.mrb[0].mxu0
      %v834 = vpop.f32.mrb[0].mxu0
      %v835 = vadd.f32 0.0, %v834
      %v836 = vpop.f32.mrb[0].mxu0
      %837 = vmatprep.mubr.bf16.mxu0 0
      %838 = vmatmul.mubr.bf16.gmra.mrb[0].mxu0 %v711
      %v839 = vpop.f32.mrb[0].mxu0
      %v840 = vadd.f32 0.0, %v839
      %v841 = vpop.f32.mrb[0].mxu0
      %v842 = vpop.f32.mrb[0].mxu0
      %v843 = vadd.f32 0.0, %v842
      %v844 = vpop.f32.mrb[0].mxu0
      %845 = vmatprep.mubr.bf16.mxu0 0
      %846 = vmatmul.mubr.bf16.gmra.mrb[0].mxu0 %v712
      %v847 = vpop.f32.mrb[0].mxu0
      %v848 = vadd.f32 0.0, %v847
      %v849 = vpop.f32.mrb[0].mxu0
      %v850 = vpop.f32.mrb[0].mxu0
      %v851 = vadd.f32 0.0, %v850
      %v852 = vpop.f32.mrb[0].mxu0
      %853 = vmatprep.mubr.bf16.mxu0 0
      %854 = vmatmul.mubr.bf16.gmra.mrb[0].mxu0 %v713
      %v855 = vpop.f32.mrb[0].mxu0
      %v856 = vadd.f32 0.0, %v855
      %v857 = vpop.f32.mrb[0].mxu0
      %v858 = vpop.f32.mrb[0].mxu0
      %v859 = vadd.f32 0.0, %v858
      %v860 = vpop.f32.mrb[0].mxu0
      %861 = vmatprep.mubr.bf16.mxu0 0
      %862 = vmatmul.mubr.bf16.gmra.mrb[0].mxu0 %v714
      %v863 = vpop.f32.mrb[0].mxu0
      %v864 = vadd.f32 0.0, %v863
      %v865 = vpop.f32.mrb[0].mxu0
      %v866 = vpop.f32.mrb[0].mxu0
      %v867 = vadd.f32 0.0, %v866
      %v868 = vpop.f32.mrb[0].mxu0
      %869 = vmatprep.mubr.bf16.mxu0 0
      %870 = vmatmul.mubr.bf16.gmra.mrb[0].mxu0 %v715
      %v871 = vpop.f32.mrb[0].mxu0
      %v872 = vadd.f32 0.0, %v871
      %v873 = vpop.f32.mrb[0].mxu0
      %v874 = vpop.f32.mrb[0].mxu0
      %v875 = vadd.f32 0.0, %v874
      %v876 = vpop.f32.mrb[0].mxu0
      %877 = vmatprep.mubr.bf16.mxu0 0
      %878 = vmatmul.mubr.bf16.gmra.mrb[0].mxu0 %v716
      %v879 = vpop.f32.mrb[0].mxu0
      %v880 = vadd.f32 0.0, %v879
      %v881 = vpop.f32.mrb[0].mxu0
      %v882 = vpop.f32.mrb[0].mxu0
      %v883 = vadd.f32 0.0, %v882
      %v884 = vpop.f32.mrb[0].mxu0
      %885 = vmatprep.mubr.bf16.mxu0 0
      %886 = vmatmul.mubr.bf16.gmra.mrb[0].mxu0 %v717
      %v887 = vpop.f32.mrb[0].mxu0
      %v888 = vadd.f32 0.0, %v887
      %v889 = vpop.f32.mrb[0].mxu0
      %v890 = vpop.f32.mrb[0].mxu0
      %v891 = vadd.f32 0.0, %v890
      %v892 = vpop.f32.mrb[0].mxu0
      %893 = vmatprep.mubr.bf16.mxu0 0
      %894 = vmatmul.mubr.bf16.gmra.mrb[0].mxu0 %v718
      %v895 = vpop.f32.mrb[0].mxu0
      %v896 = vadd.f32 0.0, %v895
      %v897 = vpop.f32.mrb[0].mxu0
      %v898 = vpop.f32.mrb[0].mxu0
      %v899 = vadd.f32 0.0, %v898
      %v900 = vpop.f32.mrb[0].mxu0
      %901 = vmatprep.mubr.bf16.mxu0 0
      %902 = vmatmul.mubr.bf16.gmra.mrb[0].mxu0 %v719
      %v903 = vpop.f32.mrb[0].mxu0
      %v904 = vadd.f32 0.0, %v903
      %v905 = vpop.f32.mrb[0].mxu0
      %v906 = vpop.f32.mrb[0].mxu0
      %v907 = vadd.f32 0.0, %v906
      %v908 = vpop.f32.mrb[0].mxu0
      %909 = vmatprep.mubr.bf16.mxu0 0
      %910 = vmatmul.mubr.bf16.gmra.mrb[0].mxu0 %v720
      %v911 = vpop.f32.mrb[0].mxu0
      %v912 = vadd.f32 0.0, %v911
      %v913 = vpop.f32.mrb[0].mxu0
      %v914 = vpop.f32.mrb[0].mxu0
      %v915 = vadd.f32 0.0, %v914
      %v916 = vpop.f32.mrb[0].mxu0
      %917 = vmatprep.mubr.bf16.mxu0 0
      %918 = vmatmul.mubr.bf16.gmra.mrb[0].mxu0 %v721
      %v919 = vpop.f32.mrb[0].mxu0
      %v920 = vadd.f32 0.0, %v919
      %v921 = vpop.f32.mrb[0].mxu0
      %v922 = vpop.f32.mrb[0].mxu0
      %v923 = vadd.f32 0.0, %v922
      %v924 = vpop.f32.mrb[0].mxu0
      %925 = vmatprep.mubr.bf16.mxu0 0
      %926 = vmatmul.mubr.bf16.gmra.mrb[0].mxu0 %v722
      %v927 = vpop.f32.mrb[0].mxu0
      %v928 = vadd.f32 0.0, %v927
      %v929 = vpop.f32.mrb[0].mxu0
      %v930 = vpop.f32.mrb[0].mxu0
      %v931 = vadd.f32 0.0, %v930
      %v932 = vpop.f32.mrb[0].mxu0
      %933 = vmatprep.mubr.bf16.mxu0 0
      %934 = vmatmul.mubr.bf16.gmra.mrb[0].mxu0 %v723
      %v935 = vpop.f32.mrb[0].mxu0
      %v936 = vadd.f32 0.0, %v935
      %v937 = vpop.f32.mrb[0].mxu0
      %v938 = vpop.f32.mrb[0].mxu0
      %v939 = vadd.f32 0.0, %v938
      %v940 = vpop.f32.mrb[0].mxu0
      %941 = vmatprep.mubr.bf16.mxu0 0
      %942 = vmatmul.mubr.bf16.gmra.mrb[0].mxu0 %v724
      %v943 = vpop.f32.mrb[0].mxu0
      %v944 = vadd.f32 0.0, %v943
      %v945 = vpop.f32.mrb[0].mxu0
      %v946 = vpop.f32.mrb[0].mxu0
      %v947 = vadd.f32 0.0, %v946
      %v948 = vpop.f32.mrb[0].mxu0
      %949 = vdwg.mxu0
      %v982 = vunpack.c.l.b16 %v249
      %v983 = vunpack.c.l.b16 %v250
      %v984 = vunpack.c.l.b16 %v251
      %v985 = vunpack.c.l.b16 %v252
      %v986 = vunpack.c.l.b16 %v253
      %v987 = vunpack.c.l.b16 %v254
      %v988 = vunpack.c.l.b16 %v255
      %v989 = vunpack.c.l.b16 %v256
      %v990 = vunpack.c.l.b16 %v257
      %v991 = vunpack.c.l.b16 %v258
      %v992 = vunpack.c.l.b16 %v259
      %v993 = vunpack.c.l.b16 %v260
      %v994 = vunpack.c.l.b16 %v261
      %v995 = vunpack.c.l.b16 %v262
      %v996 = vunpack.c.l.b16 %v263
      %v997 = vunpack.c.l.b16 %v264
      %v998 = vunpack.c.l.b16 %v265
      %v999 = vunpack.c.l.b16 %v266
      %v1000 = vunpack.c.l.b16 %v267
      %v1001 = vunpack.c.l.b16 %v268
      %v1002 = vunpack.c.l.b16 %v269
      %v1003 = vunpack.c.l.b16 %v270
      %v1004 = vunpack.c.l.b16 %v271
      %v1005 = vunpack.c.l.b16 %v272
      %v1006 = vunpack.c.l.b16 %v273
      %v1007 = vunpack.c.l.b16 %v274
      %v1008 = vunpack.c.l.b16 %v275
      %v1009 = vunpack.c.l.b16 %v276
      %v1010 = vunpack.c.l.b16 %v277
      %v1011 = vunpack.c.l.b16 %v278
      %v1012 = vunpack.c.l.b16 %v279
      %v1013 = vunpack.c.l.b16 %v280
      %v1014 = vpack.c.b16 %v983, %v982
      %v1015 = vpack.c.b16 %v985, %v984
      %v1016 = vpack.c.b16 %v987, %v986
      %v1017 = vpack.c.b16 %v989, %v988
      %v1018 = vpack.c.b16 %v991, %v990
      %v1019 = vpack.c.b16 %v993, %v992
      %v1020 = vpack.c.b16 %v995, %v994
      %v1021 = vpack.c.b16 %v997, %v996
      %v1022 = vpack.c.b16 %v999, %v998
      %v1023 = vpack.c.b16 %v1001, %v1000
      %v1024 = vpack.c.b16 %v1003, %v1002
      %v1025 = vpack.c.b16 %v1005, %v1004
      %v1026 = vpack.c.b16 %v1007, %v1006
      %v1027 = vpack.c.b16 %v1009, %v1008
      %v1028 = vpack.c.b16 %v1011, %v1010
      %v1029 = vpack.c.b16 %v1013, %v1012
      %v1062 = vunpack.c.l.b16 %v281
      %v1063 = vunpack.c.l.b16 %v282
      %v1064 = vunpack.c.l.b16 %v283
      %v1065 = vunpack.c.l.b16 %v284
      %v1066 = vunpack.c.l.b16 %v285
      %v1067 = vunpack.c.l.b16 %v286
      %v1068 = vunpack.c.l.b16 %v287
      %v1069 = vunpack.c.l.b16 %v288
      %v1070 = vunpack.c.l.b16 %v289
      %v1071 = vunpack.c.l.b16 %v290
      %v1072 = vunpack.c.l.b16 %v291
      %v1073 = vunpack.c.l.b16 %v292
      %v1074 = vunpack.c.l.b16 %v293
      %v1075 = vunpack.c.l.b16 %v294
      %v1076 = vunpack.c.l.b16 %v295
      %v1077 = vunpack.c.l.b16 %v296
      %v1078 = vpack.c.b16 %v1063, %v1062
      %v1079 = vpack.c.b16 %v1065, %v1064
      %v1080 = vpack.c.b16 %v1067, %v1066
      %v1081 = vpack.c.b16 %v1069, %v1068
      %v1082 = vpack.c.b16 %v1071, %v1070
      %v1083 = vpack.c.b16 %v1073, %v1072
      %v1084 = vpack.c.b16 %v1075, %v1074
      %v1085 = vpack.c.b16 %v1077, %v1076
      %1094 = vmatprep.subr.bf16.mxu0 0
      %1095 = vmatpush1.bf16.msra.mxu0 %v1078
      %1096 = vmatprep.subr.bf16.mxu0 0
      %1097 = vmatpush1.bf16.msra.mxu0 %v1079
      %1098 = vmatprep.subr.bf16.mxu0 0
      %1099 = vmatpush1.bf16.msra.mxu0 %v1080
      %1100 = vmatprep.subr.bf16.mxu0 0
      %1101 = vmatpush1.bf16.msra.mxu0 %v1081
      %1102 = vmatprep.subr.bf16.mxu0 0
      %1103 = vmatpush1.bf16.msra.mxu0 %v1082
      %1104 = vmatprep.subr.bf16.mxu0 0
      %1105 = vmatpush1.bf16.msra.mxu0 %v1083
      %1106 = vmatprep.subr.bf16.mxu0 0
      %1107 = vmatpush1.bf16.msra.mxu0 %v1084
      %1108 = vmatprep.subr.bf16.mxu0 0
      %1109 = vmatpush1.bf16.msra.mxu0 %v1085
      %1110 = vmatprep.subr.bf16.mxu0 0
      %1111 = vmatpush1.bf16.msra.mxu0 0
      %1112 = vmatprep.subr.bf16.mxu0 0
      %1113 = vmatpush1.bf16.msra.mxu0 0
      %1114 = vmatprep.subr.bf16.mxu0 0
      %1115 = vmatpush1.bf16.msra.mxu0 0
      %1116 = vmatprep.subr.bf16.mxu0 0
      %1117 = vmatpush1.bf16.msra.mxu0 0
      %1118 = vmatprep.subr.bf16.mxu0 0
      %1119 = vmatpush1.bf16.msra.mxu0 0
      %1120 = vmatprep.subr.bf16.mxu0 0
      %1121 = vmatpush1.bf16.msra.mxu0 0
      %1122 = vmatprep.subr.bf16.mxu0 0
      %1123 = vmatpush1.bf16.msra.mxu0 0
      %1124 = vmatprep.subr.bf16.mxu0 0
      %1125 = vmatpush1.bf16.msra.mxu0 0
      %1126 = vmatprep.mubr.bf16.mxu0 0
      %1127 = vmatmul.mubr.bf16.gmra.mrb[0].mxu0 %v1014
      %v1128 = vpop.f32.mrb[0].mxu0
      %v1129 = vadd.f32 %v824, %v1128
      %v1130 = vpop.f32.mrb[0].mxu0
      %v1131 = vpop.f32.mrb[0].mxu0
      %v1132 = vadd.f32 %v827, %v1131
      %v1133 = vpop.f32.mrb[0].mxu0
      %1134 = vmatprep.mubr.bf16.mxu0 0
      %1135 = vmatmul.mubr.bf16.gmra.mrb[0].mxu0 %v1015
      %v1136 = vpop.f32.mrb[0].mxu0
      %v1137 = vadd.f32 %v832, %v1136
      %v1138 = vpop.f32.mrb[0].mxu0
      %v1139 = vpop.f32.mrb[0].mxu0
      %v1140 = vadd.f32 %v835, %v1139
      %v1141 = vpop.f32.mrb[0].mxu0
      %1142 = vmatprep.mubr.bf16.mxu0 0
      %1143 = vmatmul.mubr.bf16.gmra.mrb[0].mxu0 %v1016
      %v1144 = vpop.f32.mrb[0].mxu0
      %v1145 = vadd.f32 %v840, %v1144
      %v1146 = vpop.f32.mrb[0].mxu0
      %v1147 = vpop.f32.mrb[0].mxu0
      %v1148 = vadd.f32 %v843, %v1147
      %v1149 = vpop.f32.mrb[0].mxu0
      %1150 = vmatprep.mubr.bf16.mxu0 0
      %1151 = vmatmul.mubr.bf16.gmra.mrb[0].mxu0 %v1017
      %v1152 = vpop.f32.mrb[0].mxu0
      %v1153 = vadd.f32 %v848, %v1152
      %v1154 = vpop.f32.mrb[0].mxu0
      %v1155 = vpop.f32.mrb[0].mxu0
      %v1156 = vadd.f32 %v851, %v1155
      %v1157 = vpop.f32.mrb[0].mxu0
      %1158 = vmatprep.mubr.bf16.mxu0 0
      %1159 = vmatmul.mubr.bf16.gmra.mrb[0].mxu0 %v1018
      %v1160 = vpop.f32.mrb[0].mxu0
      %v1161 = vadd.f32 %v856, %v1160
      %v1162 = vpop.f32.mrb[0].mxu0
      %v1163 = vpop.f32.mrb[0].mxu0
      %v1164 = vadd.f32 %v859, %v1163
      %v1165 = vpop.f32.mrb[0].mxu0
      %1166 = vmatprep.mubr.bf16.mxu0 0
      %1167 = vmatmul.mubr.bf16.gmra.mrb[0].mxu0 %v1019
      %v1168 = vpop.f32.mrb[0].mxu0
      %v1169 = vadd.f32 %v864, %v1168
      %v1170 = vpop.f32.mrb[0].mxu0
      %v1171 = vpop.f32.mrb[0].mxu0
      %v1172 = vadd.f32 %v867, %v1171
      %v1173 = vpop.f32.mrb[0].mxu0
      %1174 = vmatprep.mubr.bf16.mxu0 0
      %1175 = vmatmul.mubr.bf16.gmra.mrb[0].mxu0 %v1020
      %v1176 = vpop.f32.mrb[0].mxu0
      %v1177 = vadd.f32 %v872, %v1176
      %v1178 = vpop.f32.mrb[0].mxu0
      %v1179 = vpop.f32.mrb[0].mxu0
      %v1180 = vadd.f32 %v875, %v1179
      %v1181 = vpop.f32.mrb[0].mxu0
      %1182 = vmatprep.mubr.bf16.mxu0 0
      %1183 = vmatmul.mubr.bf16.gmra.mrb[0].mxu0 %v1021
      %v1184 = vpop.f32.mrb[0].mxu0
      %v1185 = vadd.f32 %v880, %v1184
      %v1186 = vpop.f32.mrb[0].mxu0
      %v1187 = vpop.f32.mrb[0].mxu0
      %v1188 = vadd.f32 %v883, %v1187
      %v1189 = vpop.f32.mrb[0].mxu0
      %1190 = vmatprep.mubr.bf16.mxu0 0
      %1191 = vmatmul.mubr.bf16.gmra.mrb[0].mxu0 %v1022
      %v1192 = vpop.f32.mrb[0].mxu0
      %v1193 = vadd.f32 %v888, %v1192
      %v1194 = vpop.f32.mrb[0].mxu0
      %v1195 = vpop.f32.mrb[0].mxu0
      %v1196 = vadd.f32 %v891, %v1195
      %v1197 = vpop.f32.mrb[0].mxu0
      %1198 = vmatprep.mubr.bf16.mxu0 0
      %1199 = vmatmul.mubr.bf16.gmra.mrb[0].mxu0 %v1023
      %v1200 = vpop.f32.mrb[0].mxu0
      %v1201 = vadd.f32 %v896, %v1200
      %v1202 = vpop.f32.mrb[0].mxu0
      %v1203 = vpop.f32.mrb[0].mxu0
      %v1204 = vadd.f32 %v899, %v1203
      %v1205 = vpop.f32.mrb[0].mxu0
      %1206 = vmatprep.mubr.bf16.mxu0 0
      %1207 = vmatmul.mubr.bf16.gmra.mrb[0].mxu0 %v1024
      %v1208 = vpop.f32.mrb[0].mxu0
      %v1209 = vadd.f32 %v904, %v1208
      %v1210 = vpop.f32.mrb[0].mxu0
      %v1211 = vpop.f32.mrb[0].mxu0
      %v1212 = vadd.f32 %v907, %v1211
      %v1213 = vpop.f32.mrb[0].mxu0
      %1214 = vmatprep.mubr.bf16.mxu0 0
      %1215 = vmatmul.mubr.bf16.gmra.mrb[0].mxu0 %v1025
      %v1216 = vpop.f32.mrb[0].mxu0
      %v1217 = vadd.f32 %v912, %v1216
      %v1218 = vpop.f32.mrb[0].mxu0
      %v1219 = vpop.f32.mrb[0].mxu0
      %v1220 = vadd.f32 %v915, %v1219
      %v1221 = vpop.f32.mrb[0].mxu0
      %1222 = vmatprep.mubr.bf16.mxu0 0
      %1223 = vmatmul.mubr.bf16.gmra.mrb[0].mxu0 %v1026
      %v1224 = vpop.f32.mrb[0].mxu0
      %v1225 = vadd.f32 %v920, %v1224
      %v1226 = vpop.f32.mrb[0].mxu0
      %v1227 = vpop.f32.mrb[0].mxu0
      %v1228 = vadd.f32 %v923, %v1227
      %v1229 = vpop.f32.mrb[0].mxu0
      %1230 = vmatprep.mubr.bf16.mxu0 0
      %1231 = vmatmul.mubr.bf16.gmra.mrb[0].mxu0 %v1027
      %v1232 = vpop.f32.mrb[0].mxu0
      %v1233 = vadd.f32 %v928, %v1232
      %v1234 = vpop.f32.mrb[0].mxu0
      %v1235 = vpop.f32.mrb[0].mxu0
      %v1236 = vadd.f32 %v931, %v1235
      %v1237 = vpop.f32.mrb[0].mxu0
      %1238 = vmatprep.mubr.bf16.mxu0 0
      %1239 = vmatmul.mubr.bf16.gmra.mrb[0].mxu0 %v1028
      %v1240 = vpop.f32.mrb[0].mxu0
      %v1241 = vadd.f32 %v936, %v1240
      %v1242 = vpop.f32.mrb[0].mxu0
      %v1243 = vpop.f32.mrb[0].mxu0
      %v1244 = vadd.f32 %v939, %v1243
      %v1245 = vpop.f32.mrb[0].mxu0
      %1246 = vmatprep.mubr.bf16.mxu0 0
      %1247 = vmatmul.mubr.bf16.gmra.mrb[0].mxu0 %v1029
      %v1248 = vpop.f32.mrb[0].mxu0
      %v1249 = vadd.f32 %v944, %v1248
      %v1250 = vpop.f32.mrb[0].mxu0
      %v1251 = vpop.f32.mrb[0].mxu0
      %v1252 = vadd.f32 %v947, %v1251
      %v1253 = vpop.f32.mrb[0].mxu0
      %1254 = vdwg.mxu0
      %v1255 = vld [vmem:[%s248] sm:$0xe]
      %v1256 = vld [vmem:[%s248 + $0x14] sm:$0xe]
      %v1257 = vld [vmem:[%s248 + $0x28] sm:$0xe]
      %v1258 = vld [vmem:[%s248 + $0x3c] sm:$0xe]
      %v1259 = vld [vmem:[%s248 + $0x50] sm:$0xe]
      %v1260 = vld [vmem:[%s248 + $0x64] sm:$0xe]
      %v1261 = vld [vmem:[%s248 + $0x78] sm:$0xe]
      %v1262 = vld [vmem:[%s248 + $0x8c] sm:$0xe]
      %vm1279 = vcmask 1042432
      %vm1280 = vcmask 1046532
      %vm1281 = vmor %vm1279, %vm1280
      %v1282 = vrot.slane %v1255, 5
      %v1283 = vrot.slane %v1282, 4
      %v1284 = vrot.slane %v250, 5
      %v1285 = vsel %vm1281, %v1283, %v1284
      %v1286 = vrot.slane %v1284, 4
      %v1287 = vrot.slane %v251, 5
      %v1288 = vsel %vm1281, %v1286, %v1287
      %v1289 = vrot.slane %v1287, 4
      %v1290 = vrot.slane %v252, 5
      %v1291 = vsel %vm1281, %v1289, %v1290
      %v1292 = vrot.slane %v1290, 4
      %v1293 = vrot.slane %v297, 5
      %v1294 = vsel %vm1281, %v1292, %v1293
      %v1295 = vrot.slane %v1256, 5
      %v1296 = vrot.slane %v1295, 4
      %v1297 = vrot.slane %v254, 5
      %v1298 = vsel %vm1281, %v1296, %v1297
      %v1299 = vrot.slane %v1297, 4
      %v1300 = vrot.slane %v255, 5
      %v1301 = vsel %vm1281, %v1299, %v1300
      %v1302 = vrot.slane %v1300, 4
      %v1303 = vrot.slane %v256, 5
      %v1304 = vsel %vm1281, %v1302, %v1303
      %v1305 = vrot.slane %v1303, 4
      %v1306 = vrot.slane %v298, 5
      %v1307 = vsel %vm1281, %v1305, %v1306
      %v1308 = vrot.slane %v1257, 5
      %v1309 = vrot.slane %v1308, 4
      %v1310 = vrot.slane %v258, 5
      %v1311 = vsel %vm1281, %v1309, %v1310
      %v1312 = vrot.slane %v1310, 4
      %v1313 = vrot.slane %v259, 5
      %v1314 = vsel %vm1281, %v1312, %v1313
      %v1315 = vrot.slane %v1313, 4
      %v1316 = vrot.slane %v260, 5
      %v1317 = vsel %vm1281, %v1315, %v1316
      %v1318 = vrot.slane %v1316, 4
      %v1319 = vrot.slane %v299, 5
      %v1320 = vsel %vm1281, %v1318, %v1319
      %v1321 = vrot.slane %v1258, 5
      %v1322 = vrot.slane %v1321, 4
      %v1323 = vrot.slane %v262, 5
      %v1324 = vsel %vm1281, %v1322, %v1323
      %v1325 = vrot.slane %v1323, 4
      %v1326 = vrot.slane %v263, 5
      %v1327 = vsel %vm1281, %v1325, %v1326
      %v1328 = vrot.slane %v1326, 4
      %v1329 = vrot.slane %v264, 5
      %v1330 = vsel %vm1281, %v1328, %v1329
      %v1331 = vrot.slane %v1329, 4
      %v1332 = vrot.slane %v300, 5
      %v1333 = vsel %vm1281, %v1331, %v1332
      %v1334 = vrot.slane %v1259, 5
      %v1335 = vrot.slane %v1334, 4
      %v1336 = vrot.slane %v266, 5
      %v1337 = vsel %vm1281, %v1335, %v1336
      %v1338 = vrot.slane %v1336, 4
      %v1339 = vrot.slane %v267, 5
      %v1340 = vsel %vm1281, %v1338, %v1339
      %v1341 = vrot.slane %v1339, 4
      %v1342 = vrot.slane %v268, 5
      %v1343 = vsel %vm1281, %v1341, %v1342
      %v1344 = vrot.slane %v1342, 4
      %v1345 = vrot.slane %v301, 5
      %v1346 = vsel %vm1281, %v1344, %v1345
      %v1347 = vrot.slane %v1260, 5
      %v1348 = vrot.slane %v1347, 4
      %v1349 = vrot.slane %v270, 5
      %v1350 = vsel %vm1281, %v1348, %v1349
      %v1351 = vrot.slane %v1349, 4
      %v1352 = vrot.slane %v271, 5
      %v1353 = vsel %vm1281, %v1351, %v1352
      %v1354 = vrot.slane %v1352, 4
      %v1355 = vrot.slane %v272, 5
      %v1356 = vsel %vm1281, %v1354, %v1355
      %v1357 = vrot.slane %v1355, 4
      %v1358 = vrot.slane %v302, 5
      %v1359 = vsel %vm1281, %v1357, %v1358
      %v1360 = vrot.slane %v1261, 5
      %v1361 = vrot.slane %v1360, 4
      %v1362 = vrot.slane %v274, 5
      %v1363 = vsel %vm1281, %v1361, %v1362
      %v1364 = vrot.slane %v1362, 4
      %v1365 = vrot.slane %v275, 5
      %v1366 = vsel %vm1281, %v1364, %v1365
      %v1367 = vrot.slane %v1365, 4
      %v1368 = vrot.slane %v276, 5
      %v1369 = vsel %vm1281, %v1367, %v1368
      %v1370 = vrot.slane %v1368, 4
      %v1371 = vrot.slane %v303, 5
      %v1372 = vsel %vm1281, %v1370, %v1371
      %v1373 = vrot.slane %v1262, 5
      %v1374 = vrot.slane %v1373, 4
      %v1375 = vrot.slane %v278, 5
      %v1376 = vsel %vm1281, %v1374, %v1375
      %v1377 = vrot.slane %v1375, 4
      %v1378 = vrot.slane %v279, 5
      %v1379 = vsel %vm1281, %v1377, %v1378
      %v1380 = vrot.slane %v1378, 4
      %v1381 = vrot.slane %v280, 5
      %v1382 = vsel %vm1281, %v1380, %v1381
      %v1383 = vrot.slane %v1381, 4
      %v1384 = vrot.slane %v304, 5
      %v1385 = vsel %vm1281, %v1383, %v1384
      %s1386 = scalar_lea.vmem %s1, 128
      %v1387 = vld [vmem:[%s1386] sm:$0xf]
      %v1388 = vld [vmem:[%s1386 + $0x4] sm:$0xf]
      %v1389 = vld [vmem:[%s1386 + $0x8] sm:$0xf]
      %v1390 = vld [vmem:[%s1386 + $0xc] sm:$0xf]
      %v1391 = vld [vmem:[%s1386 + $0x10] sm:$0xf]
      %v1392 = vld [vmem:[%s1386 + $0x14] sm:$0xf]
      %v1393 = vld [vmem:[%s1386 + $0x18] sm:$0xf]
      %v1394 = vld [vmem:[%s1386 + $0x1c] sm:$0xf]
      %v1395 = vld [vmem:[%s1386 + $0x20] sm:$0xf]
      %v1396 = vld [vmem:[%s1386 + $0x24] sm:$0xf]
      %v1397 = vld [vmem:[%s1386 + $0x28] sm:$0xf]
      %v1398 = vld [vmem:[%s1386 + $0x2c] sm:$0xf]
      %v1399 = vld [vmem:[%s1386 + $0x30] sm:$0xf]
      %v1400 = vld [vmem:[%s1386 + $0x34] sm:$0xf]
      %v1401 = vld [vmem:[%s1386 + $0x38] sm:$0xf]
      %v1402 = vld [vmem:[%s1386 + $0x3c] sm:$0xf]
      %v1403 = vunpack.c.l.b16 %v1285
      %v1404 = vunpack.c.l.b16 %v1288
      %v1405 = vunpack.c.l.b16 %v1291
      %v1406 = vunpack.c.l.b16 %v1294
      %v1407 = vunpack.c.l.b16 %v1298
      %v1408 = vunpack.c.l.b16 %v1301
      %v1409 = vunpack.c.l.b16 %v1304
      %v1410 = vunpack.c.l.b16 %v1307
      %v1411 = vunpack.c.l.b16 %v1311
      %v1412 = vunpack.c.l.b16 %v1314
      %v1413 = vunpack.c.l.b16 %v1317
      %v1414 = vunpack.c.l.b16 %v1320
      %v1415 = vunpack.c.l.b16 %v1324
      %v1416 = vunpack.c.l.b16 %v1327
      %v1417 = vunpack.c.l.b16 %v1330
      %v1418 = vunpack.c.l.b16 %v1333
      %v1419 = vunpack.c.l.b16 %v1337
      %v1420 = vunpack.c.l.b16 %v1340
      %v1421 = vunpack.c.l.b16 %v1343
      %v1422 = vunpack.c.l.b16 %v1346
      %v1423 = vunpack.c.l.b16 %v1350
      %v1424 = vunpack.c.l.b16 %v1353
      %v1425 = vunpack.c.l.b16 %v1356
      %v1426 = vunpack.c.l.b16 %v1359
      %v1427 = vunpack.c.l.b16 %v1363
      %v1428 = vunpack.c.l.b16 %v1366
      %v1429 = vunpack.c.l.b16 %v1369
      %v1430 = vunpack.c.l.b16 %v1372
      %v1431 = vunpack.c.l.b16 %v1376
      %v1432 = vunpack.c.l.b16 %v1379
      %v1433 = vunpack.c.l.b16 %v1382
      %v1434 = vunpack.c.l.b16 %v1385
      %v1435 = vpack.c.b16 %v1404, %v1403
      %v1436 = vpack.c.b16 %v1406, %v1405
      %v1437 = vpack.c.b16 %v1408, %v1407
      %v1438 = vpack.c.b16 %v1410, %v1409
      %v1439 = vpack.c.b16 %v1412, %v1411
      %v1440 = vpack.c.b16 %v1414, %v1413
      %v1441 = vpack.c.b16 %v1416, %v1415
      %v1442 = vpack.c.b16 %v1418, %v1417
      %v1443 = vpack.c.b16 %v1420, %v1419
      %v1444 = vpack.c.b16 %v1422, %v1421
      %v1445 = vpack.c.b16 %v1424, %v1423
      %v1446 = vpack.c.b16 %v1426, %v1425
      %v1447 = vpack.c.b16 %v1428, %v1427
      %v1448 = vpack.c.b16 %v1430, %v1429
      %v1449 = vpack.c.b16 %v1432, %v1431
      %v1450 = vpack.c.b16 %v1434, %v1433
      %v1483 = vunpack.c.l.b16 %v1387
      %v1484 = vunpack.c.l.b16 %v1388
      %v1485 = vunpack.c.l.b16 %v1389
      %v1486 = vunpack.c.l.b16 %v1390
      %v1487 = vunpack.c.l.b16 %v1391
      %v1488 = vunpack.c.l.b16 %v1392
      %v1489 = vunpack.c.l.b16 %v1393
      %v1490 = vunpack.c.l.b16 %v1394
      %v1491 = vunpack.c.l.b16 %v1395
      %v1492 = vunpack.c.l.b16 %v1396
      %v1493 = vunpack.c.l.b16 %v1397
      %v1494 = vunpack.c.l.b16 %v1398
      %v1495 = vunpack.c.l.b16 %v1399
      %v1496 = vunpack.c.l.b16 %v1400
      %v1497 = vunpack.c.l.b16 %v1401
      %v1498 = vunpack.c.l.b16 %v1402
      %v1499 = vpack.c.b16 %v1484, %v1483
      %v1500 = vpack.c.b16 %v1486, %v1485
      %v1501 = vpack.c.b16 %v1488, %v1487
      %v1502 = vpack.c.b16 %v1490, %v1489
      %v1503 = vpack.c.b16 %v1492, %v1491
      %v1504 = vpack.c.b16 %v1494, %v1493
      %v1505 = vpack.c.b16 %v1496, %v1495
      %v1506 = vpack.c.b16 %v1498, %v1497
      %1515 = vmatprep.subr.bf16.mxu0 0
      %1516 = vmatpush1.bf16.msra.mxu0 %v1499
      %1517 = vmatprep.subr.bf16.mxu0 0
      %1518 = vmatpush1.bf16.msra.mxu0 %v1500
      %1519 = vmatprep.subr.bf16.mxu0 0
      %1520 = vmatpush1.bf16.msra.mxu0 %v1501
      %1521 = vmatprep.subr.bf16.mxu0 0
      %1522 = vmatpush1.bf16.msra.mxu0 %v1502
      %1523 = vmatprep.subr.bf16.mxu0 0
      %1524 = vmatpush1.bf16.msra.mxu0 %v1503
      %1525 = vmatprep.subr.bf16.mxu0 0
      %1526 = vmatpush1.bf16.msra.mxu0 %v1504
      %1527 = vmatprep.subr.bf16.mxu0 0
      %1528 = vmatpush1.bf16.msra.mxu0 %v1505
      %1529 = vmatprep.subr.bf16.mxu0 0
      %1530 = vmatpush1.bf16.msra.mxu0 %v1506
      %1531 = vmatprep.subr.bf16.mxu0 0
      %1532 = vmatpush1.bf16.msra.mxu0 0
      %1533 = vmatprep.subr.bf16.mxu0 0
      %1534 = vmatpush1.bf16.msra.mxu0 0
      %1535 = vmatprep.subr.bf16.mxu0 0
      %1536 = vmatpush1.bf16.msra.mxu0 0
      %1537 = vmatprep.subr.bf16.mxu0 0
      %1538 = vmatpush1.bf16.msra.mxu0 0
      %1539 = vmatprep.subr.bf16.mxu0 0
      %1540 = vmatpush1.bf16.msra.mxu0 0
      %1541 = vmatprep.subr.bf16.mxu0 0
      %1542 = vmatpush1.bf16.msra.mxu0 0
      %1543 = vmatprep.subr.bf16.mxu0 0
      %1544 = vmatpush1.bf16.msra.mxu0 0
      %1545 = vmatprep.subr.bf16.mxu0 0
      %1546 = vmatpush1.bf16.msra.mxu0 0
      %1547 = vmatprep.mubr.bf16.mxu0 0
      %1548 = vmatmul.mubr.bf16.gmra.mrb[0].mxu0 %v1435
      %v1549 = vpop.f32.mrb[0].mxu0
      %v1550 = vadd.f32 0.0, %v1549
      %v1551 = vpop.f32.mrb[0].mxu0
      %v1552 = vpop.f32.mrb[0].mxu0
      %v1553 = vadd.f32 0.0, %v1552
      %v1554 = vpop.f32.mrb[0].mxu0
      %1555 = vmatprep.mubr.bf16.mxu0 0
      %1556 = vmatmul.mubr.bf16.gmra.mrb[0].mxu0 %v1436
      %v1557 = vpop.f32.mrb[0].mxu0
      %v1558 = vadd.f32 0.0, %v1557
      %v1559 = vpop.f32.mrb[0].mxu0
      %v1560 = vpop.f32.mrb[0].mxu0
      %v1561 = vadd.f32 0.0, %v1560
      %v1562 = vpop.f32.mrb[0].mxu0
      %1563 = vmatprep.mubr.bf16.mxu0 0
      %1564 = vmatmul.mubr.bf16.gmra.mrb[0].mxu0 %v1437
      %v1565 = vpop.f32.mrb[0].mxu0
      %v1566 = vadd.f32 0.0, %v1565
      %v1567 = vpop.f32.mrb[0].mxu0
      %v1568 = vpop.f32.mrb[0].mxu0
      %v1569 = vadd.f32 0.0, %v1568
      %v1570 = vpop.f32.mrb[0].mxu0
      %1571 = vmatprep.mubr.bf16.mxu0 0
      %1572 = vmatmul.mubr.bf16.gmra.mrb[0].mxu0 %v1438
      %v1573 = vpop.f32.mrb[0].mxu0
      %v1574 = vadd.f32 0.0, %v1573
      %v1575 = vpop.f32.mrb[0].mxu0
      %v1576 = vpop.f32.mrb[0].mxu0
      %v1577 = vadd.f32 0.0, %v1576
      %v1578 = vpop.f32.mrb[0].mxu0
      %1579 = vmatprep.mubr.bf16.mxu0 0
      %1580 = vmatmul.mubr.bf16.gmra.mrb[0].mxu0 %v1439
      %v1581 = vpop.f32.mrb[0].mxu0
      %v1582 = vadd.f32 0.0, %v1581
      %v1583 = vpop.f32.mrb[0].mxu0
      %v1584 = vpop.f32.mrb[0].mxu0
      %v1585 = vadd.f32 0.0, %v1584
      %v1586 = vpop.f32.mrb[0].mxu0
      %1587 = vmatprep.mubr.bf16.mxu0 0
      %1588 = vmatmul.mubr.bf16.gmra.mrb[0].mxu0 %v1440
      %v1589 = vpop.f32.mrb[0].mxu0
      %v1590 = vadd.f32 0.0, %v1589
      %v1591 = vpop.f32.mrb[0].mxu0
      %v1592 = vpop.f32.mrb[0].mxu0
      %v1593 = vadd.f32 0.0, %v1592
      %v1594 = vpop.f32.mrb[0].mxu0
      %1595 = vmatprep.mubr.bf16.mxu0 0
      %1596 = vmatmul.mubr.bf16.gmra.mrb[0].mxu0 %v1441
      %v1597 = vpop.f32.mrb[0].mxu0
      %v1598 = vadd.f32 0.0, %v1597
      %v1599 = vpop.f32.mrb[0].mxu0
      %v1600 = vpop.f32.mrb[0].mxu0
      %v1601 = vadd.f32 0.0, %v1600
      %v1602 = vpop.f32.mrb[0].mxu0
      %1603 = vmatprep.mubr.bf16.mxu0 0
      %1604 = vmatmul.mubr.bf16.gmra.mrb[0].mxu0 %v1442
      %v1605 = vpop.f32.mrb[0].mxu0
      %v1606 = vadd.f32 0.0, %v1605
      %v1607 = vpop.f32.mrb[0].mxu0
      %v1608 = vpop.f32.mrb[0].mxu0
      %v1609 = vadd.f32 0.0, %v1608
      %v1610 = vpop.f32.mrb[0].mxu0
      %1611 = vmatprep.mubr.bf16.mxu0 0
      %1612 = vmatmul.mubr.bf16.gmra.mrb[0].mxu0 %v1443
      %v1613 = vpop.f32.mrb[0].mxu0
      %v1614 = vadd.f32 0.0, %v1613
      %v1615 = vpop.f32.mrb[0].mxu0
      %v1616 = vpop.f32.mrb[0].mxu0
      %v1617 = vadd.f32 0.0, %v1616
      %v1618 = vpop.f32.mrb[0].mxu0
      %1619 = vmatprep.mubr.bf16.mxu0 0
      %1620 = vmatmul.mubr.bf16.gmra.mrb[0].mxu0 %v1444
      %v1621 = vpop.f32.mrb[0].mxu0
      %v1622 = vadd.f32 0.0, %v1621
      %v1623 = vpop.f32.mrb[0].mxu0
      %v1624 = vpop.f32.mrb[0].mxu0
      %v1625 = vadd.f32 0.0, %v1624
      %v1626 = vpop.f32.mrb[0].mxu0
      %1627 = vmatprep.mubr.bf16.mxu0 0
      %1628 = vmatmul.mubr.bf16.gmra.mrb[0].mxu0 %v1445
      %v1629 = vpop.f32.mrb[0].mxu0
      %v1630 = vadd.f32 0.0, %v1629
      %v1631 = vpop.f32.mrb[0].mxu0
      %v1632 = vpop.f32.mrb[0].mxu0
      %v1633 = vadd.f32 0.0, %v1632
      %v1634 = vpop.f32.mrb[0].mxu0
      %1635 = vmatprep.mubr.bf16.mxu0 0
      %1636 = vmatmul.mubr.bf16.gmra.mrb[0].mxu0 %v1446
      %v1637 = vpop.f32.mrb[0].mxu0
      %v1638 = vadd.f32 0.0, %v1637
      %v1639 = vpop.f32.mrb[0].mxu0
      %v1640 = vpop.f32.mrb[0].mxu0
      %v1641 = vadd.f32 0.0, %v1640
      %v1642 = vpop.f32.mrb[0].mxu0
      %1643 = vmatprep.mubr.bf16.mxu0 0
      %1644 = vmatmul.mubr.bf16.gmra.mrb[0].mxu0 %v1447
      %v1645 = vpop.f32.mrb[0].mxu0
      %v1646 = vadd.f32 0.0, %v1645
      %v1647 = vpop.f32.mrb[0].mxu0
      %v1648 = vpop.f32.mrb[0].mxu0
      %v1649 = vadd.f32 0.0, %v1648
      %v1650 = vpop.f32.mrb[0].mxu0
      %1651 = vmatprep.mubr.bf16.mxu0 0
      %1652 = vmatmul.mubr.bf16.gmra.mrb[0].mxu0 %v1448
      %v1653 = vpop.f32.mrb[0].mxu0
      %v1654 = vadd.f32 0.0, %v1653
      %v1655 = vpop.f32.mrb[0].mxu0
      %v1656 = vpop.f32.mrb[0].mxu0
      %v1657 = vadd.f32 0.0, %v1656
      %v1658 = vpop.f32.mrb[0].mxu0
      %1659 = vmatprep.mubr.bf16.mxu0 0
      %1660 = vmatmul.mubr.bf16.gmra.mrb[0].mxu0 %v1449
      %v1661 = vpop.f32.mrb[0].mxu0
      %v1662 = vadd.f32 0.0, %v1661
      %v1663 = vpop.f32.mrb[0].mxu0
      %v1664 = vpop.f32.mrb[0].mxu0
      %v1665 = vadd.f32 0.0, %v1664
      %v1666 = vpop.f32.mrb[0].mxu0
      %1667 = vmatprep.mubr.bf16.mxu0 0
      %1668 = vmatmul.mubr.bf16.gmra.mrb[0].mxu0 %v1450
      %v1669 = vpop.f32.mrb[0].mxu0
      %v1670 = vadd.f32 0.0, %v1669
      %v1671 = vpop.f32.mrb[0].mxu0
      %v1672 = vpop.f32.mrb[0].mxu0
      %v1673 = vadd.f32 0.0, %v1672
      %v1674 = vpop.f32.mrb[0].mxu0
      %1675 = vdwg.mxu0
      %v1676 = vadd.f32 %v1129, %v1550
      %v1677 = vadd.f32 %v1132, %v1553
      %v1678 = vadd.f32 %v1137, %v1558
      %v1679 = vadd.f32 %v1140, %v1561
      %v1680 = vadd.f32 %v1145, %v1566
      %v1681 = vadd.f32 %v1148, %v1569
      %v1682 = vadd.f32 %v1153, %v1574
      %v1683 = vadd.f32 %v1156, %v1577
      %v1684 = vadd.f32 %v1161, %v1582
      %v1685 = vadd.f32 %v1164, %v1585
      %v1686 = vadd.f32 %v1169, %v1590
      %v1687 = vadd.f32 %v1172, %v1593
      %v1688 = vadd.f32 %v1177, %v1598
      %v1689 = vadd.f32 %v1180, %v1601
      %v1690 = vadd.f32 %v1185, %v1606
      %v1691 = vadd.f32 %v1188, %v1609
      %v1692 = vadd.f32 %v1193, %v1614
      %v1693 = vadd.f32 %v1196, %v1617
      %v1694 = vadd.f32 %v1201, %v1622
      %v1695 = vadd.f32 %v1204, %v1625
      %v1696 = vadd.f32 %v1209, %v1630
      %v1697 = vadd.f32 %v1212, %v1633
      %v1698 = vadd.f32 %v1217, %v1638
      %v1699 = vadd.f32 %v1220, %v1641
      %v1700 = vadd.f32 %v1225, %v1646
      %v1701 = vadd.f32 %v1228, %v1649
      %v1702 = vadd.f32 %v1233, %v1654
      %v1703 = vadd.f32 %v1236, %v1657
      %v1704 = vadd.f32 %v1241, %v1662
      %v1705 = vadd.f32 %v1244, %v1665
      %v1706 = vadd.f32 %v1249, %v1670
      %v1707 = vadd.f32 %v1252, %v1673
      %s1708 = sadd.s32 %s245, 1
      %s1709 = smul.u32 %s1708, 5
      %s1710 = smul.addr %s1709, 4
      %s1711 = scalar_lea.vmem %s224, %s1710
      %v1712 = vld [vmem:[%s1711] sm:$0xf]
      %v1713 = vld [vmem:[%s1711 + $0x4] sm:$0xf]
      %v1714 = vld [vmem:[%s1711 + $0x8] sm:$0xf]
      %v1715 = vld [vmem:[%s1711 + $0xc] sm:$0xf]
      %v1716 = vld [vmem:[%s1711 + $0x14] sm:$0xf]
      %v1717 = vld [vmem:[%s1711 + $0x18] sm:$0xf]
      %v1718 = vld [vmem:[%s1711 + $0x1c] sm:$0xf]
      %v1719 = vld [vmem:[%s1711 + $0x20] sm:$0xf]
      %v1720 = vld [vmem:[%s1711 + $0x28] sm:$0xf]
      %v1721 = vld [vmem:[%s1711 + $0x2c] sm:$0xf]
      %v1722 = vld [vmem:[%s1711 + $0x30] sm:$0xf]
      %v1723 = vld [vmem:[%s1711 + $0x34] sm:$0xf]
      %v1724 = vld [vmem:[%s1711 + $0x3c] sm:$0xf]
      %v1725 = vld [vmem:[%s1711 + $0x40] sm:$0xf]
      %v1726 = vld [vmem:[%s1711 + $0x44] sm:$0xf]
      %v1727 = vld [vmem:[%s1711 + $0x48] sm:$0xf]
      %v1728 = vld [vmem:[%s1711 + $0x50] sm:$0xf]
      %v1729 = vld [vmem:[%s1711 + $0x54] sm:$0xf]
      %v1730 = vld [vmem:[%s1711 + $0x58] sm:$0xf]
      %v1731 = vld [vmem:[%s1711 + $0x5c] sm:$0xf]
      %v1732 = vld [vmem:[%s1711 + $0x64] sm:$0xf]
      %v1733 = vld [vmem:[%s1711 + $0x68] sm:$0xf]
      %v1734 = vld [vmem:[%s1711 + $0x6c] sm:$0xf]
      %v1735 = vld [vmem:[%s1711 + $0x70] sm:$0xf]
      %v1736 = vld [vmem:[%s1711 + $0x78] sm:$0xf]
      %v1737 = vld [vmem:[%s1711 + $0x7c] sm:$0xf]
      %v1738 = vld [vmem:[%s1711 + $0x80] sm:$0xf]
      %v1739 = vld [vmem:[%s1711 + $0x84] sm:$0xf]
      %v1740 = vld [vmem:[%s1711 + $0x8c] sm:$0xf]
      %v1741 = vld [vmem:[%s1711 + $0x90] sm:$0xf]
      %v1742 = vld [vmem:[%s1711 + $0x94] sm:$0xf]
      %v1743 = vld [vmem:[%s1711 + $0x98] sm:$0xf]
      %s1744 = scalar_lea.vmem %s1, 192
      %v1745 = vld [vmem:[%s1744] sm:$0xf]
      %v1746 = vld [vmem:[%s1744 + $0x4] sm:$0xf]
      %v1747 = vld [vmem:[%s1744 + $0x8] sm:$0xf]
      %v1748 = vld [vmem:[%s1744 + $0xc] sm:$0xf]
      %v1749 = vld [vmem:[%s1744 + $0x10] sm:$0xf]
      %v1750 = vld [vmem:[%s1744 + $0x14] sm:$0xf]
      %v1751 = vld [vmem:[%s1744 + $0x18] sm:$0xf]
      %v1752 = vld [vmem:[%s1744 + $0x1c] sm:$0xf]
      %v1753 = vld [vmem:[%s1744 + $0x20] sm:$0xf]
      %v1754 = vld [vmem:[%s1744 + $0x24] sm:$0xf]
      %v1755 = vld [vmem:[%s1744 + $0x28] sm:$0xf]
      %v1756 = vld [vmem:[%s1744 + $0x2c] sm:$0xf]
      %v1757 = vld [vmem:[%s1744 + $0x30] sm:$0xf]
      %v1758 = vld [vmem:[%s1744 + $0x34] sm:$0xf]
      %v1759 = vld [vmem:[%s1744 + $0x38] sm:$0xf]
      %v1760 = vld [vmem:[%s1744 + $0x3c] sm:$0xf]
      %v1793 = vunpack.c.l.b16 %v1712
      %v1794 = vunpack.c.l.b16 %v1713
      %v1795 = vunpack.c.l.b16 %v1714
      %v1796 = vunpack.c.l.b16 %v1715
      %v1797 = vunpack.c.l.b16 %v1716
      %v1798 = vunpack.c.l.b16 %v1717
      %v1799 = vunpack.c.l.b16 %v1718
      %v1800 = vunpack.c.l.b16 %v1719
      %v1801 = vunpack.c.l.b16 %v1720
      %v1802 = vunpack.c.l.b16 %v1721
      %v1803 = vunpack.c.l.b16 %v1722
      %v1804 = vunpack.c.l.b16 %v1723
      %v1805 = vunpack.c.l.b16 %v1724
      %v1806 = vunpack.c.l.b16 %v1725
      %v1807 = vunpack.c.l.b16 %v1726
      %v1808 = vunpack.c.l.b16 %v1727
      %v1809 = vunpack.c.l.b16 %v1728
      %v1810 = vunpack.c.l.b16 %v1729
      %v1811 = vunpack.c.l.b16 %v1730
      %v1812 = vunpack.c.l.b16 %v1731
      %v1813 = vunpack.c.l.b16 %v1732
      %v1814 = vunpack.c.l.b16 %v1733
      %v1815 = vunpack.c.l.b16 %v1734
      %v1816 = vunpack.c.l.b16 %v1735
      %v1817 = vunpack.c.l.b16 %v1736
      %v1818 = vunpack.c.l.b16 %v1737
      %v1819 = vunpack.c.l.b16 %v1738
      %v1820 = vunpack.c.l.b16 %v1739
      %v1821 = vunpack.c.l.b16 %v1740
      %v1822 = vunpack.c.l.b16 %v1741
      %v1823 = vunpack.c.l.b16 %v1742
      %v1824 = vunpack.c.l.b16 %v1743
      %v1825 = vpack.c.b16 %v1794, %v1793
      %v1826 = vpack.c.b16 %v1796, %v1795
      %v1827 = vpack.c.b16 %v1798, %v1797
      %v1828 = vpack.c.b16 %v1800, %v1799
      %v1829 = vpack.c.b16 %v1802, %v1801
      %v1830 = vpack.c.b16 %v1804, %v1803
      %v1831 = vpack.c.b16 %v1806, %v1805
      %v1832 = vpack.c.b16 %v1808, %v1807
      %v1833 = vpack.c.b16 %v1810, %v1809
      %v1834 = vpack.c.b16 %v1812, %v1811
      %v1835 = vpack.c.b16 %v1814, %v1813
      %v1836 = vpack.c.b16 %v1816, %v1815
      %v1837 = vpack.c.b16 %v1818, %v1817
      %v1838 = vpack.c.b16 %v1820, %v1819
      %v1839 = vpack.c.b16 %v1822, %v1821
      %v1840 = vpack.c.b16 %v1824, %v1823
      %v1873 = vunpack.c.l.b16 %v1745
      %v1874 = vunpack.c.l.b16 %v1746
      %v1875 = vunpack.c.l.b16 %v1747
      %v1876 = vunpack.c.l.b16 %v1748
      %v1877 = vunpack.c.l.b16 %v1749
      %v1878 = vunpack.c.l.b16 %v1750
      %v1879 = vunpack.c.l.b16 %v1751
      %v1880 = vunpack.c.l.b16 %v1752
      %v1881 = vunpack.c.l.b16 %v1753
      %v1882 = vunpack.c.l.b16 %v1754
      %v1883 = vunpack.c.l.b16 %v1755
      %v1884 = vunpack.c.l.b16 %v1756
      %v1885 = vunpack.c.l.b16 %v1757
      %v1886 = vunpack.c.l.b16 %v1758
      %v1887 = vunpack.c.l.b16 %v1759
      %v1888 = vunpack.c.l.b16 %v1760
      %v1889 = vpack.c.b16 %v1874, %v1873
      %v1890 = vpack.c.b16 %v1876, %v1875
      %v1891 = vpack.c.b16 %v1878, %v1877
      %v1892 = vpack.c.b16 %v1880, %v1879
      %v1893 = vpack.c.b16 %v1882, %v1881
      %v1894 = vpack.c.b16 %v1884, %v1883
      %v1895 = vpack.c.b16 %v1886, %v1885
      %v1896 = vpack.c.b16 %v1888, %v1887
      %1905 = vmatprep.subr.bf16.mxu0 0
      %1906 = vmatpush1.bf16.msra.mxu0 %v1889
      %1907 = vmatprep.subr.bf16.mxu0 0
      %1908 = vmatpush1.bf16.msra.mxu0 %v1890
      %1909 = vmatprep.subr.bf16.mxu0 0
      %1910 = vmatpush1.bf16.msra.mxu0 %v1891
      %1911 = vmatprep.subr.bf16.mxu0 0
      %1912 = vmatpush1.bf16.msra.mxu0 %v1892
      %1913 = vmatprep.subr.bf16.mxu0 0
      %1914 = vmatpush1.bf16.msra.mxu0 %v1893
      %1915 = vmatprep.subr.bf16.mxu0 0
      %1916 = vmatpush1.bf16.msra.mxu0 %v1894
      %1917 = vmatprep.subr.bf16.mxu0 0
      %1918 = vmatpush1.bf16.msra.mxu0 %v1895
      %1919 = vmatprep.subr.bf16.mxu0 0
      %1920 = vmatpush1.bf16.msra.mxu0 %v1896
      %1921 = vmatprep.subr.bf16.mxu0 0
      %1922 = vmatpush1.bf16.msra.mxu0 0
      %1923 = vmatprep.subr.bf16.mxu0 0
      %1924 = vmatpush1.bf16.msra.mxu0 0
      %1925 = vmatprep.subr.bf16.mxu0 0
      %1926 = vmatpush1.bf16.msra.mxu0 0
      %1927 = vmatprep.subr.bf16.mxu0 0
      %1928 = vmatpush1.bf16.msra.mxu0 0
      %1929 = vmatprep.subr.bf16.mxu0 0
      %1930 = vmatpush1.bf16.msra.mxu0 0
      %1931 = vmatprep.subr.bf16.mxu0 0
      %1932 = vmatpush1.bf16.msra.mxu0 0
      %1933 = vmatprep.subr.bf16.mxu0 0
      %1934 = vmatpush1.bf16.msra.mxu0 0
      %1935 = vmatprep.subr.bf16.mxu0 0
      %1936 = vmatpush1.bf16.msra.mxu0 0
      %1937 = vmatprep.mubr.bf16.mxu0 0
      %1938 = vmatmul.mubr.bf16.gmra.mrb[0].mxu0 %v1825
      %v1939 = vpop.f32.mrb[0].mxu0
      %v1940 = vadd.f32 0.0, %v1939
      %v1941 = vpop.f32.mrb[0].mxu0
      %v1942 = vpop.f32.mrb[0].mxu0
      %v1943 = vadd.f32 0.0, %v1942
      %v1944 = vpop.f32.mrb[0].mxu0
      %1945 = vmatprep.mubr.bf16.mxu0 0
      %1946 = vmatmul.mubr.bf16.gmra.mrb[0].mxu0 %v1826
      %v1947 = vpop.f32.mrb[0].mxu0
      %v1948 = vadd.f32 0.0, %v1947
      %v1949 = vpop.f32.mrb[0].mxu0
      %v1950 = vpop.f32.mrb[0].mxu0
      %v1951 = vadd.f32 0.0, %v1950
      %v1952 = vpop.f32.mrb[0].mxu0
      %1953 = vmatprep.mubr.bf16.mxu0 0
      %1954 = vmatmul.mubr.bf16.gmra.mrb[0].mxu0 %v1827
      %v1955 = vpop.f32.mrb[0].mxu0
      %v1956 = vadd.f32 0.0, %v1955
      %v1957 = vpop.f32.mrb[0].mxu0
      %v1958 = vpop.f32.mrb[0].mxu0
      %v1959 = vadd.f32 0.0, %v1958
      %v1960 = vpop.f32.mrb[0].mxu0
      %1961 = vmatprep.mubr.bf16.mxu0 0
      %1962 = vmatmul.mubr.bf16.gmra.mrb[0].mxu0 %v1828
      %v1963 = vpop.f32.mrb[0].mxu0
      %v1964 = vadd.f32 0.0, %v1963
      %v1965 = vpop.f32.mrb[0].mxu0
      %v1966 = vpop.f32.mrb[0].mxu0
      %v1967 = vadd.f32 0.0, %v1966
      %v1968 = vpop.f32.mrb[0].mxu0
      %1969 = vmatprep.mubr.bf16.mxu0 0
      %1970 = vmatmul.mubr.bf16.gmra.mrb[0].mxu0 %v1829
      %v1971 = vpop.f32.mrb[0].mxu0
      %v1972 = vadd.f32 0.0, %v1971
      %v1973 = vpop.f32.mrb[0].mxu0
      %v1974 = vpop.f32.mrb[0].mxu0
      %v1975 = vadd.f32 0.0, %v1974
      %v1976 = vpop.f32.mrb[0].mxu0
      %1977 = vmatprep.mubr.bf16.mxu0 0
      %1978 = vmatmul.mubr.bf16.gmra.mrb[0].mxu0 %v1830
      %v1979 = vpop.f32.mrb[0].mxu0
      %v1980 = vadd.f32 0.0, %v1979
      %v1981 = vpop.f32.mrb[0].mxu0
      %v1982 = vpop.f32.mrb[0].mxu0
      %v1983 = vadd.f32 0.0, %v1982
      %v1984 = vpop.f32.mrb[0].mxu0
      %1985 = vmatprep.mubr.bf16.mxu0 0
      %1986 = vmatmul.mubr.bf16.gmra.mrb[0].mxu0 %v1831
      %v1987 = vpop.f32.mrb[0].mxu0
      %v1988 = vadd.f32 0.0, %v1987
      %v1989 = vpop.f32.mrb[0].mxu0
      %v1990 = vpop.f32.mrb[0].mxu0
      %v1991 = vadd.f32 0.0, %v1990
      %v1992 = vpop.f32.mrb[0].mxu0
      %1993 = vmatprep.mubr.bf16.mxu0 0
      %1994 = vmatmul.mubr.bf16.gmra.mrb[0].mxu0 %v1832
      %v1995 = vpop.f32.mrb[0].mxu0
      %v1996 = vadd.f32 0.0, %v1995
      %v1997 = vpop.f32.mrb[0].mxu0
      %v1998 = vpop.f32.mrb[0].mxu0
      %v1999 = vadd.f32 0.0, %v1998
      %v2000 = vpop.f32.mrb[0].mxu0
      %2001 = vmatprep.mubr.bf16.mxu0 0
      %2002 = vmatmul.mubr.bf16.gmra.mrb[0].mxu0 %v1833
      %v2003 = vpop.f32.mrb[0].mxu0
      %v2004 = vadd.f32 0.0, %v2003
      %v2005 = vpop.f32.mrb[0].mxu0
      %v2006 = vpop.f32.mrb[0].mxu0
      %v2007 = vadd.f32 0.0, %v2006
      %v2008 = vpop.f32.mrb[0].mxu0
      %2009 = vmatprep.mubr.bf16.mxu0 0
      %2010 = vmatmul.mubr.bf16.gmra.mrb[0].mxu0 %v1834
      %v2011 = vpop.f32.mrb[0].mxu0
      %v2012 = vadd.f32 0.0, %v2011
      %v2013 = vpop.f32.mrb[0].mxu0
      %v2014 = vpop.f32.mrb[0].mxu0
      %v2015 = vadd.f32 0.0, %v2014
      %v2016 = vpop.f32.mrb[0].mxu0
      %2017 = vmatprep.mubr.bf16.mxu0 0
      %2018 = vmatmul.mubr.bf16.gmra.mrb[0].mxu0 %v1835
      %v2019 = vpop.f32.mrb[0].mxu0
      %v2020 = vadd.f32 0.0, %v2019
      %v2021 = vpop.f32.mrb[0].mxu0
      %v2022 = vpop.f32.mrb[0].mxu0
      %v2023 = vadd.f32 0.0, %v2022
      %v2024 = vpop.f32.mrb[0].mxu0
      %2025 = vmatprep.mubr.bf16.mxu0 0
      %2026 = vmatmul.mubr.bf16.gmra.mrb[0].mxu0 %v1836
      %v2027 = vpop.f32.mrb[0].mxu0
      %v2028 = vadd.f32 0.0, %v2027
      %v2029 = vpop.f32.mrb[0].mxu0
      %v2030 = vpop.f32.mrb[0].mxu0
      %v2031 = vadd.f32 0.0, %v2030
      %v2032 = vpop.f32.mrb[0].mxu0
      %2033 = vmatprep.mubr.bf16.mxu0 0
      %2034 = vmatmul.mubr.bf16.gmra.mrb[0].mxu0 %v1837
      %v2035 = vpop.f32.mrb[0].mxu0
      %v2036 = vadd.f32 0.0, %v2035
      %v2037 = vpop.f32.mrb[0].mxu0
      %v2038 = vpop.f32.mrb[0].mxu0
      %v2039 = vadd.f32 0.0, %v2038
      %v2040 = vpop.f32.mrb[0].mxu0
      %2041 = vmatprep.mubr.bf16.mxu0 0
      %2042 = vmatmul.mubr.bf16.gmra.mrb[0].mxu0 %v1838
      %v2043 = vpop.f32.mrb[0].mxu0
      %v2044 = vadd.f32 0.0, %v2043
      %v2045 = vpop.f32.mrb[0].mxu0
      %v2046 = vpop.f32.mrb[0].mxu0
      %v2047 = vadd.f32 0.0, %v2046
      %v2048 = vpop.f32.mrb[0].mxu0
      %2049 = vmatprep.mubr.bf16.mxu0 0
      %2050 = vmatmul.mubr.bf16.gmra.mrb[0].mxu0 %v1839
      %v2051 = vpop.f32.mrb[0].mxu0
      %v2052 = vadd.f32 0.0, %v2051
      %v2053 = vpop.f32.mrb[0].mxu0
      %v2054 = vpop.f32.mrb[0].mxu0
      %v2055 = vadd.f32 0.0, %v2054
      %v2056 = vpop.f32.mrb[0].mxu0
      %2057 = vmatprep.mubr.bf16.mxu0 0
      %2058 = vmatmul.mubr.bf16.gmra.mrb[0].mxu0 %v1840
      %v2059 = vpop.f32.mrb[0].mxu0
      %v2060 = vadd.f32 0.0, %v2059
      %v2061 = vpop.f32.mrb[0].mxu0
      %v2062 = vpop.f32.mrb[0].mxu0
      %v2063 = vadd.f32 0.0, %v2062
      %v2064 = vpop.f32.mrb[0].mxu0
      %2065 = vdwg.mxu0
      %v2066 = vadd.f32 %v1676, %v1940
      %v2067 = vadd.f32 %v1677, %v1943
      %v2068 = vadd.f32 %v1678, %v1948
      %v2069 = vadd.f32 %v1679, %v1951
      %v2070 = vadd.f32 %v1680, %v1956
      %v2071 = vadd.f32 %v1681, %v1959
      %v2072 = vadd.f32 %v1682, %v1964
      %v2073 = vadd.f32 %v1683, %v1967
      %v2074 = vadd.f32 %v1684, %v1972
      %v2075 = vadd.f32 %v1685, %v1975
      %v2076 = vadd.f32 %v1686, %v1980
      %v2077 = vadd.f32 %v1687, %v1983
      %v2078 = vadd.f32 %v1688, %v1988
      %v2079 = vadd.f32 %v1689, %v1991
      %v2080 = vadd.f32 %v1690, %v1996
      %v2081 = vadd.f32 %v1691, %v1999
      %v2082 = vadd.f32 %v1692, %v2004
      %v2083 = vadd.f32 %v1693, %v2007
      %v2084 = vadd.f32 %v1694, %v2012
      %v2085 = vadd.f32 %v1695, %v2015
      %v2086 = vadd.f32 %v1696, %v2020
      %v2087 = vadd.f32 %v1697, %v2023
      %v2088 = vadd.f32 %v1698, %v2028
      %v2089 = vadd.f32 %v1699, %v2031
      %v2090 = vadd.f32 %v1700, %v2036
      %v2091 = vadd.f32 %v1701, %v2039
      %v2092 = vadd.f32 %v1702, %v2044
      %v2093 = vadd.f32 %v1703, %v2047
      %v2094 = vadd.f32 %v1704, %v2052
      %v2095 = vadd.f32 %v1705, %v2055
      %v2096 = vadd.f32 %v1706, %v2060
      %v2097 = vadd.f32 %v1707, %v2063
      %v2098 = vld [vmem:[%s1711] sm:$0xf]
      %v2099 = vld [vmem:[%s1711 + $0x4] sm:$0xf]
      %v2100 = vld [vmem:[%s1711 + $0x8] sm:$0xf]
      %v2101 = vld [vmem:[%s1711 + $0xc] sm:$0xf]
      %v2102 = vld [vmem:[%s1711 + $0x10] sm:$0x1]
      %v2103 = vld [vmem:[%s1711 + $0x14] sm:$0xf]
      %v2104 = vld [vmem:[%s1711 + $0x18] sm:$0xf]
      %v2105 = vld [vmem:[%s1711 + $0x1c] sm:$0xf]
      %v2106 = vld [vmem:[%s1711 + $0x20] sm:$0xf]
      %v2107 = vld [vmem:[%s1711 + $0x24] sm:$0x1]
      %v2108 = vld [vmem:[%s1711 + $0x28] sm:$0xf]
      %v2109 = vld [vmem:[%s1711 + $0x2c] sm:$0xf]
      %v2110 = vld [vmem:[%s1711 + $0x30] sm:$0xf]
      %v2111 = vld [vmem:[%s1711 + $0x34] sm:$0xf]
      %v2112 = vld [vmem:[%s1711 + $0x38] sm:$0x1]
      %v2113 = vld [vmem:[%s1711 + $0x3c] sm:$0xf]
      %v2114 = vld [vmem:[%s1711 + $0x40] sm:$0xf]
      %v2115 = vld [vmem:[%s1711 + $0x44] sm:$0xf]
      %v2116 = vld [vmem:[%s1711 + $0x48] sm:$0xf]
      %v2117 = vld [vmem:[%s1711 + $0x4c] sm:$0x1]
      %v2118 = vld [vmem:[%s1711 + $0x50] sm:$0xf]
      %v2119 = vld [vmem:[%s1711 + $0x54] sm:$0xf]
      %v2120 = vld [vmem:[%s1711 + $0x58] sm:$0xf]
      %v2121 = vld [vmem:[%s1711 + $0x5c] sm:$0xf]
      %v2122 = vld [vmem:[%s1711 + $0x60] sm:$0x1]
      %v2123 = vld [vmem:[%s1711 + $0x64] sm:$0xf]
      %v2124 = vld [vmem:[%s1711 + $0x68] sm:$0xf]
      %v2125 = vld [vmem:[%s1711 + $0x6c] sm:$0xf]
      %v2126 = vld [vmem:[%s1711 + $0x70] sm:$0xf]
      %v2127 = vld [vmem:[%s1711 + $0x74] sm:$0x1]
      %v2128 = vld [vmem:[%s1711 + $0x78] sm:$0xf]
      %v2129 = vld [vmem:[%s1711 + $0x7c] sm:$0xf]
      %v2130 = vld [vmem:[%s1711 + $0x80] sm:$0xf]
      %v2131 = vld [vmem:[%s1711 + $0x84] sm:$0xf]
      %v2132 = vld [vmem:[%s1711 + $0x88] sm:$0x1]
      %v2133 = vld [vmem:[%s1711 + $0x8c] sm:$0xf]
      %v2134 = vld [vmem:[%s1711 + $0x90] sm:$0xf]
      %v2135 = vld [vmem:[%s1711 + $0x94] sm:$0xf]
      %v2136 = vld [vmem:[%s1711 + $0x98] sm:$0xf]
      %v2137 = vld [vmem:[%s1711 + $0x9c] sm:$0x1]
      %v2139 = vshrl.u32 %v2098, 16
      %v2141 = vrot.slane %v2139, 4
      %v2142 = vshll.u32 %v2098, 16
      %v2144 = vrot.slane %v2142, 5
      %v2145 = vor.u32 %v2141, %v2144
      %v2146 = vrot.slane %v2145, 4
      %v2148 = vshll.u32 %v2099, 16
      %v2150 = vrot.slane %v2148, 5
      %v2151 = vsel %vm307, %v2146, %v2150
      %v2152 = vshrl.u32 %v2099, 16
      %v2154 = vrot.slane %v2152, 4
      %v2155 = vor.u32 %v2154, %v2150
      %v2156 = vrot.slane %v2155, 4
      %v2158 = vshll.u32 %v2100, 16
      %v2160 = vrot.slane %v2158, 5
      %v2161 = vsel %vm307, %v2156, %v2160
      %v2162 = vshrl.u32 %v2100, 16
      %v2164 = vrot.slane %v2162, 4
      %v2165 = vor.u32 %v2164, %v2160
      %v2166 = vrot.slane %v2165, 4
      %v2168 = vshll.u32 %v2101, 16
      %v2170 = vrot.slane %v2168, 5
      %v2171 = vsel %vm307, %v2166, %v2170
      %v2172 = vshrl.u32 %v2101, 16
      %v2174 = vrot.slane %v2172, 4
      %v2175 = vor.u32 %v2174, %v2170
      %v2176 = vrot.slane %v2175, 4
      %v2178 = vshll.u32 %v2102, 16
      %v2180 = vrot.slane %v2178, 5
      %v2181 = vsel %vm307, %v2176, %v2180
      %v2183 = vshrl.u32 %v2103, 16
      %v2185 = vrot.slane %v2183, 4
      %v2186 = vshll.u32 %v2103, 16
      %v2188 = vrot.slane %v2186, 5
      %v2189 = vor.u32 %v2185, %v2188
      %v2190 = vrot.slane %v2189, 4
      %v2192 = vshll.u32 %v2104, 16
      %v2194 = vrot.slane %v2192, 5
      %v2195 = vsel %vm307, %v2190, %v2194
      %v2196 = vshrl.u32 %v2104, 16
      %v2198 = vrot.slane %v2196, 4
      %v2199 = vor.u32 %v2198, %v2194
      %v2200 = vrot.slane %v2199, 4
      %v2202 = vshll.u32 %v2105, 16
      %v2204 = vrot.slane %v2202, 5
      %v2205 = vsel %vm307, %v2200, %v2204
      %v2206 = vshrl.u32 %v2105, 16
      %v2208 = vrot.slane %v2206, 4
      %v2209 = vor.u32 %v2208, %v2204
      %v2210 = vrot.slane %v2209, 4
      %v2212 = vshll.u32 %v2106, 16
      %v2214 = vrot.slane %v2212, 5
      %v2215 = vsel %vm307, %v2210, %v2214
      %v2216 = vshrl.u32 %v2106, 16
      %v2218 = vrot.slane %v2216, 4
      %v2219 = vor.u32 %v2218, %v2214
      %v2220 = vrot.slane %v2219, 4
      %v2222 = vshll.u32 %v2107, 16
      %v2224 = vrot.slane %v2222, 5
      %v2225 = vsel %vm307, %v2220, %v2224
      %v2227 = vshrl.u32 %v2108, 16
      %v2229 = vrot.slane %v2227, 4
      %v2230 = vshll.u32 %v2108, 16
      %v2232 = vrot.slane %v2230, 5
      %v2233 = vor.u32 %v2229, %v2232
      %v2234 = vrot.slane %v2233, 4
      %v2236 = vshll.u32 %v2109, 16
      %v2238 = vrot.slane %v2236, 5
      %v2239 = vsel %vm307, %v2234, %v2238
      %v2240 = vshrl.u32 %v2109, 16
      %v2242 = vrot.slane %v2240, 4
      %v2243 = vor.u32 %v2242, %v2238
      %v2244 = vrot.slane %v2243, 4
      %v2246 = vshll.u32 %v2110, 16
      %v2248 = vrot.slane %v2246, 5
      %v2249 = vsel %vm307, %v2244, %v2248
      %v2250 = vshrl.u32 %v2110, 16
      %v2252 = vrot.slane %v2250, 4
      %v2253 = vor.u32 %v2252, %v2248
      %v2254 = vrot.slane %v2253, 4
      %v2256 = vshll.u32 %v2111, 16
      %v2258 = vrot.slane %v2256, 5
      %v2259 = vsel %vm307, %v2254, %v2258
      %v2260 = vshrl.u32 %v2111, 16
      %v2262 = vrot.slane %v2260, 4
      %v2263 = vor.u32 %v2262, %v2258
      %v2264 = vrot.slane %v2263, 4
      %v2266 = vshll.u32 %v2112, 16
      %v2268 = vrot.slane %v2266, 5
      %v2269 = vsel %vm307, %v2264, %v2268
      %v2271 = vshrl.u32 %v2113, 16
      %v2273 = vrot.slane %v2271, 4
      %v2274 = vshll.u32 %v2113, 16
      %v2276 = vrot.slane %v2274, 5
      %v2277 = vor.u32 %v2273, %v2276
      %v2278 = vrot.slane %v2277, 4
      %v2280 = vshll.u32 %v2114, 16
      %v2282 = vrot.slane %v2280, 5
      %v2283 = vsel %vm307, %v2278, %v2282
      %v2284 = vshrl.u32 %v2114, 16
      %v2286 = vrot.slane %v2284, 4
      %v2287 = vor.u32 %v2286, %v2282
      %v2288 = vrot.slane %v2287, 4
      %v2290 = vshll.u32 %v2115, 16
      %v2292 = vrot.slane %v2290, 5
      %v2293 = vsel %vm307, %v2288, %v2292
      %v2294 = vshrl.u32 %v2115, 16
      %v2296 = vrot.slane %v2294, 4
      %v2297 = vor.u32 %v2296, %v2292
      %v2298 = vrot.slane %v2297, 4
      %v2300 = vshll.u32 %v2116, 16
      %v2302 = vrot.slane %v2300, 5
      %v2303 = vsel %vm307, %v2298, %v2302
      %v2304 = vshrl.u32 %v2116, 16
      %v2306 = vrot.slane %v2304, 4
      %v2307 = vor.u32 %v2306, %v2302
      %v2308 = vrot.slane %v2307, 4
      %v2310 = vshll.u32 %v2117, 16
      %v2312 = vrot.slane %v2310, 5
      %v2313 = vsel %vm307, %v2308, %v2312
      %v2315 = vshrl.u32 %v2118, 16
      %v2317 = vrot.slane %v2315, 4
      %v2318 = vshll.u32 %v2118, 16
      %v2320 = vrot.slane %v2318, 5
      %v2321 = vor.u32 %v2317, %v2320
      %v2322 = vrot.slane %v2321, 4
      %v2324 = vshll.u32 %v2119, 16
      %v2326 = vrot.slane %v2324, 5
      %v2327 = vsel %vm307, %v2322, %v2326
      %v2328 = vshrl.u32 %v2119, 16
      %v2330 = vrot.slane %v2328, 4
      %v2331 = vor.u32 %v2330, %v2326
      %v2332 = vrot.slane %v2331, 4
      %v2334 = vshll.u32 %v2120, 16
      %v2336 = vrot.slane %v2334, 5
      %v2337 = vsel %vm307, %v2332, %v2336
      %v2338 = vshrl.u32 %v2120, 16
      %v2340 = vrot.slane %v2338, 4
      %v2341 = vor.u32 %v2340, %v2336
      %v2342 = vrot.slane %v2341, 4
      %v2344 = vshll.u32 %v2121, 16
      %v2346 = vrot.slane %v2344, 5
      %v2347 = vsel %vm307, %v2342, %v2346
      %v2348 = vshrl.u32 %v2121, 16
      %v2350 = vrot.slane %v2348, 4
      %v2351 = vor.u32 %v2350, %v2346
      %v2352 = vrot.slane %v2351, 4
      %v2354 = vshll.u32 %v2122, 16
      %v2356 = vrot.slane %v2354, 5
      %v2357 = vsel %vm307, %v2352, %v2356
      %v2359 = vshrl.u32 %v2123, 16
      %v2361 = vrot.slane %v2359, 4
      %v2362 = vshll.u32 %v2123, 16
      %v2364 = vrot.slane %v2362, 5
      %v2365 = vor.u32 %v2361, %v2364
      %v2366 = vrot.slane %v2365, 4
      %v2368 = vshll.u32 %v2124, 16
      %v2370 = vrot.slane %v2368, 5
      %v2371 = vsel %vm307, %v2366, %v2370
      %v2372 = vshrl.u32 %v2124, 16
      %v2374 = vrot.slane %v2372, 4
      %v2375 = vor.u32 %v2374, %v2370
      %v2376 = vrot.slane %v2375, 4
      %v2378 = vshll.u32 %v2125, 16
      %v2380 = vrot.slane %v2378, 5
      %v2381 = vsel %vm307, %v2376, %v2380
      %v2382 = vshrl.u32 %v2125, 16
      %v2384 = vrot.slane %v2382, 4
      %v2385 = vor.u32 %v2384, %v2380
      %v2386 = vrot.slane %v2385, 4
      %v2388 = vshll.u32 %v2126, 16
      %v2390 = vrot.slane %v2388, 5
      %v2391 = vsel %vm307, %v2386, %v2390
      %v2392 = vshrl.u32 %v2126, 16
      %v2394 = vrot.slane %v2392, 4
      %v2395 = vor.u32 %v2394, %v2390
      %v2396 = vrot.slane %v2395, 4
      %v2398 = vshll.u32 %v2127, 16
      %v2400 = vrot.slane %v2398, 5
      %v2401 = vsel %vm307, %v2396, %v2400
      %v2403 = vshrl.u32 %v2128, 16
      %v2405 = vrot.slane %v2403, 4
      %v2406 = vshll.u32 %v2128, 16
      %v2408 = vrot.slane %v2406, 5
      %v2409 = vor.u32 %v2405, %v2408
      %v2410 = vrot.slane %v2409, 4
      %v2412 = vshll.u32 %v2129, 16
      %v2414 = vrot.slane %v2412, 5
      %v2415 = vsel %vm307, %v2410, %v2414
      %v2416 = vshrl.u32 %v2129, 16
      %v2418 = vrot.slane %v2416, 4
      %v2419 = vor.u32 %v2418, %v2414
      %v2420 = vrot.slane %v2419, 4
      %v2422 = vshll.u32 %v2130, 16
      %v2424 = vrot.slane %v2422, 5
      %v2425 = vsel %vm307, %v2420, %v2424
      %v2426 = vshrl.u32 %v2130, 16
      %v2428 = vrot.slane %v2426, 4
      %v2429 = vor.u32 %v2428, %v2424
      %v2430 = vrot.slane %v2429, 4
      %v2432 = vshll.u32 %v2131, 16
      %v2434 = vrot.slane %v2432, 5
      %v2435 = vsel %vm307, %v2430, %v2434
      %v2436 = vshrl.u32 %v2131, 16
      %v2438 = vrot.slane %v2436, 4
      %v2439 = vor.u32 %v2438, %v2434
      %v2440 = vrot.slane %v2439, 4
      %v2442 = vshll.u32 %v2132, 16
      %v2444 = vrot.slane %v2442, 5
      %v2445 = vsel %vm307, %v2440, %v2444
      %v2447 = vshrl.u32 %v2133, 16
      %v2449 = vrot.slane %v2447, 4
      %v2450 = vshll.u32 %v2133, 16
      %v2452 = vrot.slane %v2450, 5
      %v2453 = vor.u32 %v2449, %v2452
      %v2454 = vrot.slane %v2453, 4
      %v2456 = vshll.u32 %v2134, 16
      %v2458 = vrot.slane %v2456, 5
      %v2459 = vsel %vm307, %v2454, %v2458
      %v2460 = vshrl.u32 %v2134, 16
      %v2462 = vrot.slane %v2460, 4
      %v2463 = vor.u32 %v2462, %v2458
      %v2464 = vrot.slane %v2463, 4
      %v2466 = vshll.u32 %v2135, 16
      %v2468 = vrot.slane %v2466, 5
      %v2469 = vsel %vm307, %v2464, %v2468
      %v2470 = vshrl.u32 %v2135, 16
      %v2472 = vrot.slane %v2470, 4
      %v2473 = vor.u32 %v2472, %v2468
      %v2474 = vrot.slane %v2473, 4
      %v2476 = vshll.u32 %v2136, 16
      %v2478 = vrot.slane %v2476, 5
      %v2479 = vsel %vm307, %v2474, %v2478
      %v2480 = vshrl.u32 %v2136, 16
      %v2482 = vrot.slane %v2480, 4
      %v2483 = vor.u32 %v2482, %v2478
      %v2484 = vrot.slane %v2483, 4
      %v2486 = vshll.u32 %v2137, 16
      %v2488 = vrot.slane %v2486, 5
      %v2489 = vsel %vm307, %v2484, %v2488
      %s2490 = scalar_lea.vmem %s1, 256
      %v2491 = vld [vmem:[%s2490] sm:$0xf]
      %v2492 = vld [vmem:[%s2490 + $0x4] sm:$0xf]
      %v2493 = vld [vmem:[%s2490 + $0x8] sm:$0xf]
      %v2494 = vld [vmem:[%s2490 + $0xc] sm:$0xf]
      %v2495 = vld [vmem:[%s2490 + $0x10] sm:$0xf]
      %v2496 = vld [vmem:[%s2490 + $0x14] sm:$0xf]
      %v2497 = vld [vmem:[%s2490 + $0x18] sm:$0xf]
      %v2498 = vld [vmem:[%s2490 + $0x1c] sm:$0xf]
      %v2499 = vld [vmem:[%s2490 + $0x20] sm:$0xf]
      %v2500 = vld [vmem:[%s2490 + $0x24] sm:$0xf]
      %v2501 = vld [vmem:[%s2490 + $0x28] sm:$0xf]
      %v2502 = vld [vmem:[%s2490 + $0x2c] sm:$0xf]
      %v2503 = vld [vmem:[%s2490 + $0x30] sm:$0xf]
      %v2504 = vld [vmem:[%s2490 + $0x34] sm:$0xf]
      %v2505 = vld [vmem:[%s2490 + $0x38] sm:$0xf]
      %v2506 = vld [vmem:[%s2490 + $0x3c] sm:$0xf]
      %v2507 = vunpack.c.l.b16 %v2151
      %v2508 = vunpack.c.l.b16 %v2161
      %v2509 = vunpack.c.l.b16 %v2171
      %v2510 = vunpack.c.l.b16 %v2181
      %v2511 = vunpack.c.l.b16 %v2195
      %v2512 = vunpack.c.l.b16 %v2205
      %v2513 = vunpack.c.l.b16 %v2215
      %v2514 = vunpack.c.l.b16 %v2225
      %v2515 = vunpack.c.l.b16 %v2239
      %v2516 = vunpack.c.l.b16 %v2249
      %v2517 = vunpack.c.l.b16 %v2259
      %v2518 = vunpack.c.l.b16 %v2269
      %v2519 = vunpack.c.l.b16 %v2283
      %v2520 = vunpack.c.l.b16 %v2293
      %v2521 = vunpack.c.l.b16 %v2303
      %v2522 = vunpack.c.l.b16 %v2313
      %v2523 = vunpack.c.l.b16 %v2327
      %v2524 = vunpack.c.l.b16 %v2337
      %v2525 = vunpack.c.l.b16 %v2347
      %v2526 = vunpack.c.l.b16 %v2357
      %v2527 = vunpack.c.l.b16 %v2371
      %v2528 = vunpack.c.l.b16 %v2381
      %v2529 = vunpack.c.l.b16 %v2391
      %v2530 = vunpack.c.l.b16 %v2401
      %v2531 = vunpack.c.l.b16 %v2415
      %v2532 = vunpack.c.l.b16 %v2425
      %v2533 = vunpack.c.l.b16 %v2435
      %v2534 = vunpack.c.l.b16 %v2445
      %v2535 = vunpack.c.l.b16 %v2459
      %v2536 = vunpack.c.l.b16 %v2469
      %v2537 = vunpack.c.l.b16 %v2479
      %v2538 = vunpack.c.l.b16 %v2489
      %v2539 = vpack.c.b16 %v2508, %v2507
      %v2540 = vpack.c.b16 %v2510, %v2509
      %v2541 = vpack.c.b16 %v2512, %v2511
      %v2542 = vpack.c.b16 %v2514, %v2513
      %v2543 = vpack.c.b16 %v2516, %v2515
      %v2544 = vpack.c.b16 %v2518, %v2517
      %v2545 = vpack.c.b16 %v2520, %v2519
      %v2546 = vpack.c.b16 %v2522, %v2521
      %v2547 = vpack.c.b16 %v2524, %v2523
      %v2548 = vpack.c.b16 %v2526, %v2525
      %v2549 = vpack.c.b16 %v2528, %v2527
      %v2550 = vpack.c.b16 %v2530, %v2529
      %v2551 = vpack.c.b16 %v2532, %v2531
      %v2552 = vpack.c.b16 %v2534, %v2533
      %v2553 = vpack.c.b16 %v2536, %v2535
      %v2554 = vpack.c.b16 %v2538, %v2537
      %v2587 = vunpack.c.l.b16 %v2491
      %v2588 = vunpack.c.l.b16 %v2492
      %v2589 = vunpack.c.l.b16 %v2493
      %v2590 = vunpack.c.l.b16 %v2494
      %v2591 = vunpack.c.l.b16 %v2495
      %v2592 = vunpack.c.l.b16 %v2496
      %v2593 = vunpack.c.l.b16 %v2497
      %v2594 = vunpack.c.l.b16 %v2498
      %v2595 = vunpack.c.l.b16 %v2499
      %v2596 = vunpack.c.l.b16 %v2500
      %v2597 = vunpack.c.l.b16 %v2501
      %v2598 = vunpack.c.l.b16 %v2502
      %v2599 = vunpack.c.l.b16 %v2503
      %v2600 = vunpack.c.l.b16 %v2504
      %v2601 = vunpack.c.l.b16 %v2505
      %v2602 = vunpack.c.l.b16 %v2506
      %v2603 = vpack.c.b16 %v2588, %v2587
      %v2604 = vpack.c.b16 %v2590, %v2589
      %v2605 = vpack.c.b16 %v2592, %v2591
      %v2606 = vpack.c.b16 %v2594, %v2593
      %v2607 = vpack.c.b16 %v2596, %v2595
      %v2608 = vpack.c.b16 %v2598, %v2597
      %v2609 = vpack.c.b16 %v2600, %v2599
      %v2610 = vpack.c.b16 %v2602, %v2601
      %2619 = vmatprep.subr.bf16.mxu0 0
      %2620 = vmatpush1.bf16.msra.mxu0 %v2603
      %2621 = vmatprep.subr.bf16.mxu0 0
      %2622 = vmatpush1.bf16.msra.mxu0 %v2604
      %2623 = vmatprep.subr.bf16.mxu0 0
      %2624 = vmatpush1.bf16.msra.mxu0 %v2605
      %2625 = vmatprep.subr.bf16.mxu0 0
      %2626 = vmatpush1.bf16.msra.mxu0 %v2606
      %2627 = vmatprep.subr.bf16.mxu0 0
      %2628 = vmatpush1.bf16.msra.mxu0 %v2607
      %2629 = vmatprep.subr.bf16.mxu0 0
      %2630 = vmatpush1.bf16.msra.mxu0 %v2608
      %2631 = vmatprep.subr.bf16.mxu0 0
      %2632 = vmatpush1.bf16.msra.mxu0 %v2609
      %2633 = vmatprep.subr.bf16.mxu0 0
      %2634 = vmatpush1.bf16.msra.mxu0 %v2610
      %2635 = vmatprep.subr.bf16.mxu0 0
      %2636 = vmatpush1.bf16.msra.mxu0 0
      %2637 = vmatprep.subr.bf16.mxu0 0
      %2638 = vmatpush1.bf16.msra.mxu0 0
      %2639 = vmatprep.subr.bf16.mxu0 0
      %2640 = vmatpush1.bf16.msra.mxu0 0
      %2641 = vmatprep.subr.bf16.mxu0 0
      %2642 = vmatpush1.bf16.msra.mxu0 0
      %2643 = vmatprep.subr.bf16.mxu0 0
      %2644 = vmatpush1.bf16.msra.mxu0 0
      %2645 = vmatprep.subr.bf16.mxu0 0
      %2646 = vmatpush1.bf16.msra.mxu0 0
      %2647 = vmatprep.subr.bf16.mxu0 0
      %2648 = vmatpush1.bf16.msra.mxu0 0
      %2649 = vmatprep.subr.bf16.mxu0 0
      %2650 = vmatpush1.bf16.msra.mxu0 0
      %2651 = vmatprep.mubr.bf16.mxu0 0
      %2652 = vmatmul.mubr.bf16.gmra.mrb[0].mxu0 %v2539
      %v2653 = vpop.f32.mrb[0].mxu0
      %v2654 = vadd.f32 0.0, %v2653
      %v2655 = vpop.f32.mrb[0].mxu0
      %v2656 = vpop.f32.mrb[0].mxu0
      %v2657 = vadd.f32 0.0, %v2656
      %v2658 = vpop.f32.mrb[0].mxu0
      %2659 = vmatprep.mubr.bf16.mxu0 0
      %2660 = vmatmul.mubr.bf16.gmra.mrb[0].mxu0 %v2540
      %v2661 = vpop.f32.mrb[0].mxu0
      %v2662 = vadd.f32 0.0, %v2661
      %v2663 = vpop.f32.mrb[0].mxu0
      %v2664 = vpop.f32.mrb[0].mxu0
      %v2665 = vadd.f32 0.0, %v2664
      %v2666 = vpop.f32.mrb[0].mxu0
      %2667 = vmatprep.mubr.bf16.mxu0 0
      %2668 = vmatmul.mubr.bf16.gmra.mrb[0].mxu0 %v2541
      %v2669 = vpop.f32.mrb[0].mxu0
      %v2670 = vadd.f32 0.0, %v2669
      %v2671 = vpop.f32.mrb[0].mxu0
      %v2672 = vpop.f32.mrb[0].mxu0
      %v2673 = vadd.f32 0.0, %v2672
      %v2674 = vpop.f32.mrb[0].mxu0
      %2675 = vmatprep.mubr.bf16.mxu0 0
      %2676 = vmatmul.mubr.bf16.gmra.mrb[0].mxu0 %v2542
      %v2677 = vpop.f32.mrb[0].mxu0
      %v2678 = vadd.f32 0.0, %v2677
      %v2679 = vpop.f32.mrb[0].mxu0
      %v2680 = vpop.f32.mrb[0].mxu0
      %v2681 = vadd.f32 0.0, %v2680
      %v2682 = vpop.f32.mrb[0].mxu0
      %2683 = vmatprep.mubr.bf16.mxu0 0
      %2684 = vmatmul.mubr.bf16.gmra.mrb[0].mxu0 %v2543
      %v2685 = vpop.f32.mrb[0].mxu0
      %v2686 = vadd.f32 0.0, %v2685
      %v2687 = vpop.f32.mrb[0].mxu0
      %v2688 = vpop.f32.mrb[0].mxu0
      %v2689 = vadd.f32 0.0, %v2688
      %v2690 = vpop.f32.mrb[0].mxu0
      %2691 = vmatprep.mubr.bf16.mxu0 0
      %2692 = vmatmul.mubr.bf16.gmra.mrb[0].mxu0 %v2544
      %v2693 = vpop.f32.mrb[0].mxu0
      %v2694 = vadd.f32 0.0, %v2693
      %v2695 = vpop.f32.mrb[0].mxu0
      %v2696 = vpop.f32.mrb[0].mxu0
      %v2697 = vadd.f32 0.0, %v2696
      %v2698 = vpop.f32.mrb[0].mxu0
      %2699 = vmatprep.mubr.bf16.mxu0 0
      %2700 = vmatmul.mubr.bf16.gmra.mrb[0].mxu0 %v2545
      %v2701 = vpop.f32.mrb[0].mxu0
      %v2702 = vadd.f32 0.0, %v2701
      %v2703 = vpop.f32.mrb[0].mxu0
      %v2704 = vpop.f32.mrb[0].mxu0
      %v2705 = vadd.f32 0.0, %v2704
      %v2706 = vpop.f32.mrb[0].mxu0
      %2707 = vmatprep.mubr.bf16.mxu0 0
      %2708 = vmatmul.mubr.bf16.gmra.mrb[0].mxu0 %v2546
      %v2709 = vpop.f32.mrb[0].mxu0
      %v2710 = vadd.f32 0.0, %v2709
      %v2711 = vpop.f32.mrb[0].mxu0
      %v2712 = vpop.f32.mrb[0].mxu0
      %v2713 = vadd.f32 0.0, %v2712
      %v2714 = vpop.f32.mrb[0].mxu0
      %2715 = vmatprep.mubr.bf16.mxu0 0
      %2716 = vmatmul.mubr.bf16.gmra.mrb[0].mxu0 %v2547
      %v2717 = vpop.f32.mrb[0].mxu0
      %v2718 = vadd.f32 0.0, %v2717
      %v2719 = vpop.f32.mrb[0].mxu0
      %v2720 = vpop.f32.mrb[0].mxu0
      %v2721 = vadd.f32 0.0, %v2720
      %v2722 = vpop.f32.mrb[0].mxu0
      %2723 = vmatprep.mubr.bf16.mxu0 0
      %2724 = vmatmul.mubr.bf16.gmra.mrb[0].mxu0 %v2548
      %v2725 = vpop.f32.mrb[0].mxu0
      %v2726 = vadd.f32 0.0, %v2725
      %v2727 = vpop.f32.mrb[0].mxu0
      %v2728 = vpop.f32.mrb[0].mxu0
      %v2729 = vadd.f32 0.0, %v2728
      %v2730 = vpop.f32.mrb[0].mxu0
      %2731 = vmatprep.mubr.bf16.mxu0 0
      %2732 = vmatmul.mubr.bf16.gmra.mrb[0].mxu0 %v2549
      %v2733 = vpop.f32.mrb[0].mxu0
      %v2734 = vadd.f32 0.0, %v2733
      %v2735 = vpop.f32.mrb[0].mxu0
      %v2736 = vpop.f32.mrb[0].mxu0
      %v2737 = vadd.f32 0.0, %v2736
      %v2738 = vpop.f32.mrb[0].mxu0
      %2739 = vmatprep.mubr.bf16.mxu0 0
      %2740 = vmatmul.mubr.bf16.gmra.mrb[0].mxu0 %v2550
      %v2741 = vpop.f32.mrb[0].mxu0
      %v2742 = vadd.f32 0.0, %v2741
      %v2743 = vpop.f32.mrb[0].mxu0
      %v2744 = vpop.f32.mrb[0].mxu0
      %v2745 = vadd.f32 0.0, %v2744
      %v2746 = vpop.f32.mrb[0].mxu0
      %2747 = vmatprep.mubr.bf16.mxu0 0
      %2748 = vmatmul.mubr.bf16.gmra.mrb[0].mxu0 %v2551
      %v2749 = vpop.f32.mrb[0].mxu0
      %v2750 = vadd.f32 0.0, %v2749
      %v2751 = vpop.f32.mrb[0].mxu0
      %v2752 = vpop.f32.mrb[0].mxu0
      %v2753 = vadd.f32 0.0, %v2752
      %v2754 = vpop.f32.mrb[0].mxu0
      %2755 = vmatprep.mubr.bf16.mxu0 0
      %2756 = vmatmul.mubr.bf16.gmra.mrb[0].mxu0 %v2552
      %v2757 = vpop.f32.mrb[0].mxu0
      %v2758 = vadd.f32 0.0, %v2757
      %v2759 = vpop.f32.mrb[0].mxu0
      %v2760 = vpop.f32.mrb[0].mxu0
      %v2761 = vadd.f32 0.0, %v2760
      %v2762 = vpop.f32.mrb[0].mxu0
      %2763 = vmatprep.mubr.bf16.mxu0 0
      %2764 = vmatmul.mubr.bf16.gmra.mrb[0].mxu0 %v2553
      %v2765 = vpop.f32.mrb[0].mxu0
      %v2766 = vadd.f32 0.0, %v2765
      %v2767 = vpop.f32.mrb[0].mxu0
      %v2768 = vpop.f32.mrb[0].mxu0
      %v2769 = vadd.f32 0.0, %v2768
      %v2770 = vpop.f32.mrb[0].mxu0
      %2771 = vmatprep.mubr.bf16.mxu0 0
      %2772 = vmatmul.mubr.bf16.gmra.mrb[0].mxu0 %v2554
      %v2773 = vpop.f32.mrb[0].mxu0
      %v2774 = vadd.f32 0.0, %v2773
      %v2775 = vpop.f32.mrb[0].mxu0
      %v2776 = vpop.f32.mrb[0].mxu0
      %v2777 = vadd.f32 0.0, %v2776
      %v2778 = vpop.f32.mrb[0].mxu0
      %2779 = vdwg.mxu0
      %v2780 = vadd.f32 %v2066, %v2654
      %v2781 = vadd.f32 %v2067, %v2657
      %v2782 = vadd.f32 %v2068, %v2662
      %v2783 = vadd.f32 %v2069, %v2665
      %v2784 = vadd.f32 %v2070, %v2670
      %v2785 = vadd.f32 %v2071, %v2673
      %v2786 = vadd.f32 %v2072, %v2678
      %v2787 = vadd.f32 %v2073, %v2681
      %v2788 = vadd.f32 %v2074, %v2686
      %v2789 = vadd.f32 %v2075, %v2689
      %v2790 = vadd.f32 %v2076, %v2694
      %v2791 = vadd.f32 %v2077, %v2697
      %v2792 = vadd.f32 %v2078, %v2702
      %v2793 = vadd.f32 %v2079, %v2705
      %v2794 = vadd.f32 %v2080, %v2710
      %v2795 = vadd.f32 %v2081, %v2713
      %v2796 = vadd.f32 %v2082, %v2718
      %v2797 = vadd.f32 %v2083, %v2721
      %v2798 = vadd.f32 %v2084, %v2726
      %v2799 = vadd.f32 %v2085, %v2729
      %v2800 = vadd.f32 %v2086, %v2734
      %v2801 = vadd.f32 %v2087, %v2737
      %v2802 = vadd.f32 %v2088, %v2742
      %v2803 = vadd.f32 %v2089, %v2745
      %v2804 = vadd.f32 %v2090, %v2750
      %v2805 = vadd.f32 %v2091, %v2753
      %v2806 = vadd.f32 %v2092, %v2758
      %v2807 = vadd.f32 %v2093, %v2761
      %v2808 = vadd.f32 %v2094, %v2766
      %v2809 = vadd.f32 %v2095, %v2769
      %v2810 = vadd.f32 %v2096, %v2774
      %v2811 = vadd.f32 %v2097, %v2777
      %v2812 = vld [vmem:[%s1711] sm:$0xe]
      %v2813 = vld [vmem:[%s1711 + $0x14] sm:$0xe]
      %v2814 = vld [vmem:[%s1711 + $0x28] sm:$0xe]
      %v2815 = vld [vmem:[%s1711 + $0x3c] sm:$0xe]
      %v2816 = vld [vmem:[%s1711 + $0x50] sm:$0xe]
      %v2817 = vld [vmem:[%s1711 + $0x64] sm:$0xe]
      %v2818 = vld [vmem:[%s1711 + $0x78] sm:$0xe]
      %v2819 = vld [vmem:[%s1711 + $0x8c] sm:$0xe]
      %v2860 = vrot.slane %v2812, 5
      %v2861 = vrot.slane %v2860, 4
      %v2862 = vrot.slane %v2099, 5
      %v2863 = vsel %vm1281, %v2861, %v2862
      %v2864 = vrot.slane %v2862, 4
      %v2865 = vrot.slane %v2100, 5
      %v2866 = vsel %vm1281, %v2864, %v2865
      %v2867 = vrot.slane %v2865, 4
      %v2868 = vrot.slane %v2101, 5
      %v2869 = vsel %vm1281, %v2867, %v2868
      %v2870 = vrot.slane %v2868, 4
      %v2871 = vrot.slane %v2102, 5
      %v2872 = vsel %vm1281, %v2870, %v2871
      %v2873 = vrot.slane %v2813, 5
      %v2874 = vrot.slane %v2873, 4
      %v2875 = vrot.slane %v2104, 5
      %v2876 = vsel %vm1281, %v2874, %v2875
      %v2877 = vrot.slane %v2875, 4
      %v2878 = vrot.slane %v2105, 5
      %v2879 = vsel %vm1281, %v2877, %v2878
      %v2880 = vrot.slane %v2878, 4
      %v2881 = vrot.slane %v2106, 5
      %v2882 = vsel %vm1281, %v2880, %v2881
      %v2883 = vrot.slane %v2881, 4
      %v2884 = vrot.slane %v2107, 5
      %v2885 = vsel %vm1281, %v2883, %v2884
      %v2886 = vrot.slane %v2814, 5
      %v2887 = vrot.slane %v2886, 4
      %v2888 = vrot.slane %v2109, 5
      %v2889 = vsel %vm1281, %v2887, %v2888
      %v2890 = vrot.slane %v2888, 4
      %v2891 = vrot.slane %v2110, 5
      %v2892 = vsel %vm1281, %v2890, %v2891
      %v2893 = vrot.slane %v2891, 4
      %v2894 = vrot.slane %v2111, 5
      %v2895 = vsel %vm1281, %v2893, %v2894
      %v2896 = vrot.slane %v2894, 4
      %v2897 = vrot.slane %v2112, 5
      %v2898 = vsel %vm1281, %v2896, %v2897
      %v2899 = vrot.slane %v2815, 5
      %v2900 = vrot.slane %v2899, 4
      %v2901 = vrot.slane %v2114, 5
      %v2902 = vsel %vm1281, %v2900, %v2901
      %v2903 = vrot.slane %v2901, 4
      %v2904 = vrot.slane %v2115, 5
      %v2905 = vsel %vm1281, %v2903, %v2904
      %v2906 = vrot.slane %v2904, 4
      %v2907 = vrot.slane %v2116, 5
      %v2908 = vsel %vm1281, %v2906, %v2907
      %v2909 = vrot.slane %v2907, 4
      %v2910 = vrot.slane %v2117, 5
      %v2911 = vsel %vm1281, %v2909, %v2910
      %v2912 = vrot.slane %v2816, 5
      %v2913 = vrot.slane %v2912, 4
      %v2914 = vrot.slane %v2119, 5
      %v2915 = vsel %vm1281, %v2913, %v2914
      %v2916 = vrot.slane %v2914, 4
      %v2917 = vrot.slane %v2120, 5
      %v2918 = vsel %vm1281, %v2916, %v2917
      %v2919 = vrot.slane %v2917, 4
      %v2920 = vrot.slane %v2121, 5
      %v2921 = vsel %vm1281, %v2919, %v2920
      %v2922 = vrot.slane %v2920, 4
      %v2923 = vrot.slane %v2122, 5
      %v2924 = vsel %vm1281, %v2922, %v2923
      %v2925 = vrot.slane %v2817, 5
      %v2926 = vrot.slane %v2925, 4
      %v2927 = vrot.slane %v2124, 5
      %v2928 = vsel %vm1281, %v2926, %v2927
      %v2929 = vrot.slane %v2927, 4
      %v2930 = vrot.slane %v2125, 5
      %v2931 = vsel %vm1281, %v2929, %v2930
      %v2932 = vrot.slane %v2930, 4
      %v2933 = vrot.slane %v2126, 5
      %v2934 = vsel %vm1281, %v2932, %v2933
      %v2935 = vrot.slane %v2933, 4
      %v2936 = vrot.slane %v2127, 5
      %v2937 = vsel %vm1281, %v2935, %v2936
      %v2938 = vrot.slane %v2818, 5
      %v2939 = vrot.slane %v2938, 4
      %v2940 = vrot.slane %v2129, 5
      %v2941 = vsel %vm1281, %v2939, %v2940
      %v2942 = vrot.slane %v2940, 4
      %v2943 = vrot.slane %v2130, 5
      %v2944 = vsel %vm1281, %v2942, %v2943
      %v2945 = vrot.slane %v2943, 4
      %v2946 = vrot.slane %v2131, 5
      %v2947 = vsel %vm1281, %v2945, %v2946
      %v2948 = vrot.slane %v2946, 4
      %v2949 = vrot.slane %v2132, 5
      %v2950 = vsel %vm1281, %v2948, %v2949
      %v2951 = vrot.slane %v2819, 5
      %v2952 = vrot.slane %v2951, 4
      %v2953 = vrot.slane %v2134, 5
      %v2954 = vsel %vm1281, %v2952, %v2953
      %v2955 = vrot.slane %v2953, 4
      %v2956 = vrot.slane %v2135, 5
      %v2957 = vsel %vm1281, %v2955, %v2956
      %v2958 = vrot.slane %v2956, 4
      %v2959 = vrot.slane %v2136, 5
      %v2960 = vsel %vm1281, %v2958, %v2959
      %v2961 = vrot.slane %v2959, 4
      %v2962 = vrot.slane %v2137, 5
      %v2963 = vsel %vm1281, %v2961, %v2962
      %s2964 = scalar_lea.vmem %s1, 320
      %v2965 = vld [vmem:[%s2964] sm:$0xf]
      %v2966 = vld [vmem:[%s2964 + $0x4] sm:$0xf]
      %v2967 = vld [vmem:[%s2964 + $0x8] sm:$0xf]
      %v2968 = vld [vmem:[%s2964 + $0xc] sm:$0xf]
      %v2969 = vld [vmem:[%s2964 + $0x10] sm:$0xf]
      %v2970 = vld [vmem:[%s2964 + $0x14] sm:$0xf]
      %v2971 = vld [vmem:[%s2964 + $0x18] sm:$0xf]
      %v2972 = vld [vmem:[%s2964 + $0x1c] sm:$0xf]
      %v2973 = vld [vmem:[%s2964 + $0x20] sm:$0xf]
      %v2974 = vld [vmem:[%s2964 + $0x24] sm:$0xf]
      %v2975 = vld [vmem:[%s2964 + $0x28] sm:$0xf]
      %v2976 = vld [vmem:[%s2964 + $0x2c] sm:$0xf]
      %v2977 = vld [vmem:[%s2964 + $0x30] sm:$0xf]
      %v2978 = vld [vmem:[%s2964 + $0x34] sm:$0xf]
      %v2979 = vld [vmem:[%s2964 + $0x38] sm:$0xf]
      %v2980 = vld [vmem:[%s2964 + $0x3c] sm:$0xf]
      %v2981 = vunpack.c.l.b16 %v2863
      %v2982 = vunpack.c.l.b16 %v2866
      %v2983 = vunpack.c.l.b16 %v2869
      %v2984 = vunpack.c.l.b16 %v2872
      %v2985 = vunpack.c.l.b16 %v2876
      %v2986 = vunpack.c.l.b16 %v2879
      %v2987 = vunpack.c.l.b16 %v2882
      %v2988 = vunpack.c.l.b16 %v2885
      %v2989 = vunpack.c.l.b16 %v2889
      %v2990 = vunpack.c.l.b16 %v2892
      %v2991 = vunpack.c.l.b16 %v2895
      %v2992 = vunpack.c.l.b16 %v2898
      %v2993 = vunpack.c.l.b16 %v2902
      %v2994 = vunpack.c.l.b16 %v2905
      %v2995 = vunpack.c.l.b16 %v2908
      %v2996 = vunpack.c.l.b16 %v2911
      %v2997 = vunpack.c.l.b16 %v2915
      %v2998 = vunpack.c.l.b16 %v2918
      %v2999 = vunpack.c.l.b16 %v2921
      %v3000 = vunpack.c.l.b16 %v2924
      %v3001 = vunpack.c.l.b16 %v2928
      %v3002 = vunpack.c.l.b16 %v2931
      %v3003 = vunpack.c.l.b16 %v2934
      %v3004 = vunpack.c.l.b16 %v2937
      %v3005 = vunpack.c.l.b16 %v2941
      %v3006 = vunpack.c.l.b16 %v2944
      %v3007 = vunpack.c.l.b16 %v2947
      %v3008 = vunpack.c.l.b16 %v2950
      %v3009 = vunpack.c.l.b16 %v2954
      %v3010 = vunpack.c.l.b16 %v2957
      %v3011 = vunpack.c.l.b16 %v2960
      %v3012 = vunpack.c.l.b16 %v2963
      %v3013 = vpack.c.b16 %v2982, %v2981
      %v3014 = vpack.c.b16 %v2984, %v2983
      %v3015 = vpack.c.b16 %v2986, %v2985
      %v3016 = vpack.c.b16 %v2988, %v2987
      %v3017 = vpack.c.b16 %v2990, %v2989
      %v3018 = vpack.c.b16 %v2992, %v2991
      %v3019 = vpack.c.b16 %v2994, %v2993
      %v3020 = vpack.c.b16 %v2996, %v2995
      %v3021 = vpack.c.b16 %v2998, %v2997
      %v3022 = vpack.c.b16 %v3000, %v2999
      %v3023 = vpack.c.b16 %v3002, %v3001
      %v3024 = vpack.c.b16 %v3004, %v3003
      %v3025 = vpack.c.b16 %v3006, %v3005
      %v3026 = vpack.c.b16 %v3008, %v3007
      %v3027 = vpack.c.b16 %v3010, %v3009
      %v3028 = vpack.c.b16 %v3012, %v3011
      %v3061 = vunpack.c.l.b16 %v2965
      %v3062 = vunpack.c.l.b16 %v2966
      %v3063 = vunpack.c.l.b16 %v2967
      %v3064 = vunpack.c.l.b16 %v2968
      %v3065 = vunpack.c.l.b16 %v2969
      %v3066 = vunpack.c.l.b16 %v2970
      %v3067 = vunpack.c.l.b16 %v2971
      %v3068 = vunpack.c.l.b16 %v2972
      %v3069 = vunpack.c.l.b16 %v2973
      %v3070 = vunpack.c.l.b16 %v2974
      %v3071 = vunpack.c.l.b16 %v2975
      %v3072 = vunpack.c.l.b16 %v2976
      %v3073 = vunpack.c.l.b16 %v2977
      %v3074 = vunpack.c.l.b16 %v2978
      %v3075 = vunpack.c.l.b16 %v2979
      %v3076 = vunpack.c.l.b16 %v2980
      %v3077 = vpack.c.b16 %v3062, %v3061
      %v3078 = vpack.c.b16 %v3064, %v3063
      %v3079 = vpack.c.b16 %v3066, %v3065
      %v3080 = vpack.c.b16 %v3068, %v3067
      %v3081 = vpack.c.b16 %v3070, %v3069
      %v3082 = vpack.c.b16 %v3072, %v3071
      %v3083 = vpack.c.b16 %v3074, %v3073
      %v3084 = vpack.c.b16 %v3076, %v3075
      %3093 = vmatprep.subr.bf16.mxu0 0
      %3094 = vmatpush1.bf16.msra.mxu0 %v3077
      %3095 = vmatprep.subr.bf16.mxu0 0
      %3096 = vmatpush1.bf16.msra.mxu0 %v3078
      %3097 = vmatprep.subr.bf16.mxu0 0
      %3098 = vmatpush1.bf16.msra.mxu0 %v3079
      %3099 = vmatprep.subr.bf16.mxu0 0
      %3100 = vmatpush1.bf16.msra.mxu0 %v3080
      %3101 = vmatprep.subr.bf16.mxu0 0
      %3102 = vmatpush1.bf16.msra.mxu0 %v3081
      %3103 = vmatprep.subr.bf16.mxu0 0
      %3104 = vmatpush1.bf16.msra.mxu0 %v3082
      %3105 = vmatprep.subr.bf16.mxu0 0
      %3106 = vmatpush1.bf16.msra.mxu0 %v3083
      %3107 = vmatprep.subr.bf16.mxu0 0
      %3108 = vmatpush1.bf16.msra.mxu0 %v3084
      %3109 = vmatprep.subr.bf16.mxu0 0
      %3110 = vmatpush1.bf16.msra.mxu0 0
      %3111 = vmatprep.subr.bf16.mxu0 0
      %3112 = vmatpush1.bf16.msra.mxu0 0
      %3113 = vmatprep.subr.bf16.mxu0 0
      %3114 = vmatpush1.bf16.msra.mxu0 0
      %3115 = vmatprep.subr.bf16.mxu0 0
      %3116 = vmatpush1.bf16.msra.mxu0 0
      %3117 = vmatprep.subr.bf16.mxu0 0
      %3118 = vmatpush1.bf16.msra.mxu0 0
      %3119 = vmatprep.subr.bf16.mxu0 0
      %3120 = vmatpush1.bf16.msra.mxu0 0
      %3121 = vmatprep.subr.bf16.mxu0 0
      %3122 = vmatpush1.bf16.msra.mxu0 0
      %3123 = vmatprep.subr.bf16.mxu0 0
      %3124 = vmatpush1.bf16.msra.mxu0 0
      %3125 = vmatprep.mubr.bf16.mxu0 0
      %3126 = vmatmul.mubr.bf16.gmra.mrb[0].mxu0 %v3013
      %v3127 = vpop.f32.mrb[0].mxu0
      %v3128 = vadd.f32 0.0, %v3127
      %v3129 = vpop.f32.mrb[0].mxu0
      %v3130 = vpop.f32.mrb[0].mxu0
      %v3131 = vadd.f32 0.0, %v3130
      %v3132 = vpop.f32.mrb[0].mxu0
      %3133 = vmatprep.mubr.bf16.mxu0 0
      %3134 = vmatmul.mubr.bf16.gmra.mrb[0].mxu0 %v3014
      %v3135 = vpop.f32.mrb[0].mxu0
      %v3136 = vadd.f32 0.0, %v3135
      %v3137 = vpop.f32.mrb[0].mxu0
      %v3138 = vpop.f32.mrb[0].mxu0
      %v3139 = vadd.f32 0.0, %v3138
      %v3140 = vpop.f32.mrb[0].mxu0
      %3141 = vmatprep.mubr.bf16.mxu0 0
      %3142 = vmatmul.mubr.bf16.gmra.mrb[0].mxu0 %v3015
      %v3143 = vpop.f32.mrb[0].mxu0
      %v3144 = vadd.f32 0.0, %v3143
      %v3145 = vpop.f32.mrb[0].mxu0
      %v3146 = vpop.f32.mrb[0].mxu0
      %v3147 = vadd.f32 0.0, %v3146
      %v3148 = vpop.f32.mrb[0].mxu0
      %3149 = vmatprep.mubr.bf16.mxu0 0
      %3150 = vmatmul.mubr.bf16.gmra.mrb[0].mxu0 %v3016
      %v3151 = vpop.f32.mrb[0].mxu0
      %v3152 = vadd.f32 0.0, %v3151
      %v3153 = vpop.f32.mrb[0].mxu0
      %v3154 = vpop.f32.mrb[0].mxu0
      %v3155 = vadd.f32 0.0, %v3154
      %v3156 = vpop.f32.mrb[0].mxu0
      %3157 = vmatprep.mubr.bf16.mxu0 0
      %3158 = vmatmul.mubr.bf16.gmra.mrb[0].mxu0 %v3017
      %v3159 = vpop.f32.mrb[0].mxu0
      %v3160 = vadd.f32 0.0, %v3159
      %v3161 = vpop.f32.mrb[0].mxu0
      %v3162 = vpop.f32.mrb[0].mxu0
      %v3163 = vadd.f32 0.0, %v3162
      %v3164 = vpop.f32.mrb[0].mxu0
      %3165 = vmatprep.mubr.bf16.mxu0 0
      %3166 = vmatmul.mubr.bf16.gmra.mrb[0].mxu0 %v3018
      %v3167 = vpop.f32.mrb[0].mxu0
      %v3168 = vadd.f32 0.0, %v3167
      %v3169 = vpop.f32.mrb[0].mxu0
      %v3170 = vpop.f32.mrb[0].mxu0
      %v3171 = vadd.f32 0.0, %v3170
      %v3172 = vpop.f32.mrb[0].mxu0
      %3173 = vmatprep.mubr.bf16.mxu0 0
      %3174 = vmatmul.mubr.bf16.gmra.mrb[0].mxu0 %v3019
      %v3175 = vpop.f32.mrb[0].mxu0
      %v3176 = vadd.f32 0.0, %v3175
      %v3177 = vpop.f32.mrb[0].mxu0
      %v3178 = vpop.f32.mrb[0].mxu0
      %v3179 = vadd.f32 0.0, %v3178
      %v3180 = vpop.f32.mrb[0].mxu0
      %3181 = vmatprep.mubr.bf16.mxu0 0
      %3182 = vmatmul.mubr.bf16.gmra.mrb[0].mxu0 %v3020
      %v3183 = vpop.f32.mrb[0].mxu0
      %v3184 = vadd.f32 0.0, %v3183
      %v3185 = vpop.f32.mrb[0].mxu0
      %v3186 = vpop.f32.mrb[0].mxu0
      %v3187 = vadd.f32 0.0, %v3186
      %v3188 = vpop.f32.mrb[0].mxu0
      %3189 = vmatprep.mubr.bf16.mxu0 0
      %3190 = vmatmul.mubr.bf16.gmra.mrb[0].mxu0 %v3021
      %v3191 = vpop.f32.mrb[0].mxu0
      %v3192 = vadd.f32 0.0, %v3191
      %v3193 = vpop.f32.mrb[0].mxu0
      %v3194 = vpop.f32.mrb[0].mxu0
      %v3195 = vadd.f32 0.0, %v3194
      %v3196 = vpop.f32.mrb[0].mxu0
      %3197 = vmatprep.mubr.bf16.mxu0 0
      %3198 = vmatmul.mubr.bf16.gmra.mrb[0].mxu0 %v3022
      %v3199 = vpop.f32.mrb[0].mxu0
      %v3200 = vadd.f32 0.0, %v3199
      %v3201 = vpop.f32.mrb[0].mxu0
      %v3202 = vpop.f32.mrb[0].mxu0
      %v3203 = vadd.f32 0.0, %v3202
      %v3204 = vpop.f32.mrb[0].mxu0
      %3205 = vmatprep.mubr.bf16.mxu0 0
      %3206 = vmatmul.mubr.bf16.gmra.mrb[0].mxu0 %v3023
      %v3207 = vpop.f32.mrb[0].mxu0
      %v3208 = vadd.f32 0.0, %v3207
      %v3209 = vpop.f32.mrb[0].mxu0
      %v3210 = vpop.f32.mrb[0].mxu0
      %v3211 = vadd.f32 0.0, %v3210
      %v3212 = vpop.f32.mrb[0].mxu0
      %3213 = vmatprep.mubr.bf16.mxu0 0
      %3214 = vmatmul.mubr.bf16.gmra.mrb[0].mxu0 %v3024
      %v3215 = vpop.f32.mrb[0].mxu0
      %v3216 = vadd.f32 0.0, %v3215
      %v3217 = vpop.f32.mrb[0].mxu0
      %v3218 = vpop.f32.mrb[0].mxu0
      %v3219 = vadd.f32 0.0, %v3218
      %v3220 = vpop.f32.mrb[0].mxu0
      %3221 = vmatprep.mubr.bf16.mxu0 0
      %3222 = vmatmul.mubr.bf16.gmra.mrb[0].mxu0 %v3025
      %v3223 = vpop.f32.mrb[0].mxu0
      %v3224 = vadd.f32 0.0, %v3223
      %v3225 = vpop.f32.mrb[0].mxu0
      %v3226 = vpop.f32.mrb[0].mxu0
      %v3227 = vadd.f32 0.0, %v3226
      %v3228 = vpop.f32.mrb[0].mxu0
      %3229 = vmatprep.mubr.bf16.mxu0 0
      %3230 = vmatmul.mubr.bf16.gmra.mrb[0].mxu0 %v3026
      %v3231 = vpop.f32.mrb[0].mxu0
      %v3232 = vadd.f32 0.0, %v3231
      %v3233 = vpop.f32.mrb[0].mxu0
      %v3234 = vpop.f32.mrb[0].mxu0
      %v3235 = vadd.f32 0.0, %v3234
      %v3236 = vpop.f32.mrb[0].mxu0
      %3237 = vmatprep.mubr.bf16.mxu0 0
      %3238 = vmatmul.mubr.bf16.gmra.mrb[0].mxu0 %v3027
      %v3239 = vpop.f32.mrb[0].mxu0
      %v3240 = vadd.f32 0.0, %v3239
      %v3241 = vpop.f32.mrb[0].mxu0
      %v3242 = vpop.f32.mrb[0].mxu0
      %v3243 = vadd.f32 0.0, %v3242
      %v3244 = vpop.f32.mrb[0].mxu0
      %3245 = vmatprep.mubr.bf16.mxu0 0
      %3246 = vmatmul.mubr.bf16.gmra.mrb[0].mxu0 %v3028
      %v3247 = vpop.f32.mrb[0].mxu0
      %v3248 = vadd.f32 0.0, %v3247
      %v3249 = vpop.f32.mrb[0].mxu0
      %v3250 = vpop.f32.mrb[0].mxu0
      %v3251 = vadd.f32 0.0, %v3250
      %v3252 = vpop.f32.mrb[0].mxu0
      %3253 = vdwg.mxu0
      %v3254 = vadd.f32 %v2780, %v3128
      %v3255 = vadd.f32 %v2781, %v3131
      %v3256 = vadd.f32 %v2782, %v3136
      %v3257 = vadd.f32 %v2783, %v3139
      %v3258 = vadd.f32 %v2784, %v3144
      %v3259 = vadd.f32 %v2785, %v3147
      %v3260 = vadd.f32 %v2786, %v3152
      %v3261 = vadd.f32 %v2787, %v3155
      %v3262 = vadd.f32 %v2788, %v3160
      %v3263 = vadd.f32 %v2789, %v3163
      %v3264 = vadd.f32 %v2790, %v3168
      %v3265 = vadd.f32 %v2791, %v3171
      %v3266 = vadd.f32 %v2792, %v3176
      %v3267 = vadd.f32 %v2793, %v3179
      %v3268 = vadd.f32 %v2794, %v3184
      %v3269 = vadd.f32 %v2795, %v3187
      %v3270 = vadd.f32 %v2796, %v3192
      %v3271 = vadd.f32 %v2797, %v3195
      %v3272 = vadd.f32 %v2798, %v3200
      %v3273 = vadd.f32 %v2799, %v3203
      %v3274 = vadd.f32 %v2800, %v3208
      %v3275 = vadd.f32 %v2801, %v3211
      %v3276 = vadd.f32 %v2802, %v3216
      %v3277 = vadd.f32 %v2803, %v3219
      %v3278 = vadd.f32 %v2804, %v3224
      %v3279 = vadd.f32 %v2805, %v3227
      %v3280 = vadd.f32 %v2806, %v3232
      %v3281 = vadd.f32 %v2807, %v3235
      %v3282 = vadd.f32 %v2808, %v3240
      %v3283 = vadd.f32 %v2809, %v3243
      %v3284 = vadd.f32 %v2810, %v3248
      %v3285 = vadd.f32 %v2811, %v3251
      %s3286 = sadd.s32 %s245, 2
      %s3287 = smul.u32 %s3286, 5
      %s3288 = smul.addr %s3287, 4
      %s3289 = scalar_lea.vmem %s224, %s3288
      %v3290 = vld [vmem:[%s3289] sm:$0xf]
      %v3291 = vld [vmem:[%s3289 + $0x4] sm:$0xf]
      %v3292 = vld [vmem:[%s3289 + $0x8] sm:$0xf]
      %v3293 = vld [vmem:[%s3289 + $0xc] sm:$0xf]
      %v3294 = vld [vmem:[%s3289 + $0x14] sm:$0xf]
      %v3295 = vld [vmem:[%s3289 + $0x18] sm:$0xf]
      %v3296 = vld [vmem:[%s3289 + $0x1c] sm:$0xf]
      %v3297 = vld [vmem:[%s3289 + $0x20] sm:$0xf]
      %v3298 = vld [vmem:[%s3289 + $0x28] sm:$0xf]
      %v3299 = vld [vmem:[%s3289 + $0x2c] sm:$0xf]
      %v3300 = vld [vmem:[%s3289 + $0x30] sm:$0xf]
      %v3301 = vld [vmem:[%s3289 + $0x34] sm:$0xf]
      %v3302 = vld [vmem:[%s3289 + $0x3c] sm:$0xf]
      %v3303 = vld [vmem:[%s3289 + $0x40] sm:$0xf]
      %v3304 = vld [vmem:[%s3289 + $0x44] sm:$0xf]
      %v3305 = vld [vmem:[%s3289 + $0x48] sm:$0xf]
      %v3306 = vld [vmem:[%s3289 + $0x50] sm:$0xf]
      %v3307 = vld [vmem:[%s3289 + $0x54] sm:$0xf]
      %v3308 = vld [vmem:[%s3289 + $0x58] sm:$0xf]
      %v3309 = vld [vmem:[%s3289 + $0x5c] sm:$0xf]
      %v3310 = vld [vmem:[%s3289 + $0x64] sm:$0xf]
      %v3311 = vld [vmem:[%s3289 + $0x68] sm:$0xf]
      %v3312 = vld [vmem:[%s3289 + $0x6c] sm:$0xf]
      %v3313 = vld [vmem:[%s3289 + $0x70] sm:$0xf]
      %v3314 = vld [vmem:[%s3289 + $0x78] sm:$0xf]
      %v3315 = vld [vmem:[%s3289 + $0x7c] sm:$0xf]
      %v3316 = vld [vmem:[%s3289 + $0x80] sm:$0xf]
      %v3317 = vld [vmem:[%s3289 + $0x84] sm:$0xf]
      %v3318 = vld [vmem:[%s3289 + $0x8c] sm:$0xf]
      %v3319 = vld [vmem:[%s3289 + $0x90] sm:$0xf]
      %v3320 = vld [vmem:[%s3289 + $0x94] sm:$0xf]
      %v3321 = vld [vmem:[%s3289 + $0x98] sm:$0xf]
      %s3322 = scalar_lea.vmem %s1, 384
      %v3323 = vld [vmem:[%s3322] sm:$0xf]
      %v3324 = vld [vmem:[%s3322 + $0x4] sm:$0xf]
      %v3325 = vld [vmem:[%s3322 + $0x8] sm:$0xf]
      %v3326 = vld [vmem:[%s3322 + $0xc] sm:$0xf]
      %v3327 = vld [vmem:[%s3322 + $0x10] sm:$0xf]
      %v3328 = vld [vmem:[%s3322 + $0x14] sm:$0xf]
      %v3329 = vld [vmem:[%s3322 + $0x18] sm:$0xf]
      %v3330 = vld [vmem:[%s3322 + $0x1c] sm:$0xf]
      %v3331 = vld [vmem:[%s3322 + $0x20] sm:$0xf]
      %v3332 = vld [vmem:[%s3322 + $0x24] sm:$0xf]
      %v3333 = vld [vmem:[%s3322 + $0x28] sm:$0xf]
      %v3334 = vld [vmem:[%s3322 + $0x2c] sm:$0xf]
      %v3335 = vld [vmem:[%s3322 + $0x30] sm:$0xf]
      %v3336 = vld [vmem:[%s3322 + $0x34] sm:$0xf]
      %v3337 = vld [vmem:[%s3322 + $0x38] sm:$0xf]
      %v3338 = vld [vmem:[%s3322 + $0x3c] sm:$0xf]
      %v3371 = vunpack.c.l.b16 %v3290
      %v3372 = vunpack.c.l.b16 %v3291
      %v3373 = vunpack.c.l.b16 %v3292
      %v3374 = vunpack.c.l.b16 %v3293
      %v3375 = vunpack.c.l.b16 %v3294
      %v3376 = vunpack.c.l.b16 %v3295
      %v3377 = vunpack.c.l.b16 %v3296
      %v3378 = vunpack.c.l.b16 %v3297
      %v3379 = vunpack.c.l.b16 %v3298
      %v3380 = vunpack.c.l.b16 %v3299
      %v3381 = vunpack.c.l.b16 %v3300
      %v3382 = vunpack.c.l.b16 %v3301
      %v3383 = vunpack.c.l.b16 %v3302
      %v3384 = vunpack.c.l.b16 %v3303
      %v3385 = vunpack.c.l.b16 %v3304
      %v3386 = vunpack.c.l.b16 %v3305
      %v3387 = vunpack.c.l.b16 %v3306
      %v3388 = vunpack.c.l.b16 %v3307
      %v3389 = vunpack.c.l.b16 %v3308
      %v3390 = vunpack.c.l.b16 %v3309
      %v3391 = vunpack.c.l.b16 %v3310
      %v3392 = vunpack.c.l.b16 %v3311
      %v3393 = vunpack.c.l.b16 %v3312
      %v3394 = vunpack.c.l.b16 %v3313
      %v3395 = vunpack.c.l.b16 %v3314
      %v3396 = vunpack.c.l.b16 %v3315
      %v3397 = vunpack.c.l.b16 %v3316
      %v3398 = vunpack.c.l.b16 %v3317
      %v3399 = vunpack.c.l.b16 %v3318
      %v3400 = vunpack.c.l.b16 %v3319
      %v3401 = vunpack.c.l.b16 %v3320
      %v3402 = vunpack.c.l.b16 %v3321
      %v3403 = vpack.c.b16 %v3372, %v3371
      %v3404 = vpack.c.b16 %v3374, %v3373
      %v3405 = vpack.c.b16 %v3376, %v3375
      %v3406 = vpack.c.b16 %v3378, %v3377
      %v3407 = vpack.c.b16 %v3380, %v3379
      %v3408 = vpack.c.b16 %v3382, %v3381
      %v3409 = vpack.c.b16 %v3384, %v3383
      %v3410 = vpack.c.b16 %v3386, %v3385
      %v3411 = vpack.c.b16 %v3388, %v3387
      %v3412 = vpack.c.b16 %v3390, %v3389
      %v3413 = vpack.c.b16 %v3392, %v3391
      %v3414 = vpack.c.b16 %v3394, %v3393
      %v3415 = vpack.c.b16 %v3396, %v3395
      %v3416 = vpack.c.b16 %v3398, %v3397
      %v3417 = vpack.c.b16 %v3400, %v3399
      %v3418 = vpack.c.b16 %v3402, %v3401
      %v3451 = vunpack.c.l.b16 %v3323
      %v3452 = vunpack.c.l.b16 %v3324
      %v3453 = vunpack.c.l.b16 %v3325
      %v3454 = vunpack.c.l.b16 %v3326
      %v3455 = vunpack.c.l.b16 %v3327
      %v3456 = vunpack.c.l.b16 %v3328
      %v3457 = vunpack.c.l.b16 %v3329
      %v3458 = vunpack.c.l.b16 %v3330
      %v3459 = vunpack.c.l.b16 %v3331
      %v3460 = vunpack.c.l.b16 %v3332
      %v3461 = vunpack.c.l.b16 %v3333
      %v3462 = vunpack.c.l.b16 %v3334
      %v3463 = vunpack.c.l.b16 %v3335
      %v3464 = vunpack.c.l.b16 %v3336
      %v3465 = vunpack.c.l.b16 %v3337
      %v3466 = vunpack.c.l.b16 %v3338
      %v3467 = vpack.c.b16 %v3452, %v3451
      %v3468 = vpack.c.b16 %v3454, %v3453
      %v3469 = vpack.c.b16 %v3456, %v3455
      %v3470 = vpack.c.b16 %v3458, %v3457
      %v3471 = vpack.c.b16 %v3460, %v3459
      %v3472 = vpack.c.b16 %v3462, %v3461
      %v3473 = vpack.c.b16 %v3464, %v3463
      %v3474 = vpack.c.b16 %v3466, %v3465
      %3483 = vmatprep.subr.bf16.mxu0 0
      %3484 = vmatpush1.bf16.msra.mxu0 %v3467
      %3485 = vmatprep.subr.bf16.mxu0 0
      %3486 = vmatpush1.bf16.msra.mxu0 %v3468
      %3487 = vmatprep.subr.bf16.mxu0 0
      %3488 = vmatpush1.bf16.msra.mxu0 %v3469
      %3489 = vmatprep.subr.bf16.mxu0 0
      %3490 = vmatpush1.bf16.msra.mxu0 %v3470
      %3491 = vmatprep.subr.bf16.mxu0 0
      %3492 = vmatpush1.bf16.msra.mxu0 %v3471
      %3493 = vmatprep.subr.bf16.mxu0 0
      %3494 = vmatpush1.bf16.msra.mxu0 %v3472
      %3495 = vmatprep.subr.bf16.mxu0 0
      %3496 = vmatpush1.bf16.msra.mxu0 %v3473
      %3497 = vmatprep.subr.bf16.mxu0 0
      %3498 = vmatpush1.bf16.msra.mxu0 %v3474
      %3499 = vmatprep.subr.bf16.mxu0 0
      %3500 = vmatpush1.bf16.msra.mxu0 0
      %3501 = vmatprep.subr.bf16.mxu0 0
      %3502 = vmatpush1.bf16.msra.mxu0 0
      %3503 = vmatprep.subr.bf16.mxu0 0
      %3504 = vmatpush1.bf16.msra.mxu0 0
      %3505 = vmatprep.subr.bf16.mxu0 0
      %3506 = vmatpush1.bf16.msra.mxu0 0
      %3507 = vmatprep.subr.bf16.mxu0 0
      %3508 = vmatpush1.bf16.msra.mxu0 0
      %3509 = vmatprep.subr.bf16.mxu0 0
      %3510 = vmatpush1.bf16.msra.mxu0 0
      %3511 = vmatprep.subr.bf16.mxu0 0
      %3512 = vmatpush1.bf16.msra.mxu0 0
      %3513 = vmatprep.subr.bf16.mxu0 0
      %3514 = vmatpush1.bf16.msra.mxu0 0
      %3515 = vmatprep.mubr.bf16.mxu0 0
      %3516 = vmatmul.mubr.bf16.gmra.mrb[0].mxu0 %v3403
      %v3517 = vpop.f32.mrb[0].mxu0
      %v3518 = vadd.f32 0.0, %v3517
      %v3519 = vpop.f32.mrb[0].mxu0
      %v3520 = vpop.f32.mrb[0].mxu0
      %v3521 = vadd.f32 0.0, %v3520
      %v3522 = vpop.f32.mrb[0].mxu0
      %3523 = vmatprep.mubr.bf16.mxu0 0
      %3524 = vmatmul.mubr.bf16.gmra.mrb[0].mxu0 %v3404
      %v3525 = vpop.f32.mrb[0].mxu0
      %v3526 = vadd.f32 0.0, %v3525
      %v3527 = vpop.f32.mrb[0].mxu0
      %v3528 = vpop.f32.mrb[0].mxu0
      %v3529 = vadd.f32 0.0, %v3528
      %v3530 = vpop.f32.mrb[0].mxu0
      %3531 = vmatprep.mubr.bf16.mxu0 0
      %3532 = vmatmul.mubr.bf16.gmra.mrb[0].mxu0 %v3405
      %v3533 = vpop.f32.mrb[0].mxu0
      %v3534 = vadd.f32 0.0, %v3533
      %v3535 = vpop.f32.mrb[0].mxu0
      %v3536 = vpop.f32.mrb[0].mxu0
      %v3537 = vadd.f32 0.0, %v3536
      %v3538 = vpop.f32.mrb[0].mxu0
      %3539 = vmatprep.mubr.bf16.mxu0 0
      %3540 = vmatmul.mubr.bf16.gmra.mrb[0].mxu0 %v3406
      %v3541 = vpop.f32.mrb[0].mxu0
      %v3542 = vadd.f32 0.0, %v3541
      %v3543 = vpop.f32.mrb[0].mxu0
      %v3544 = vpop.f32.mrb[0].mxu0
      %v3545 = vadd.f32 0.0, %v3544
      %v3546 = vpop.f32.mrb[0].mxu0
      %3547 = vmatprep.mubr.bf16.mxu0 0
      %3548 = vmatmul.mubr.bf16.gmra.mrb[0].mxu0 %v3407
      %v3549 = vpop.f32.mrb[0].mxu0
      %v3550 = vadd.f32 0.0, %v3549
      %v3551 = vpop.f32.mrb[0].mxu0
      %v3552 = vpop.f32.mrb[0].mxu0
      %v3553 = vadd.f32 0.0, %v3552
      %v3554 = vpop.f32.mrb[0].mxu0
      %3555 = vmatprep.mubr.bf16.mxu0 0
      %3556 = vmatmul.mubr.bf16.gmra.mrb[0].mxu0 %v3408
      %v3557 = vpop.f32.mrb[0].mxu0
      %v3558 = vadd.f32 0.0, %v3557
      %v3559 = vpop.f32.mrb[0].mxu0
      %v3560 = vpop.f32.mrb[0].mxu0
      %v3561 = vadd.f32 0.0, %v3560
      %v3562 = vpop.f32.mrb[0].mxu0
      %3563 = vmatprep.mubr.bf16.mxu0 0
      %3564 = vmatmul.mubr.bf16.gmra.mrb[0].mxu0 %v3409
      %v3565 = vpop.f32.mrb[0].mxu0
      %v3566 = vadd.f32 0.0, %v3565
      %v3567 = vpop.f32.mrb[0].mxu0
      %v3568 = vpop.f32.mrb[0].mxu0
      %v3569 = vadd.f32 0.0, %v3568
      %v3570 = vpop.f32.mrb[0].mxu0
      %3571 = vmatprep.mubr.bf16.mxu0 0
      %3572 = vmatmul.mubr.bf16.gmra.mrb[0].mxu0 %v3410
      %v3573 = vpop.f32.mrb[0].mxu0
      %v3574 = vadd.f32 0.0, %v3573
      %v3575 = vpop.f32.mrb[0].mxu0
      %v3576 = vpop.f32.mrb[0].mxu0
      %v3577 = vadd.f32 0.0, %v3576
      %v3578 = vpop.f32.mrb[0].mxu0
      %3579 = vmatprep.mubr.bf16.mxu0 0
      %3580 = vmatmul.mubr.bf16.gmra.mrb[0].mxu0 %v3411
      %v3581 = vpop.f32.mrb[0].mxu0
      %v3582 = vadd.f32 0.0, %v3581
      %v3583 = vpop.f32.mrb[0].mxu0
      %v3584 = vpop.f32.mrb[0].mxu0
      %v3585 = vadd.f32 0.0, %v3584
      %v3586 = vpop.f32.mrb[0].mxu0
      %3587 = vmatprep.mubr.bf16.mxu0 0
      %3588 = vmatmul.mubr.bf16.gmra.mrb[0].mxu0 %v3412
      %v3589 = vpop.f32.mrb[0].mxu0
      %v3590 = vadd.f32 0.0, %v3589
      %v3591 = vpop.f32.mrb[0].mxu0
      %v3592 = vpop.f32.mrb[0].mxu0
      %v3593 = vadd.f32 0.0, %v3592
      %v3594 = vpop.f32.mrb[0].mxu0
      %3595 = vmatprep.mubr.bf16.mxu0 0
      %3596 = vmatmul.mubr.bf16.gmra.mrb[0].mxu0 %v3413
      %v3597 = vpop.f32.mrb[0].mxu0
      %v3598 = vadd.f32 0.0, %v3597
      %v3599 = vpop.f32.mrb[0].mxu0
      %v3600 = vpop.f32.mrb[0].mxu0
      %v3601 = vadd.f32 0.0, %v3600
      %v3602 = vpop.f32.mrb[0].mxu0
      %3603 = vmatprep.mubr.bf16.mxu0 0
      %3604 = vmatmul.mubr.bf16.gmra.mrb[0].mxu0 %v3414
      %v3605 = vpop.f32.mrb[0].mxu0
      %v3606 = vadd.f32 0.0, %v3605
      %v3607 = vpop.f32.mrb[0].mxu0
      %v3608 = vpop.f32.mrb[0].mxu0
      %v3609 = vadd.f32 0.0, %v3608
      %v3610 = vpop.f32.mrb[0].mxu0
      %3611 = vmatprep.mubr.bf16.mxu0 0
      %3612 = vmatmul.mubr.bf16.gmra.mrb[0].mxu0 %v3415
      %v3613 = vpop.f32.mrb[0].mxu0
      %v3614 = vadd.f32 0.0, %v3613
      %v3615 = vpop.f32.mrb[0].mxu0
      %v3616 = vpop.f32.mrb[0].mxu0
      %v3617 = vadd.f32 0.0, %v3616
      %v3618 = vpop.f32.mrb[0].mxu0
      %3619 = vmatprep.mubr.bf16.mxu0 0
      %3620 = vmatmul.mubr.bf16.gmra.mrb[0].mxu0 %v3416
      %v3621 = vpop.f32.mrb[0].mxu0
      %v3622 = vadd.f32 0.0, %v3621
      %v3623 = vpop.f32.mrb[0].mxu0
      %v3624 = vpop.f32.mrb[0].mxu0
      %v3625 = vadd.f32 0.0, %v3624
      %v3626 = vpop.f32.mrb[0].mxu0
      %3627 = vmatprep.mubr.bf16.mxu0 0
      %3628 = vmatmul.mubr.bf16.gmra.mrb[0].mxu0 %v3417
      %v3629 = vpop.f32.mrb[0].mxu0
      %v3630 = vadd.f32 0.0, %v3629
      %v3631 = vpop.f32.mrb[0].mxu0
      %v3632 = vpop.f32.mrb[0].mxu0
      %v3633 = vadd.f32 0.0, %v3632
      %v3634 = vpop.f32.mrb[0].mxu0
      %3635 = vmatprep.mubr.bf16.mxu0 0
      %3636 = vmatmul.mubr.bf16.gmra.mrb[0].mxu0 %v3418
      %v3637 = vpop.f32.mrb[0].mxu0
      %v3638 = vadd.f32 0.0, %v3637
      %v3639 = vpop.f32.mrb[0].mxu0
      %v3640 = vpop.f32.mrb[0].mxu0
      %v3641 = vadd.f32 0.0, %v3640
      %v3642 = vpop.f32.mrb[0].mxu0
      %3643 = vdwg.mxu0
      %v3644 = vadd.f32 %v3254, %v3518
      %v3645 = vadd.f32 %v3255, %v3521
      %v3646 = vadd.f32 %v3256, %v3526
      %v3647 = vadd.f32 %v3257, %v3529
      %v3648 = vadd.f32 %v3258, %v3534
      %v3649 = vadd.f32 %v3259, %v3537
      %v3650 = vadd.f32 %v3260, %v3542
      %v3651 = vadd.f32 %v3261, %v3545
      %v3652 = vadd.f32 %v3262, %v3550
      %v3653 = vadd.f32 %v3263, %v3553
      %v3654 = vadd.f32 %v3264, %v3558
      %v3655 = vadd.f32 %v3265, %v3561
      %v3656 = vadd.f32 %v3266, %v3566
      %v3657 = vadd.f32 %v3267, %v3569
      %v3658 = vadd.f32 %v3268, %v3574
      %v3659 = vadd.f32 %v3269, %v3577
      %v3660 = vadd.f32 %v3270, %v3582
      %v3661 = vadd.f32 %v3271, %v3585
      %v3662 = vadd.f32 %v3272, %v3590
      %v3663 = vadd.f32 %v3273, %v3593
      %v3664 = vadd.f32 %v3274, %v3598
      %v3665 = vadd.f32 %v3275, %v3601
      %v3666 = vadd.f32 %v3276, %v3606
      %v3667 = vadd.f32 %v3277, %v3609
      %v3668 = vadd.f32 %v3278, %v3614
      %v3669 = vadd.f32 %v3279, %v3617
      %v3670 = vadd.f32 %v3280, %v3622
      %v3671 = vadd.f32 %v3281, %v3625
      %v3672 = vadd.f32 %v3282, %v3630
      %v3673 = vadd.f32 %v3283, %v3633
      %v3674 = vadd.f32 %v3284, %v3638
      %v3675 = vadd.f32 %v3285, %v3641
      %v3676 = vld [vmem:[%s3289] sm:$0xf]
      %v3677 = vld [vmem:[%s3289 + $0x4] sm:$0xf]
      %v3678 = vld [vmem:[%s3289 + $0x8] sm:$0xf]
      %v3679 = vld [vmem:[%s3289 + $0xc] sm:$0xf]
      %v3680 = vld [vmem:[%s3289 + $0x10] sm:$0x1]
      %v3681 = vld [vmem:[%s3289 + $0x14] sm:$0xf]
      %v3682 = vld [vmem:[%s3289 + $0x18] sm:$0xf]
      %v3683 = vld [vmem:[%s3289 + $0x1c] sm:$0xf]
      %v3684 = vld [vmem:[%s3289 + $0x20] sm:$0xf]
      %v3685 = vld [vmem:[%s3289 + $0x24] sm:$0x1]
      %v3686 = vld [vmem:[%s3289 + $0x28] sm:$0xf]
      %v3687 = vld [vmem:[%s3289 + $0x2c] sm:$0xf]
      %v3688 = vld [vmem:[%s3289 + $0x30] sm:$0xf]
      %v3689 = vld [vmem:[%s3289 + $0x34] sm:$0xf]
      %v3690 = vld [vmem:[%s3289 + $0x38] sm:$0x1]
      %v3691 = vld [vmem:[%s3289 + $0x3c] sm:$0xf]
      %v3692 = vld [vmem:[%s3289 + $0x40] sm:$0xf]
      %v3693 = vld [vmem:[%s3289 + $0x44] sm:$0xf]
      %v3694 = vld [vmem:[%s3289 + $0x48] sm:$0xf]
      %v3695 = vld [vmem:[%s3289 + $0x4c] sm:$0x1]
      %v3696 = vld [vmem:[%s3289 + $0x50] sm:$0xf]
      %v3697 = vld [vmem:[%s3289 + $0x54] sm:$0xf]
      %v3698 = vld [vmem:[%s3289 + $0x58] sm:$0xf]
      %v3699 = vld [vmem:[%s3289 + $0x5c] sm:$0xf]
      %v3700 = vld [vmem:[%s3289 + $0x60] sm:$0x1]
      %v3701 = vld [vmem:[%s3289 + $0x64] sm:$0xf]
      %v3702 = vld [vmem:[%s3289 + $0x68] sm:$0xf]
      %v3703 = vld [vmem:[%s3289 + $0x6c] sm:$0xf]
      %v3704 = vld [vmem:[%s3289 + $0x70] sm:$0xf]
      %v3705 = vld [vmem:[%s3289 + $0x74] sm:$0x1]
      %v3706 = vld [vmem:[%s3289 + $0x78] sm:$0xf]
      %v3707 = vld [vmem:[%s3289 + $0x7c] sm:$0xf]
      %v3708 = vld [vmem:[%s3289 + $0x80] sm:$0xf]
      %v3709 = vld [vmem:[%s3289 + $0x84] sm:$0xf]
      %v3710 = vld [vmem:[%s3289 + $0x88] sm:$0x1]
      %v3711 = vld [vmem:[%s3289 + $0x8c] sm:$0xf]
      %v3712 = vld [vmem:[%s3289 + $0x90] sm:$0xf]
      %v3713 = vld [vmem:[%s3289 + $0x94] sm:$0xf]
      %v3714 = vld [vmem:[%s3289 + $0x98] sm:$0xf]
      %v3715 = vld [vmem:[%s3289 + $0x9c] sm:$0x1]
      %v3717 = vshrl.u32 %v3676, 16
      %v3719 = vrot.slane %v3717, 4
      %v3720 = vshll.u32 %v3676, 16
      %v3722 = vrot.slane %v3720, 5
      %v3723 = vor.u32 %v3719, %v3722
      %v3724 = vrot.slane %v3723, 4
      %v3726 = vshll.u32 %v3677, 16
      %v3728 = vrot.slane %v3726, 5
      %v3729 = vsel %vm307, %v3724, %v3728
      %v3730 = vshrl.u32 %v3677, 16
      %v3732 = vrot.slane %v3730, 4
      %v3733 = vor.u32 %v3732, %v3728
      %v3734 = vrot.slane %v3733, 4
      %v3736 = vshll.u32 %v3678, 16
      %v3738 = vrot.slane %v3736, 5
      %v3739 = vsel %vm307, %v3734, %v3738
      %v3740 = vshrl.u32 %v3678, 16
      %v3742 = vrot.slane %v3740, 4
      %v3743 = vor.u32 %v3742, %v3738
      %v3744 = vrot.slane %v3743, 4
      %v3746 = vshll.u32 %v3679, 16
      %v3748 = vrot.slane %v3746, 5
      %v3749 = vsel %vm307, %v3744, %v3748
      %v3750 = vshrl.u32 %v3679, 16
      %v3752 = vrot.slane %v3750, 4
      %v3753 = vor.u32 %v3752, %v3748
      %v3754 = vrot.slane %v3753, 4
      %v3756 = vshll.u32 %v3680, 16
      %v3758 = vrot.slane %v3756, 5
      %v3759 = vsel %vm307, %v3754, %v3758
      %v3761 = vshrl.u32 %v3681, 16
      %v3763 = vrot.slane %v3761, 4
      %v3764 = vshll.u32 %v3681, 16
      %v3766 = vrot.slane %v3764, 5
      %v3767 = vor.u32 %v3763, %v3766
      %v3768 = vrot.slane %v3767, 4
      %v3770 = vshll.u32 %v3682, 16
      %v3772 = vrot.slane %v3770, 5
      %v3773 = vsel %vm307, %v3768, %v3772
      %v3774 = vshrl.u32 %v3682, 16
      %v3776 = vrot.slane %v3774, 4
      %v3777 = vor.u32 %v3776, %v3772
      %v3778 = vrot.slane %v3777, 4
      %v3780 = vshll.u32 %v3683, 16
      %v3782 = vrot.slane %v3780, 5
      %v3783 = vsel %vm307, %v3778, %v3782
      %v3784 = vshrl.u32 %v3683, 16
      %v3786 = vrot.slane %v3784, 4
      %v3787 = vor.u32 %v3786, %v3782
      %v3788 = vrot.slane %v3787, 4
      %v3790 = vshll.u32 %v3684, 16
      %v3792 = vrot.slane %v3790, 5
      %v3793 = vsel %vm307, %v3788, %v3792
      %v3794 = vshrl.u32 %v3684, 16
      %v3796 = vrot.slane %v3794, 4
      %v3797 = vor.u32 %v3796, %v3792
      %v3798 = vrot.slane %v3797, 4
      %v3800 = vshll.u32 %v3685, 16
      %v3802 = vrot.slane %v3800, 5
      %v3803 = vsel %vm307, %v3798, %v3802
      %v3805 = vshrl.u32 %v3686, 16
      %v3807 = vrot.slane %v3805, 4
      %v3808 = vshll.u32 %v3686, 16
      %v3810 = vrot.slane %v3808, 5
      %v3811 = vor.u32 %v3807, %v3810
      %v3812 = vrot.slane %v3811, 4
      %v3814 = vshll.u32 %v3687, 16
      %v3816 = vrot.slane %v3814, 5
      %v3817 = vsel %vm307, %v3812, %v3816
      %v3818 = vshrl.u32 %v3687, 16
      %v3820 = vrot.slane %v3818, 4
      %v3821 = vor.u32 %v3820, %v3816
      %v3822 = vrot.slane %v3821, 4
      %v3824 = vshll.u32 %v3688, 16
      %v3826 = vrot.slane %v3824, 5
      %v3827 = vsel %vm307, %v3822, %v3826
      %v3828 = vshrl.u32 %v3688, 16
      %v3830 = vrot.slane %v3828, 4
      %v3831 = vor.u32 %v3830, %v3826
      %v3832 = vrot.slane %v3831, 4
      %v3834 = vshll.u32 %v3689, 16
      %v3836 = vrot.slane %v3834, 5
      %v3837 = vsel %vm307, %v3832, %v3836
      %v3838 = vshrl.u32 %v3689, 16
      %v3840 = vrot.slane %v3838, 4
      %v3841 = vor.u32 %v3840, %v3836
      %v3842 = vrot.slane %v3841, 4
      %v3844 = vshll.u32 %v3690, 16
      %v3846 = vrot.slane %v3844, 5
      %v3847 = vsel %vm307, %v3842, %v3846
      %v3849 = vshrl.u32 %v3691, 16
      %v3851 = vrot.slane %v3849, 4
      %v3852 = vshll.u32 %v3691, 16
      %v3854 = vrot.slane %v3852, 5
      %v3855 = vor.u32 %v3851, %v3854
      %v3856 = vrot.slane %v3855, 4
      %v3858 = vshll.u32 %v3692, 16
      %v3860 = vrot.slane %v3858, 5
      %v3861 = vsel %vm307, %v3856, %v3860
      %v3862 = vshrl.u32 %v3692, 16
      %v3864 = vrot.slane %v3862, 4
      %v3865 = vor.u32 %v3864, %v3860
      %v3866 = vrot.slane %v3865, 4
      %v3868 = vshll.u32 %v3693, 16
      %v3870 = vrot.slane %v3868, 5
      %v3871 = vsel %vm307, %v3866, %v3870
      %v3872 = vshrl.u32 %v3693, 16
      %v3874 = vrot.slane %v3872, 4
      %v3875 = vor.u32 %v3874, %v3870
      %v3876 = vrot.slane %v3875, 4
      %v3878 = vshll.u32 %v3694, 16
      %v3880 = vrot.slane %v3878, 5
      %v3881 = vsel %vm307, %v3876, %v3880
      %v3882 = vshrl.u32 %v3694, 16
      %v3884 = vrot.slane %v3882, 4
      %v3885 = vor.u32 %v3884, %v3880
      %v3886 = vrot.slane %v3885, 4
      %v3888 = vshll.u32 %v3695, 16
      %v3890 = vrot.slane %v3888, 5
      %v3891 = vsel %vm307, %v3886, %v3890
      %v3893 = vshrl.u32 %v3696, 16
      %v3895 = vrot.slane %v3893, 4
      %v3896 = vshll.u32 %v3696, 16
      %v3898 = vrot.slane %v3896, 5
      %v3899 = vor.u32 %v3895, %v3898
      %v3900 = vrot.slane %v3899, 4
      %v3902 = vshll.u32 %v3697, 16
      %v3904 = vrot.slane %v3902, 5
      %v3905 = vsel %vm307, %v3900, %v3904
      %v3906 = vshrl.u32 %v3697, 16
      %v3908 = vrot.slane %v3906, 4
      %v3909 = vor.u32 %v3908, %v3904
      %v3910 = vrot.slane %v3909, 4
      %v3912 = vshll.u32 %v3698, 16
      %v3914 = vrot.slane %v3912, 5
      %v3915 = vsel %vm307, %v3910, %v3914
      %v3916 = vshrl.u32 %v3698, 16
      %v3918 = vrot.slane %v3916, 4
      %v3919 = vor.u32 %v3918, %v3914
      %v3920 = vrot.slane %v3919, 4
      %v3922 = vshll.u32 %v3699, 16
      %v3924 = vrot.slane %v3922, 5
      %v3925 = vsel %vm307, %v3920, %v3924
      %v3926 = vshrl.u32 %v3699, 16
      %v3928 = vrot.slane %v3926, 4
      %v3929 = vor.u32 %v3928, %v3924
      %v3930 = vrot.slane %v3929, 4
      %v3932 = vshll.u32 %v3700, 16
      %v3934 = vrot.slane %v3932, 5
      %v3935 = vsel %vm307, %v3930, %v3934
      %v3937 = vshrl.u32 %v3701, 16
      %v3939 = vrot.slane %v3937, 4
      %v3940 = vshll.u32 %v3701, 16
      %v3942 = vrot.slane %v3940, 5
      %v3943 = vor.u32 %v3939, %v3942
      %v3944 = vrot.slane %v3943, 4
      %v3946 = vshll.u32 %v3702, 16
      %v3948 = vrot.slane %v3946, 5
      %v3949 = vsel %vm307, %v3944, %v3948
      %v3950 = vshrl.u32 %v3702, 16
      %v3952 = vrot.slane %v3950, 4
      %v3953 = vor.u32 %v3952, %v3948
      %v3954 = vrot.slane %v3953, 4
      %v3956 = vshll.u32 %v3703, 16
      %v3958 = vrot.slane %v3956, 5
      %v3959 = vsel %vm307, %v3954, %v3958
      %v3960 = vshrl.u32 %v3703, 16
      %v3962 = vrot.slane %v3960, 4
      %v3963 = vor.u32 %v3962, %v3958
      %v3964 = vrot.slane %v3963, 4
      %v3966 = vshll.u32 %v3704, 16
      %v3968 = vrot.slane %v3966, 5
      %v3969 = vsel %vm307, %v3964, %v3968
      %v3970 = vshrl.u32 %v3704, 16
      %v3972 = vrot.slane %v3970, 4
      %v3973 = vor.u32 %v3972, %v3968
      %v3974 = vrot.slane %v3973, 4
      %v3976 = vshll.u32 %v3705, 16
      %v3978 = vrot.slane %v3976, 5
      %v3979 = vsel %vm307, %v3974, %v3978
      %v3981 = vshrl.u32 %v3706, 16
      %v3983 = vrot.slane %v3981, 4
      %v3984 = vshll.u32 %v3706, 16
      %v3986 = vrot.slane %v3984, 5
      %v3987 = vor.u32 %v3983, %v3986
      %v3988 = vrot.slane %v3987, 4
      %v3990 = vshll.u32 %v3707, 16
      %v3992 = vrot.slane %v3990, 5
      %v3993 = vsel %vm307, %v3988, %v3992
      %v3994 = vshrl.u32 %v3707, 16
      %v3996 = vrot.slane %v3994, 4
      %v3997 = vor.u32 %v3996, %v3992
      %v3998 = vrot.slane %v3997, 4
      %v4000 = vshll.u32 %v3708, 16
      %v4002 = vrot.slane %v4000, 5
      %v4003 = vsel %vm307, %v3998, %v4002
      %v4004 = vshrl.u32 %v3708, 16
      %v4006 = vrot.slane %v4004, 4
      %v4007 = vor.u32 %v4006, %v4002
      %v4008 = vrot.slane %v4007, 4
      %v4010 = vshll.u32 %v3709, 16
      %v4012 = vrot.slane %v4010, 5
      %v4013 = vsel %vm307, %v4008, %v4012
      %v4014 = vshrl.u32 %v3709, 16
      %v4016 = vrot.slane %v4014, 4
      %v4017 = vor.u32 %v4016, %v4012
      %v4018 = vrot.slane %v4017, 4
      %v4020 = vshll.u32 %v3710, 16
      %v4022 = vrot.slane %v4020, 5
      %v4023 = vsel %vm307, %v4018, %v4022
      %v4025 = vshrl.u32 %v3711, 16
      %v4027 = vrot.slane %v4025, 4
      %v4028 = vshll.u32 %v3711, 16
      %v4030 = vrot.slane %v4028, 5
      %v4031 = vor.u32 %v4027, %v4030
      %v4032 = vrot.slane %v4031, 4
      %v4034 = vshll.u32 %v3712, 16
      %v4036 = vrot.slane %v4034, 5
      %v4037 = vsel %vm307, %v4032, %v4036
      %v4038 = vshrl.u32 %v3712, 16
      %v4040 = vrot.slane %v4038, 4
      %v4041 = vor.u32 %v4040, %v4036
      %v4042 = vrot.slane %v4041, 4
      %v4044 = vshll.u32 %v3713, 16
      %v4046 = vrot.slane %v4044, 5
      %v4047 = vsel %vm307, %v4042, %v4046
      %v4048 = vshrl.u32 %v3713, 16
      %v4050 = vrot.slane %v4048, 4
      %v4051 = vor.u32 %v4050, %v4046
      %v4052 = vrot.slane %v4051, 4
      %v4054 = vshll.u32 %v3714, 16
      %v4056 = vrot.slane %v4054, 5
      %v4057 = vsel %vm307, %v4052, %v4056
      %v4058 = vshrl.u32 %v3714, 16
      %v4060 = vrot.slane %v4058, 4
      %v4061 = vor.u32 %v4060, %v4056
      %v4062 = vrot.slane %v4061, 4
      %v4064 = vshll.u32 %v3715, 16
      %v4066 = vrot.slane %v4064, 5
      %v4067 = vsel %vm307, %v4062, %v4066
      %s4068 = scalar_lea.vmem %s1, 448
      %v4069 = vld [vmem:[%s4068] sm:$0xf]
      %v4070 = vld [vmem:[%s4068 + $0x4] sm:$0xf]
      %v4071 = vld [vmem:[%s4068 + $0x8] sm:$0xf]
      %v4072 = vld [vmem:[%s4068 + $0xc] sm:$0xf]
      %v4073 = vld [vmem:[%s4068 + $0x10] sm:$0xf]
      %v4074 = vld [vmem:[%s4068 + $0x14] sm:$0xf]
      %v4075 = vld [vmem:[%s4068 + $0x18] sm:$0xf]
      %v4076 = vld [vmem:[%s4068 + $0x1c] sm:$0xf]
      %v4077 = vld [vmem:[%s4068 + $0x20] sm:$0xf]
      %v4078 = vld [vmem:[%s4068 + $0x24] sm:$0xf]
      %v4079 = vld [vmem:[%s4068 + $0x28] sm:$0xf]
      %v4080 = vld [vmem:[%s4068 + $0x2c] sm:$0xf]
      %v4081 = vld [vmem:[%s4068 + $0x30] sm:$0xf]
      %v4082 = vld [vmem:[%s4068 + $0x34] sm:$0xf]
      %v4083 = vld [vmem:[%s4068 + $0x38] sm:$0xf]
      %v4084 = vld [vmem:[%s4068 + $0x3c] sm:$0xf]
      %v4085 = vunpack.c.l.b16 %v3729
      %v4086 = vunpack.c.l.b16 %v3739
      %v4087 = vunpack.c.l.b16 %v3749
      %v4088 = vunpack.c.l.b16 %v3759
      %v4089 = vunpack.c.l.b16 %v3773
      %v4090 = vunpack.c.l.b16 %v3783
      %v4091 = vunpack.c.l.b16 %v3793
      %v4092 = vunpack.c.l.b16 %v3803
      %v4093 = vunpack.c.l.b16 %v3817
      %v4094 = vunpack.c.l.b16 %v3827
      %v4095 = vunpack.c.l.b16 %v3837
      %v4096 = vunpack.c.l.b16 %v3847
      %v4097 = vunpack.c.l.b16 %v3861
      %v4098 = vunpack.c.l.b16 %v3871
      %v4099 = vunpack.c.l.b16 %v3881
      %v4100 = vunpack.c.l.b16 %v3891
      %v4101 = vunpack.c.l.b16 %v3905
      %v4102 = vunpack.c.l.b16 %v3915
      %v4103 = vunpack.c.l.b16 %v3925
      %v4104 = vunpack.c.l.b16 %v3935
      %v4105 = vunpack.c.l.b16 %v3949
      %v4106 = vunpack.c.l.b16 %v3959
      %v4107 = vunpack.c.l.b16 %v3969
      %v4108 = vunpack.c.l.b16 %v3979
      %v4109 = vunpack.c.l.b16 %v3993
      %v4110 = vunpack.c.l.b16 %v4003
      %v4111 = vunpack.c.l.b16 %v4013
      %v4112 = vunpack.c.l.b16 %v4023
      %v4113 = vunpack.c.l.b16 %v4037
      %v4114 = vunpack.c.l.b16 %v4047
      %v4115 = vunpack.c.l.b16 %v4057
      %v4116 = vunpack.c.l.b16 %v4067
      %v4117 = vpack.c.b16 %v4086, %v4085
      %v4118 = vpack.c.b16 %v4088, %v4087
      %v4119 = vpack.c.b16 %v4090, %v4089
      %v4120 = vpack.c.b16 %v4092, %v4091
      %v4121 = vpack.c.b16 %v4094, %v4093
      %v4122 = vpack.c.b16 %v4096, %v4095
      %v4123 = vpack.c.b16 %v4098, %v4097
      %v4124 = vpack.c.b16 %v4100, %v4099
      %v4125 = vpack.c.b16 %v4102, %v4101
      %v4126 = vpack.c.b16 %v4104, %v4103
      %v4127 = vpack.c.b16 %v4106, %v4105
      %v4128 = vpack.c.b16 %v4108, %v4107
      %v4129 = vpack.c.b16 %v4110, %v4109
      %v4130 = vpack.c.b16 %v4112, %v4111
      %v4131 = vpack.c.b16 %v4114, %v4113
      %v4132 = vpack.c.b16 %v4116, %v4115
      %v4165 = vunpack.c.l.b16 %v4069
      %v4166 = vunpack.c.l.b16 %v4070
      %v4167 = vunpack.c.l.b16 %v4071
      %v4168 = vunpack.c.l.b16 %v4072
      %v4169 = vunpack.c.l.b16 %v4073
      %v4170 = vunpack.c.l.b16 %v4074
      %v4171 = vunpack.c.l.b16 %v4075
      %v4172 = vunpack.c.l.b16 %v4076
      %v4173 = vunpack.c.l.b16 %v4077
      %v4174 = vunpack.c.l.b16 %v4078
      %v4175 = vunpack.c.l.b16 %v4079
      %v4176 = vunpack.c.l.b16 %v4080
      %v4177 = vunpack.c.l.b16 %v4081
      %v4178 = vunpack.c.l.b16 %v4082
      %v4179 = vunpack.c.l.b16 %v4083
      %v4180 = vunpack.c.l.b16 %v4084
      %v4181 = vpack.c.b16 %v4166, %v4165
      %v4182 = vpack.c.b16 %v4168, %v4167
      %v4183 = vpack.c.b16 %v4170, %v4169
      %v4184 = vpack.c.b16 %v4172, %v4171
      %v4185 = vpack.c.b16 %v4174, %v4173
      %v4186 = vpack.c.b16 %v4176, %v4175
      %v4187 = vpack.c.b16 %v4178, %v4177
      %v4188 = vpack.c.b16 %v4180, %v4179
      %4197 = vmatprep.subr.bf16.mxu0 0
      %4198 = vmatpush1.bf16.msra.mxu0 %v4181
      %4199 = vmatprep.subr.bf16.mxu0 0
      %4200 = vmatpush1.bf16.msra.mxu0 %v4182
      %4201 = vmatprep.subr.bf16.mxu0 0
      %4202 = vmatpush1.bf16.msra.mxu0 %v4183
      %4203 = vmatprep.subr.bf16.mxu0 0
      %4204 = vmatpush1.bf16.msra.mxu0 %v4184
      %4205 = vmatprep.subr.bf16.mxu0 0
      %4206 = vmatpush1.bf16.msra.mxu0 %v4185
      %4207 = vmatprep.subr.bf16.mxu0 0
      %4208 = vmatpush1.bf16.msra.mxu0 %v4186
      %4209 = vmatprep.subr.bf16.mxu0 0
      %4210 = vmatpush1.bf16.msra.mxu0 %v4187
      %4211 = vmatprep.subr.bf16.mxu0 0
      %4212 = vmatpush1.bf16.msra.mxu0 %v4188
      %4213 = vmatprep.subr.bf16.mxu0 0
      %4214 = vmatpush1.bf16.msra.mxu0 0
      %4215 = vmatprep.subr.bf16.mxu0 0
      %4216 = vmatpush1.bf16.msra.mxu0 0
      %4217 = vmatprep.subr.bf16.mxu0 0
      %4218 = vmatpush1.bf16.msra.mxu0 0
      %4219 = vmatprep.subr.bf16.mxu0 0
      %4220 = vmatpush1.bf16.msra.mxu0 0
      %4221 = vmatprep.subr.bf16.mxu0 0
      %4222 = vmatpush1.bf16.msra.mxu0 0
      %4223 = vmatprep.subr.bf16.mxu0 0
      %4224 = vmatpush1.bf16.msra.mxu0 0
      %4225 = vmatprep.subr.bf16.mxu0 0
      %4226 = vmatpush1.bf16.msra.mxu0 0
      %4227 = vmatprep.subr.bf16.mxu0 0
      %4228 = vmatpush1.bf16.msra.mxu0 0
      %4229 = vmatprep.mubr.bf16.mxu0 0
      %4230 = vmatmul.mubr.bf16.gmra.mrb[0].mxu0 %v4117
      %v4231 = vpop.f32.mrb[0].mxu0
      %v4232 = vadd.f32 0.0, %v4231
      %v4233 = vpop.f32.mrb[0].mxu0
      %v4234 = vpop.f32.mrb[0].mxu0
      %v4235 = vadd.f32 0.0, %v4234
      %v4236 = vpop.f32.mrb[0].mxu0
      %4237 = vmatprep.mubr.bf16.mxu0 0
      %4238 = vmatmul.mubr.bf16.gmra.mrb[0].mxu0 %v4118
      %v4239 = vpop.f32.mrb[0].mxu0
      %v4240 = vadd.f32 0.0, %v4239
      %v4241 = vpop.f32.mrb[0].mxu0
      %v4242 = vpop.f32.mrb[0].mxu0
      %v4243 = vadd.f32 0.0, %v4242
      %v4244 = vpop.f32.mrb[0].mxu0
      %4245 = vmatprep.mubr.bf16.mxu0 0
      %4246 = vmatmul.mubr.bf16.gmra.mrb[0].mxu0 %v4119
      %v4247 = vpop.f32.mrb[0].mxu0
      %v4248 = vadd.f32 0.0, %v4247
      %v4249 = vpop.f32.mrb[0].mxu0
      %v4250 = vpop.f32.mrb[0].mxu0
      %v4251 = vadd.f32 0.0, %v4250
      %v4252 = vpop.f32.mrb[0].mxu0
      %4253 = vmatprep.mubr.bf16.mxu0 0
      %4254 = vmatmul.mubr.bf16.gmra.mrb[0].mxu0 %v4120
      %v4255 = vpop.f32.mrb[0].mxu0
      %v4256 = vadd.f32 0.0, %v4255
      %v4257 = vpop.f32.mrb[0].mxu0
      %v4258 = vpop.f32.mrb[0].mxu0
      %v4259 = vadd.f32 0.0, %v4258
      %v4260 = vpop.f32.mrb[0].mxu0
      %4261 = vmatprep.mubr.bf16.mxu0 0
      %4262 = vmatmul.mubr.bf16.gmra.mrb[0].mxu0 %v4121
      %v4263 = vpop.f32.mrb[0].mxu0
      %v4264 = vadd.f32 0.0, %v4263
      %v4265 = vpop.f32.mrb[0].mxu0
      %v4266 = vpop.f32.mrb[0].mxu0
      %v4267 = vadd.f32 0.0, %v4266
      %v4268 = vpop.f32.mrb[0].mxu0
      %4269 = vmatprep.mubr.bf16.mxu0 0
      %4270 = vmatmul.mubr.bf16.gmra.mrb[0].mxu0 %v4122
      %v4271 = vpop.f32.mrb[0].mxu0
      %v4272 = vadd.f32 0.0, %v4271
      %v4273 = vpop.f32.mrb[0].mxu0
      %v4274 = vpop.f32.mrb[0].mxu0
      %v4275 = vadd.f32 0.0, %v4274
      %v4276 = vpop.f32.mrb[0].mxu0
      %4277 = vmatprep.mubr.bf16.mxu0 0
      %4278 = vmatmul.mubr.bf16.gmra.mrb[0].mxu0 %v4123
      %v4279 = vpop.f32.mrb[0].mxu0
      %v4280 = vadd.f32 0.0, %v4279
      %v4281 = vpop.f32.mrb[0].mxu0
      %v4282 = vpop.f32.mrb[0].mxu0
      %v4283 = vadd.f32 0.0, %v4282
      %v4284 = vpop.f32.mrb[0].mxu0
      %4285 = vmatprep.mubr.bf16.mxu0 0
      %4286 = vmatmul.mubr.bf16.gmra.mrb[0].mxu0 %v4124
      %v4287 = vpop.f32.mrb[0].mxu0
      %v4288 = vadd.f32 0.0, %v4287
      %v4289 = vpop.f32.mrb[0].mxu0
      %v4290 = vpop.f32.mrb[0].mxu0
      %v4291 = vadd.f32 0.0, %v4290
      %v4292 = vpop.f32.mrb[0].mxu0
      %4293 = vmatprep.mubr.bf16.mxu0 0
      %4294 = vmatmul.mubr.bf16.gmra.mrb[0].mxu0 %v4125
      %v4295 = vpop.f32.mrb[0].mxu0
      %v4296 = vadd.f32 0.0, %v4295
      %v4297 = vpop.f32.mrb[0].mxu0
      %v4298 = vpop.f32.mrb[0].mxu0
      %v4299 = vadd.f32 0.0, %v4298
      %v4300 = vpop.f32.mrb[0].mxu0
      %4301 = vmatprep.mubr.bf16.mxu0 0
      %4302 = vmatmul.mubr.bf16.gmra.mrb[0].mxu0 %v4126
      %v4303 = vpop.f32.mrb[0].mxu0
      %v4304 = vadd.f32 0.0, %v4303
      %v4305 = vpop.f32.mrb[0].mxu0
      %v4306 = vpop.f32.mrb[0].mxu0
      %v4307 = vadd.f32 0.0, %v4306
      %v4308 = vpop.f32.mrb[0].mxu0
      %4309 = vmatprep.mubr.bf16.mxu0 0
      %4310 = vmatmul.mubr.bf16.gmra.mrb[0].mxu0 %v4127
      %v4311 = vpop.f32.mrb[0].mxu0
      %v4312 = vadd.f32 0.0, %v4311
      %v4313 = vpop.f32.mrb[0].mxu0
      %v4314 = vpop.f32.mrb[0].mxu0
      %v4315 = vadd.f32 0.0, %v4314
      %v4316 = vpop.f32.mrb[0].mxu0
      %4317 = vmatprep.mubr.bf16.mxu0 0
      %4318 = vmatmul.mubr.bf16.gmra.mrb[0].mxu0 %v4128
      %v4319 = vpop.f32.mrb[0].mxu0
      %v4320 = vadd.f32 0.0, %v4319
      %v4321 = vpop.f32.mrb[0].mxu0
      %v4322 = vpop.f32.mrb[0].mxu0
      %v4323 = vadd.f32 0.0, %v4322
      %v4324 = vpop.f32.mrb[0].mxu0
      %4325 = vmatprep.mubr.bf16.mxu0 0
      %4326 = vmatmul.mubr.bf16.gmra.mrb[0].mxu0 %v4129
      %v4327 = vpop.f32.mrb[0].mxu0
      %v4328 = vadd.f32 0.0, %v4327
      %v4329 = vpop.f32.mrb[0].mxu0
      %v4330 = vpop.f32.mrb[0].mxu0
      %v4331 = vadd.f32 0.0, %v4330
      %v4332 = vpop.f32.mrb[0].mxu0
      %4333 = vmatprep.mubr.bf16.mxu0 0
      %4334 = vmatmul.mubr.bf16.gmra.mrb[0].mxu0 %v4130
      %v4335 = vpop.f32.mrb[0].mxu0
      %v4336 = vadd.f32 0.0, %v4335
      %v4337 = vpop.f32.mrb[0].mxu0
      %v4338 = vpop.f32.mrb[0].mxu0
      %v4339 = vadd.f32 0.0, %v4338
      %v4340 = vpop.f32.mrb[0].mxu0
      %4341 = vmatprep.mubr.bf16.mxu0 0
      %4342 = vmatmul.mubr.bf16.gmra.mrb[0].mxu0 %v4131
      %v4343 = vpop.f32.mrb[0].mxu0
      %v4344 = vadd.f32 0.0, %v4343
      %v4345 = vpop.f32.mrb[0].mxu0
      %v4346 = vpop.f32.mrb[0].mxu0
      %v4347 = vadd.f32 0.0, %v4346
      %v4348 = vpop.f32.mrb[0].mxu0
      %4349 = vmatprep.mubr.bf16.mxu0 0
      %4350 = vmatmul.mubr.bf16.gmra.mrb[0].mxu0 %v4132
      %v4351 = vpop.f32.mrb[0].mxu0
      %v4352 = vadd.f32 0.0, %v4351
      %v4353 = vpop.f32.mrb[0].mxu0
      %v4354 = vpop.f32.mrb[0].mxu0
      %v4355 = vadd.f32 0.0, %v4354
      %v4356 = vpop.f32.mrb[0].mxu0
      %4357 = vdwg.mxu0
      %v4358 = vadd.f32 %v3644, %v4232
      %v4359 = vadd.f32 %v3645, %v4235
      %v4360 = vadd.f32 %v3646, %v4240
      %v4361 = vadd.f32 %v3647, %v4243
      %v4362 = vadd.f32 %v3648, %v4248
      %v4363 = vadd.f32 %v3649, %v4251
      %v4364 = vadd.f32 %v3650, %v4256
      %v4365 = vadd.f32 %v3651, %v4259
      %v4366 = vadd.f32 %v3652, %v4264
      %v4367 = vadd.f32 %v3653, %v4267
      %v4368 = vadd.f32 %v3654, %v4272
      %v4369 = vadd.f32 %v3655, %v4275
      %v4370 = vadd.f32 %v3656, %v4280
      %v4371 = vadd.f32 %v3657, %v4283
      %v4372 = vadd.f32 %v3658, %v4288
      %v4373 = vadd.f32 %v3659, %v4291
      %v4374 = vadd.f32 %v3660, %v4296
      %v4375 = vadd.f32 %v3661, %v4299
      %v4376 = vadd.f32 %v3662, %v4304
      %v4377 = vadd.f32 %v3663, %v4307
      %v4378 = vadd.f32 %v3664, %v4312
      %v4379 = vadd.f32 %v3665, %v4315
      %v4380 = vadd.f32 %v3666, %v4320
      %v4381 = vadd.f32 %v3667, %v4323
      %v4382 = vadd.f32 %v3668, %v4328
      %v4383 = vadd.f32 %v3669, %v4331
      %v4384 = vadd.f32 %v3670, %v4336
      %v4385 = vadd.f32 %v3671, %v4339
      %v4386 = vadd.f32 %v3672, %v4344
      %v4387 = vadd.f32 %v3673, %v4347
      %v4388 = vadd.f32 %v3674, %v4352
      %v4389 = vadd.f32 %v3675, %v4355
      %v4390 = vld [vmem:[%s3289] sm:$0xe]
      %v4391 = vld [vmem:[%s3289 + $0x14] sm:$0xe]
      %v4392 = vld [vmem:[%s3289 + $0x28] sm:$0xe]
      %v4393 = vld [vmem:[%s3289 + $0x3c] sm:$0xe]
      %v4394 = vld [vmem:[%s3289 + $0x50] sm:$0xe]
      %v4395 = vld [vmem:[%s3289 + $0x64] sm:$0xe]
      %v4396 = vld [vmem:[%s3289 + $0x78] sm:$0xe]
      %v4397 = vld [vmem:[%s3289 + $0x8c] sm:$0xe]
      %v4438 = vrot.slane %v4390, 5
      %v4439 = vrot.slane %v4438, 4
      %v4440 = vrot.slane %v3677, 5
      %v4441 = vsel %vm1281, %v4439, %v4440
      %v4442 = vrot.slane %v4440, 4
      %v4443 = vrot.slane %v3678, 5
      %v4444 = vsel %vm1281, %v4442, %v4443
      %v4445 = vrot.slane %v4443, 4
      %v4446 = vrot.slane %v3679, 5
      %v4447 = vsel %vm1281, %v4445, %v4446
      %v4448 = vrot.slane %v4446, 4
      %v4449 = vrot.slane %v3680, 5
      %v4450 = vsel %vm1281, %v4448, %v4449
      %v4451 = vrot.slane %v4391, 5
      %v4452 = vrot.slane %v4451, 4
      %v4453 = vrot.slane %v3682, 5
      %v4454 = vsel %vm1281, %v4452, %v4453
      %v4455 = vrot.slane %v4453, 4
      %v4456 = vrot.slane %v3683, 5
      %v4457 = vsel %vm1281, %v4455, %v4456
      %v4458 = vrot.slane %v4456, 4
      %v4459 = vrot.slane %v3684, 5
      %v4460 = vsel %vm1281, %v4458, %v4459
      %v4461 = vrot.slane %v4459, 4
      %v4462 = vrot.slane %v3685, 5
      %v4463 = vsel %vm1281, %v4461, %v4462
      %v4464 = vrot.slane %v4392, 5
      %v4465 = vrot.slane %v4464, 4
      %v4466 = vrot.slane %v3687, 5
      %v4467 = vsel %vm1281, %v4465, %v4466
      %v4468 = vrot.slane %v4466, 4
      %v4469 = vrot.slane %v3688, 5
      %v4470 = vsel %vm1281, %v4468, %v4469
      %v4471 = vrot.slane %v4469, 4
      %v4472 = vrot.slane %v3689, 5
      %v4473 = vsel %vm1281, %v4471, %v4472
      %v4474 = vrot.slane %v4472, 4
      %v4475 = vrot.slane %v3690, 5
      %v4476 = vsel %vm1281, %v4474, %v4475
      %v4477 = vrot.slane %v4393, 5
      %v4478 = vrot.slane %v4477, 4
      %v4479 = vrot.slane %v3692, 5
      %v4480 = vsel %vm1281, %v4478, %v4479
      %v4481 = vrot.slane %v4479, 4
      %v4482 = vrot.slane %v3693, 5
      %v4483 = vsel %vm1281, %v4481, %v4482
      %v4484 = vrot.slane %v4482, 4
      %v4485 = vrot.slane %v3694, 5
      %v4486 = vsel %vm1281, %v4484, %v4485
      %v4487 = vrot.slane %v4485, 4
      %v4488 = vrot.slane %v3695, 5
      %v4489 = vsel %vm1281, %v4487, %v4488
      %v4490 = vrot.slane %v4394, 5
      %v4491 = vrot.slane %v4490, 4
      %v4492 = vrot.slane %v3697, 5
      %v4493 = vsel %vm1281, %v4491, %v4492
      %v4494 = vrot.slane %v4492, 4
      %v4495 = vrot.slane %v3698, 5
      %v4496 = vsel %vm1281, %v4494, %v4495
      %v4497 = vrot.slane %v4495, 4
      %v4498 = vrot.slane %v3699, 5
      %v4499 = vsel %vm1281, %v4497, %v4498
      %v4500 = vrot.slane %v4498, 4
      %v4501 = vrot.slane %v3700, 5
      %v4502 = vsel %vm1281, %v4500, %v4501
      %v4503 = vrot.slane %v4395, 5
      %v4504 = vrot.slane %v4503, 4
      %v4505 = vrot.slane %v3702, 5
      %v4506 = vsel %vm1281, %v4504, %v4505
      %v4507 = vrot.slane %v4505, 4
      %v4508 = vrot.slane %v3703, 5
      %v4509 = vsel %vm1281, %v4507, %v4508
      %v4510 = vrot.slane %v4508, 4
      %v4511 = vrot.slane %v3704, 5
      %v4512 = vsel %vm1281, %v4510, %v4511
      %v4513 = vrot.slane %v4511, 4
      %v4514 = vrot.slane %v3705, 5
      %v4515 = vsel %vm1281, %v4513, %v4514
      %v4516 = vrot.slane %v4396, 5
      %v4517 = vrot.slane %v4516, 4
      %v4518 = vrot.slane %v3707, 5
      %v4519 = vsel %vm1281, %v4517, %v4518
      %v4520 = vrot.slane %v4518, 4
      %v4521 = vrot.slane %v3708, 5
      %v4522 = vsel %vm1281, %v4520, %v4521
      %v4523 = vrot.slane %v4521, 4
      %v4524 = vrot.slane %v3709, 5
      %v4525 = vsel %vm1281, %v4523, %v4524
      %v4526 = vrot.slane %v4524, 4
      %v4527 = vrot.slane %v3710, 5
      %v4528 = vsel %vm1281, %v4526, %v4527
      %v4529 = vrot.slane %v4397, 5
      %v4530 = vrot.slane %v4529, 4
      %v4531 = vrot.slane %v3712, 5
      %v4532 = vsel %vm1281, %v4530, %v4531
      %v4533 = vrot.slane %v4531, 4
      %v4534 = vrot.slane %v3713, 5
      %v4535 = vsel %vm1281, %v4533, %v4534
      %v4536 = vrot.slane %v4534, 4
      %v4537 = vrot.slane %v3714, 5
      %v4538 = vsel %vm1281, %v4536, %v4537
      %v4539 = vrot.slane %v4537, 4
      %v4540 = vrot.slane %v3715, 5
      %v4541 = vsel %vm1281, %v4539, %v4540
      %s4542 = scalar_lea.vmem %s1, 512
      %v4543 = vld [vmem:[%s4542] sm:$0xf]
      %v4544 = vld [vmem:[%s4542 + $0x4] sm:$0xf]
      %v4545 = vld [vmem:[%s4542 + $0x8] sm:$0xf]
      %v4546 = vld [vmem:[%s4542 + $0xc] sm:$0xf]
      %v4547 = vld [vmem:[%s4542 + $0x10] sm:$0xf]
      %v4548 = vld [vmem:[%s4542 + $0x14] sm:$0xf]
      %v4549 = vld [vmem:[%s4542 + $0x18] sm:$0xf]
      %v4550 = vld [vmem:[%s4542 + $0x1c] sm:$0xf]
      %v4551 = vld [vmem:[%s4542 + $0x20] sm:$0xf]
      %v4552 = vld [vmem:[%s4542 + $0x24] sm:$0xf]
      %v4553 = vld [vmem:[%s4542 + $0x28] sm:$0xf]
      %v4554 = vld [vmem:[%s4542 + $0x2c] sm:$0xf]
      %v4555 = vld [vmem:[%s4542 + $0x30] sm:$0xf]
      %v4556 = vld [vmem:[%s4542 + $0x34] sm:$0xf]
      %v4557 = vld [vmem:[%s4542 + $0x38] sm:$0xf]
      %v4558 = vld [vmem:[%s4542 + $0x3c] sm:$0xf]
      %v4559 = vunpack.c.l.b16 %v4441
      %v4560 = vunpack.c.l.b16 %v4444
      %v4561 = vunpack.c.l.b16 %v4447
      %v4562 = vunpack.c.l.b16 %v4450
      %v4563 = vunpack.c.l.b16 %v4454
      %v4564 = vunpack.c.l.b16 %v4457
      %v4565 = vunpack.c.l.b16 %v4460
      %v4566 = vunpack.c.l.b16 %v4463
      %v4567 = vunpack.c.l.b16 %v4467
      %v4568 = vunpack.c.l.b16 %v4470
      %v4569 = vunpack.c.l.b16 %v4473
      %v4570 = vunpack.c.l.b16 %v4476
      %v4571 = vunpack.c.l.b16 %v4480
      %v4572 = vunpack.c.l.b16 %v4483
      %v4573 = vunpack.c.l.b16 %v4486
      %v4574 = vunpack.c.l.b16 %v4489
      %v4575 = vunpack.c.l.b16 %v4493
      %v4576 = vunpack.c.l.b16 %v4496
      %v4577 = vunpack.c.l.b16 %v4499
      %v4578 = vunpack.c.l.b16 %v4502
      %v4579 = vunpack.c.l.b16 %v4506
      %v4580 = vunpack.c.l.b16 %v4509
      %v4581 = vunpack.c.l.b16 %v4512
      %v4582 = vunpack.c.l.b16 %v4515
      %v4583 = vunpack.c.l.b16 %v4519
      %v4584 = vunpack.c.l.b16 %v4522
      %v4585 = vunpack.c.l.b16 %v4525
      %v4586 = vunpack.c.l.b16 %v4528
      %v4587 = vunpack.c.l.b16 %v4532
      %v4588 = vunpack.c.l.b16 %v4535
      %v4589 = vunpack.c.l.b16 %v4538
      %v4590 = vunpack.c.l.b16 %v4541
      %v4591 = vpack.c.b16 %v4560, %v4559
      %v4592 = vpack.c.b16 %v4562, %v4561
      %v4593 = vpack.c.b16 %v4564, %v4563
      %v4594 = vpack.c.b16 %v4566, %v4565
      %v4595 = vpack.c.b16 %v4568, %v4567
      %v4596 = vpack.c.b16 %v4570, %v4569
      %v4597 = vpack.c.b16 %v4572, %v4571
      %v4598 = vpack.c.b16 %v4574, %v4573
      %v4599 = vpack.c.b16 %v4576, %v4575
      %v4600 = vpack.c.b16 %v4578, %v4577
      %v4601 = vpack.c.b16 %v4580, %v4579
      %v4602 = vpack.c.b16 %v4582, %v4581
      %v4603 = vpack.c.b16 %v4584, %v4583
      %v4604 = vpack.c.b16 %v4586, %v4585
      %v4605 = vpack.c.b16 %v4588, %v4587
      %v4606 = vpack.c.b16 %v4590, %v4589
      %v4639 = vunpack.c.l.b16 %v4543
      %v4640 = vunpack.c.l.b16 %v4544
      %v4641 = vunpack.c.l.b16 %v4545
      %v4642 = vunpack.c.l.b16 %v4546
      %v4643 = vunpack.c.l.b16 %v4547
      %v4644 = vunpack.c.l.b16 %v4548
      %v4645 = vunpack.c.l.b16 %v4549
      %v4646 = vunpack.c.l.b16 %v4550
      %v4647 = vunpack.c.l.b16 %v4551
      %v4648 = vunpack.c.l.b16 %v4552
      %v4649 = vunpack.c.l.b16 %v4553
      %v4650 = vunpack.c.l.b16 %v4554
      %v4651 = vunpack.c.l.b16 %v4555
      %v4652 = vunpack.c.l.b16 %v4556
      %v4653 = vunpack.c.l.b16 %v4557
      %v4654 = vunpack.c.l.b16 %v4558
      %v4655 = vpack.c.b16 %v4640, %v4639
      %v4656 = vpack.c.b16 %v4642, %v4641
      %v4657 = vpack.c.b16 %v4644, %v4643
      %v4658 = vpack.c.b16 %v4646, %v4645
      %v4659 = vpack.c.b16 %v4648, %v4647
      %v4660 = vpack.c.b16 %v4650, %v4649
      %v4661 = vpack.c.b16 %v4652, %v4651
      %v4662 = vpack.c.b16 %v4654, %v4653
      %4671 = vmatprep.subr.bf16.mxu0 0
      %4672 = vmatpush1.bf16.msra.mxu0 %v4655
      %4673 = vmatprep.subr.bf16.mxu0 0
      %4674 = vmatpush1.bf16.msra.mxu0 %v4656
      %4675 = vmatprep.subr.bf16.mxu0 0
      %4676 = vmatpush1.bf16.msra.mxu0 %v4657
      %4677 = vmatprep.subr.bf16.mxu0 0
      %4678 = vmatpush1.bf16.msra.mxu0 %v4658
      %4679 = vmatprep.subr.bf16.mxu0 0
      %4680 = vmatpush1.bf16.msra.mxu0 %v4659
      %4681 = vmatprep.subr.bf16.mxu0 0
      %4682 = vmatpush1.bf16.msra.mxu0 %v4660
      %4683 = vmatprep.subr.bf16.mxu0 0
      %4684 = vmatpush1.bf16.msra.mxu0 %v4661
      %4685 = vmatprep.subr.bf16.mxu0 0
      %4686 = vmatpush1.bf16.msra.mxu0 %v4662
      %4687 = vmatprep.subr.bf16.mxu0 0
      %4688 = vmatpush1.bf16.msra.mxu0 0
      %4689 = vmatprep.subr.bf16.mxu0 0
      %4690 = vmatpush1.bf16.msra.mxu0 0
      %4691 = vmatprep.subr.bf16.mxu0 0
      %4692 = vmatpush1.bf16.msra.mxu0 0
      %4693 = vmatprep.subr.bf16.mxu0 0
      %4694 = vmatpush1.bf16.msra.mxu0 0
      %4695 = vmatprep.subr.bf16.mxu0 0
      %4696 = vmatpush1.bf16.msra.mxu0 0
      %4697 = vmatprep.subr.bf16.mxu0 0
      %4698 = vmatpush1.bf16.msra.mxu0 0
      %4699 = vmatprep.subr.bf16.mxu0 0
      %4700 = vmatpush1.bf16.msra.mxu0 0
      %4701 = vmatprep.subr.bf16.mxu0 0
      %4702 = vmatpush1.bf16.msra.mxu0 0
      %4703 = vmatprep.mubr.bf16.mxu0 0
      %4704 = vmatmul.mubr.bf16.gmra.mrb[0].mxu0 %v4591
      %v4705 = vpop.f32.mrb[0].mxu0
      %v4706 = vadd.f32 0.0, %v4705
      %v4707 = vpop.f32.mrb[0].mxu0
      %v4708 = vpop.f32.mrb[0].mxu0
      %v4709 = vadd.f32 0.0, %v4708
      %v4710 = vpop.f32.mrb[0].mxu0
      %4711 = vmatprep.mubr.bf16.mxu0 0
      %4712 = vmatmul.mubr.bf16.gmra.mrb[0].mxu0 %v4592
      %v4713 = vpop.f32.mrb[0].mxu0
      %v4714 = vadd.f32 0.0, %v4713
      %v4715 = vpop.f32.mrb[0].mxu0
      %v4716 = vpop.f32.mrb[0].mxu0
      %v4717 = vadd.f32 0.0, %v4716
      %v4718 = vpop.f32.mrb[0].mxu0
      %4719 = vmatprep.mubr.bf16.mxu0 0
      %4720 = vmatmul.mubr.bf16.gmra.mrb[0].mxu0 %v4593
      %v4721 = vpop.f32.mrb[0].mxu0
      %v4722 = vadd.f32 0.0, %v4721
      %v4723 = vpop.f32.mrb[0].mxu0
      %v4724 = vpop.f32.mrb[0].mxu0
      %v4725 = vadd.f32 0.0, %v4724
      %v4726 = vpop.f32.mrb[0].mxu0
      %4727 = vmatprep.mubr.bf16.mxu0 0
      %4728 = vmatmul.mubr.bf16.gmra.mrb[0].mxu0 %v4594
      %v4729 = vpop.f32.mrb[0].mxu0
      %v4730 = vadd.f32 0.0, %v4729
      %v4731 = vpop.f32.mrb[0].mxu0
      %v4732 = vpop.f32.mrb[0].mxu0
      %v4733 = vadd.f32 0.0, %v4732
      %v4734 = vpop.f32.mrb[0].mxu0
      %4735 = vmatprep.mubr.bf16.mxu0 0
      %4736 = vmatmul.mubr.bf16.gmra.mrb[0].mxu0 %v4595
      %v4737 = vpop.f32.mrb[0].mxu0
      %v4738 = vadd.f32 0.0, %v4737
      %v4739 = vpop.f32.mrb[0].mxu0
      %v4740 = vpop.f32.mrb[0].mxu0
      %v4741 = vadd.f32 0.0, %v4740
      %v4742 = vpop.f32.mrb[0].mxu0
      %4743 = vmatprep.mubr.bf16.mxu0 0
      %4744 = vmatmul.mubr.bf16.gmra.mrb[0].mxu0 %v4596
      %v4745 = vpop.f32.mrb[0].mxu0
      %v4746 = vadd.f32 0.0, %v4745
      %v4747 = vpop.f32.mrb[0].mxu0
      %v4748 = vpop.f32.mrb[0].mxu0
      %v4749 = vadd.f32 0.0, %v4748
      %v4750 = vpop.f32.mrb[0].mxu0
      %4751 = vmatprep.mubr.bf16.mxu0 0
      %4752 = vmatmul.mubr.bf16.gmra.mrb[0].mxu0 %v4597
      %v4753 = vpop.f32.mrb[0].mxu0
      %v4754 = vadd.f32 0.0, %v4753
      %v4755 = vpop.f32.mrb[0].mxu0
      %v4756 = vpop.f32.mrb[0].mxu0
      %v4757 = vadd.f32 0.0, %v4756
      %v4758 = vpop.f32.mrb[0].mxu0
      %4759 = vmatprep.mubr.bf16.mxu0 0
      %4760 = vmatmul.mubr.bf16.gmra.mrb[0].mxu0 %v4598
      %v4761 = vpop.f32.mrb[0].mxu0
      %v4762 = vadd.f32 0.0, %v4761
      %v4763 = vpop.f32.mrb[0].mxu0
      %v4764 = vpop.f32.mrb[0].mxu0
      %v4765 = vadd.f32 0.0, %v4764
      %v4766 = vpop.f32.mrb[0].mxu0
      %4767 = vmatprep.mubr.bf16.mxu0 0
      %4768 = vmatmul.mubr.bf16.gmra.mrb[0].mxu0 %v4599
      %v4769 = vpop.f32.mrb[0].mxu0
      %v4770 = vadd.f32 0.0, %v4769
      %v4771 = vpop.f32.mrb[0].mxu0
      %v4772 = vpop.f32.mrb[0].mxu0
      %v4773 = vadd.f32 0.0, %v4772
      %v4774 = vpop.f32.mrb[0].mxu0
      %4775 = vmatprep.mubr.bf16.mxu0 0
      %4776 = vmatmul.mubr.bf16.gmra.mrb[0].mxu0 %v4600
      %v4777 = vpop.f32.mrb[0].mxu0
      %v4778 = vadd.f32 0.0, %v4777
      %v4779 = vpop.f32.mrb[0].mxu0
      %v4780 = vpop.f32.mrb[0].mxu0
      %v4781 = vadd.f32 0.0, %v4780
      %v4782 = vpop.f32.mrb[0].mxu0
      %4783 = vmatprep.mubr.bf16.mxu0 0
      %4784 = vmatmul.mubr.bf16.gmra.mrb[0].mxu0 %v4601
      %v4785 = vpop.f32.mrb[0].mxu0
      %v4786 = vadd.f32 0.0, %v4785
      %v4787 = vpop.f32.mrb[0].mxu0
      %v4788 = vpop.f32.mrb[0].mxu0
      %v4789 = vadd.f32 0.0, %v4788
      %v4790 = vpop.f32.mrb[0].mxu0
      %4791 = vmatprep.mubr.bf16.mxu0 0
      %4792 = vmatmul.mubr.bf16.gmra.mrb[0].mxu0 %v4602
      %v4793 = vpop.f32.mrb[0].mxu0
      %v4794 = vadd.f32 0.0, %v4793
      %v4795 = vpop.f32.mrb[0].mxu0
      %v4796 = vpop.f32.mrb[0].mxu0
      %v4797 = vadd.f32 0.0, %v4796
      %v4798 = vpop.f32.mrb[0].mxu0
      %4799 = vmatprep.mubr.bf16.mxu0 0
      %4800 = vmatmul.mubr.bf16.gmra.mrb[0].mxu0 %v4603
      %v4801 = vpop.f32.mrb[0].mxu0
      %v4802 = vadd.f32 0.0, %v4801
      %v4803 = vpop.f32.mrb[0].mxu0
      %v4804 = vpop.f32.mrb[0].mxu0
      %v4805 = vadd.f32 0.0, %v4804
      %v4806 = vpop.f32.mrb[0].mxu0
      %4807 = vmatprep.mubr.bf16.mxu0 0
      %4808 = vmatmul.mubr.bf16.gmra.mrb[0].mxu0 %v4604
      %v4809 = vpop.f32.mrb[0].mxu0
      %v4810 = vadd.f32 0.0, %v4809
      %v4811 = vpop.f32.mrb[0].mxu0
      %v4812 = vpop.f32.mrb[0].mxu0
      %v4813 = vadd.f32 0.0, %v4812
      %v4814 = vpop.f32.mrb[0].mxu0
      %4815 = vmatprep.mubr.bf16.mxu0 0
      %4816 = vmatmul.mubr.bf16.gmra.mrb[0].mxu0 %v4605
      %v4817 = vpop.f32.mrb[0].mxu0
      %v4818 = vadd.f32 0.0, %v4817
      %v4819 = vpop.f32.mrb[0].mxu0
      %v4820 = vpop.f32.mrb[0].mxu0
      %v4821 = vadd.f32 0.0, %v4820
      %v4822 = vpop.f32.mrb[0].mxu0
      %4823 = vmatprep.mubr.bf16.mxu0 0
      %4824 = vmatmul.mubr.bf16.gmra.mrb[0].mxu0 %v4606
      %v4825 = vpop.f32.mrb[0].mxu0
      %v4826 = vadd.f32 0.0, %v4825
      %v4827 = vpop.f32.mrb[0].mxu0
      %v4828 = vpop.f32.mrb[0].mxu0
      %v4829 = vadd.f32 0.0, %v4828
      %v4830 = vpop.f32.mrb[0].mxu0
      %4831 = vdwg.mxu0
      %v4832 = vadd.f32 %v4358, %v4706
      %v4833 = vadd.f32 %v4359, %v4709
      %v4834 = vadd.f32 %v4360, %v4714
      %v4835 = vadd.f32 %v4361, %v4717
      %v4836 = vadd.f32 %v4362, %v4722
      %v4837 = vadd.f32 %v4363, %v4725
      %v4838 = vadd.f32 %v4364, %v4730
      %v4839 = vadd.f32 %v4365, %v4733
      %v4840 = vadd.f32 %v4366, %v4738
      %v4841 = vadd.f32 %v4367, %v4741
      %v4842 = vadd.f32 %v4368, %v4746
      %v4843 = vadd.f32 %v4369, %v4749
      %v4844 = vadd.f32 %v4370, %v4754
      %v4845 = vadd.f32 %v4371, %v4757
      %v4846 = vadd.f32 %v4372, %v4762
      %v4847 = vadd.f32 %v4373, %v4765
      %v4848 = vadd.f32 %v4374, %v4770
      %v4849 = vadd.f32 %v4375, %v4773
      %v4850 = vadd.f32 %v4376, %v4778
      %v4851 = vadd.f32 %v4377, %v4781
      %v4852 = vadd.f32 %v4378, %v4786
      %v4853 = vadd.f32 %v4379, %v4789
      %v4854 = vadd.f32 %v4380, %v4794
      %v4855 = vadd.f32 %v4381, %v4797
      %v4856 = vadd.f32 %v4382, %v4802
      %v4857 = vadd.f32 %v4383, %v4805
      %v4858 = vadd.f32 %v4384, %v4810
      %v4859 = vadd.f32 %v4385, %v4813
      %v4860 = vadd.f32 %v4386, %v4818
      %v4861 = vadd.f32 %v4387, %v4821
      %v4862 = vadd.f32 %v4388, %v4826
      %v4863 = vadd.f32 %v4389, %v4829
      %v4864 = vld [vmem:[%s2] sm:$0x1]
      %v4866 = vlaneseq
      %v4867 = vshrl.u32 %v4866, 7
      %v4868 = vsub.s32 0, %v4867
      %v4869 = vrot.slane %v4864, %v4868
      %v4871 = vadd.f32 %v4832, %v4869
      %v4872 = vadd.f32 %v4833, %v4869
      %v4873 = vadd.f32 %v4834, %v4869
      %v4874 = vadd.f32 %v4835, %v4869
      %v4875 = vadd.f32 %v4836, %v4869
      %v4876 = vadd.f32 %v4837, %v4869
      %v4877 = vadd.f32 %v4838, %v4869
      %v4878 = vadd.f32 %v4839, %v4869
      %v4879 = vadd.f32 %v4840, %v4869
      %v4880 = vadd.f32 %v4841, %v4869
      %v4881 = vadd.f32 %v4842, %v4869
      %v4882 = vadd.f32 %v4843, %v4869
      %v4883 = vadd.f32 %v4844, %v4869
      %v4884 = vadd.f32 %v4845, %v4869
      %v4885 = vadd.f32 %v4846, %v4869
      %v4886 = vadd.f32 %v4847, %v4869
      %v4887 = vadd.f32 %v4848, %v4869
      %v4888 = vadd.f32 %v4849, %v4869
      %v4889 = vadd.f32 %v4850, %v4869
      %v4890 = vadd.f32 %v4851, %v4869
      %v4891 = vadd.f32 %v4852, %v4869
      %v4892 = vadd.f32 %v4853, %v4869
      %v4893 = vadd.f32 %v4854, %v4869
      %v4894 = vadd.f32 %v4855, %v4869
      %v4895 = vadd.f32 %v4856, %v4869
      %v4896 = vadd.f32 %v4857, %v4869
      %v4897 = vadd.f32 %v4858, %v4869
      %v4898 = vadd.f32 %v4859, %v4869
      %v4899 = vadd.f32 %v4860, %v4869
      %v4900 = vadd.f32 %v4861, %v4869
      %v4901 = vadd.f32 %v4862, %v4869
      %v4902 = vadd.f32 %v4863, %v4869
      %4903 = vst [vmem:[%s234] sm:$0xff] %v4871
      %4904 = vst [vmem:[%s234 + $0x8] sm:$0xff] %v4872
      %4905 = vst [vmem:[%s234 + $0x10] sm:$0xff] %v4873
      %4906 = vst [vmem:[%s234 + $0x18] sm:$0xff] %v4874
      %4907 = vst [vmem:[%s234 + $0x20] sm:$0xff] %v4875
      %4908 = vst [vmem:[%s234 + $0x28] sm:$0xff] %v4876
      %4909 = vst [vmem:[%s234 + $0x30] sm:$0xff] %v4877
      %4910 = vst [vmem:[%s234 + $0x38] sm:$0xff] %v4878
      %4911 = vst [vmem:[%s234 + $0x40] sm:$0xff] %v4879
      %4912 = vst [vmem:[%s234 + $0x48] sm:$0xff] %v4880
      %4913 = vst [vmem:[%s234 + $0x50] sm:$0xff] %v4881
      %4914 = vst [vmem:[%s234 + $0x58] sm:$0xff] %v4882
      %4915 = vst [vmem:[%s234 + $0x60] sm:$0xff] %v4883
      %4916 = vst [vmem:[%s234 + $0x68] sm:$0xff] %v4884
      %4917 = vst [vmem:[%s234 + $0x70] sm:$0xff] %v4885
      %4918 = vst [vmem:[%s234 + $0x78] sm:$0xff] %v4886
      %4919 = vst [vmem:[%s234 + $0x80] sm:$0xff] %v4887
      %4920 = vst [vmem:[%s234 + $0x88] sm:$0xff] %v4888
      %4921 = vst [vmem:[%s234 + $0x90] sm:$0xff] %v4889
      %4922 = vst [vmem:[%s234 + $0x98] sm:$0xff] %v4890
      %4923 = vst [vmem:[%s234 + $0xa0] sm:$0xff] %v4891
      %4924 = vst [vmem:[%s234 + $0xa8] sm:$0xff] %v4892
      %4925 = vst [vmem:[%s234 + $0xb0] sm:$0xff] %v4893
      %4926 = vst [vmem:[%s234 + $0xb8] sm:$0xff] %v4894
      %4927 = vst [vmem:[%s234 + $0xc0] sm:$0xff] %v4895
      %4928 = vst [vmem:[%s234 + $0xc8] sm:$0xff] %v4896
      %4929 = vst [vmem:[%s234 + $0xd0] sm:$0xff] %v4897
      %4930 = vst [vmem:[%s234 + $0xd8] sm:$0xff] %v4898
      %4931 = vst [vmem:[%s234 + $0xe0] sm:$0xff] %v4899
      %4932 = vst [vmem:[%s234 + $0xe8] sm:$0xff] %v4900
      %4933 = vst [vmem:[%s234 + $0xf0] sm:$0xff] %v4901
      %4934 = vst [vmem:[%s234 + $0xf8] sm:$0xff] %v4902
      %v4935 = vadd.f32 %v4871, %v4872
      %v4936 = vadd.f32 %v4935, %v4873
      %v4937 = vadd.f32 %v4936, %v4874
      %v4938 = vadd.f32 %v4937, %v4875
      %v4939 = vadd.f32 %v4938, %v4876
      %v4940 = vadd.f32 %v4939, %v4877
      %v4941 = vadd.f32 %v4940, %v4878
      %v4942 = vadd.f32 %v4941, %v4879
      %v4943 = vadd.f32 %v4942, %v4880
      %v4944 = vadd.f32 %v4943, %v4881
      %v4945 = vadd.f32 %v4944, %v4882
      %v4946 = vadd.f32 %v4945, %v4883
      %v4947 = vadd.f32 %v4946, %v4884
      %v4948 = vadd.f32 %v4947, %v4885
      %v4949 = vadd.f32 %v4948, %v4886
      %v4950 = vadd.f32 %v4949, %v4887
      %v4951 = vadd.f32 %v4950, %v4888
      %v4952 = vadd.f32 %v4951, %v4889
      %v4953 = vadd.f32 %v4952, %v4890
      %v4954 = vadd.f32 %v4953, %v4891
      %v4955 = vadd.f32 %v4954, %v4892
      %v4956 = vadd.f32 %v4955, %v4893
      %v4957 = vadd.f32 %v4956, %v4894
      %v4958 = vadd.f32 %v4957, %v4895
      %v4959 = vadd.f32 %v4958, %v4896
      %v4960 = vadd.f32 %v4959, %v4897
      %v4961 = vadd.f32 %v4960, %v4898
      %v4962 = vadd.f32 %v4961, %v4899
      %v4963 = vadd.f32 %v4962, %v4900
      %v4964 = vadd.f32 %v4963, %v4901
      %v4965 = vadd.f32 %v4964, %v4902
      %v4966 = vrot.slane %v4965, 4
      %v4967 = vadd.f32 %v4965, %v4966
      %v4968 = vrot.slane %v4967, 2
      %v4969 = vadd.f32 %v4967, %v4968
      %v4970 = vrot.slane %v4969, 1
      %v4971 = vadd.f32 %v4969, %v4970
      %v4972 = vmul.f32 %v4871, %v4871
      %v4973 = vmul.f32 %v4872, %v4872
      %v4974 = vmul.f32 %v4873, %v4873
      %v4975 = vmul.f32 %v4874, %v4874
      %v4976 = vmul.f32 %v4875, %v4875
      %v4977 = vmul.f32 %v4876, %v4876
      %v4978 = vmul.f32 %v4877, %v4877
      %v4979 = vmul.f32 %v4878, %v4878
      %v4980 = vmul.f32 %v4879, %v4879
      %v4981 = vmul.f32 %v4880, %v4880
      %v4982 = vmul.f32 %v4881, %v4881
      %v4983 = vmul.f32 %v4882, %v4882
      %v4984 = vmul.f32 %v4883, %v4883
      %v4985 = vmul.f32 %v4884, %v4884
      %v4986 = vmul.f32 %v4885, %v4885
      %v4987 = vmul.f32 %v4886, %v4886
      %v4988 = vmul.f32 %v4887, %v4887
      %v4989 = vmul.f32 %v4888, %v4888
      %v4990 = vmul.f32 %v4889, %v4889
      %v4991 = vmul.f32 %v4890, %v4890
      %v4992 = vmul.f32 %v4891, %v4891
      %v4993 = vmul.f32 %v4892, %v4892
      %v4994 = vmul.f32 %v4893, %v4893
      %v4995 = vmul.f32 %v4894, %v4894
      %v4996 = vmul.f32 %v4895, %v4895
      %v4997 = vmul.f32 %v4896, %v4896
      %v4998 = vmul.f32 %v4897, %v4897
      %v4999 = vmul.f32 %v4898, %v4898
      %v5000 = vmul.f32 %v4899, %v4899
      %v5001 = vmul.f32 %v4900, %v4900
      %v5002 = vmul.f32 %v4901, %v4901
      %v5003 = vmul.f32 %v4902, %v4902
      %v5004 = vadd.f32 %v4972, %v4973
      %v5005 = vadd.f32 %v5004, %v4974
      %v5006 = vadd.f32 %v5005, %v4975
      %v5007 = vadd.f32 %v5006, %v4976
      %v5008 = vadd.f32 %v5007, %v4977
      %v5009 = vadd.f32 %v5008, %v4978
      %v5010 = vadd.f32 %v5009, %v4979
      %v5011 = vadd.f32 %v5010, %v4980
      %v5012 = vadd.f32 %v5011, %v4981
      %v5013 = vadd.f32 %v5012, %v4982
      %v5014 = vadd.f32 %v5013, %v4983
      %v5015 = vadd.f32 %v5014, %v4984
      %v5016 = vadd.f32 %v5015, %v4985
      %v5017 = vadd.f32 %v5016, %v4986
      %v5018 = vadd.f32 %v5017, %v4987
      %v5019 = vadd.f32 %v5018, %v4988
      %v5020 = vadd.f32 %v5019, %v4989
      %v5021 = vadd.f32 %v5020, %v4990
      %v5022 = vadd.f32 %v5021, %v4991
      %v5023 = vadd.f32 %v5022, %v4992
      %v5024 = vadd.f32 %v5023, %v4993
      %v5025 = vadd.f32 %v5024, %v4994
      %v5026 = vadd.f32 %v5025, %v4995
      %v5027 = vadd.f32 %v5026, %v4996
      %v5028 = vadd.f32 %v5027, %v4997
      %v5029 = vadd.f32 %v5028, %v4998
      %v5030 = vadd.f32 %v5029, %v4999
      %v5031 = vadd.f32 %v5030, %v5000
      %v5032 = vadd.f32 %v5031, %v5001
      %v5033 = vadd.f32 %v5032, %v5002
      %v5034 = vadd.f32 %v5033, %v5003
      %v5035 = vrot.slane %v5034, 4
      %v5036 = vadd.f32 %v5034, %v5035
      %v5037 = vrot.slane %v5036, 2
      %v5038 = vadd.f32 %v5036, %v5037
      %v5039 = vrot.slane %v5038, 1
      %v5040 = vadd.f32 %v5038, %v5039
      %vm5041 = vcmask 1040384
      %v5042 = vsel %vm5041, %v4971, %v5040
      %5043 = vst [vmem:[%s243] sm:$0x3] %v5042
      %s5044 = smul.u32 8, %s21
      %p5045 = scmp.lt.s32.totalorder %s20, 1
      %s5046 = scalar_select %p5045, %s20, 1
      %p5047 = scmp.lt.s32.totalorder %s5044, 31
      %s5048 = scalar_select %p5047, %s5044, 31
      %s5049 = smul.addr %s5048, 4
      %s5050 = smul.addr %s5046, 128
      %s5051 = sadd.s32 %s5049, %s5050
      %s5052 = smul.addr %s5051, 8
      %s5053 = scalar_lea.vmem %s3, %s5052
      %p5054 = scmp.lt.s32.totalorder %s20, 1
      %s5055 = scalar_select %p5054, %s20, 1
      %p5056 = scmp.lt.s32.totalorder %s21, 3
      %s5057 = scalar_select %p5056, %s21, 3
      %s5058 = smul.addr %s5055, 4
      %s5059 = sadd.s32 %s5057, %s5058
      %s5060 = smul.addr %s5059, 2
      %s5061 = scalar_lea.vmem %s4, %s5060
      // Predicated region
      $region33: #{decoder_block_forward.8} parent=31 // pred_check
        %p5062 = pneg %p116
      $region34: #{decoder_block_forward.8} parent=31 // pred_check_branch
        %5064 = sbr.rel (%p5062) target = $region36
      $region35: #{decoder_block_forward.8} parent=31 // pred_region
        %s5065 = smul.u32 8, %s21
      $region36: #{decoder_block_forward.8} parent=31 // pred_fallthru
        _
      // Predicated region
      $region37: #{decoder_block_forward.8} parent=31 // pred_check
        %p5066 = pneg %p144
      $region38: #{decoder_block_forward.8} parent=31 // pred_check_branch
        %5068 = sbr.rel (%p5066) target = $region40
      $region39: #{decoder_block_forward.8} parent=31 // pred_region
        _
      $region40: #{decoder_block_forward.8} parent=31 // pred_fallthru
        _
    $region32: #{decoder_block_forward.8} parent=5 // pred_fallthru
      _
    %p5069 = scmp.le.s32.totalorder 2, %s11
    // Predicated region
    $region41: #{decoder_block_forward.8} parent=5 // pred_check
      %p5070 = pneg %p5069
    $region42: #{decoder_block_forward.8} parent=5 // pred_check_branch
      %5072 = sbr.rel (%p5070) target = $region44
    $region43: #{decoder_block_forward.8} parent=5 // pred_region
      %s5073 = ssub.s32 %s11, 2
      // Predicated region
      $region45: #{decoder_block_forward.8} parent=43 // pred_check
        %p5074 = pneg %p122
      $region46: #{decoder_block_forward.8} parent=43 // pred_check_branch
        %5076 = sbr.rel (%p5074) target = $region48
      $region47: #{decoder_block_forward.8} parent=43 // pred_region
        %s5077 = smul.u32 8, %s23
        %p5078 = scmp.lt.s32.totalorder %s22, 1
        %s5079 = scalar_select %p5078, %s22, 1
        %p5080 = scmp.lt.s32.totalorder %s5077, 31
        %s5081 = scalar_select %p5080, %s5077, 31
        %s5082 = smul.addr %s5081, 4
        %s5083 = smul.addr %s5079, 128
        %s5084 = sadd.s32 %s5082, %s5083
        %s5085 = smul.addr %s5084, 8
        %s5086 = scalar_lea.vmem %s3, %s5085
      $region48: #{decoder_block_forward.8} parent=43 // pred_fallthru
        _
      // Predicated region
      $region49: #{decoder_block_forward.8} parent=43 // pred_check
        %p5087 = pneg %p150
      $region50: #{decoder_block_forward.8} parent=43 // pred_check_branch
        %5089 = sbr.rel (%p5087) target = $region52
      $region51: #{decoder_block_forward.8} parent=43 // pred_region
        %p5090 = scmp.lt.s32.totalorder %s22, 1
        %s5091 = scalar_select %p5090, %s22, 1
        %p5092 = scmp.lt.s32.totalorder %s23, 3
        %s5093 = scalar_select %p5092, %s23, 3
        %s5094 = smul.addr %s5091, 4
        %s5095 = sadd.s32 %s5093, %s5094
        %s5096 = smul.addr %s5095, 2
        %s5097 = scalar_lea.vmem %s4, %s5096
      $region52: #{decoder_block_forward.8} parent=43 // pred_fallthru
        _
    $region44: #{decoder_block_forward.8} parent=5 // pred_fallthru
      _
  $region6: #{decoder_block_forward.8} parent=0 // loop_footer
    %s15 = sadd.s32 1, %s11
  $region7: #{decoder_block_forward.8} parent=0 // loop_footer_branch
    %10 = sbr.rel target = $region3
  $region8: #{decoder_block_forward.8} parent=0 // loop_exit
    _

</llo_original>
